<compile_context>
chip_gen: v5e
topology: v5e:2x2
jax: 0.10.0
libtpu: 0.0.40
codegen_flags: <defaults>
</compile_context>

<pallas_src>
import functools

import jax
import jax.numpy as jnp
from jax.experimental import pallas as pl
from jax.experimental.pallas import tpu as pltpu

F_IN = 7618                      # first Linear's in_features (fixed by module)
H1, H2, H3, OUT = 1024, 256, 32, 2
TK = 1920                        # K-tile for the big first matmul (4 steps)
F_PAD = ((F_IN + TK - 1) // TK) * TK   # 7680, zero-padded feature dim


def _mlp_kernel(x_ref, w1_ref, b1_ref, w2_ref, b2_ref, w3_ref, b3_ref,
                w4_ref, b4_ref, o_ref, h1_acc):
    """Grid axis 0 iterates over K-chunks of the (B, 7680) @ (7680, 1024) matmul.

    The first-layer product is accumulated in a VMEM f32 scratch; on the final
    K-step the remaining (tiny) layers + softmax run entirely in VMEM.
    """
    k = pl.program_id(0)

    @pl.when(k == 0)
    def _():
        h1_acc[...] = jnp.zeros_like(h1_acc)

    # Hot path: bf16 x bf16 matmul chunk on the MXU, f32 accumulation.
    h1_acc[...] += jnp.dot(x_ref[...], w1_ref[...],
                           preferred_element_type=jnp.float32)

    @pl.when(k == pl.num_programs(0) - 1)
    def _():
        h1 = jnp.maximum(h1_acc[...] + b1_ref[...], 0.0)        # ReLU (Dropout = id)
        h2 = jnp.dot(h1, w2_ref[...], preferred_element_type=jnp.float32)
        h2 = jnp.maximum(h2 + b2_ref[...], 0.0)                  # ReLU (Dropout = id)
        h3 = jnp.dot(h2, w3_ref[...], preferred_element_type=jnp.float32)
        h3 = jnp.maximum(h3 + b3_ref[...], 0.0)                  # ReLU (Dropout = id)
        logits = jnp.dot(h3, w4_ref[...],
                         preferred_element_type=jnp.float32) + b4_ref[...]
        # Softmax over dim=1 (numerically stable).
        m = jnp.max(logits, axis=1, keepdims=True)
        e = jnp.exp(logits - m)
        o_ref[...] = (e / jnp.sum(e, axis=1, keepdims=True)).astype(o_ref.dtype)


def prepare_params(params):
    """One-shot parameter prep: pad + bf16-cast W1, reshape biases.

    Do this once and reuse the result across forward calls — this is where the
    ~31 MB pad/copy of W1 used to happen on every call.
    """
    w1, b1, w2, b2, w3, b3, w4, b4 = params
    w1_p = jnp.pad(w1, ((0, F_PAD - F_IN), (0, 0))).astype(jnp.bfloat16)
    return (w1_p, b1.reshape(1, H1).astype(jnp.float32),
            w2.astype(jnp.float32), b2.reshape(1, H2).astype(jnp.float32),
            w3.astype(jnp.float32), b3.reshape(1, H3).astype(jnp.float32),
            w4.astype(jnp.float32), b4.reshape(1, OUT).astype(jnp.float32))


@jax.jit
def dnn_forward(x, prepped):
    """x: (B, 7618) float32. prepped: output of prepare_params().
    Returns softmax probabilities (B, 2) float32."""
    w1_p, b1, w2, b2, w3, b3, w4, b4 = prepped
    B = x.shape[0]
    x = x.reshape(B, -1)                                     # inputs.view(B, -1)
    assert x.shape[1] == F_IN

    # Cheap: pad the (small) activation to F_PAD and cast to bf16 in the
    # wrapper (zeros contribute nothing to the matmul).
    x_p = jnp.pad(x.astype(jnp.bfloat16), ((0, 0), (0, F_PAD - F_IN)))

    n_k = F_PAD // TK                                        # = 4 grid steps
    grid_spec = pltpu.PrefetchScalarGridSpec(
        num_scalar_prefetch=0,
        grid=(n_k,),
        in_specs=[
            pl.BlockSpec((B, TK), lambda k: (0, k)),          # x chunk   (bf16)
            pl.BlockSpec((TK, H1), lambda k: (k, 0)),         # W1 chunk  (bf16)
            pl.BlockSpec((1, H1), lambda k: (0, 0)),          # b1
            pl.BlockSpec((H1, H2), lambda k: (0, 0)),         # W2 (resident)
            pl.BlockSpec((1, H2), lambda k: (0, 0)),          # b2
            pl.BlockSpec((H2, H3), lambda k: (0, 0)),         # W3 (resident)
            pl.BlockSpec((1, H3), lambda k: (0, 0)),          # b3
            pl.BlockSpec((H3, OUT), lambda k: (0, 0)),        # W4 (resident)
            pl.BlockSpec((1, OUT), lambda k: (0, 0)),         # b4
        ],
        out_specs=pl.BlockSpec((B, OUT), lambda k: (0, 0)),
        scratch_shapes=[pltpu.VMEM((B, H1), jnp.float32)],    # h1 accumulator
    )
    # VMEM budget: 2 x W1 tile (2 x 3.75 MiB bf16) + 2 x x tile (~60 KiB)
    # + resident W2/W3/W4/biases (~2.1 MiB double-buffered) + h1_acc (32 KiB)
    # ≈ 10 MiB; 32 MiB gives ample headroom on v5e/v6e/v7x.
    return pl.pallas_call(
        _mlp_kernel,
        out_shape=jax.ShapeDtypeStruct((B, OUT), jnp.float32),
        grid_spec=grid_spec,
        compiler_params=pltpu.CompilerParams(
            dimension_semantics=("arbitrary",),               # pure K reduction
            vmem_limit_bytes=32 * 1024 * 1024),
    )(x_p, w1_p, b1, w2, b2, w3, b3, w4, b4)


def init_params(key):
    """Deterministic Kaiming-uniform-ish init matching nn.Linear shapes."""
    def linear(k, fan_in, fan_out):
        kw, kb = jax.random.split(k)
        bound = 1.0 / jnp.sqrt(fan_in)
        w = jax.random.uniform(kw, (fan_in, fan_out), jnp.float32, -bound, bound)
        b = jax.random.uniform(kb, (fan_out,), jnp.float32, -bound, bound)
        return w, b

    k1, k2, k3, k4 = jax.random.split(key, 4)
    w1, b1 = linear(k1, F_IN, H1)
    w2, b2 = linear(k2, H1, H2)
    w3, b3 = linear(k3, H2, H3)
    w4, b4 = linear(k4, H3, OUT)
    return (w1, b1, w2, b2, w3, b3, w4, b4)


def reference_forward(x, params, first_layer_dtype=jnp.float32):
    """Plain-JAX reference of the same forward pass (eval-mode dropout)."""
    w1, b1, w2, b2, w3, b3, w4, b4 = params
    h = jnp.dot(x.astype(first_layer_dtype), w1.astype(first_layer_dtype),
                preferred_element_type=jnp.float32) + b1
    h = jnp.maximum(h, 0.0)
    h = jnp.maximum(h @ w2 + b2, 0.0)
    h = jnp.maximum(h @ w3 + b3, 0.0)
    logits = h @ w4 + b4
    return jax.nn.softmax(logits, axis=1)


if __name__ == "__main__":
    key = jax.random.PRNGKey(0)
    kx, kp = jax.random.split(key)
    B = 8
    x = jax.random.normal(kx, (B, F_IN), dtype=jnp.float32)
    params = init_params(kp)

    prepped = prepare_params(params)          # one-time weight prep (pad + bf16)
    out = dnn_forward(x, prepped)
    out = jax.block_until_ready(out)

    assert out.shape == (B, OUT)
    # Apples-to-apples reference: first layer in bf16 (same precision as kernel).
    ref_bf16 = reference_forward(x, params, first_layer_dtype=jnp.bfloat16)
    assert jnp.allclose(out, ref_bf16, atol=2e-3, rtol=2e-3), \
        "mismatch vs bf16-first-layer reference"
    # Sanity vs full-f32 reference (loose tolerance for bf16 weight storage).
    ref_f32 = reference_forward(x, params)
    assert jnp.allclose(out, ref_f32, atol=5e-2), "mismatch vs f32 reference"
    assert jnp.allclose(jnp.sum(out, axis=1), 1.0, atol=1e-5), \
        "softmax rows must sum to 1"

    print("KERNEL_OK")
</pallas_src>

<mosaic_0001>
module attributes {stable_mosaic.version = 11 : i64} {
  func.func @_mlp_kernel(%arg0: i32, %arg1: memref<8x1920xbf16, #tpu.memory_space<vmem>>, %arg2: memref<1920x1024xbf16, #tpu.memory_space<vmem>>, %arg3: memref<1x1024xf32, #tpu.memory_space<vmem>>, %arg4: memref<1024x256xf32, #tpu.memory_space<vmem>>, %arg5: memref<1x256xf32, #tpu.memory_space<vmem>>, %arg6: memref<256x32xf32, #tpu.memory_space<vmem>>, %arg7: memref<1x32xf32, #tpu.memory_space<vmem>>, %arg8: memref<32x2xf32, #tpu.memory_space<vmem>>, %arg9: memref<1x2xf32, #tpu.memory_space<vmem>>, %arg10: memref<8x2xf32, #tpu.memory_space<vmem>>, %arg11: memref<8x1024xf32, #tpu.memory_space<vmem>>) attributes {dimension_semantics = [#tpu.dimension_semantics<arbitrary>], iteration_bounds = array<i64: 4>, scalar_prefetch = 0 : i64, scratch_operands = 1 : i64, tpu.core_type = #tpu.core_type<tc>, window_params = [{transform_indices = @transform_0, window_bounds = array<i64: 8, 1920>}, {transform_indices = @transform_1, window_bounds = array<i64: 1920, 1024>}, {pipeline_mode = #tpu.pipeline_mode<synchronous>, transform_indices = @transform_2, window_bounds = array<i64: 1, 1024>}, {pipeline_mode = #tpu.pipeline_mode<synchronous>, transform_indices = @transform_3, window_bounds = array<i64: 1024, 256>}, {pipeline_mode = #tpu.pipeline_mode<synchronous>, transform_indices = @transform_4, window_bounds = array<i64: 1, 256>}, {pipeline_mode = #tpu.pipeline_mode<synchronous>, transform_indices = @transform_5, window_bounds = array<i64: 256, 32>}, {pipeline_mode = #tpu.pipeline_mode<synchronous>, transform_indices = @transform_6, window_bounds = array<i64: 1, 32>}, {pipeline_mode = #tpu.pipeline_mode<synchronous>, transform_indices = @transform_7, window_bounds = array<i64: 32, 2>}, {pipeline_mode = #tpu.pipeline_mode<synchronous>, transform_indices = @transform_8, window_bounds = array<i64: 1, 2>}, {pipeline_mode = #tpu.pipeline_mode<synchronous>, transform_indices = @transform_9, window_bounds = array<i64: 8, 2>}]} {
    %c0_i32 = arith.constant 0 : i32
    %0 = arith.cmpi eq, %arg0, %c0_i32 : i32
    %1 = arith.extui %0 : i1 to i32
    %c0_i32_0 = arith.constant 0 : i32
    %2 = arith.cmpi ne, %1, %c0_i32_0 : i32
    scf.if %2 {
      %cst_9 = arith.constant 0.000000e+00 : f32
      %12 = vector.broadcast %cst_9 : f32 to vector<8x1024xf32>
      %c0_10 = arith.constant 0 : index
      %c0_11 = arith.constant 0 : index
      %13 = vector.load %arg11[%c0_10, %c0_11] : memref<8x1024xf32, #tpu.memory_space<vmem>>, vector<8x1024xf32>
      tpu.vector_store %arg11[%c0_10, %c0_11], %12 {strides = array<i32>} : memref<8x1024xf32, #tpu.memory_space<vmem>>, vector<8x1024xf32>,
    } else {
    }
    %c0 = arith.constant 0 : index
    %c0_1 = arith.constant 0 : index
    %3 = vector.load %arg11[%c0, %c0_1] : memref<8x1024xf32, #tpu.memory_space<vmem>>, vector<8x1024xf32>
    %c0_2 = arith.constant 0 : index
    %c0_3 = arith.constant 0 : index
    %4 = vector.load %arg1[%c0_2, %c0_3] : memref<8x1920xbf16, #tpu.memory_space<vmem>>, vector<8x1920xbf16>
    %c0_4 = arith.constant 0 : index
    %c0_5 = arith.constant 0 : index
    %5 = vector.load %arg2[%c0_4, %c0_5] : memref<1920x1024xbf16, #tpu.memory_space<vmem>>, vector<1920x1024xbf16>
    %cst = arith.constant dense<0.000000e+00> : vector<8x1024xf32>
    %6 = tpu.matmul %4, %5, %cst {dimension_numbers = #tpu.dot_dimension_numbers<[1], [0], [0], [1], [0, 0, 1, 1], [], []>} : vector<8x1920xbf16>, vector<1920x1024xbf16>, vector<8x1024xf32> -> vector<8x1024xf32>
    %7 = arith.addf %3, %6 : vector<8x1024xf32>
    %c0_6 = arith.constant 0 : index
    %c0_7 = arith.constant 0 : index
    %8 = vector.load %arg11[%c0_6, %c0_7] : memref<8x1024xf32, #tpu.memory_space<vmem>>, vector<8x1024xf32>
    tpu.vector_store %arg11[%c0_6, %c0_7], %7 {strides = array<i32>} : memref<8x1024xf32, #tpu.memory_space<vmem>>, vector<8x1024xf32>,
    %c3_i32 = arith.constant 3 : i32
    %9 = arith.cmpi eq, %arg0, %c3_i32 : i32
    %10 = arith.extui %9 : i1 to i32
    %c0_i32_8 = arith.constant 0 : i32
    %11 = arith.cmpi ne, %10, %c0_i32_8 : i32
    scf.if %11 {
      %c0_9 = arith.constant 0 : index
      %c0_10 = arith.constant 0 : index
      %12 = vector.load %arg11[%c0_9, %c0_10] : memref<8x1024xf32, #tpu.memory_space<vmem>>, vector<8x1024xf32>
      %c0_11 = arith.constant 0 : index
      %c0_12 = arith.constant 0 : index
      %13 = vector.load %arg3[%c0_11, %c0_12] : memref<1x1024xf32, #tpu.memory_space<vmem>>, vector<1x1024xf32>
      %14 = vector.broadcast %13 : vector<1x1024xf32> to vector<8x1024xf32>
      %15 = arith.addf %12, %14 : vector<8x1024xf32>
      %cst_13 = arith.constant 0.000000e+00 : f32
      %16 = vector.broadcast %cst_13 : f32 to vector<8x1024xf32>
      %17 = arith.maximumf %15, %16 : vector<8x1024xf32>
      %c0_14 = arith.constant 0 : index
      %c0_15 = arith.constant 0 : index
      %18 = vector.load %arg4[%c0_14, %c0_15] : memref<1024x256xf32, #tpu.memory_space<vmem>>, vector<1024x256xf32>
      %cst_16 = arith.constant dense<0.000000e+00> : vector<8x256xf32>
      %19 = tpu.matmul %17, %18, %cst_16 {dimension_numbers = #tpu.dot_dimension_numbers<[1], [0], [0], [1], [0, 0, 1, 1], [], []>} : vector<8x1024xf32>, vector<1024x256xf32>, vector<8x256xf32> -> vector<8x256xf32>
      %c0_17 = arith.constant 0 : index
      %c0_18 = arith.constant 0 : index
      %20 = vector.load %arg5[%c0_17, %c0_18] : memref<1x256xf32, #tpu.memory_space<vmem>>, vector<1x256xf32>
      %21 = vector.broadcast %20 : vector<1x256xf32> to vector<8x256xf32>
      %22 = arith.addf %19, %21 : vector<8x256xf32>
      %cst_19 = arith.constant 0.000000e+00 : f32
      %23 = vector.broadcast %cst_19 : f32 to vector<8x256xf32>
      %24 = arith.maximumf %22, %23 : vector<8x256xf32>
      %c0_20 = arith.constant 0 : index
      %c0_21 = arith.constant 0 : index
      %25 = vector.load %arg6[%c0_20, %c0_21] : memref<256x32xf32, #tpu.memory_space<vmem>>, vector<256x32xf32>
      %cst_22 = arith.constant dense<0.000000e+00> : vector<8x32xf32>
      %26 = tpu.matmul %24, %25, %cst_22 {dimension_numbers = #tpu.dot_dimension_numbers<[1], [0], [0], [1], [0, 0, 1, 1], [], []>} : vector<8x256xf32>, vector<256x32xf32>, vector<8x32xf32> -> vector<8x32xf32>
      %c0_23 = arith.constant 0 : index
      %c0_24 = arith.constant 0 : index
      %27 = vector.load %arg7[%c0_23, %c0_24] : memref<1x32xf32, #tpu.memory_space<vmem>>, vector<1x32xf32>
      %28 = vector.broadcast %27 : vector<1x32xf32> to vector<8x32xf32>
      %29 = arith.addf %26, %28 : vector<8x32xf32>
      %cst_25 = arith.constant 0.000000e+00 : f32
      %30 = vector.broadcast %cst_25 : f32 to vector<8x32xf32>
      %31 = arith.maximumf %29, %30 : vector<8x32xf32>
      %c0_26 = arith.constant 0 : index
      %c0_27 = arith.constant 0 : index
      %32 = vector.load %arg8[%c0_26, %c0_27] : memref<32x2xf32, #tpu.memory_space<vmem>>, vector<32x2xf32>
      %cst_28 = arith.constant dense<0.000000e+00> : vector<8x2xf32>
      %33 = tpu.matmul %31, %32, %cst_28 {dimension_numbers = #tpu.dot_dimension_numbers<[1], [0], [0], [1], [0, 0, 1, 1], [], []>} : vector<8x32xf32>, vector<32x2xf32>, vector<8x2xf32> -> vector<8x2xf32>
      %c0_29 = arith.constant 0 : index
      %c0_30 = arith.constant 0 : index
      %34 = vector.load %arg9[%c0_29, %c0_30] : memref<1x2xf32, #tpu.memory_space<vmem>>, vector<1x2xf32>
      %35 = vector.broadcast %34 : vector<1x2xf32> to vector<8x2xf32>
      %36 = arith.addf %33, %35 : vector<8x2xf32>
      %cst_31 = arith.constant dense<0xFF800000> : vector<8xf32>
      %37 = vector.multi_reduction <maximumf>, %36, %cst_31 [1] : vector<8x2xf32> to vector<8xf32>
      %38 = vector.shape_cast %37 : vector<8xf32> to vector<8x1xf32>
      %39 = vector.broadcast %38 : vector<8x1xf32> to vector<8x2xf32>
      %40 = arith.subf %36, %39 : vector<8x2xf32>
      %41 = math.exp %40 : vector<8x2xf32>
      %cst_32 = arith.constant dense<0.000000e+00> : vector<8xf32>
      %42 = vector.multi_reduction <add>, %41, %cst_32 [1] : vector<8x2xf32> to vector<8xf32>
      %43 = vector.shape_cast %42 : vector<8xf32> to vector<8x1xf32>
      %44 = vector.broadcast %43 : vector<8x1xf32> to vector<8x2xf32>
      %45 = arith.divf %41, %44 : vector<8x2xf32>
      %c0_33 = arith.constant 0 : index
      %c0_34 = arith.constant 0 : index
      %46 = vector.load %arg10[%c0_33, %c0_34] : memref<8x2xf32, #tpu.memory_space<vmem>>, vector<8x2xf32>
      tpu.vector_store %arg10[%c0_33, %c0_34], %45 {strides = array<i32>} : memref<8x2xf32, #tpu.memory_space<vmem>>, vector<8x2xf32>,
    } else {
    }
    return
  }
  func.func @transform_0(%arg0: i32) -> (i32, i32) {
    %c0_i32 = arith.constant 0 : i32
    %c0_i32_0 = arith.constant 0 : i32
    return %c0_i32, %arg0 : i32, i32
  }
  func.func @transform_1(%arg0: i32) -> (i32, i32) {
    %c0_i32 = arith.constant 0 : i32
    %c0_i32_0 = arith.constant 0 : i32
    return %arg0, %c0_i32 : i32, i32
  }
  func.func @transform_2(%arg0: i32) -> (i32, i32) {
    %c0_i32 = arith.constant 0 : i32
    %c0_i32_0 = arith.constant 0 : i32
    %c0_i32_1 = arith.constant 0 : i32
    return %c0_i32, %c0_i32_0 : i32, i32
  }
  func.func @transform_3(%arg0: i32) -> (i32, i32) {
    %c0_i32 = arith.constant 0 : i32
    %c0_i32_0 = arith.constant 0 : i32
    %c0_i32_1 = arith.constant 0 : i32
    return %c0_i32, %c0_i32_0 : i32, i32
  }
  func.func @transform_4(%arg0: i32) -> (i32, i32) {
    %c0_i32 = arith.constant 0 : i32
    %c0_i32_0 = arith.constant 0 : i32
    %c0_i32_1 = arith.constant 0 : i32
    return %c0_i32, %c0_i32_0 : i32, i32
  }
  func.func @transform_5(%arg0: i32) -> (i32, i32) {
    %c0_i32 = arith.constant 0 : i32
    %c0_i32_0 = arith.constant 0 : i32
    %c0_i32_1 = arith.constant 0 : i32
    return %c0_i32, %c0_i32_0 : i32, i32
  }
  func.func @transform_6(%arg0: i32) -> (i32, i32) {
    %c0_i32 = arith.constant 0 : i32
    %c0_i32_0 = arith.constant 0 : i32
    %c0_i32_1 = arith.constant 0 : i32
    return %c0_i32, %c0_i32_0 : i32, i32
  }
  func.func @transform_7(%arg0: i32) -> (i32, i32) {
    %c0_i32 = arith.constant 0 : i32
    %c0_i32_0 = arith.constant 0 : i32
    %c0_i32_1 = arith.constant 0 : i32
    return %c0_i32, %c0_i32_0 : i32, i32
  }
  func.func @transform_8(%arg0: i32) -> (i32, i32) {
    %c0_i32 = arith.constant 0 : i32
    %c0_i32_0 = arith.constant 0 : i32
    %c0_i32_1 = arith.constant 0 : i32
    return %c0_i32, %c0_i32_0 : i32, i32
  }
  func.func @transform_9(%arg0: i32) -> (i32, i32) {
    %c0_i32 = arith.constant 0 : i32
    %c0_i32_0 = arith.constant 0 : i32
    %c0_i32_1 = arith.constant 0 : i32
    return %c0_i32, %c0_i32_0 : i32, i32
  }
}

</mosaic_0001>

<llo_original>
// kernel: dnn_forward.1
$region0: #{dnn_forward.1}
  #allocation0 [shape = 'u32[]', space=smem, size = 0x4, offset = 0x4, fixed_abs, tag = 'smem constant byte address 0x4 - core index']
  #allocation1 [shape = 'u32[72,128]{1,0:T(1,128)}', space=vmem, size = 0x9000, scoped, tag = 'internal scratch']
  #allocation2 [shape = 'f32[8,1024]{1,0:T(8,128)}', space=vmem, size = 0x8000, scoped, tag = 'scratch operand']
  %s0 = inlined_call_operand.vmem [shape: bf16[8,7680], index: 0, kind: input, shape index: {}]
  %s1 = inlined_call_operand.hbm [shape: bf16[7680,1024], index: 1, kind: input, shape index: {}]
  %s2 = inlined_call_operand.hbm [shape: f32[1,1024], index: 2, kind: input, shape index: {}]
  %s3 = inlined_call_operand.hbm [shape: f32[1024,256], index: 3, kind: input, shape index: {}]
  %s4 = inlined_call_operand.hbm [shape: f32[1,256], index: 4, kind: input, shape index: {}]
  %s5 = inlined_call_operand.vmem [shape: f32[256,32], index: 5, kind: input, shape index: {}]
  %s6 = inlined_call_operand.hbm [shape: f32[1,32], index: 6, kind: input, shape index: {}]
  %s7 = inlined_call_operand.vmem [shape: f32[32,2], index: 7, kind: input, shape index: {}]
  %s8 = inlined_call_operand.hbm [shape: f32[1,2], index: 8, kind: input, shape index: {}]
  %s9 = inlined_call_operand.vmem [shape: f32[8,2], index: 9, kind: output, shape index: {}]
  %s10 = sld [smem:[#allocation0]]
  $region101: #{dnn_forward.1} parent=0
    _
  %s12 = ssub.s32 1, %s10
  %s13 = scalar_select 0, %s12, %s10
  $region1: #{dnn_forward.1} parent=0
    #allocation3 [shape = 'u8[7864320]{0}', space=vmem, size = 0x780000, scoped, tag = 'input window, operand 1']
    #allocation4 [shape = 's32[2]{0}', space=sflag, size = 0x8, scoped, tag = 'scoped memory for dnn_forward.1']
    #allocation5 [shape = 'u8[4096]{0}', space=vmem, size = 0x1000, scoped, tag = 'input window, operand 2, single buffered']
    #allocation6 [shape = 's32[1]{0}', space=sflag, size = 0x4, scoped, tag = 'scoped memory for dnn_forward.1']
    #allocation7 [shape = 'u8[1048576]{0}', space=vmem, size = 0x100000, scoped, tag = 'input window, operand 3, single buffered']
    #allocation8 [shape = 'u8[1024]{0}', space=vmem, size = 0x400, scoped, tag = 'input window, operand 4, single buffered']
    #allocation9 [shape = 's32[1]{0}', space=sflag, size = 0x4, scoped, tag = 'scoped memory for dnn_forward.1']
    #allocation10 [shape = 'u8[512]{0}', space=vmem, size = 0x400, scoped, tag = 'input window, operand 6, single buffered']
    #allocation11 [shape = 'u8[512]{0}', space=vmem, size = 0x400, scoped, tag = 'input window, operand 8, single buffered']
    #allocation12 [shape = 's32[1]{0}', space=sflag, size = 0x4, scoped, tag = 'scoped memory for dnn_forward.1']
    %14 = vsyncpa [#allocation4], 0
    %s15 = scalar_lea.sflag [#allocation4], 1
    %16 = vsyncpa %s15, 0
    %17 = vsyncpa [#allocation6], 0
    %18 = vsyncpa [#allocation9], 0
    %19 = vsyncpa [#allocation12], 0
    loop: start=0, step=1, limit=6
    $region2: #{dnn_forward.1} parent=1 // loop_pre_header
      _
    $region3: #{dnn_forward.1} parent=1 // loop_header
      %s21 = sphi 0, %s25
      %p22 = scmp.ge.s32.totalorder %s21, 6
      %s31 = sphi 0, %s33
      %s34 = sphi 0, %s31
      %s35 = sphi 0, %s34
      %s51 = sphi 0, %s35
      %s57 = sphi 0, %s59
      %s60 = sphi 0, %s57
      %s61 = sphi 0, %s60
      %s77 = sphi 0, %s61
      %s81 = sphi 0, %s81
      %s83 = sphi 0, %s81
      %s84 = sphi 0, %s83
      %s98 = sphi 0, %s84
      %s102 = sphi 0, %s102
      %s104 = sphi 0, %s102
      %s105 = sphi 0, %s104
      %s119 = sphi 0, %s105
      %s123 = sphi 0, %s123
      %s125 = sphi 0, %s123
      %s126 = sphi 0, %s125
      %s140 = sphi 0, %s126
      %s144 = sphi 0, %s144
      %s146 = sphi 0, %s144
      %s147 = sphi 0, %s146
      %s161 = sphi 0, %s147
      %s165 = sphi 0, %s165
      %s167 = sphi 0, %s165
      %s168 = sphi 0, %s167
      %s182 = sphi 0, %s168
      %s186 = sphi 0, %s186
      %s188 = sphi 0, %s186
      %s189 = sphi 0, %s188
      %s203 = sphi 0, %s189
      %s207 = sphi 0, %s207
      %s209 = sphi 0, %s207
      %s210 = sphi 0, %s209
      %s224 = sphi 0, %s210
      %s228 = sphi 0, %s228
      %s230 = sphi 0, %s228
      %s231 = sphi 0, %s230
      %s245 = sphi 0, %s231
    $region4: #{dnn_forward.1} parent=1 // loop_header_branch
      %24 = sbr.rel (%p22) target = $region8
    $region5: #{dnn_forward.1} parent=1 // loop_body
      %s26 = ssub.s32 %s21, 1
      %s27 = ssub.s32 %s21, 2
      %s28 = sadd.s32 %s21, 1
      %s29 = ssub.s32 %s21, %s28
      %p30 = scmp.eq.s32.totalorder %s29, 0
      %s32 = sadd.s32 %s31, 1
      %s33 = scalar_select %p30, %s31, %s32
      %p36 = pneg %p30
      %p37 = scmp.eq.s32.totalorder %s21, 3
      %p38 = por %p36, %p37
      %p39 = scmp.ne.s32.totalorder %s31, %s34
      %p40 = scmp.eq.s32.totalorder %s21, 0
      %p41 = por %p39, %p40
      %p42 = scmp.ne.s32.totalorder %s31, %s34
      %p43 = scmp.eq.s32.totalorder %s26, 3
      %p44 = por %p42, %p43
      %p45 = scmp.ne.s32.totalorder %s34, %s35
      %p46 = scmp.eq.s32.totalorder %s26, 0
      %p47 = por %p45, %p46
      %p48 = scmp.ne.s32.totalorder %s34, %s35
      %p49 = scmp.eq.s32.totalorder %s27, 3
      %p50 = por %p48, %p49
      %p52 = scmp.ne.s32.totalorder %s35, %s51
      %p53 = scmp.eq.s32.totalorder %s27, 0
      %p54 = por %p52, %p53
      %s55 = ssub.s32 %s21, %s28
      %p56 = scmp.eq.s32.totalorder %s55, 0
      %s58 = sadd.s32 %s57, 1
      %s59 = scalar_select %p56, %s57, %s58
      %p62 = pneg %p56
      %p63 = scmp.eq.s32.totalorder %s21, 3
      %p64 = por %p62, %p63
      %p65 = scmp.ne.s32.totalorder %s57, %s60
      %p66 = scmp.eq.s32.totalorder %s21, 0
      %p67 = por %p65, %p66
      %p68 = scmp.ne.s32.totalorder %s57, %s60
      %p69 = scmp.eq.s32.totalorder %s26, 3
      %p70 = por %p68, %p69
      %p71 = scmp.ne.s32.totalorder %s60, %s61
      %p72 = scmp.eq.s32.totalorder %s26, 0
      %p73 = por %p71, %p72
      %p74 = scmp.ne.s32.totalorder %s60, %s61
      %p75 = scmp.eq.s32.totalorder %s27, 3
      %p76 = por %p74, %p75
      %p78 = scmp.ne.s32.totalorder %s61, %s77
      %p79 = scmp.eq.s32.totalorder %s27, 0
      %p80 = por %p78, %p79
      %s82 = sadd.s32 %s81, 1
      %p85 = scmp.eq.s32.totalorder %s21, 3
      %p86 = scmp.ne.s32.totalorder %s81, %s83
      %p87 = scmp.eq.s32.totalorder %s21, 0
      %p88 = por %p86, %p87
      %p89 = scmp.ne.s32.totalorder %s81, %s83
      %p90 = scmp.eq.s32.totalorder %s26, 3
      %p91 = por %p89, %p90
      %p92 = scmp.ne.s32.totalorder %s83, %s84
      %p93 = scmp.eq.s32.totalorder %s26, 0
      %p94 = por %p92, %p93
      %p95 = scmp.ne.s32.totalorder %s83, %s84
      %p96 = scmp.eq.s32.totalorder %s27, 3
      %p97 = por %p95, %p96
      %p99 = scmp.ne.s32.totalorder %s84, %s98
      %p100 = scmp.eq.s32.totalorder %s27, 0
      %p101 = por %p99, %p100
      %s103 = sadd.s32 %s102, 1
      %p106 = scmp.eq.s32.totalorder %s21, 3
      %p107 = scmp.ne.s32.totalorder %s102, %s104
      %p108 = scmp.eq.s32.totalorder %s21, 0
      %p109 = por %p107, %p108
      %p110 = scmp.ne.s32.totalorder %s102, %s104
      %p111 = scmp.eq.s32.totalorder %s26, 3
      %p112 = por %p110, %p111
      %p113 = scmp.ne.s32.totalorder %s104, %s105
      %p114 = scmp.eq.s32.totalorder %s26, 0
      %p115 = por %p113, %p114
      %p116 = scmp.ne.s32.totalorder %s104, %s105
      %p117 = scmp.eq.s32.totalorder %s27, 3
      %p118 = por %p116, %p117
      %p120 = scmp.ne.s32.totalorder %s105, %s119
      %p121 = scmp.eq.s32.totalorder %s27, 0
      %p122 = por %p120, %p121
      %s124 = sadd.s32 %s123, 1
      %p127 = scmp.eq.s32.totalorder %s21, 3
      %p128 = scmp.ne.s32.totalorder %s123, %s125
      %p129 = scmp.eq.s32.totalorder %s21, 0
      %p130 = por %p128, %p129
      %p131 = scmp.ne.s32.totalorder %s123, %s125
      %p132 = scmp.eq.s32.totalorder %s26, 3
      %p133 = por %p131, %p132
      %p134 = scmp.ne.s32.totalorder %s125, %s126
      %p135 = scmp.eq.s32.totalorder %s26, 0
      %p136 = por %p134, %p135
      %p137 = scmp.ne.s32.totalorder %s125, %s126
      %p138 = scmp.eq.s32.totalorder %s27, 3
      %p139 = por %p137, %p138
      %p141 = scmp.ne.s32.totalorder %s126, %s140
      %p142 = scmp.eq.s32.totalorder %s27, 0
      %p143 = por %p141, %p142
      %s145 = sadd.s32 %s144, 1
      %p148 = scmp.eq.s32.totalorder %s21, 3
      %p149 = scmp.ne.s32.totalorder %s144, %s146
      %p150 = scmp.eq.s32.totalorder %s21, 0
      %p151 = por %p149, %p150
      %p152 = scmp.ne.s32.totalorder %s144, %s146
      %p153 = scmp.eq.s32.totalorder %s26, 3
      %p154 = por %p152, %p153
      %p155 = scmp.ne.s32.totalorder %s146, %s147
      %p156 = scmp.eq.s32.totalorder %s26, 0
      %p157 = por %p155, %p156
      %p158 = scmp.ne.s32.totalorder %s146, %s147
      %p159 = scmp.eq.s32.totalorder %s27, 3
      %p160 = por %p158, %p159
      %p162 = scmp.ne.s32.totalorder %s147, %s161
      %p163 = scmp.eq.s32.totalorder %s27, 0
      %p164 = por %p162, %p163
      %s166 = sadd.s32 %s165, 1
      %p169 = scmp.eq.s32.totalorder %s21, 3
      %p170 = scmp.ne.s32.totalorder %s165, %s167
      %p171 = scmp.eq.s32.totalorder %s21, 0
      %p172 = por %p170, %p171
      %p173 = scmp.ne.s32.totalorder %s165, %s167
      %p174 = scmp.eq.s32.totalorder %s26, 3
      %p175 = por %p173, %p174
      %p176 = scmp.ne.s32.totalorder %s167, %s168
      %p177 = scmp.eq.s32.totalorder %s26, 0
      %p178 = por %p176, %p177
      %p179 = scmp.ne.s32.totalorder %s167, %s168
      %p180 = scmp.eq.s32.totalorder %s27, 3
      %p181 = por %p179, %p180
      %p183 = scmp.ne.s32.totalorder %s168, %s182
      %p184 = scmp.eq.s32.totalorder %s27, 0
      %p185 = por %p183, %p184
      %s187 = sadd.s32 %s186, 1
      %p190 = scmp.eq.s32.totalorder %s21, 3
      %p191 = scmp.ne.s32.totalorder %s186, %s188
      %p192 = scmp.eq.s32.totalorder %s21, 0
      %p193 = por %p191, %p192
      %p194 = scmp.ne.s32.totalorder %s186, %s188
      %p195 = scmp.eq.s32.totalorder %s26, 3
      %p196 = por %p194, %p195
      %p197 = scmp.ne.s32.totalorder %s188, %s189
      %p198 = scmp.eq.s32.totalorder %s26, 0
      %p199 = por %p197, %p198
      %p200 = scmp.ne.s32.totalorder %s188, %s189
      %p201 = scmp.eq.s32.totalorder %s27, 3
      %p202 = por %p200, %p201
      %p204 = scmp.ne.s32.totalorder %s189, %s203
      %p205 = scmp.eq.s32.totalorder %s27, 0
      %p206 = por %p204, %p205
      %s208 = sadd.s32 %s207, 1
      %p211 = scmp.eq.s32.totalorder %s21, 3
      %p212 = scmp.ne.s32.totalorder %s207, %s209
      %p213 = scmp.eq.s32.totalorder %s21, 0
      %p214 = por %p212, %p213
      %p215 = scmp.ne.s32.totalorder %s207, %s209
      %p216 = scmp.eq.s32.totalorder %s26, 3
      %p217 = por %p215, %p216
      %p218 = scmp.ne.s32.totalorder %s209, %s210
      %p219 = scmp.eq.s32.totalorder %s26, 0
      %p220 = por %p218, %p219
      %p221 = scmp.ne.s32.totalorder %s209, %s210
      %p222 = scmp.eq.s32.totalorder %s27, 3
      %p223 = por %p221, %p222
      %p225 = scmp.ne.s32.totalorder %s210, %s224
      %p226 = scmp.eq.s32.totalorder %s27, 0
      %p227 = por %p225, %p226
      %s229 = sadd.s32 %s228, 1
      %p232 = scmp.eq.s32.totalorder %s21, 3
      %p233 = scmp.ne.s32.totalorder %s228, %s230
      %p234 = scmp.eq.s32.totalorder %s21, 0
      %p235 = por %p233, %p234
      %p236 = scmp.ne.s32.totalorder %s228, %s230
      %p237 = scmp.eq.s32.totalorder %s26, 3
      %p238 = por %p236, %p237
      %p239 = scmp.ne.s32.totalorder %s230, %s231
      %p240 = scmp.eq.s32.totalorder %s26, 0
      %p241 = por %p239, %p240
      %p242 = scmp.ne.s32.totalorder %s230, %s231
      %p243 = scmp.eq.s32.totalorder %s27, 3
      %p244 = por %p242, %p243
      %p246 = scmp.ne.s32.totalorder %s231, %s245
      %p247 = scmp.eq.s32.totalorder %s27, 0
      %p248 = por %p246, %p247
      %p249 = scmp.le.s32.totalorder 1, %s21
      %p250 = scmp.lt.s32.totalorder %s21, 5
      %p251 = pnand %p249, %p250
      %p252 = pneg %p251
      // Predicated region
      $region9: #{dnn_forward.1} parent=5 // pred_check
        _
      $region10: #{dnn_forward.1} parent=5 // pred_check_branch
        %254 = sbr.rel (%p251) target = $region12
      $region11: #{dnn_forward.1} parent=5 // pred_region
        %s255 = ssub.s32 %s21, 1
        // Predicated region
        $region13: #{dnn_forward.1} parent=11 // pred_check
          %p256 = pneg %p94
        $region14: #{dnn_forward.1} parent=11 // pred_check_branch
          %258 = sbr.rel (%p256) target = $region16
        $region15: #{dnn_forward.1} parent=11 // pred_region
          %260 = vsyncadd [#allocation6], 0
          %s262 = sshll.u32 %s2, 4
          %s263 = int_to_ptr.hbm [resolvable:$true] %s262
          %s264 = sshll.u32 [#allocation5], 4
          %s265 = int_to_ptr.vmem [resolvable:$true] %s264
          %267 = dma.hbm_to_vmem [thread:$0]  %s263, 128, %s265, [#allocation6]
        $region16: #{dnn_forward.1} parent=11 // pred_fallthru
          _
        // Predicated region
        $region17: #{dnn_forward.1} parent=11 // pred_check
          %p268 = pneg %p115
        $region18: #{dnn_forward.1} parent=11 // pred_check_branch
          %270 = sbr.rel (%p268) target = $region20
        $region19: #{dnn_forward.1} parent=11 // pred_region
          %272 = vsyncadd [#allocation6], 0
          %s273 = sshll.u32 %s3, 4
          %s274 = int_to_ptr.hbm [resolvable:$true] %s273
          %s275 = sshll.u32 [#allocation7], 4
          %s276 = int_to_ptr.vmem [resolvable:$true] %s275
          %281 = dma.hbm_to_vmem [thread:$0]  %s274, 32768, %s276, [#allocation6], 256, 256, 16
        $region20: #{dnn_forward.1} parent=11 // pred_fallthru
          _
        // Predicated region
        $region21: #{dnn_forward.1} parent=11 // pred_check
          %p282 = pneg %p136
        $region22: #{dnn_forward.1} parent=11 // pred_check_branch
          %284 = sbr.rel (%p282) target = $region24
        $region23: #{dnn_forward.1} parent=11 // pred_region
          %286 = vsyncadd [#allocation9], 0
          %s288 = sshll.u32 %s4, 4
          %s289 = int_to_ptr.hbm [resolvable:$true] %s288
          %s290 = sshll.u32 [#allocation8], 4
          %s291 = int_to_ptr.vmem [resolvable:$true] %s290
          %293 = dma.hbm_to_vmem [thread:$0]  %s289, 32, %s291, [#allocation9]
        $region24: #{dnn_forward.1} parent=11 // pred_fallthru
          _
        // Predicated region
        $region25: #{dnn_forward.1} parent=11 // pred_check
          %p294 = pneg %p157
        $region26: #{dnn_forward.1} parent=11 // pred_check_branch
          %296 = sbr.rel (%p294) target = $region28
        $region27: #{dnn_forward.1} parent=11 // pred_region
          _
        $region28: #{dnn_forward.1} parent=11 // pred_fallthru
          _
        // Predicated region
        $region29: #{dnn_forward.1} parent=11 // pred_check
          %p297 = pneg %p178
        $region30: #{dnn_forward.1} parent=11 // pred_check_branch
          %299 = sbr.rel (%p297) target = $region32
        $region31: #{dnn_forward.1} parent=11 // pred_region
          %301 = vsyncadd [#allocation9], 0
          %s303 = sshll.u32 %s6, 4
          %s304 = int_to_ptr.hbm [resolvable:$true] %s303
          %s305 = sshll.u32 [#allocation10], 4
          %s306 = int_to_ptr.vmem [resolvable:$true] %s305
          %308 = dma.hbm_to_vmem [thread:$0]  %s304, 16, %s306, [#allocation9]
        $region32: #{dnn_forward.1} parent=11 // pred_fallthru
          _
        // Predicated region
        $region33: #{dnn_forward.1} parent=11 // pred_check
          %p309 = pneg %p199
        $region34: #{dnn_forward.1} parent=11 // pred_check_branch
          %311 = sbr.rel (%p309) target = $region36
        $region35: #{dnn_forward.1} parent=11 // pred_region
          _
        $region36: #{dnn_forward.1} parent=11 // pred_fallthru
          _
        // Predicated region
        $region37: #{dnn_forward.1} parent=11 // pred_check
          %p312 = pneg %p220
        $region38: #{dnn_forward.1} parent=11 // pred_check_branch
          %314 = sbr.rel (%p312) target = $region40
        $region39: #{dnn_forward.1} parent=11 // pred_region
          %316 = vsyncadd [#allocation12], 0
          %s318 = sshll.u32 %s8, 4
          %s319 = int_to_ptr.hbm [resolvable:$true] %s318
          %s320 = sshll.u32 [#allocation11], 4
          %s321 = int_to_ptr.vmem [resolvable:$true] %s320
          %323 = dma.hbm_to_vmem [thread:$0]  %s319, 16, %s321, [#allocation12]
        $region40: #{dnn_forward.1} parent=11 // pred_fallthru
          _
      $region12: #{dnn_forward.1} parent=5 // pred_fallthru
        _
      %p324 = scmp.lt.s32.totalorder %s21, 4
      // Predicated region
      $region41: #{dnn_forward.1} parent=5 // pred_check
        %p325 = pneg %p324
      $region42: #{dnn_forward.1} parent=5 // pred_check_branch
        %327 = sbr.rel (%p325) target = $region44
      $region43: #{dnn_forward.1} parent=5 // pred_region
        // Predicated region
        $region45: #{dnn_forward.1} parent=43 // pred_check
          %p328 = pneg %p41
        $region46: #{dnn_forward.1} parent=43 // pred_check_branch
          %330 = sbr.rel (%p328) target = $region48
        $region47: #{dnn_forward.1} parent=43 // pred_region
          %s331 = smul.u32 15, %s21
          %p332 = scmp.lt.s32.totalorder %s331, 59
          %s333 = scalar_select %p332, %s331, 59
          %s334 = smul.addr %s333, 4
          %s335 = scalar_lea.vmem %s0, %s334
          %s336 = smul.u32 15, %s21
        $region48: #{dnn_forward.1} parent=43 // pred_fallthru
          _
        // Predicated region
        $region49: #{dnn_forward.1} parent=43 // pred_check
          %p337 = pneg %p67
        $region50: #{dnn_forward.1} parent=43 // pred_check_branch
          %339 = sbr.rel (%p337) target = $region52
        $region51: #{dnn_forward.1} parent=43 // pred_region
          %s340 = sand.u32 %s57, 1
          %s341 = scalar_lea.sflag [#allocation4], %s340
          %s342 = sand.u32 %s57, 1
          %s343 = smul.addr %s342, 7680
          %s344 = scalar_lea.vmem [#allocation3], %s343
          %s345 = smul.u32 240, %s21
          %347 = vsyncadd %s341, 0
          %s348 = smul.addr %s345, 8
          %s349 = smul.addr %s348, 4
          %s350 = scalar_lea.hbm %s1, %s349
          %s351 = sshll.u32 %s350, 4
          %s352 = int_to_ptr.hbm [resolvable:$true] %s351
          %s353 = sshll.u32 %s344, 4
          %s354 = int_to_ptr.vmem [resolvable:$true] %s353
          %359 = dma.hbm_to_vmem [thread:$0]  %s352, 122880, %s354, %s341, 512, 512, 32
        $region52: #{dnn_forward.1} parent=43 // pred_fallthru
          _
      $region44: #{dnn_forward.1} parent=5 // pred_fallthru
        _
      %p360 = scmp.le.s32.totalorder 1, %s21
      %p361 = scmp.lt.s32.totalorder %s21, 5
      %p362 = pnand %p360, %p361
      %p363 = pneg %p362
      // Predicated region
      $region53: #{dnn_forward.1} parent=5 // pred_check
        _
      $region54: #{dnn_forward.1} parent=5 // pred_check_branch
        %365 = sbr.rel (%p362) target = $region56
      $region55: #{dnn_forward.1} parent=5 // pred_region
        %s366 = ssub.s32 %s21, 1
        %s367 = sand.u32 %s60, 1
        %s368 = scalar_lea.sflag [#allocation4], %s367
        %s369 = sand.u32 %s60, 1
        %s370 = smul.addr %s369, 7680
        %s371 = scalar_lea.vmem [#allocation3], %s370
        // Predicated region
        $region57: #{dnn_forward.1} parent=55 // pred_check
          %p372 = pneg %p73
        $region58: #{dnn_forward.1} parent=55 // pred_check_branch
          %374 = sbr.rel (%p372) target = $region60
        $region59: #{dnn_forward.1} parent=55 // pred_region
          %376 = dma.done %s368, 122880
        $region60: #{dnn_forward.1} parent=55 // pred_fallthru
          _
        // Predicated region
        $region61: #{dnn_forward.1} parent=55 // pred_check
          %p377 = pneg %p94
        $region62: #{dnn_forward.1} parent=55 // pred_check_branch
          %379 = sbr.rel (%p377) target = $region64
        $region63: #{dnn_forward.1} parent=55 // pred_region
          %381 = dma.done [#allocation6], 128
        $region64: #{dnn_forward.1} parent=55 // pred_fallthru
          _
        // Predicated region
        $region65: #{dnn_forward.1} parent=55 // pred_check
          %p382 = pneg %p115
        $region66: #{dnn_forward.1} parent=55 // pred_check_branch
          %384 = sbr.rel (%p382) target = $region68
        $region67: #{dnn_forward.1} parent=55 // pred_region
          %386 = dma.done [#allocation6], 32768
        $region68: #{dnn_forward.1} parent=55 // pred_fallthru
          _
        // Predicated region
        $region69: #{dnn_forward.1} parent=55 // pred_check
          %p387 = pneg %p136
        $region70: #{dnn_forward.1} parent=55 // pred_check_branch
          %389 = sbr.rel (%p387) target = $region72
        $region71: #{dnn_forward.1} parent=55 // pred_region
          %391 = dma.done [#allocation9], 32
        $region72: #{dnn_forward.1} parent=55 // pred_fallthru
          _
        // Predicated region
        $region73: #{dnn_forward.1} parent=55 // pred_check
          %p392 = pneg %p178
        $region74: #{dnn_forward.1} parent=55 // pred_check_branch
          %394 = sbr.rel (%p392) target = $region76
        $region75: #{dnn_forward.1} parent=55 // pred_region
          %396 = dma.done [#allocation9], 16
        $region76: #{dnn_forward.1} parent=55 // pred_fallthru
          _
        // Predicated region
        $region77: #{dnn_forward.1} parent=55 // pred_check
          %p397 = pneg %p220
        $region78: #{dnn_forward.1} parent=55 // pred_check_branch
          %399 = sbr.rel (%p397) target = $region80
        $region79: #{dnn_forward.1} parent=55 // pred_region
          %401 = dma.done [#allocation12], 16
        $region80: #{dnn_forward.1} parent=55 // pred_fallthru
          _
        %s402 = smul.u32 15, %s26
        %p403 = scmp.lt.s32.totalorder %s402, 59
        %s404 = scalar_select %p403, %s402, 59
        %s405 = smul.addr %s404, 4
        %s406 = scalar_lea.vmem %s0, %s405
        %p407 = pneg %p47
        %p408 = pneg %p44
        %s409 = sand.u32 %s60, 1
        %s410 = scalar_lea.sflag [#allocation4], %s409
        %s411 = sand.u32 %s60, 1
        %s412 = smul.addr %s411, 7680
        %s413 = scalar_lea.vmem [#allocation3], %s412
        %p414 = pneg %p73
        %p415 = pneg %p70
        %p416 = pneg %p94
        %p417 = pneg %p91
        %p418 = pneg %p115
        %p419 = pneg %p112
        %p420 = pneg %p136
        %p421 = pneg %p133
        %p422 = pneg %p157
        %p423 = pneg %p154
        %p424 = pneg %p178
        %p425 = pneg %p175
        %p426 = pneg %p199
        %p427 = pneg %p196
        %p428 = pneg %p220
        %p429 = pneg %p217
        %p430 = pneg %p241
        %p431 = pneg %p238
        %s432 = smul.u32 15, %s26
        %p433 = scmp.lt.s32.totalorder %s432, 59
        %s434 = scalar_select %p433, %s432, 59
        %s435 = smul.addr %s434, 4
        %s436 = scalar_lea.vmem %s0, %s435
        %s437 = smul.u32 15, %s26
        %s438 = smul.u32 240, %s26
        %p439 = scmp.eq.s32.totalorder %s26, 0
        // Predicated region
        $region81: #{dnn_forward.1} parent=55 // pred_check
          %p440 = pneg %p439
        $region82: #{dnn_forward.1} parent=55 // pred_check_branch
          %442 = sbr.rel (%p440) target = $region84
        $region83: #{dnn_forward.1} parent=55 // pred_region
          %443 = vst [vmem:[#allocation2] sm:$0xff] 0.0
          %444 = vst [vmem:[#allocation2 + $0x8] sm:$0xff] 0.0
          %445 = vst [vmem:[#allocation2 + $0x10] sm:$0xff] 0.0
          %446 = vst [vmem:[#allocation2 + $0x18] sm:$0xff] 0.0
          %447 = vst [vmem:[#allocation2 + $0x20] sm:$0xff] 0.0
          %448 = vst [vmem:[#allocation2 + $0x28] sm:$0xff] 0.0
          %449 = vst [vmem:[#allocation2 + $0x30] sm:$0xff] 0.0
          %450 = vst [vmem:[#allocation2 + $0x38] sm:$0xff] 0.0
        $region84: #{dnn_forward.1} parent=55 // pred_fallthru
          _
        %v451 = vld [vmem:[#allocation2] sm:$0xff]
        %v452 = vld [vmem:[#allocation2 + $0x8] sm:$0xff]
        %v453 = vld [vmem:[#allocation2 + $0x10] sm:$0xff]
        %v454 = vld [vmem:[#allocation2 + $0x18] sm:$0xff]
        %v455 = vld [vmem:[#allocation2 + $0x20] sm:$0xff]
        %v456 = vld [vmem:[#allocation2 + $0x28] sm:$0xff]
        %v457 = vld [vmem:[#allocation2 + $0x30] sm:$0xff]
        %v458 = vld [vmem:[#allocation2 + $0x38] sm:$0xff]
        %v459 = vld [vmem:[%s436] sm:$0xff]
        %v460 = vld [vmem:[%s436 + $0x8] sm:$0xff]
        %v461 = vld [vmem:[%s436 + $0x10] sm:$0xff]
        %v462 = vld [vmem:[%s436 + $0x18] sm:$0xff]
        %v463 = vld [vmem:[%s436 + $0x20] sm:$0xff]
        %v464 = vld [vmem:[%s436 + $0x28] sm:$0xff]
        %v465 = vld [vmem:[%s436 + $0x30] sm:$0xff]
        %v466 = vld [vmem:[%s436 + $0x38] sm:$0xf]
        %v467 = vld [vmem:[%s371] sm:$0xff]
        %v468 = vld [vmem:[%s371 + $0x8] sm:$0xff]
        %v469 = vld [vmem:[%s371 + $0x10] sm:$0xff]
        %v470 = vld [vmem:[%s371 + $0x18] sm:$0xff]
        %v471 = vld [vmem:[%s371 + $0x20] sm:$0xff]
        %v472 = vld [vmem:[%s371 + $0x28] sm:$0xff]
        %v473 = vld [vmem:[%s371 + $0x30] sm:$0xff]
        %v474 = vld [vmem:[%s371 + $0x38] sm:$0xff]
        %v475 = vld [vmem:[%s371 + $0x40] sm:$0xff]
        %v476 = vld [vmem:[%s371 + $0x48] sm:$0xff]
        %v477 = vld [vmem:[%s371 + $0x50] sm:$0xff]
        %v478 = vld [vmem:[%s371 + $0x58] sm:$0xff]
        %v479 = vld [vmem:[%s371 + $0x60] sm:$0xff]
        %v480 = vld [vmem:[%s371 + $0x68] sm:$0xff]
        %v481 = vld [vmem:[%s371 + $0x70] sm:$0xff]
        %v482 = vld [vmem:[%s371 + $0x78] sm:$0xff]
        %v483 = vld [vmem:[%s371 + $0x80] sm:$0xff]
        %v484 = vld [vmem:[%s371 + $0x88] sm:$0xff]
        %v485 = vld [vmem:[%s371 + $0x90] sm:$0xff]
        %v486 = vld [vmem:[%s371 + $0x98] sm:$0xff]
        %v487 = vld [vmem:[%s371 + $0xa0] sm:$0xff]
        %v488 = vld [vmem:[%s371 + $0xa8] sm:$0xff]
        %v489 = vld [vmem:[%s371 + $0xb0] sm:$0xff]
        %v490 = vld [vmem:[%s371 + $0xb8] sm:$0xff]
        %v491 = vld [vmem:[%s371 + $0xc0] sm:$0xff]
        %v492 = vld [vmem:[%s371 + $0xc8] sm:$0xff]
        %v493 = vld [vmem:[%s371 + $0xd0] sm:$0xff]
        %v494 = vld [vmem:[%s371 + $0xd8] sm:$0xff]
        %v495 = vld [vmem:[%s371 + $0xe0] sm:$0xff]
        %v496 = vld [vmem:[%s371 + $0xe8] sm:$0xff]
        %v497 = vld [vmem:[%s371 + $0xf0] sm:$0xff]
        %v498 = vld [vmem:[%s371 + $0xf8] sm:$0xff]
        %v499 = vld [vmem:[%s371 + $0x100] sm:$0xff]
        %v500 = vld [vmem:[%s371 + $0x108] sm:$0xff]
        %v501 = vld [vmem:[%s371 + $0x110] sm:$0xff]
        %v502 = vld [vmem:[%s371 + $0x118] sm:$0xff]
        %v503 = vld [vmem:[%s371 + $0x120] sm:$0xff]
        %v504 = vld [vmem:[%s371 + $0x128] sm:$0xff]
        %v505 = vld [vmem:[%s371 + $0x130] sm:$0xff]
        %v506 = vld [vmem:[%s371 + $0x138] sm:$0xff]
        %v507 = vld [vmem:[%s371 + $0x140] sm:$0xff]
        %v508 = vld [vmem:[%s371 + $0x148] sm:$0xff]
        %v509 = vld [vmem:[%s371 + $0x150] sm:$0xff]
        %v510 = vld [vmem:[%s371 + $0x158] sm:$0xff]
        %v511 = vld [vmem:[%s371 + $0x160] sm:$0xff]
        %v512 = vld [vmem:[%s371 + $0x168] sm:$0xff]
        %v513 = vld [vmem:[%s371 + $0x170] sm:$0xff]
        %v514 = vld [vmem:[%s371 + $0x178] sm:$0xff]
        %v515 = vld [vmem:[%s371 + $0x180] sm:$0xff]
        %v516 = vld [vmem:[%s371 + $0x188] sm:$0xff]
        %v517 = vld [vmem:[%s371 + $0x190] sm:$0xff]
        %v518 = vld [vmem:[%s371 + $0x198] sm:$0xff]
        %v519 = vld [vmem:[%s371 + $0x1a0] sm:$0xff]
        %v520 = vld [vmem:[%s371 + $0x1a8] sm:$0xff]
        %v521 = vld [vmem:[%s371 + $0x1b0] sm:$0xff]
        %v522 = vld [vmem:[%s371 + $0x1b8] sm:$0xff]
        %v523 = vld [vmem:[%s371 + $0x1c0] sm:$0xff]
        %v524 = vld [vmem:[%s371 + $0x1c8] sm:$0xff]
        %v525 = vld [vmem:[%s371 + $0x1d0] sm:$0xff]
        %v526 = vld [vmem:[%s371 + $0x1d8] sm:$0xff]
        %v527 = vld [vmem:[%s371 + $0x1e0] sm:$0xff]
        %v528 = vld [vmem:[%s371 + $0x1e8] sm:$0xff]
        %v529 = vld [vmem:[%s371 + $0x1f0] sm:$0xff]
        %v530 = vld [vmem:[%s371 + $0x1f8] sm:$0xff]
        %v531 = vld [vmem:[%s371 + $0x200] sm:$0xff]
        %v532 = vld [vmem:[%s371 + $0x208] sm:$0xff]
        %v533 = vld [vmem:[%s371 + $0x210] sm:$0xff]
        %v534 = vld [vmem:[%s371 + $0x218] sm:$0xff]
        %v535 = vld [vmem:[%s371 + $0x220] sm:$0xff]
        %v536 = vld [vmem:[%s371 + $0x228] sm:$0xff]
        %v537 = vld [vmem:[%s371 + $0x230] sm:$0xff]
        %v538 = vld [vmem:[%s371 + $0x238] sm:$0xff]
        %v539 = vld [vmem:[%s371 + $0x240] sm:$0xff]
        %v540 = vld [vmem:[%s371 + $0x248] sm:$0xff]
        %v541 = vld [vmem:[%s371 + $0x250] sm:$0xff]
        %v542 = vld [vmem:[%s371 + $0x258] sm:$0xff]
        %v543 = vld [vmem:[%s371 + $0x260] sm:$0xff]
        %v544 = vld [vmem:[%s371 + $0x268] sm:$0xff]
        %v545 = vld [vmem:[%s371 + $0x270] sm:$0xff]
        %v546 = vld [vmem:[%s371 + $0x278] sm:$0xff]
        %v547 = vld [vmem:[%s371 + $0x280] sm:$0xff]
        %v548 = vld [vmem:[%s371 + $0x288] sm:$0xff]
        %v549 = vld [vmem:[%s371 + $0x290] sm:$0xff]
        %v550 = vld [vmem:[%s371 + $0x298] sm:$0xff]
        %v551 = vld [vmem:[%s371 + $0x2a0] sm:$0xff]
        %v552 = vld [vmem:[%s371 + $0x2a8] sm:$0xff]
        %v553 = vld [vmem:[%s371 + $0x2b0] sm:$0xff]
        %v554 = vld [vmem:[%s371 + $0x2b8] sm:$0xff]
        %v555 = vld [vmem:[%s371 + $0x2c0] sm:$0xff]
        %v556 = vld [vmem:[%s371 + $0x2c8] sm:$0xff]
        %v557 = vld [vmem:[%s371 + $0x2d0] sm:$0xff]
        %v558 = vld [vmem:[%s371 + $0x2d8] sm:$0xff]
        %v559 = vld [vmem:[%s371 + $0x2e0] sm:$0xff]
        %v560 = vld [vmem:[%s371 + $0x2e8] sm:$0xff]
        %v561 = vld [vmem:[%s371 + $0x2f0] sm:$0xff]
        %v562 = vld [vmem:[%s371 + $0x2f8] sm:$0xff]
        %v563 = vld [vmem:[%s371 + $0x300] sm:$0xff]
        %v564 = vld [vmem:[%s371 + $0x308] sm:$0xff]
        %v565 = vld [vmem:[%s371 + $0x310] sm:$0xff]
        %v566 = vld [vmem:[%s371 + $0x318] sm:$0xff]
        %v567 = vld [vmem:[%s371 + $0x320] sm:$0xff]
        %v568 = vld [vmem:[%s371 + $0x328] sm:$0xff]
        %v569 = vld [vmem:[%s371 + $0x330] sm:$0xff]
        %v570 = vld [vmem:[%s371 + $0x338] sm:$0xff]
        %v571 = vld [vmem:[%s371 + $0x340] sm:$0xff]
        %v572 = vld [vmem:[%s371 + $0x348] sm:$0xff]
        %v573 = vld [vmem:[%s371 + $0x350] sm:$0xff]
        %v574 = vld [vmem:[%s371 + $0x358] sm:$0xff]
        %v575 = vld [vmem:[%s371 + $0x360] sm:$0xff]
        %v576 = vld [vmem:[%s371 + $0x368] sm:$0xff]
        %v577 = vld [vmem:[%s371 + $0x370] sm:$0xff]
        %v578 = vld [vmem:[%s371 + $0x378] sm:$0xff]
        %v579 = vld [vmem:[%s371 + $0x380] sm:$0xff]
        %v580 = vld [vmem:[%s371 + $0x388] sm:$0xff]
        %v581 = vld [vmem:[%s371 + $0x390] sm:$0xff]
        %v582 = vld [vmem:[%s371 + $0x398] sm:$0xff]
        %v583 = vld [vmem:[%s371 + $0x3a0] sm:$0xff]
        %v584 = vld [vmem:[%s371 + $0x3a8] sm:$0xff]
        %v585 = vld [vmem:[%s371 + $0x3b0] sm:$0xff]
        %v586 = vld [vmem:[%s371 + $0x3b8] sm:$0xff]
        %v587 = vld [vmem:[%s371 + $0x3c0] sm:$0xff]
        %v588 = vld [vmem:[%s371 + $0x3c8] sm:$0xff]
        %v589 = vld [vmem:[%s371 + $0x3d0] sm:$0xff]
        %v590 = vld [vmem:[%s371 + $0x3d8] sm:$0xff]
        %v591 = vld [vmem:[%s371 + $0x3e0] sm:$0xff]
        %v592 = vld [vmem:[%s371 + $0x3e8] sm:$0xff]
        %v593 = vld [vmem:[%s371 + $0x3f0] sm:$0xff]
        %v594 = vld [vmem:[%s371 + $0x3f8] sm:$0xff]
        %v595 = vld [vmem:[%s371 + $0x400] sm:$0xff]
        %v596 = vld [vmem:[%s371 + $0x408] sm:$0xff]
        %v597 = vld [vmem:[%s371 + $0x410] sm:$0xff]
        %v598 = vld [vmem:[%s371 + $0x418] sm:$0xff]
        %v599 = vld [vmem:[%s371 + $0x420] sm:$0xff]
        %v600 = vld [vmem:[%s371 + $0x428] sm:$0xff]
        %v601 = vld [vmem:[%s371 + $0x430] sm:$0xff]
        %v602 = vld [vmem:[%s371 + $0x438] sm:$0xff]
        %v603 = vld [vmem:[%s371 + $0x440] sm:$0xff]
        %v604 = vld [vmem:[%s371 + $0x448] sm:$0xff]
        %v605 = vld [vmem:[%s371 + $0x450] sm:$0xff]
        %v606 = vld [vmem:[%s371 + $0x458] sm:$0xff]
        %v607 = vld [vmem:[%s371 + $0x460] sm:$0xff]
        %v608 = vld [vmem:[%s371 + $0x468] sm:$0xff]
        %v609 = vld [vmem:[%s371 + $0x470] sm:$0xff]
        %v610 = vld [vmem:[%s371 + $0x478] sm:$0xff]
        %v611 = vld [vmem:[%s371 + $0x480] sm:$0xff]
        %v612 = vld [vmem:[%s371 + $0x488] sm:$0xff]
        %v613 = vld [vmem:[%s371 + $0x490] sm:$0xff]
        %v614 = vld [vmem:[%s371 + $0x498] sm:$0xff]
        %v615 = vld [vmem:[%s371 + $0x4a0] sm:$0xff]
        %v616 = vld [vmem:[%s371 + $0x4a8] sm:$0xff]
        %v617 = vld [vmem:[%s371 + $0x4b0] sm:$0xff]
        %v618 = vld [vmem:[%s371 + $0x4b8] sm:$0xff]
        %v619 = vld [vmem:[%s371 + $0x4c0] sm:$0xff]
        %v620 = vld [vmem:[%s371 + $0x4c8] sm:$0xff]
        %v621 = vld [vmem:[%s371 + $0x4d0] sm:$0xff]
        %v622 = vld [vmem:[%s371 + $0x4d8] sm:$0xff]
        %v623 = vld [vmem:[%s371 + $0x4e0] sm:$0xff]
        %v624 = vld [vmem:[%s371 + $0x4e8] sm:$0xff]
        %v625 = vld [vmem:[%s371 + $0x4f0] sm:$0xff]
        %v626 = vld [vmem:[%s371 + $0x4f8] sm:$0xff]
        %v627 = vld [vmem:[%s371 + $0x500] sm:$0xff]
        %v628 = vld [vmem:[%s371 + $0x508] sm:$0xff]
        %v629 = vld [vmem:[%s371 + $0x510] sm:$0xff]
        %v630 = vld [vmem:[%s371 + $0x518] sm:$0xff]
        %v631 = vld [vmem:[%s371 + $0x520] sm:$0xff]
        %v632 = vld [vmem:[%s371 + $0x528] sm:$0xff]
        %v633 = vld [vmem:[%s371 + $0x530] sm:$0xff]
        %v634 = vld [vmem:[%s371 + $0x538] sm:$0xff]
        %v635 = vld [vmem:[%s371 + $0x540] sm:$0xff]
        %v636 = vld [vmem:[%s371 + $0x548] sm:$0xff]
        %v637 = vld [vmem:[%s371 + $0x550] sm:$0xff]
        %v638 = vld [vmem:[%s371 + $0x558] sm:$0xff]
        %v639 = vld [vmem:[%s371 + $0x560] sm:$0xff]
        %v640 = vld [vmem:[%s371 + $0x568] sm:$0xff]
        %v641 = vld [vmem:[%s371 + $0x570] sm:$0xff]
        %v642 = vld [vmem:[%s371 + $0x578] sm:$0xff]
        %v643 = vld [vmem:[%s371 + $0x580] sm:$0xff]
        %v644 = vld [vmem:[%s371 + $0x588] sm:$0xff]
        %v645 = vld [vmem:[%s371 + $0x590] sm:$0xff]
        %v646 = vld [vmem:[%s371 + $0x598] sm:$0xff]
        %v647 = vld [vmem:[%s371 + $0x5a0] sm:$0xff]
        %v648 = vld [vmem:[%s371 + $0x5a8] sm:$0xff]
        %v649 = vld [vmem:[%s371 + $0x5b0] sm:$0xff]
        %v650 = vld [vmem:[%s371 + $0x5b8] sm:$0xff]
        %v651 = vld [vmem:[%s371 + $0x5c0] sm:$0xff]
        %v652 = vld [vmem:[%s371 + $0x5c8] sm:$0xff]
        %v653 = vld [vmem:[%s371 + $0x5d0] sm:$0xff]
        %v654 = vld [vmem:[%s371 + $0x5d8] sm:$0xff]
        %v655 = vld [vmem:[%s371 + $0x5e0] sm:$0xff]
        %v656 = vld [vmem:[%s371 + $0x5e8] sm:$0xff]
        %v657 = vld [vmem:[%s371 + $0x5f0] sm:$0xff]
        %v658 = vld [vmem:[%s371 + $0x5f8] sm:$0xff]
        %v659 = vld [vmem:[%s371 + $0x600] sm:$0xff]
        %v660 = vld [vmem:[%s371 + $0x608] sm:$0xff]
        %v661 = vld [vmem:[%s371 + $0x610] sm:$0xff]
        %v662 = vld [vmem:[%s371 + $0x618] sm:$0xff]
        %v663 = vld [vmem:[%s371 + $0x620] sm:$0xff]
        %v664 = vld [vmem:[%s371 + $0x628] sm:$0xff]
        %v665 = vld [vmem:[%s371 + $0x630] sm:$0xff]
        %v666 = vld [vmem:[%s371 + $0x638] sm:$0xff]
        %v667 = vld [vmem:[%s371 + $0x640] sm:$0xff]
        %v668 = vld [vmem:[%s371 + $0x648] sm:$0xff]
        %v669 = vld [vmem:[%s371 + $0x650] sm:$0xff]
        %v670 = vld [vmem:[%s371 + $0x658] sm:$0xff]
        %v671 = vld [vmem:[%s371 + $0x660] sm:$0xff]
        %v672 = vld [vmem:[%s371 + $0x668] sm:$0xff]
        %v673 = vld [vmem:[%s371 + $0x670] sm:$0xff]
        %v674 = vld [vmem:[%s371 + $0x678] sm:$0xff]
        %v675 = vld [vmem:[%s371 + $0x680] sm:$0xff]
        %v676 = vld [vmem:[%s371 + $0x688] sm:$0xff]
        %v677 = vld [vmem:[%s371 + $0x690] sm:$0xff]
        %v678 = vld [vmem:[%s371 + $0x698] sm:$0xff]
        %v679 = vld [vmem:[%s371 + $0x6a0] sm:$0xff]
        %v680 = vld [vmem:[%s371 + $0x6a8] sm:$0xff]
        %v681 = vld [vmem:[%s371 + $0x6b0] sm:$0xff]
        %v682 = vld [vmem:[%s371 + $0x6b8] sm:$0xff]
        %v683 = vld [vmem:[%s371 + $0x6c0] sm:$0xff]
        %v684 = vld [vmem:[%s371 + $0x6c8] sm:$0xff]
        %v685 = vld [vmem:[%s371 + $0x6d0] sm:$0xff]
        %v686 = vld [vmem:[%s371 + $0x6d8] sm:$0xff]
        %v687 = vld [vmem:[%s371 + $0x6e0] sm:$0xff]
        %v688 = vld [vmem:[%s371 + $0x6e8] sm:$0xff]
        %v689 = vld [vmem:[%s371 + $0x6f0] sm:$0xff]
        %v690 = vld [vmem:[%s371 + $0x6f8] sm:$0xff]
        %v691 = vld [vmem:[%s371 + $0x700] sm:$0xff]
        %v692 = vld [vmem:[%s371 + $0x708] sm:$0xff]
        %v693 = vld [vmem:[%s371 + $0x710] sm:$0xff]
        %v694 = vld [vmem:[%s371 + $0x718] sm:$0xff]
        %v695 = vld [vmem:[%s371 + $0x720] sm:$0xff]
        %v696 = vld [vmem:[%s371 + $0x728] sm:$0xff]
        %v697 = vld [vmem:[%s371 + $0x730] sm:$0xff]
        %v698 = vld [vmem:[%s371 + $0x738] sm:$0xff]
        %v699 = vld [vmem:[%s371 + $0x740] sm:$0xff]
        %v700 = vld [vmem:[%s371 + $0x748] sm:$0xff]
        %v701 = vld [vmem:[%s371 + $0x750] sm:$0xff]
        %v702 = vld [vmem:[%s371 + $0x758] sm:$0xff]
        %v703 = vld [vmem:[%s371 + $0x760] sm:$0xff]
        %v704 = vld [vmem:[%s371 + $0x768] sm:$0xff]
        %v705 = vld [vmem:[%s371 + $0x770] sm:$0xff]
        %v706 = vld [vmem:[%s371 + $0x778] sm:$0xff]
        %v707 = vld [vmem:[%s371 + $0x780] sm:$0xff]
        %v708 = vld [vmem:[%s371 + $0x788] sm:$0xff]
        %v709 = vld [vmem:[%s371 + $0x790] sm:$0xff]
        %v710 = vld [vmem:[%s371 + $0x798] sm:$0xff]
        %v711 = vld [vmem:[%s371 + $0x7a0] sm:$0xff]
        %v712 = vld [vmem:[%s371 + $0x7a8] sm:$0xff]
        %v713 = vld [vmem:[%s371 + $0x7b0] sm:$0xff]
        %v714 = vld [vmem:[%s371 + $0x7b8] sm:$0xff]
        %v715 = vld [vmem:[%s371 + $0x7c0] sm:$0xff]
        %v716 = vld [vmem:[%s371 + $0x7c8] sm:$0xff]
        %v717 = vld [vmem:[%s371 + $0x7d0] sm:$0xff]
        %v718 = vld [vmem:[%s371 + $0x7d8] sm:$0xff]
        %v719 = vld [vmem:[%s371 + $0x7e0] sm:$0xff]
        %v720 = vld [vmem:[%s371 + $0x7e8] sm:$0xff]
        %v721 = vld [vmem:[%s371 + $0x7f0] sm:$0xff]
        %v722 = vld [vmem:[%s371 + $0x7f8] sm:$0xff]
        %v723 = vld [vmem:[%s371 + $0x800] sm:$0xff]
        %v724 = vld [vmem:[%s371 + $0x808] sm:$0xff]
        %v725 = vld [vmem:[%s371 + $0x810] sm:$0xff]
        %v726 = vld [vmem:[%s371 + $0x818] sm:$0xff]
        %v727 = vld [vmem:[%s371 + $0x820] sm:$0xff]
        %v728 = vld [vmem:[%s371 + $0x828] sm:$0xff]
        %v729 = vld [vmem:[%s371 + $0x830] sm:$0xff]
        %v730 = vld [vmem:[%s371 + $0x838] sm:$0xff]
        %v731 = vld [vmem:[%s371 + $0x840] sm:$0xff]
        %v732 = vld [vmem:[%s371 + $0x848] sm:$0xff]
        %v733 = vld [vmem:[%s371 + $0x850] sm:$0xff]
        %v734 = vld [vmem:[%s371 + $0x858] sm:$0xff]
        %v735 = vld [vmem:[%s371 + $0x860] sm:$0xff]
        %v736 = vld [vmem:[%s371 + $0x868] sm:$0xff]
        %v737 = vld [vmem:[%s371 + $0x870] sm:$0xff]
        %v738 = vld [vmem:[%s371 + $0x878] sm:$0xff]
        %v739 = vld [vmem:[%s371 + $0x880] sm:$0xff]
        %v740 = vld [vmem:[%s371 + $0x888] sm:$0xff]
        %v741 = vld [vmem:[%s371 + $0x890] sm:$0xff]
        %v742 = vld [vmem:[%s371 + $0x898] sm:$0xff]
        %v743 = vld [vmem:[%s371 + $0x8a0] sm:$0xff]
        %v744 = vld [vmem:[%s371 + $0x8a8] sm:$0xff]
        %v745 = vld [vmem:[%s371 + $0x8b0] sm:$0xff]
        %v746 = vld [vmem:[%s371 + $0x8b8] sm:$0xff]
        %v747 = vld [vmem:[%s371 + $0x8c0] sm:$0xff]
        %v748 = vld [vmem:[%s371 + $0x8c8] sm:$0xff]
        %v749 = vld [vmem:[%s371 + $0x8d0] sm:$0xff]
        %v750 = vld [vmem:[%s371 + $0x8d8] sm:$0xff]
        %v751 = vld [vmem:[%s371 + $0x8e0] sm:$0xff]
        %v752 = vld [vmem:[%s371 + $0x8e8] sm:$0xff]
        %v753 = vld [vmem:[%s371 + $0x8f0] sm:$0xff]
        %v754 = vld [vmem:[%s371 + $0x8f8] sm:$0xff]
        %v755 = vld [vmem:[%s371 + $0x900] sm:$0xff]
        %v756 = vld [vmem:[%s371 + $0x908] sm:$0xff]
        %v757 = vld [vmem:[%s371 + $0x910] sm:$0xff]
        %v758 = vld [vmem:[%s371 + $0x918] sm:$0xff]
        %v759 = vld [vmem:[%s371 + $0x920] sm:$0xff]
        %v760 = vld [vmem:[%s371 + $0x928] sm:$0xff]
        %v761 = vld [vmem:[%s371 + $0x930] sm:$0xff]
        %v762 = vld [vmem:[%s371 + $0x938] sm:$0xff]
        %v763 = vld [vmem:[%s371 + $0x940] sm:$0xff]
        %v764 = vld [vmem:[%s371 + $0x948] sm:$0xff]
        %v765 = vld [vmem:[%s371 + $0x950] sm:$0xff]
        %v766 = vld [vmem:[%s371 + $0x958] sm:$0xff]
        %v767 = vld [vmem:[%s371 + $0x960] sm:$0xff]
        %v768 = vld [vmem:[%s371 + $0x968] sm:$0xff]
        %v769 = vld [vmem:[%s371 + $0x970] sm:$0xff]
        %v770 = vld [vmem:[%s371 + $0x978] sm:$0xff]
        %v771 = vld [vmem:[%s371 + $0x980] sm:$0xff]
        %v772 = vld [vmem:[%s371 + $0x988] sm:$0xff]
        %v773 = vld [vmem:[%s371 + $0x990] sm:$0xff]
        %v774 = vld [vmem:[%s371 + $0x998] sm:$0xff]
        %v775 = vld [vmem:[%s371 + $0x9a0] sm:$0xff]
        %v776 = vld [vmem:[%s371 + $0x9a8] sm:$0xff]
        %v777 = vld [vmem:[%s371 + $0x9b0] sm:$0xff]
        %v778 = vld [vmem:[%s371 + $0x9b8] sm:$0xff]
        %v779 = vld [vmem:[%s371 + $0x9c0] sm:$0xff]
        %v780 = vld [vmem:[%s371 + $0x9c8] sm:$0xff]
        %v781 = vld [vmem:[%s371 + $0x9d0] sm:$0xff]
        %v782 = vld [vmem:[%s371 + $0x9d8] sm:$0xff]
        %v783 = vld [vmem:[%s371 + $0x9e0] sm:$0xff]
        %v784 = vld [vmem:[%s371 + $0x9e8] sm:$0xff]
        %v785 = vld [vmem:[%s371 + $0x9f0] sm:$0xff]
        %v786 = vld [vmem:[%s371 + $0x9f8] sm:$0xff]
        %v787 = vld [vmem:[%s371 + $0xa00] sm:$0xff]
        %v788 = vld [vmem:[%s371 + $0xa08] sm:$0xff]
        %v789 = vld [vmem:[%s371 + $0xa10] sm:$0xff]
        %v790 = vld [vmem:[%s371 + $0xa18] sm:$0xff]
        %v791 = vld [vmem:[%s371 + $0xa20] sm:$0xff]
        %v792 = vld [vmem:[%s371 + $0xa28] sm:$0xff]
        %v793 = vld [vmem:[%s371 + $0xa30] sm:$0xff]
        %v794 = vld [vmem:[%s371 + $0xa38] sm:$0xff]
        %v795 = vld [vmem:[%s371 + $0xa40] sm:$0xff]
        %v796 = vld [vmem:[%s371 + $0xa48] sm:$0xff]
        %v797 = vld [vmem:[%s371 + $0xa50] sm:$0xff]
        %v798 = vld [vmem:[%s371 + $0xa58] sm:$0xff]
        %v799 = vld [vmem:[%s371 + $0xa60] sm:$0xff]
        %v800 = vld [vmem:[%s371 + $0xa68] sm:$0xff]
        %v801 = vld [vmem:[%s371 + $0xa70] sm:$0xff]
        %v802 = vld [vmem:[%s371 + $0xa78] sm:$0xff]
        %v803 = vld [vmem:[%s371 + $0xa80] sm:$0xff]
        %v804 = vld [vmem:[%s371 + $0xa88] sm:$0xff]
        %v805 = vld [vmem:[%s371 + $0xa90] sm:$0xff]
        %v806 = vld [vmem:[%s371 + $0xa98] sm:$0xff]
        %v807 = vld [vmem:[%s371 + $0xaa0] sm:$0xff]
        %v808 = vld [vmem:[%s371 + $0xaa8] sm:$0xff]
        %v809 = vld [vmem:[%s371 + $0xab0] sm:$0xff]
        %v810 = vld [vmem:[%s371 + $0xab8] sm:$0xff]
        %v811 = vld [vmem:[%s371 + $0xac0] sm:$0xff]
        %v812 = vld [vmem:[%s371 + $0xac8] sm:$0xff]
        %v813 = vld [vmem:[%s371 + $0xad0] sm:$0xff]
        %v814 = vld [vmem:[%s371 + $0xad8] sm:$0xff]
        %v815 = vld [vmem:[%s371 + $0xae0] sm:$0xff]
        %v816 = vld [vmem:[%s371 + $0xae8] sm:$0xff]
        %v817 = vld [vmem:[%s371 + $0xaf0] sm:$0xff]
        %v818 = vld [vmem:[%s371 + $0xaf8] sm:$0xff]
        %v819 = vld [vmem:[%s371 + $0xb00] sm:$0xff]
        %v820 = vld [vmem:[%s371 + $0xb08] sm:$0xff]
        %v821 = vld [vmem:[%s371 + $0xb10] sm:$0xff]
        %v822 = vld [vmem:[%s371 + $0xb18] sm:$0xff]
        %v823 = vld [vmem:[%s371 + $0xb20] sm:$0xff]
        %v824 = vld [vmem:[%s371 + $0xb28] sm:$0xff]
        %v825 = vld [vmem:[%s371 + $0xb30] sm:$0xff]
        %v826 = vld [vmem:[%s371 + $0xb38] sm:$0xff]
        %v827 = vld [vmem:[%s371 + $0xb40] sm:$0xff]
        %v828 = vld [vmem:[%s371 + $0xb48] sm:$0xff]
        %v829 = vld [vmem:[%s371 + $0xb50] sm:$0xff]
        %v830 = vld [vmem:[%s371 + $0xb58] sm:$0xff]
        %v831 = vld [vmem:[%s371 + $0xb60] sm:$0xff]
        %v832 = vld [vmem:[%s371 + $0xb68] sm:$0xff]
        %v833 = vld [vmem:[%s371 + $0xb70] sm:$0xff]
        %v834 = vld [vmem:[%s371 + $0xb78] sm:$0xff]
        %v835 = vld [vmem:[%s371 + $0xb80] sm:$0xff]
        %v836 = vld [vmem:[%s371 + $0xb88] sm:$0xff]
        %v837 = vld [vmem:[%s371 + $0xb90] sm:$0xff]
        %v838 = vld [vmem:[%s371 + $0xb98] sm:$0xff]
        %v839 = vld [vmem:[%s371 + $0xba0] sm:$0xff]
        %v840 = vld [vmem:[%s371 + $0xba8] sm:$0xff]
        %v841 = vld [vmem:[%s371 + $0xbb0] sm:$0xff]
        %v842 = vld [vmem:[%s371 + $0xbb8] sm:$0xff]
        %v843 = vld [vmem:[%s371 + $0xbc0] sm:$0xff]
        %v844 = vld [vmem:[%s371 + $0xbc8] sm:$0xff]
        %v845 = vld [vmem:[%s371 + $0xbd0] sm:$0xff]
        %v846 = vld [vmem:[%s371 + $0xbd8] sm:$0xff]
        %v847 = vld [vmem:[%s371 + $0xbe0] sm:$0xff]
        %v848 = vld [vmem:[%s371 + $0xbe8] sm:$0xff]
        %v849 = vld [vmem:[%s371 + $0xbf0] sm:$0xff]
        %v850 = vld [vmem:[%s371 + $0xbf8] sm:$0xff]
        %v851 = vld [vmem:[%s371 + $0xc00] sm:$0xff]
        %v852 = vld [vmem:[%s371 + $0xc08] sm:$0xff]
        %v853 = vld [vmem:[%s371 + $0xc10] sm:$0xff]
        %v854 = vld [vmem:[%s371 + $0xc18] sm:$0xff]
        %v855 = vld [vmem:[%s371 + $0xc20] sm:$0xff]
        %v856 = vld [vmem:[%s371 + $0xc28] sm:$0xff]
        %v857 = vld [vmem:[%s371 + $0xc30] sm:$0xff]
        %v858 = vld [vmem:[%s371 + $0xc38] sm:$0xff]
        %v859 = vld [vmem:[%s371 + $0xc40] sm:$0xff]
        %v860 = vld [vmem:[%s371 + $0xc48] sm:$0xff]
        %v861 = vld [vmem:[%s371 + $0xc50] sm:$0xff]
        %v862 = vld [vmem:[%s371 + $0xc58] sm:$0xff]
        %v863 = vld [vmem:[%s371 + $0xc60] sm:$0xff]
        %v864 = vld [vmem:[%s371 + $0xc68] sm:$0xff]
        %v865 = vld [vmem:[%s371 + $0xc70] sm:$0xff]
        %v866 = vld [vmem:[%s371 + $0xc78] sm:$0xff]
        %v867 = vld [vmem:[%s371 + $0xc80] sm:$0xff]
        %v868 = vld [vmem:[%s371 + $0xc88] sm:$0xff]
        %v869 = vld [vmem:[%s371 + $0xc90] sm:$0xff]
        %v870 = vld [vmem:[%s371 + $0xc98] sm:$0xff]
        %v871 = vld [vmem:[%s371 + $0xca0] sm:$0xff]
        %v872 = vld [vmem:[%s371 + $0xca8] sm:$0xff]
        %v873 = vld [vmem:[%s371 + $0xcb0] sm:$0xff]
        %v874 = vld [vmem:[%s371 + $0xcb8] sm:$0xff]
        %v875 = vld [vmem:[%s371 + $0xcc0] sm:$0xff]
        %v876 = vld [vmem:[%s371 + $0xcc8] sm:$0xff]
        %v877 = vld [vmem:[%s371 + $0xcd0] sm:$0xff]
        %v878 = vld [vmem:[%s371 + $0xcd8] sm:$0xff]
        %v879 = vld [vmem:[%s371 + $0xce0] sm:$0xff]
        %v880 = vld [vmem:[%s371 + $0xce8] sm:$0xff]
        %v881 = vld [vmem:[%s371 + $0xcf0] sm:$0xff]
        %v882 = vld [vmem:[%s371 + $0xcf8] sm:$0xff]
        %v883 = vld [vmem:[%s371 + $0xd00] sm:$0xff]
        %v884 = vld [vmem:[%s371 + $0xd08] sm:$0xff]
        %v885 = vld [vmem:[%s371 + $0xd10] sm:$0xff]
        %v886 = vld [vmem:[%s371 + $0xd18] sm:$0xff]
        %v887 = vld [vmem:[%s371 + $0xd20] sm:$0xff]
        %v888 = vld [vmem:[%s371 + $0xd28] sm:$0xff]
        %v889 = vld [vmem:[%s371 + $0xd30] sm:$0xff]
        %v890 = vld [vmem:[%s371 + $0xd38] sm:$0xff]
        %v891 = vld [vmem:[%s371 + $0xd40] sm:$0xff]
        %v892 = vld [vmem:[%s371 + $0xd48] sm:$0xff]
        %v893 = vld [vmem:[%s371 + $0xd50] sm:$0xff]
        %v894 = vld [vmem:[%s371 + $0xd58] sm:$0xff]
        %v895 = vld [vmem:[%s371 + $0xd60] sm:$0xff]
        %v896 = vld [vmem:[%s371 + $0xd68] sm:$0xff]
        %v897 = vld [vmem:[%s371 + $0xd70] sm:$0xff]
        %v898 = vld [vmem:[%s371 + $0xd78] sm:$0xff]
        %v899 = vld [vmem:[%s371 + $0xd80] sm:$0xff]
        %v900 = vld [vmem:[%s371 + $0xd88] sm:$0xff]
        %v901 = vld [vmem:[%s371 + $0xd90] sm:$0xff]
        %v902 = vld [vmem:[%s371 + $0xd98] sm:$0xff]
        %v903 = vld [vmem:[%s371 + $0xda0] sm:$0xff]
        %v904 = vld [vmem:[%s371 + $0xda8] sm:$0xff]
        %v905 = vld [vmem:[%s371 + $0xdb0] sm:$0xff]
        %v906 = vld [vmem:[%s371 + $0xdb8] sm:$0xff]
        %v907 = vld [vmem:[%s371 + $0xdc0] sm:$0xff]
        %v908 = vld [vmem:[%s371 + $0xdc8] sm:$0xff]
        %v909 = vld [vmem:[%s371 + $0xdd0] sm:$0xff]
        %v910 = vld [vmem:[%s371 + $0xdd8] sm:$0xff]
        %v911 = vld [vmem:[%s371 + $0xde0] sm:$0xff]
        %v912 = vld [vmem:[%s371 + $0xde8] sm:$0xff]
        %v913 = vld [vmem:[%s371 + $0xdf0] sm:$0xff]
        %v914 = vld [vmem:[%s371 + $0xdf8] sm:$0xff]
        %v915 = vld [vmem:[%s371 + $0xe00] sm:$0xff]
        %v916 = vld [vmem:[%s371 + $0xe08] sm:$0xff]
        %v917 = vld [vmem:[%s371 + $0xe10] sm:$0xff]
        %v918 = vld [vmem:[%s371 + $0xe18] sm:$0xff]
        %v919 = vld [vmem:[%s371 + $0xe20] sm:$0xff]
        %v920 = vld [vmem:[%s371 + $0xe28] sm:$0xff]
        %v921 = vld [vmem:[%s371 + $0xe30] sm:$0xff]
        %v922 = vld [vmem:[%s371 + $0xe38] sm:$0xff]
        %v923 = vld [vmem:[%s371 + $0xe40] sm:$0xff]
        %v924 = vld [vmem:[%s371 + $0xe48] sm:$0xff]
        %v925 = vld [vmem:[%s371 + $0xe50] sm:$0xff]
        %v926 = vld [vmem:[%s371 + $0xe58] sm:$0xff]
        %v927 = vld [vmem:[%s371 + $0xe60] sm:$0xff]
        %v928 = vld [vmem:[%s371 + $0xe68] sm:$0xff]
        %v929 = vld [vmem:[%s371 + $0xe70] sm:$0xff]
        %v930 = vld [vmem:[%s371 + $0xe78] sm:$0xff]
        %v931 = vld [vmem:[%s371 + $0xe80] sm:$0xff]
        %v932 = vld [vmem:[%s371 + $0xe88] sm:$0xff]
        %v933 = vld [vmem:[%s371 + $0xe90] sm:$0xff]
        %v934 = vld [vmem:[%s371 + $0xe98] sm:$0xff]
        %v935 = vld [vmem:[%s371 + $0xea0] sm:$0xff]
        %v936 = vld [vmem:[%s371 + $0xea8] sm:$0xff]
        %v937 = vld [vmem:[%s371 + $0xeb0] sm:$0xff]
        %v938 = vld [vmem:[%s371 + $0xeb8] sm:$0xff]
        %v939 = vld [vmem:[%s371 + $0xec0] sm:$0xff]
        %v940 = vld [vmem:[%s371 + $0xec8] sm:$0xff]
        %v941 = vld [vmem:[%s371 + $0xed0] sm:$0xff]
        %v942 = vld [vmem:[%s371 + $0xed8] sm:$0xff]
        %v943 = vld [vmem:[%s371 + $0xee0] sm:$0xff]
        %v944 = vld [vmem:[%s371 + $0xee8] sm:$0xff]
        %v945 = vld [vmem:[%s371 + $0xef0] sm:$0xff]
        %v946 = vld [vmem:[%s371 + $0xef8] sm:$0xff]
        %v947 = vld [vmem:[%s371 + $0xf00] sm:$0xff]
        %v948 = vld [vmem:[%s371 + $0xf08] sm:$0xff]
        %v949 = vld [vmem:[%s371 + $0xf10] sm:$0xff]
        %v950 = vld [vmem:[%s371 + $0xf18] sm:$0xff]
        %v951 = vld [vmem:[%s371 + $0xf20] sm:$0xff]
        %v952 = vld [vmem:[%s371 + $0xf28] sm:$0xff]
        %v953 = vld [vmem:[%s371 + $0xf30] sm:$0xff]
        %v954 = vld [vmem:[%s371 + $0xf38] sm:$0xff]
        %v955 = vld [vmem:[%s371 + $0xf40] sm:$0xff]
        %v956 = vld [vmem:[%s371 + $0xf48] sm:$0xff]
        %v957 = vld [vmem:[%s371 + $0xf50] sm:$0xff]
        %v958 = vld [vmem:[%s371 + $0xf58] sm:$0xff]
        %v959 = vld [vmem:[%s371 + $0xf60] sm:$0xff]
        %v960 = vld [vmem:[%s371 + $0xf68] sm:$0xff]
        %v961 = vld [vmem:[%s371 + $0xf70] sm:$0xff]
        %v962 = vld [vmem:[%s371 + $0xf78] sm:$0xff]
        %v963 = vld [vmem:[%s371 + $0xf80] sm:$0xff]
        %v964 = vld [vmem:[%s371 + $0xf88] sm:$0xff]
        %v965 = vld [vmem:[%s371 + $0xf90] sm:$0xff]
        %v966 = vld [vmem:[%s371 + $0xf98] sm:$0xff]
        %v967 = vld [vmem:[%s371 + $0xfa0] sm:$0xff]
        %v968 = vld [vmem:[%s371 + $0xfa8] sm:$0xff]
        %v969 = vld [vmem:[%s371 + $0xfb0] sm:$0xff]
        %v970 = vld [vmem:[%s371 + $0xfb8] sm:$0xff]
        %v971 = vld [vmem:[%s371 + $0xfc0] sm:$0xff]
        %v972 = vld [vmem:[%s371 + $0xfc8] sm:$0xff]
        %v973 = vld [vmem:[%s371 + $0xfd0] sm:$0xff]
        %v974 = vld [vmem:[%s371 + $0xfd8] sm:$0xff]
        %v975 = vld [vmem:[%s371 + $0xfe0] sm:$0xff]
        %v976 = vld [vmem:[%s371 + $0xfe8] sm:$0xff]
        %v977 = vld [vmem:[%s371 + $0xff0] sm:$0xff]
        %v978 = vld [vmem:[%s371 + $0xff8] sm:$0xff]
        %v979 = vld [vmem:[%s371 + $0x1000] sm:$0xff]
        %v980 = vld [vmem:[%s371 + $0x1008] sm:$0xff]
        %v981 = vld [vmem:[%s371 + $0x1010] sm:$0xff]
        %v982 = vld [vmem:[%s371 + $0x1018] sm:$0xff]
        %v983 = vld [vmem:[%s371 + $0x1020] sm:$0xff]
        %v984 = vld [vmem:[%s371 + $0x1028] sm:$0xff]
        %v985 = vld [vmem:[%s371 + $0x1030] sm:$0xff]
        %v986 = vld [vmem:[%s371 + $0x1038] sm:$0xff]
        %v987 = vld [vmem:[%s371 + $0x1040] sm:$0xff]
        %v988 = vld [vmem:[%s371 + $0x1048] sm:$0xff]
        %v989 = vld [vmem:[%s371 + $0x1050] sm:$0xff]
        %v990 = vld [vmem:[%s371 + $0x1058] sm:$0xff]
        %v991 = vld [vmem:[%s371 + $0x1060] sm:$0xff]
        %v992 = vld [vmem:[%s371 + $0x1068] sm:$0xff]
        %v993 = vld [vmem:[%s371 + $0x1070] sm:$0xff]
        %v994 = vld [vmem:[%s371 + $0x1078] sm:$0xff]
        %v995 = vld [vmem:[%s371 + $0x1080] sm:$0xff]
        %v996 = vld [vmem:[%s371 + $0x1088] sm:$0xff]
        %v997 = vld [vmem:[%s371 + $0x1090] sm:$0xff]
        %v998 = vld [vmem:[%s371 + $0x1098] sm:$0xff]
        %v999 = vld [vmem:[%s371 + $0x10a0] sm:$0xff]
        %v1000 = vld [vmem:[%s371 + $0x10a8] sm:$0xff]
        %v1001 = vld [vmem:[%s371 + $0x10b0] sm:$0xff]
        %v1002 = vld [vmem:[%s371 + $0x10b8] sm:$0xff]
        %v1003 = vld [vmem:[%s371 + $0x10c0] sm:$0xff]
        %v1004 = vld [vmem:[%s371 + $0x10c8] sm:$0xff]
        %v1005 = vld [vmem:[%s371 + $0x10d0] sm:$0xff]
        %v1006 = vld [vmem:[%s371 + $0x10d8] sm:$0xff]
        %v1007 = vld [vmem:[%s371 + $0x10e0] sm:$0xff]
        %v1008 = vld [vmem:[%s371 + $0x10e8] sm:$0xff]
        %v1009 = vld [vmem:[%s371 + $0x10f0] sm:$0xff]
        %v1010 = vld [vmem:[%s371 + $0x10f8] sm:$0xff]
        %v1011 = vld [vmem:[%s371 + $0x1100] sm:$0xff]
        %v1012 = vld [vmem:[%s371 + $0x1108] sm:$0xff]
        %v1013 = vld [vmem:[%s371 + $0x1110] sm:$0xff]
        %v1014 = vld [vmem:[%s371 + $0x1118] sm:$0xff]
        %v1015 = vld [vmem:[%s371 + $0x1120] sm:$0xff]
        %v1016 = vld [vmem:[%s371 + $0x1128] sm:$0xff]
        %v1017 = vld [vmem:[%s371 + $0x1130] sm:$0xff]
        %v1018 = vld [vmem:[%s371 + $0x1138] sm:$0xff]
        %v1019 = vld [vmem:[%s371 + $0x1140] sm:$0xff]
        %v1020 = vld [vmem:[%s371 + $0x1148] sm:$0xff]
        %v1021 = vld [vmem:[%s371 + $0x1150] sm:$0xff]
        %v1022 = vld [vmem:[%s371 + $0x1158] sm:$0xff]
        %v1023 = vld [vmem:[%s371 + $0x1160] sm:$0xff]
        %v1024 = vld [vmem:[%s371 + $0x1168] sm:$0xff]
        %v1025 = vld [vmem:[%s371 + $0x1170] sm:$0xff]
        %v1026 = vld [vmem:[%s371 + $0x1178] sm:$0xff]
        %v1027 = vld [vmem:[%s371 + $0x1180] sm:$0xff]
        %v1028 = vld [vmem:[%s371 + $0x1188] sm:$0xff]
        %v1029 = vld [vmem:[%s371 + $0x1190] sm:$0xff]
        %v1030 = vld [vmem:[%s371 + $0x1198] sm:$0xff]
        %v1031 = vld [vmem:[%s371 + $0x11a0] sm:$0xff]
        %v1032 = vld [vmem:[%s371 + $0x11a8] sm:$0xff]
        %v1033 = vld [vmem:[%s371 + $0x11b0] sm:$0xff]
        %v1034 = vld [vmem:[%s371 + $0x11b8] sm:$0xff]
        %v1035 = vld [vmem:[%s371 + $0x11c0] sm:$0xff]
        %v1036 = vld [vmem:[%s371 + $0x11c8] sm:$0xff]
        %v1037 = vld [vmem:[%s371 + $0x11d0] sm:$0xff]
        %v1038 = vld [vmem:[%s371 + $0x11d8] sm:$0xff]
        %v1039 = vld [vmem:[%s371 + $0x11e0] sm:$0xff]
        %v1040 = vld [vmem:[%s371 + $0x11e8] sm:$0xff]
        %v1041 = vld [vmem:[%s371 + $0x11f0] sm:$0xff]
        %v1042 = vld [vmem:[%s371 + $0x11f8] sm:$0xff]
        %v1043 = vld [vmem:[%s371 + $0x1200] sm:$0xff]
        %v1044 = vld [vmem:[%s371 + $0x1208] sm:$0xff]
        %v1045 = vld [vmem:[%s371 + $0x1210] sm:$0xff]
        %v1046 = vld [vmem:[%s371 + $0x1218] sm:$0xff]
        %v1047 = vld [vmem:[%s371 + $0x1220] sm:$0xff]
        %v1048 = vld [vmem:[%s371 + $0x1228] sm:$0xff]
        %v1049 = vld [vmem:[%s371 + $0x1230] sm:$0xff]
        %v1050 = vld [vmem:[%s371 + $0x1238] sm:$0xff]
        %v1051 = vld [vmem:[%s371 + $0x1240] sm:$0xff]
        %v1052 = vld [vmem:[%s371 + $0x1248] sm:$0xff]
        %v1053 = vld [vmem:[%s371 + $0x1250] sm:$0xff]
        %v1054 = vld [vmem:[%s371 + $0x1258] sm:$0xff]
        %v1055 = vld [vmem:[%s371 + $0x1260] sm:$0xff]
        %v1056 = vld [vmem:[%s371 + $0x1268] sm:$0xff]
        %v1057 = vld [vmem:[%s371 + $0x1270] sm:$0xff]
        %v1058 = vld [vmem:[%s371 + $0x1278] sm:$0xff]
        %v1059 = vld [vmem:[%s371 + $0x1280] sm:$0xff]
        %v1060 = vld [vmem:[%s371 + $0x1288] sm:$0xff]
        %v1061 = vld [vmem:[%s371 + $0x1290] sm:$0xff]
        %v1062 = vld [vmem:[%s371 + $0x1298] sm:$0xff]
        %v1063 = vld [vmem:[%s371 + $0x12a0] sm:$0xff]
        %v1064 = vld [vmem:[%s371 + $0x12a8] sm:$0xff]
        %v1065 = vld [vmem:[%s371 + $0x12b0] sm:$0xff]
        %v1066 = vld [vmem:[%s371 + $0x12b8] sm:$0xff]
        %v1067 = vld [vmem:[%s371 + $0x12c0] sm:$0xff]
        %v1068 = vld [vmem:[%s371 + $0x12c8] sm:$0xff]
        %v1069 = vld [vmem:[%s371 + $0x12d0] sm:$0xff]
        %v1070 = vld [vmem:[%s371 + $0x12d8] sm:$0xff]
        %v1071 = vld [vmem:[%s371 + $0x12e0] sm:$0xff]
        %v1072 = vld [vmem:[%s371 + $0x12e8] sm:$0xff]
        %v1073 = vld [vmem:[%s371 + $0x12f0] sm:$0xff]
        %v1074 = vld [vmem:[%s371 + $0x12f8] sm:$0xff]
        %v1075 = vld [vmem:[%s371 + $0x1300] sm:$0xff]
        %v1076 = vld [vmem:[%s371 + $0x1308] sm:$0xff]
        %v1077 = vld [vmem:[%s371 + $0x1310] sm:$0xff]
        %v1078 = vld [vmem:[%s371 + $0x1318] sm:$0xff]
        %v1079 = vld [vmem:[%s371 + $0x1320] sm:$0xff]
        %v1080 = vld [vmem:[%s371 + $0x1328] sm:$0xff]
        %v1081 = vld [vmem:[%s371 + $0x1330] sm:$0xff]
        %v1082 = vld [vmem:[%s371 + $0x1338] sm:$0xff]
        %v1083 = vld [vmem:[%s371 + $0x1340] sm:$0xff]
        %v1084 = vld [vmem:[%s371 + $0x1348] sm:$0xff]
        %v1085 = vld [vmem:[%s371 + $0x1350] sm:$0xff]
        %v1086 = vld [vmem:[%s371 + $0x1358] sm:$0xff]
        %v1087 = vld [vmem:[%s371 + $0x1360] sm:$0xff]
        %v1088 = vld [vmem:[%s371 + $0x1368] sm:$0xff]
        %v1089 = vld [vmem:[%s371 + $0x1370] sm:$0xff]
        %v1090 = vld [vmem:[%s371 + $0x1378] sm:$0xff]
        %v1091 = vld [vmem:[%s371 + $0x1380] sm:$0xff]
        %v1092 = vld [vmem:[%s371 + $0x1388] sm:$0xff]
        %v1093 = vld [vmem:[%s371 + $0x1390] sm:$0xff]
        %v1094 = vld [vmem:[%s371 + $0x1398] sm:$0xff]
        %v1095 = vld [vmem:[%s371 + $0x13a0] sm:$0xff]
        %v1096 = vld [vmem:[%s371 + $0x13a8] sm:$0xff]
        %v1097 = vld [vmem:[%s371 + $0x13b0] sm:$0xff]
        %v1098 = vld [vmem:[%s371 + $0x13b8] sm:$0xff]
        %v1099 = vld [vmem:[%s371 + $0x13c0] sm:$0xff]
        %v1100 = vld [vmem:[%s371 + $0x13c8] sm:$0xff]
        %v1101 = vld [vmem:[%s371 + $0x13d0] sm:$0xff]
        %v1102 = vld [vmem:[%s371 + $0x13d8] sm:$0xff]
        %v1103 = vld [vmem:[%s371 + $0x13e0] sm:$0xff]
        %v1104 = vld [vmem:[%s371 + $0x13e8] sm:$0xff]
        %v1105 = vld [vmem:[%s371 + $0x13f0] sm:$0xff]
        %v1106 = vld [vmem:[%s371 + $0x13f8] sm:$0xff]
        %v1107 = vld [vmem:[%s371 + $0x1400] sm:$0xff]
        %v1108 = vld [vmem:[%s371 + $0x1408] sm:$0xff]
        %v1109 = vld [vmem:[%s371 + $0x1410] sm:$0xff]
        %v1110 = vld [vmem:[%s371 + $0x1418] sm:$0xff]
        %v1111 = vld [vmem:[%s371 + $0x1420] sm:$0xff]
        %v1112 = vld [vmem:[%s371 + $0x1428] sm:$0xff]
        %v1113 = vld [vmem:[%s371 + $0x1430] sm:$0xff]
        %v1114 = vld [vmem:[%s371 + $0x1438] sm:$0xff]
        %v1115 = vld [vmem:[%s371 + $0x1440] sm:$0xff]
        %v1116 = vld [vmem:[%s371 + $0x1448] sm:$0xff]
        %v1117 = vld [vmem:[%s371 + $0x1450] sm:$0xff]
        %v1118 = vld [vmem:[%s371 + $0x1458] sm:$0xff]
        %v1119 = vld [vmem:[%s371 + $0x1460] sm:$0xff]
        %v1120 = vld [vmem:[%s371 + $0x1468] sm:$0xff]
        %v1121 = vld [vmem:[%s371 + $0x1470] sm:$0xff]
        %v1122 = vld [vmem:[%s371 + $0x1478] sm:$0xff]
        %v1123 = vld [vmem:[%s371 + $0x1480] sm:$0xff]
        %v1124 = vld [vmem:[%s371 + $0x1488] sm:$0xff]
        %v1125 = vld [vmem:[%s371 + $0x1490] sm:$0xff]
        %v1126 = vld [vmem:[%s371 + $0x1498] sm:$0xff]
        %v1127 = vld [vmem:[%s371 + $0x14a0] sm:$0xff]
        %v1128 = vld [vmem:[%s371 + $0x14a8] sm:$0xff]
        %v1129 = vld [vmem:[%s371 + $0x14b0] sm:$0xff]
        %v1130 = vld [vmem:[%s371 + $0x14b8] sm:$0xff]
        %v1131 = vld [vmem:[%s371 + $0x14c0] sm:$0xff]
        %v1132 = vld [vmem:[%s371 + $0x14c8] sm:$0xff]
        %v1133 = vld [vmem:[%s371 + $0x14d0] sm:$0xff]
        %v1134 = vld [vmem:[%s371 + $0x14d8] sm:$0xff]
        %v1135 = vld [vmem:[%s371 + $0x14e0] sm:$0xff]
        %v1136 = vld [vmem:[%s371 + $0x14e8] sm:$0xff]
        %v1137 = vld [vmem:[%s371 + $0x14f0] sm:$0xff]
        %v1138 = vld [vmem:[%s371 + $0x14f8] sm:$0xff]
        %v1139 = vld [vmem:[%s371 + $0x1500] sm:$0xff]
        %v1140 = vld [vmem:[%s371 + $0x1508] sm:$0xff]
        %v1141 = vld [vmem:[%s371 + $0x1510] sm:$0xff]
        %v1142 = vld [vmem:[%s371 + $0x1518] sm:$0xff]
        %v1143 = vld [vmem:[%s371 + $0x1520] sm:$0xff]
        %v1144 = vld [vmem:[%s371 + $0x1528] sm:$0xff]
        %v1145 = vld [vmem:[%s371 + $0x1530] sm:$0xff]
        %v1146 = vld [vmem:[%s371 + $0x1538] sm:$0xff]
        %v1147 = vld [vmem:[%s371 + $0x1540] sm:$0xff]
        %v1148 = vld [vmem:[%s371 + $0x1548] sm:$0xff]
        %v1149 = vld [vmem:[%s371 + $0x1550] sm:$0xff]
        %v1150 = vld [vmem:[%s371 + $0x1558] sm:$0xff]
        %v1151 = vld [vmem:[%s371 + $0x1560] sm:$0xff]
        %v1152 = vld [vmem:[%s371 + $0x1568] sm:$0xff]
        %v1153 = vld [vmem:[%s371 + $0x1570] sm:$0xff]
        %v1154 = vld [vmem:[%s371 + $0x1578] sm:$0xff]
        %v1155 = vld [vmem:[%s371 + $0x1580] sm:$0xff]
        %v1156 = vld [vmem:[%s371 + $0x1588] sm:$0xff]
        %v1157 = vld [vmem:[%s371 + $0x1590] sm:$0xff]
        %v1158 = vld [vmem:[%s371 + $0x1598] sm:$0xff]
        %v1159 = vld [vmem:[%s371 + $0x15a0] sm:$0xff]
        %v1160 = vld [vmem:[%s371 + $0x15a8] sm:$0xff]
        %v1161 = vld [vmem:[%s371 + $0x15b0] sm:$0xff]
        %v1162 = vld [vmem:[%s371 + $0x15b8] sm:$0xff]
        %v1163 = vld [vmem:[%s371 + $0x15c0] sm:$0xff]
        %v1164 = vld [vmem:[%s371 + $0x15c8] sm:$0xff]
        %v1165 = vld [vmem:[%s371 + $0x15d0] sm:$0xff]
        %v1166 = vld [vmem:[%s371 + $0x15d8] sm:$0xff]
        %v1167 = vld [vmem:[%s371 + $0x15e0] sm:$0xff]
        %v1168 = vld [vmem:[%s371 + $0x15e8] sm:$0xff]
        %v1169 = vld [vmem:[%s371 + $0x15f0] sm:$0xff]
        %v1170 = vld [vmem:[%s371 + $0x15f8] sm:$0xff]
        %v1171 = vld [vmem:[%s371 + $0x1600] sm:$0xff]
        %v1172 = vld [vmem:[%s371 + $0x1608] sm:$0xff]
        %v1173 = vld [vmem:[%s371 + $0x1610] sm:$0xff]
        %v1174 = vld [vmem:[%s371 + $0x1618] sm:$0xff]
        %v1175 = vld [vmem:[%s371 + $0x1620] sm:$0xff]
        %v1176 = vld [vmem:[%s371 + $0x1628] sm:$0xff]
        %v1177 = vld [vmem:[%s371 + $0x1630] sm:$0xff]
        %v1178 = vld [vmem:[%s371 + $0x1638] sm:$0xff]
        %v1179 = vld [vmem:[%s371 + $0x1640] sm:$0xff]
        %v1180 = vld [vmem:[%s371 + $0x1648] sm:$0xff]
        %v1181 = vld [vmem:[%s371 + $0x1650] sm:$0xff]
        %v1182 = vld [vmem:[%s371 + $0x1658] sm:$0xff]
        %v1183 = vld [vmem:[%s371 + $0x1660] sm:$0xff]
        %v1184 = vld [vmem:[%s371 + $0x1668] sm:$0xff]
        %v1185 = vld [vmem:[%s371 + $0x1670] sm:$0xff]
        %v1186 = vld [vmem:[%s371 + $0x1678] sm:$0xff]
        %v1187 = vld [vmem:[%s371 + $0x1680] sm:$0xff]
        %v1188 = vld [vmem:[%s371 + $0x1688] sm:$0xff]
        %v1189 = vld [vmem:[%s371 + $0x1690] sm:$0xff]
        %v1190 = vld [vmem:[%s371 + $0x1698] sm:$0xff]
        %v1191 = vld [vmem:[%s371 + $0x16a0] sm:$0xff]
        %v1192 = vld [vmem:[%s371 + $0x16a8] sm:$0xff]
        %v1193 = vld [vmem:[%s371 + $0x16b0] sm:$0xff]
        %v1194 = vld [vmem:[%s371 + $0x16b8] sm:$0xff]
        %v1195 = vld [vmem:[%s371 + $0x16c0] sm:$0xff]
        %v1196 = vld [vmem:[%s371 + $0x16c8] sm:$0xff]
        %v1197 = vld [vmem:[%s371 + $0x16d0] sm:$0xff]
        %v1198 = vld [vmem:[%s371 + $0x16d8] sm:$0xff]
        %v1199 = vld [vmem:[%s371 + $0x16e0] sm:$0xff]
        %v1200 = vld [vmem:[%s371 + $0x16e8] sm:$0xff]
        %v1201 = vld [vmem:[%s371 + $0x16f0] sm:$0xff]
        %v1202 = vld [vmem:[%s371 + $0x16f8] sm:$0xff]
        %v1203 = vld [vmem:[%s371 + $0x1700] sm:$0xff]
        %v1204 = vld [vmem:[%s371 + $0x1708] sm:$0xff]
        %v1205 = vld [vmem:[%s371 + $0x1710] sm:$0xff]
        %v1206 = vld [vmem:[%s371 + $0x1718] sm:$0xff]
        %v1207 = vld [vmem:[%s371 + $0x1720] sm:$0xff]
        %v1208 = vld [vmem:[%s371 + $0x1728] sm:$0xff]
        %v1209 = vld [vmem:[%s371 + $0x1730] sm:$0xff]
        %v1210 = vld [vmem:[%s371 + $0x1738] sm:$0xff]
        %v1211 = vld [vmem:[%s371 + $0x1740] sm:$0xff]
        %v1212 = vld [vmem:[%s371 + $0x1748] sm:$0xff]
        %v1213 = vld [vmem:[%s371 + $0x1750] sm:$0xff]
        %v1214 = vld [vmem:[%s371 + $0x1758] sm:$0xff]
        %v1215 = vld [vmem:[%s371 + $0x1760] sm:$0xff]
        %v1216 = vld [vmem:[%s371 + $0x1768] sm:$0xff]
        %v1217 = vld [vmem:[%s371 + $0x1770] sm:$0xff]
        %v1218 = vld [vmem:[%s371 + $0x1778] sm:$0xff]
        %v1219 = vld [vmem:[%s371 + $0x1780] sm:$0xff]
        %v1220 = vld [vmem:[%s371 + $0x1788] sm:$0xff]
        %v1221 = vld [vmem:[%s371 + $0x1790] sm:$0xff]
        %v1222 = vld [vmem:[%s371 + $0x1798] sm:$0xff]
        %v1223 = vld [vmem:[%s371 + $0x17a0] sm:$0xff]
        %v1224 = vld [vmem:[%s371 + $0x17a8] sm:$0xff]
        %v1225 = vld [vmem:[%s371 + $0x17b0] sm:$0xff]
        %v1226 = vld [vmem:[%s371 + $0x17b8] sm:$0xff]
        %v1227 = vld [vmem:[%s371 + $0x17c0] sm:$0xff]
        %v1228 = vld [vmem:[%s371 + $0x17c8] sm:$0xff]
        %v1229 = vld [vmem:[%s371 + $0x17d0] sm:$0xff]
        %v1230 = vld [vmem:[%s371 + $0x17d8] sm:$0xff]
        %v1231 = vld [vmem:[%s371 + $0x17e0] sm:$0xff]
        %v1232 = vld [vmem:[%s371 + $0x17e8] sm:$0xff]
        %v1233 = vld [vmem:[%s371 + $0x17f0] sm:$0xff]
        %v1234 = vld [vmem:[%s371 + $0x17f8] sm:$0xff]
        %v1235 = vld [vmem:[%s371 + $0x1800] sm:$0xff]
        %v1236 = vld [vmem:[%s371 + $0x1808] sm:$0xff]
        %v1237 = vld [vmem:[%s371 + $0x1810] sm:$0xff]
        %v1238 = vld [vmem:[%s371 + $0x1818] sm:$0xff]
        %v1239 = vld [vmem:[%s371 + $0x1820] sm:$0xff]
        %v1240 = vld [vmem:[%s371 + $0x1828] sm:$0xff]
        %v1241 = vld [vmem:[%s371 + $0x1830] sm:$0xff]
        %v1242 = vld [vmem:[%s371 + $0x1838] sm:$0xff]
        %v1243 = vld [vmem:[%s371 + $0x1840] sm:$0xff]
        %v1244 = vld [vmem:[%s371 + $0x1848] sm:$0xff]
        %v1245 = vld [vmem:[%s371 + $0x1850] sm:$0xff]
        %v1246 = vld [vmem:[%s371 + $0x1858] sm:$0xff]
        %v1247 = vld [vmem:[%s371 + $0x1860] sm:$0xff]
        %v1248 = vld [vmem:[%s371 + $0x1868] sm:$0xff]
        %v1249 = vld [vmem:[%s371 + $0x1870] sm:$0xff]
        %v1250 = vld [vmem:[%s371 + $0x1878] sm:$0xff]
        %v1251 = vld [vmem:[%s371 + $0x1880] sm:$0xff]
        %v1252 = vld [vmem:[%s371 + $0x1888] sm:$0xff]
        %v1253 = vld [vmem:[%s371 + $0x1890] sm:$0xff]
        %v1254 = vld [vmem:[%s371 + $0x1898] sm:$0xff]
        %v1255 = vld [vmem:[%s371 + $0x18a0] sm:$0xff]
        %v1256 = vld [vmem:[%s371 + $0x18a8] sm:$0xff]
        %v1257 = vld [vmem:[%s371 + $0x18b0] sm:$0xff]
        %v1258 = vld [vmem:[%s371 + $0x18b8] sm:$0xff]
        %v1259 = vld [vmem:[%s371 + $0x18c0] sm:$0xff]
        %v1260 = vld [vmem:[%s371 + $0x18c8] sm:$0xff]
        %v1261 = vld [vmem:[%s371 + $0x18d0] sm:$0xff]
        %v1262 = vld [vmem:[%s371 + $0x18d8] sm:$0xff]
        %v1263 = vld [vmem:[%s371 + $0x18e0] sm:$0xff]
        %v1264 = vld [vmem:[%s371 + $0x18e8] sm:$0xff]
        %v1265 = vld [vmem:[%s371 + $0x18f0] sm:$0xff]
        %v1266 = vld [vmem:[%s371 + $0x18f8] sm:$0xff]
        %v1267 = vld [vmem:[%s371 + $0x1900] sm:$0xff]
        %v1268 = vld [vmem:[%s371 + $0x1908] sm:$0xff]
        %v1269 = vld [vmem:[%s371 + $0x1910] sm:$0xff]
        %v1270 = vld [vmem:[%s371 + $0x1918] sm:$0xff]
        %v1271 = vld [vmem:[%s371 + $0x1920] sm:$0xff]
        %v1272 = vld [vmem:[%s371 + $0x1928] sm:$0xff]
        %v1273 = vld [vmem:[%s371 + $0x1930] sm:$0xff]
        %v1274 = vld [vmem:[%s371 + $0x1938] sm:$0xff]
        %v1275 = vld [vmem:[%s371 + $0x1940] sm:$0xff]
        %v1276 = vld [vmem:[%s371 + $0x1948] sm:$0xff]
        %v1277 = vld [vmem:[%s371 + $0x1950] sm:$0xff]
        %v1278 = vld [vmem:[%s371 + $0x1958] sm:$0xff]
        %v1279 = vld [vmem:[%s371 + $0x1960] sm:$0xff]
        %v1280 = vld [vmem:[%s371 + $0x1968] sm:$0xff]
        %v1281 = vld [vmem:[%s371 + $0x1970] sm:$0xff]
        %v1282 = vld [vmem:[%s371 + $0x1978] sm:$0xff]
        %v1283 = vld [vmem:[%s371 + $0x1980] sm:$0xff]
        %v1284 = vld [vmem:[%s371 + $0x1988] sm:$0xff]
        %v1285 = vld [vmem:[%s371 + $0x1990] sm:$0xff]
        %v1286 = vld [vmem:[%s371 + $0x1998] sm:$0xff]
        %v1287 = vld [vmem:[%s371 + $0x19a0] sm:$0xff]
        %v1288 = vld [vmem:[%s371 + $0x19a8] sm:$0xff]
        %v1289 = vld [vmem:[%s371 + $0x19b0] sm:$0xff]
        %v1290 = vld [vmem:[%s371 + $0x19b8] sm:$0xff]
        %v1291 = vld [vmem:[%s371 + $0x19c0] sm:$0xff]
        %v1292 = vld [vmem:[%s371 + $0x19c8] sm:$0xff]
        %v1293 = vld [vmem:[%s371 + $0x19d0] sm:$0xff]
        %v1294 = vld [vmem:[%s371 + $0x19d8] sm:$0xff]
        %v1295 = vld [vmem:[%s371 + $0x19e0] sm:$0xff]
        %v1296 = vld [vmem:[%s371 + $0x19e8] sm:$0xff]
        %v1297 = vld [vmem:[%s371 + $0x19f0] sm:$0xff]
        %v1298 = vld [vmem:[%s371 + $0x19f8] sm:$0xff]
        %v1299 = vld [vmem:[%s371 + $0x1a00] sm:$0xff]
        %v1300 = vld [vmem:[%s371 + $0x1a08] sm:$0xff]
        %v1301 = vld [vmem:[%s371 + $0x1a10] sm:$0xff]
        %v1302 = vld [vmem:[%s371 + $0x1a18] sm:$0xff]
        %v1303 = vld [vmem:[%s371 + $0x1a20] sm:$0xff]
        %v1304 = vld [vmem:[%s371 + $0x1a28] sm:$0xff]
        %v1305 = vld [vmem:[%s371 + $0x1a30] sm:$0xff]
        %v1306 = vld [vmem:[%s371 + $0x1a38] sm:$0xff]
        %v1307 = vld [vmem:[%s371 + $0x1a40] sm:$0xff]
        %v1308 = vld [vmem:[%s371 + $0x1a48] sm:$0xff]
        %v1309 = vld [vmem:[%s371 + $0x1a50] sm:$0xff]
        %v1310 = vld [vmem:[%s371 + $0x1a58] sm:$0xff]
        %v1311 = vld [vmem:[%s371 + $0x1a60] sm:$0xff]
        %v1312 = vld [vmem:[%s371 + $0x1a68] sm:$0xff]
        %v1313 = vld [vmem:[%s371 + $0x1a70] sm:$0xff]
        %v1314 = vld [vmem:[%s371 + $0x1a78] sm:$0xff]
        %v1315 = vld [vmem:[%s371 + $0x1a80] sm:$0xff]
        %v1316 = vld [vmem:[%s371 + $0x1a88] sm:$0xff]
        %v1317 = vld [vmem:[%s371 + $0x1a90] sm:$0xff]
        %v1318 = vld [vmem:[%s371 + $0x1a98] sm:$0xff]
        %v1319 = vld [vmem:[%s371 + $0x1aa0] sm:$0xff]
        %v1320 = vld [vmem:[%s371 + $0x1aa8] sm:$0xff]
        %v1321 = vld [vmem:[%s371 + $0x1ab0] sm:$0xff]
        %v1322 = vld [vmem:[%s371 + $0x1ab8] sm:$0xff]
        %v1323 = vld [vmem:[%s371 + $0x1ac0] sm:$0xff]
        %v1324 = vld [vmem:[%s371 + $0x1ac8] sm:$0xff]
        %v1325 = vld [vmem:[%s371 + $0x1ad0] sm:$0xff]
        %v1326 = vld [vmem:[%s371 + $0x1ad8] sm:$0xff]
        %v1327 = vld [vmem:[%s371 + $0x1ae0] sm:$0xff]
        %v1328 = vld [vmem:[%s371 + $0x1ae8] sm:$0xff]
        %v1329 = vld [vmem:[%s371 + $0x1af0] sm:$0xff]
        %v1330 = vld [vmem:[%s371 + $0x1af8] sm:$0xff]
        %v1331 = vld [vmem:[%s371 + $0x1b00] sm:$0xff]
        %v1332 = vld [vmem:[%s371 + $0x1b08] sm:$0xff]
        %v1333 = vld [vmem:[%s371 + $0x1b10] sm:$0xff]
        %v1334 = vld [vmem:[%s371 + $0x1b18] sm:$0xff]
        %v1335 = vld [vmem:[%s371 + $0x1b20] sm:$0xff]
        %v1336 = vld [vmem:[%s371 + $0x1b28] sm:$0xff]
        %v1337 = vld [vmem:[%s371 + $0x1b30] sm:$0xff]
        %v1338 = vld [vmem:[%s371 + $0x1b38] sm:$0xff]
        %v1339 = vld [vmem:[%s371 + $0x1b40] sm:$0xff]
        %v1340 = vld [vmem:[%s371 + $0x1b48] sm:$0xff]
        %v1341 = vld [vmem:[%s371 + $0x1b50] sm:$0xff]
        %v1342 = vld [vmem:[%s371 + $0x1b58] sm:$0xff]
        %v1343 = vld [vmem:[%s371 + $0x1b60] sm:$0xff]
        %v1344 = vld [vmem:[%s371 + $0x1b68] sm:$0xff]
        %v1345 = vld [vmem:[%s371 + $0x1b70] sm:$0xff]
        %v1346 = vld [vmem:[%s371 + $0x1b78] sm:$0xff]
        %v1347 = vld [vmem:[%s371 + $0x1b80] sm:$0xff]
        %v1348 = vld [vmem:[%s371 + $0x1b88] sm:$0xff]
        %v1349 = vld [vmem:[%s371 + $0x1b90] sm:$0xff]
        %v1350 = vld [vmem:[%s371 + $0x1b98] sm:$0xff]
        %v1351 = vld [vmem:[%s371 + $0x1ba0] sm:$0xff]
        %v1352 = vld [vmem:[%s371 + $0x1ba8] sm:$0xff]
        %v1353 = vld [vmem:[%s371 + $0x1bb0] sm:$0xff]
        %v1354 = vld [vmem:[%s371 + $0x1bb8] sm:$0xff]
        %v1355 = vld [vmem:[%s371 + $0x1bc0] sm:$0xff]
        %v1356 = vld [vmem:[%s371 + $0x1bc8] sm:$0xff]
        %v1357 = vld [vmem:[%s371 + $0x1bd0] sm:$0xff]
        %v1358 = vld [vmem:[%s371 + $0x1bd8] sm:$0xff]
        %v1359 = vld [vmem:[%s371 + $0x1be0] sm:$0xff]
        %v1360 = vld [vmem:[%s371 + $0x1be8] sm:$0xff]
        %v1361 = vld [vmem:[%s371 + $0x1bf0] sm:$0xff]
        %v1362 = vld [vmem:[%s371 + $0x1bf8] sm:$0xff]
        %v1363 = vld [vmem:[%s371 + $0x1c00] sm:$0xff]
        %v1364 = vld [vmem:[%s371 + $0x1c08] sm:$0xff]
        %v1365 = vld [vmem:[%s371 + $0x1c10] sm:$0xff]
        %v1366 = vld [vmem:[%s371 + $0x1c18] sm:$0xff]
        %v1367 = vld [vmem:[%s371 + $0x1c20] sm:$0xff]
        %v1368 = vld [vmem:[%s371 + $0x1c28] sm:$0xff]
        %v1369 = vld [vmem:[%s371 + $0x1c30] sm:$0xff]
        %v1370 = vld [vmem:[%s371 + $0x1c38] sm:$0xff]
        %v1371 = vld [vmem:[%s371 + $0x1c40] sm:$0xff]
        %v1372 = vld [vmem:[%s371 + $0x1c48] sm:$0xff]
        %v1373 = vld [vmem:[%s371 + $0x1c50] sm:$0xff]
        %v1374 = vld [vmem:[%s371 + $0x1c58] sm:$0xff]
        %v1375 = vld [vmem:[%s371 + $0x1c60] sm:$0xff]
        %v1376 = vld [vmem:[%s371 + $0x1c68] sm:$0xff]
        %v1377 = vld [vmem:[%s371 + $0x1c70] sm:$0xff]
        %v1378 = vld [vmem:[%s371 + $0x1c78] sm:$0xff]
        %v1379 = vld [vmem:[%s371 + $0x1c80] sm:$0xff]
        %v1380 = vld [vmem:[%s371 + $0x1c88] sm:$0xff]
        %v1381 = vld [vmem:[%s371 + $0x1c90] sm:$0xff]
        %v1382 = vld [vmem:[%s371 + $0x1c98] sm:$0xff]
        %v1383 = vld [vmem:[%s371 + $0x1ca0] sm:$0xff]
        %v1384 = vld [vmem:[%s371 + $0x1ca8] sm:$0xff]
        %v1385 = vld [vmem:[%s371 + $0x1cb0] sm:$0xff]
        %v1386 = vld [vmem:[%s371 + $0x1cb8] sm:$0xff]
        %v1387 = vld [vmem:[%s371 + $0x1cc0] sm:$0xff]
        %v1388 = vld [vmem:[%s371 + $0x1cc8] sm:$0xff]
        %v1389 = vld [vmem:[%s371 + $0x1cd0] sm:$0xff]
        %v1390 = vld [vmem:[%s371 + $0x1cd8] sm:$0xff]
        %v1391 = vld [vmem:[%s371 + $0x1ce0] sm:$0xff]
        %v1392 = vld [vmem:[%s371 + $0x1ce8] sm:$0xff]
        %v1393 = vld [vmem:[%s371 + $0x1cf0] sm:$0xff]
        %v1394 = vld [vmem:[%s371 + $0x1cf8] sm:$0xff]
        %v1395 = vld [vmem:[%s371 + $0x1d00] sm:$0xff]
        %v1396 = vld [vmem:[%s371 + $0x1d08] sm:$0xff]
        %v1397 = vld [vmem:[%s371 + $0x1d10] sm:$0xff]
        %v1398 = vld [vmem:[%s371 + $0x1d18] sm:$0xff]
        %v1399 = vld [vmem:[%s371 + $0x1d20] sm:$0xff]
        %v1400 = vld [vmem:[%s371 + $0x1d28] sm:$0xff]
        %v1401 = vld [vmem:[%s371 + $0x1d30] sm:$0xff]
        %v1402 = vld [vmem:[%s371 + $0x1d38] sm:$0xff]
        %v1403 = vld [vmem:[%s371 + $0x1d40] sm:$0xff]
        %v1404 = vld [vmem:[%s371 + $0x1d48] sm:$0xff]
        %v1405 = vld [vmem:[%s371 + $0x1d50] sm:$0xff]
        %v1406 = vld [vmem:[%s371 + $0x1d58] sm:$0xff]
        %v1407 = vld [vmem:[%s371 + $0x1d60] sm:$0xff]
        %v1408 = vld [vmem:[%s371 + $0x1d68] sm:$0xff]
        %v1409 = vld [vmem:[%s371 + $0x1d70] sm:$0xff]
        %v1410 = vld [vmem:[%s371 + $0x1d78] sm:$0xff]
        %v1411 = vld [vmem:[%s371 + $0x1d80] sm:$0xff]
        %v1412 = vld [vmem:[%s371 + $0x1d88] sm:$0xff]
        %v1413 = vld [vmem:[%s371 + $0x1d90] sm:$0xff]
        %v1414 = vld [vmem:[%s371 + $0x1d98] sm:$0xff]
        %v1415 = vld [vmem:[%s371 + $0x1da0] sm:$0xff]
        %v1416 = vld [vmem:[%s371 + $0x1da8] sm:$0xff]
        %v1417 = vld [vmem:[%s371 + $0x1db0] sm:$0xff]
        %v1418 = vld [vmem:[%s371 + $0x1db8] sm:$0xff]
        %v1419 = vld [vmem:[%s371 + $0x1dc0] sm:$0xff]
        %v1420 = vld [vmem:[%s371 + $0x1dc8] sm:$0xff]
        %v1421 = vld [vmem:[%s371 + $0x1dd0] sm:$0xff]
        %v1422 = vld [vmem:[%s371 + $0x1dd8] sm:$0xff]
        %v1423 = vld [vmem:[%s371 + $0x1de0] sm:$0xff]
        %v1424 = vld [vmem:[%s371 + $0x1de8] sm:$0xff]
        %v1425 = vld [vmem:[%s371 + $0x1df0] sm:$0xff]
        %v1426 = vld [vmem:[%s371 + $0x1df8] sm:$0xff]
        %v1435 = vunpack.c.l.b16 %v459
        %v1436 = vunpack.c.h.b16 %v459
        %v1437 = vunpack.c.l.b16 %v460
        %v1438 = vunpack.c.h.b16 %v460
        %v1439 = vunpack.c.l.b16 %v461
        %v1440 = vunpack.c.h.b16 %v461
        %v1441 = vunpack.c.l.b16 %v462
        %v1442 = vunpack.c.h.b16 %v462
        %v1443 = vunpack.c.l.b16 %v463
        %v1444 = vunpack.c.h.b16 %v463
        %v1445 = vunpack.c.l.b16 %v464
        %v1446 = vunpack.c.h.b16 %v464
        %v1447 = vunpack.c.l.b16 %v465
        %v1448 = vunpack.c.h.b16 %v465
        %v1449 = vunpack.c.l.b16 %v466
        %v1450 = vpack.c.b16 %v1435, %v1435
        %v1451 = vpack.c.b16 %v1436, %v1436
        %v1452 = vpack.c.b16 %v1437, %v1437
        %v1453 = vpack.c.b16 %v1438, %v1438
        %v1454 = vpack.c.b16 %v1439, %v1439
        %v1455 = vpack.c.b16 %v1440, %v1440
        %v1456 = vpack.c.b16 %v1441, %v1441
        %v1457 = vpack.c.b16 %v1442, %v1442
        %v1458 = vpack.c.b16 %v1443, %v1443
        %v1459 = vpack.c.b16 %v1444, %v1444
        %v1460 = vpack.c.b16 %v1445, %v1445
        %v1461 = vpack.c.b16 %v1446, %v1446
        %v1462 = vpack.c.b16 %v1447, %v1447
        %v1463 = vpack.c.b16 %v1448, %v1448
        %v1464 = vpack.c.b16 %v1449, %v1449
        %v2440 = vunpack.c.l.b16 %v467
        %v2441 = vunpack.c.h.b16 %v467
        %v2442 = vunpack.c.l.b16 %v468
        %v2443 = vunpack.c.h.b16 %v468
        %v2444 = vunpack.c.l.b16 %v469
        %v2445 = vunpack.c.h.b16 %v469
        %v2446 = vunpack.c.l.b16 %v470
        %v2447 = vunpack.c.h.b16 %v470
        %v2448 = vunpack.c.l.b16 %v471
        %v2449 = vunpack.c.h.b16 %v471
        %v2450 = vunpack.c.l.b16 %v472
        %v2451 = vunpack.c.h.b16 %v472
        %v2452 = vunpack.c.l.b16 %v473
        %v2453 = vunpack.c.h.b16 %v473
        %v2454 = vunpack.c.l.b16 %v474
        %v2455 = vunpack.c.h.b16 %v474
        %v2456 = vunpack.c.l.b16 %v475
        %v2457 = vunpack.c.h.b16 %v475
        %v2458 = vunpack.c.l.b16 %v476
        %v2459 = vunpack.c.h.b16 %v476
        %v2460 = vunpack.c.l.b16 %v477
        %v2461 = vunpack.c.h.b16 %v477
        %v2462 = vunpack.c.l.b16 %v478
        %v2463 = vunpack.c.h.b16 %v478
        %v2464 = vunpack.c.l.b16 %v479
        %v2465 = vunpack.c.h.b16 %v479
        %v2466 = vunpack.c.l.b16 %v480
        %v2467 = vunpack.c.h.b16 %v480
        %v2468 = vunpack.c.l.b16 %v481
        %v2469 = vunpack.c.h.b16 %v481
        %v2470 = vunpack.c.l.b16 %v482
        %v2471 = vunpack.c.h.b16 %v482
        %v2472 = vunpack.c.l.b16 %v483
        %v2473 = vunpack.c.h.b16 %v483
        %v2474 = vunpack.c.l.b16 %v484
        %v2475 = vunpack.c.h.b16 %v484
        %v2476 = vunpack.c.l.b16 %v485
        %v2477 = vunpack.c.h.b16 %v485
        %v2478 = vunpack.c.l.b16 %v486
        %v2479 = vunpack.c.h.b16 %v486
        %v2480 = vunpack.c.l.b16 %v487
        %v2481 = vunpack.c.h.b16 %v487
        %v2482 = vunpack.c.l.b16 %v488
        %v2483 = vunpack.c.h.b16 %v488
        %v2484 = vunpack.c.l.b16 %v489
        %v2485 = vunpack.c.h.b16 %v489
        %v2486 = vunpack.c.l.b16 %v490
        %v2487 = vunpack.c.h.b16 %v490
        %v2488 = vunpack.c.l.b16 %v491
        %v2489 = vunpack.c.h.b16 %v491
        %v2490 = vunpack.c.l.b16 %v492
        %v2491 = vunpack.c.h.b16 %v492
        %v2492 = vunpack.c.l.b16 %v493
        %v2493 = vunpack.c.h.b16 %v493
        %v2494 = vunpack.c.l.b16 %v494
        %v2495 = vunpack.c.h.b16 %v494
        %v2496 = vunpack.c.l.b16 %v495
        %v2497 = vunpack.c.h.b16 %v495
        %v2498 = vunpack.c.l.b16 %v496
        %v2499 = vunpack.c.h.b16 %v496
        %v2500 = vunpack.c.l.b16 %v497
        %v2501 = vunpack.c.h.b16 %v497
        %v2502 = vunpack.c.l.b16 %v498
        %v2503 = vunpack.c.h.b16 %v498
        %v2504 = vunpack.c.l.b16 %v499
        %v2505 = vunpack.c.h.b16 %v499
        %v2506 = vunpack.c.l.b16 %v500
        %v2507 = vunpack.c.h.b16 %v500
        %v2508 = vunpack.c.l.b16 %v501
        %v2509 = vunpack.c.h.b16 %v501
        %v2510 = vunpack.c.l.b16 %v502
        %v2511 = vunpack.c.h.b16 %v502
        %v2512 = vunpack.c.l.b16 %v503
        %v2513 = vunpack.c.h.b16 %v503
        %v2514 = vunpack.c.l.b16 %v504
        %v2515 = vunpack.c.h.b16 %v504
        %v2516 = vunpack.c.l.b16 %v505
        %v2517 = vunpack.c.h.b16 %v505
        %v2518 = vunpack.c.l.b16 %v506
        %v2519 = vunpack.c.h.b16 %v506
        %v2520 = vunpack.c.l.b16 %v507
        %v2521 = vunpack.c.h.b16 %v507
        %v2522 = vunpack.c.l.b16 %v508
        %v2523 = vunpack.c.h.b16 %v508
        %v2524 = vunpack.c.l.b16 %v509
        %v2525 = vunpack.c.h.b16 %v509
        %v2526 = vunpack.c.l.b16 %v510
        %v2527 = vunpack.c.h.b16 %v510
        %v2528 = vunpack.c.l.b16 %v511
        %v2529 = vunpack.c.h.b16 %v511
        %v2530 = vunpack.c.l.b16 %v512
        %v2531 = vunpack.c.h.b16 %v512
        %v2532 = vunpack.c.l.b16 %v513
        %v2533 = vunpack.c.h.b16 %v513
        %v2534 = vunpack.c.l.b16 %v514
        %v2535 = vunpack.c.h.b16 %v514
        %v2536 = vunpack.c.l.b16 %v515
        %v2537 = vunpack.c.h.b16 %v515
        %v2538 = vunpack.c.l.b16 %v516
        %v2539 = vunpack.c.h.b16 %v516
        %v2540 = vunpack.c.l.b16 %v517
        %v2541 = vunpack.c.h.b16 %v517
        %v2542 = vunpack.c.l.b16 %v518
        %v2543 = vunpack.c.h.b16 %v518
        %v2544 = vunpack.c.l.b16 %v519
        %v2545 = vunpack.c.h.b16 %v519
        %v2546 = vunpack.c.l.b16 %v520
        %v2547 = vunpack.c.h.b16 %v520
        %v2548 = vunpack.c.l.b16 %v521
        %v2549 = vunpack.c.h.b16 %v521
        %v2550 = vunpack.c.l.b16 %v522
        %v2551 = vunpack.c.h.b16 %v522
        %v2552 = vunpack.c.l.b16 %v523
        %v2553 = vunpack.c.h.b16 %v523
        %v2554 = vunpack.c.l.b16 %v524
        %v2555 = vunpack.c.h.b16 %v524
        %v2556 = vunpack.c.l.b16 %v525
        %v2557 = vunpack.c.h.b16 %v525
        %v2558 = vunpack.c.l.b16 %v526
        %v2559 = vunpack.c.h.b16 %v526
        %v2560 = vunpack.c.l.b16 %v527
        %v2561 = vunpack.c.h.b16 %v527
        %v2562 = vunpack.c.l.b16 %v528
        %v2563 = vunpack.c.h.b16 %v528
        %v2564 = vunpack.c.l.b16 %v529
        %v2565 = vunpack.c.h.b16 %v529
        %v2566 = vunpack.c.l.b16 %v530
        %v2567 = vunpack.c.h.b16 %v530
        %v2568 = vunpack.c.l.b16 %v531
        %v2569 = vunpack.c.h.b16 %v531
        %v2570 = vunpack.c.l.b16 %v532
        %v2571 = vunpack.c.h.b16 %v532
        %v2572 = vunpack.c.l.b16 %v533
        %v2573 = vunpack.c.h.b16 %v533
        %v2574 = vunpack.c.l.b16 %v534
        %v2575 = vunpack.c.h.b16 %v534
        %v2576 = vunpack.c.l.b16 %v535
        %v2577 = vunpack.c.h.b16 %v535
        %v2578 = vunpack.c.l.b16 %v536
        %v2579 = vunpack.c.h.b16 %v536
        %v2580 = vunpack.c.l.b16 %v537
        %v2581 = vunpack.c.h.b16 %v537
        %v2582 = vunpack.c.l.b16 %v538
        %v2583 = vunpack.c.h.b16 %v538
        %v2584 = vunpack.c.l.b16 %v539
        %v2585 = vunpack.c.h.b16 %v539
        %v2586 = vunpack.c.l.b16 %v540
        %v2587 = vunpack.c.h.b16 %v540
        %v2588 = vunpack.c.l.b16 %v541
        %v2589 = vunpack.c.h.b16 %v541
        %v2590 = vunpack.c.l.b16 %v542
        %v2591 = vunpack.c.h.b16 %v542
        %v2592 = vunpack.c.l.b16 %v543
        %v2593 = vunpack.c.h.b16 %v543
        %v2594 = vunpack.c.l.b16 %v544
        %v2595 = vunpack.c.h.b16 %v544
        %v2596 = vunpack.c.l.b16 %v545
        %v2597 = vunpack.c.h.b16 %v545
        %v2598 = vunpack.c.l.b16 %v546
        %v2599 = vunpack.c.h.b16 %v546
        %v2600 = vunpack.c.l.b16 %v547
        %v2601 = vunpack.c.h.b16 %v547
        %v2602 = vunpack.c.l.b16 %v548
        %v2603 = vunpack.c.h.b16 %v548
        %v2604 = vunpack.c.l.b16 %v549
        %v2605 = vunpack.c.h.b16 %v549
        %v2606 = vunpack.c.l.b16 %v550
        %v2607 = vunpack.c.h.b16 %v550
        %v2608 = vunpack.c.l.b16 %v551
        %v2609 = vunpack.c.h.b16 %v551
        %v2610 = vunpack.c.l.b16 %v552
        %v2611 = vunpack.c.h.b16 %v552
        %v2612 = vunpack.c.l.b16 %v553
        %v2613 = vunpack.c.h.b16 %v553
        %v2614 = vunpack.c.l.b16 %v554
        %v2615 = vunpack.c.h.b16 %v554
        %v2616 = vunpack.c.l.b16 %v555
        %v2617 = vunpack.c.h.b16 %v555
        %v2618 = vunpack.c.l.b16 %v556
        %v2619 = vunpack.c.h.b16 %v556
        %v2620 = vunpack.c.l.b16 %v557
        %v2621 = vunpack.c.h.b16 %v557
        %v2622 = vunpack.c.l.b16 %v558
        %v2623 = vunpack.c.h.b16 %v558
        %v2624 = vunpack.c.l.b16 %v559
        %v2625 = vunpack.c.h.b16 %v559
        %v2626 = vunpack.c.l.b16 %v560
        %v2627 = vunpack.c.h.b16 %v560
        %v2628 = vunpack.c.l.b16 %v561
        %v2629 = vunpack.c.h.b16 %v561
        %v2630 = vunpack.c.l.b16 %v562
        %v2631 = vunpack.c.h.b16 %v562
        %v2632 = vunpack.c.l.b16 %v563
        %v2633 = vunpack.c.h.b16 %v563
        %v2634 = vunpack.c.l.b16 %v564
        %v2635 = vunpack.c.h.b16 %v564
        %v2636 = vunpack.c.l.b16 %v565
        %v2637 = vunpack.c.h.b16 %v565
        %v2638 = vunpack.c.l.b16 %v566
        %v2639 = vunpack.c.h.b16 %v566
        %v2640 = vunpack.c.l.b16 %v567
        %v2641 = vunpack.c.h.b16 %v567
        %v2642 = vunpack.c.l.b16 %v568
        %v2643 = vunpack.c.h.b16 %v568
        %v2644 = vunpack.c.l.b16 %v569
        %v2645 = vunpack.c.h.b16 %v569
        %v2646 = vunpack.c.l.b16 %v570
        %v2647 = vunpack.c.h.b16 %v570
        %v2648 = vunpack.c.l.b16 %v571
        %v2649 = vunpack.c.h.b16 %v571
        %v2650 = vunpack.c.l.b16 %v572
        %v2651 = vunpack.c.h.b16 %v572
        %v2652 = vunpack.c.l.b16 %v573
        %v2653 = vunpack.c.h.b16 %v573
        %v2654 = vunpack.c.l.b16 %v574
        %v2655 = vunpack.c.h.b16 %v574
        %v2656 = vunpack.c.l.b16 %v575
        %v2657 = vunpack.c.h.b16 %v575
        %v2658 = vunpack.c.l.b16 %v576
        %v2659 = vunpack.c.h.b16 %v576
        %v2660 = vunpack.c.l.b16 %v577
        %v2661 = vunpack.c.h.b16 %v577
        %v2662 = vunpack.c.l.b16 %v578
        %v2663 = vunpack.c.h.b16 %v578
        %v2664 = vunpack.c.l.b16 %v579
        %v2665 = vunpack.c.h.b16 %v579
        %v2666 = vunpack.c.l.b16 %v580
        %v2667 = vunpack.c.h.b16 %v580
        %v2668 = vunpack.c.l.b16 %v581
        %v2669 = vunpack.c.h.b16 %v581
        %v2670 = vunpack.c.l.b16 %v582
        %v2671 = vunpack.c.h.b16 %v582
        %v2672 = vunpack.c.l.b16 %v583
        %v2673 = vunpack.c.h.b16 %v583
        %v2674 = vunpack.c.l.b16 %v584
        %v2675 = vunpack.c.h.b16 %v584
        %v2676 = vunpack.c.l.b16 %v585
        %v2677 = vunpack.c.h.b16 %v585
        %v2678 = vunpack.c.l.b16 %v586
        %v2679 = vunpack.c.h.b16 %v586
        %v2680 = vunpack.c.l.b16 %v587
        %v2681 = vunpack.c.h.b16 %v587
        %v2682 = vunpack.c.l.b16 %v588
        %v2683 = vunpack.c.h.b16 %v588
        %v2684 = vunpack.c.l.b16 %v589
        %v2685 = vunpack.c.h.b16 %v589
        %v2686 = vunpack.c.l.b16 %v590
        %v2687 = vunpack.c.h.b16 %v590
        %v2688 = vunpack.c.l.b16 %v591
        %v2689 = vunpack.c.h.b16 %v591
        %v2690 = vunpack.c.l.b16 %v592
        %v2691 = vunpack.c.h.b16 %v592
        %v2692 = vunpack.c.l.b16 %v593
        %v2693 = vunpack.c.h.b16 %v593
        %v2694 = vunpack.c.l.b16 %v594
        %v2695 = vunpack.c.h.b16 %v594
        %v2696 = vunpack.c.l.b16 %v595
        %v2697 = vunpack.c.h.b16 %v595
        %v2698 = vunpack.c.l.b16 %v596
        %v2699 = vunpack.c.h.b16 %v596
        %v2700 = vunpack.c.l.b16 %v597
        %v2701 = vunpack.c.h.b16 %v597
        %v2702 = vunpack.c.l.b16 %v598
        %v2703 = vunpack.c.h.b16 %v598
        %v2704 = vunpack.c.l.b16 %v599
        %v2705 = vunpack.c.h.b16 %v599
        %v2706 = vunpack.c.l.b16 %v600
        %v2707 = vunpack.c.h.b16 %v600
        %v2708 = vunpack.c.l.b16 %v601
        %v2709 = vunpack.c.h.b16 %v601
        %v2710 = vunpack.c.l.b16 %v602
        %v2711 = vunpack.c.h.b16 %v602
        %v2712 = vunpack.c.l.b16 %v603
        %v2713 = vunpack.c.h.b16 %v603
        %v2714 = vunpack.c.l.b16 %v604
        %v2715 = vunpack.c.h.b16 %v604
        %v2716 = vunpack.c.l.b16 %v605
        %v2717 = vunpack.c.h.b16 %v605
        %v2718 = vunpack.c.l.b16 %v606
        %v2719 = vunpack.c.h.b16 %v606
        %v2720 = vunpack.c.l.b16 %v607
        %v2721 = vunpack.c.h.b16 %v607
        %v2722 = vunpack.c.l.b16 %v608
        %v2723 = vunpack.c.h.b16 %v608
        %v2724 = vunpack.c.l.b16 %v609
        %v2725 = vunpack.c.h.b16 %v609
        %v2726 = vunpack.c.l.b16 %v610
        %v2727 = vunpack.c.h.b16 %v610
        %v2728 = vunpack.c.l.b16 %v611
        %v2729 = vunpack.c.h.b16 %v611
        %v2730 = vunpack.c.l.b16 %v612
        %v2731 = vunpack.c.h.b16 %v612
        %v2732 = vunpack.c.l.b16 %v613
        %v2733 = vunpack.c.h.b16 %v613
        %v2734 = vunpack.c.l.b16 %v614
        %v2735 = vunpack.c.h.b16 %v614
        %v2736 = vunpack.c.l.b16 %v615
        %v2737 = vunpack.c.h.b16 %v615
        %v2738 = vunpack.c.l.b16 %v616
        %v2739 = vunpack.c.h.b16 %v616
        %v2740 = vunpack.c.l.b16 %v617
        %v2741 = vunpack.c.h.b16 %v617
        %v2742 = vunpack.c.l.b16 %v618
        %v2743 = vunpack.c.h.b16 %v618
        %v2744 = vunpack.c.l.b16 %v619
        %v2745 = vunpack.c.h.b16 %v619
        %v2746 = vunpack.c.l.b16 %v620
        %v2747 = vunpack.c.h.b16 %v620
        %v2748 = vunpack.c.l.b16 %v621
        %v2749 = vunpack.c.h.b16 %v621
        %v2750 = vunpack.c.l.b16 %v622
        %v2751 = vunpack.c.h.b16 %v622
        %v2752 = vunpack.c.l.b16 %v623
        %v2753 = vunpack.c.h.b16 %v623
        %v2754 = vunpack.c.l.b16 %v624
        %v2755 = vunpack.c.h.b16 %v624
        %v2756 = vunpack.c.l.b16 %v625
        %v2757 = vunpack.c.h.b16 %v625
        %v2758 = vunpack.c.l.b16 %v626
        %v2759 = vunpack.c.h.b16 %v626
        %v2760 = vunpack.c.l.b16 %v627
        %v2761 = vunpack.c.h.b16 %v627
        %v2762 = vunpack.c.l.b16 %v628
        %v2763 = vunpack.c.h.b16 %v628
        %v2764 = vunpack.c.l.b16 %v629
        %v2765 = vunpack.c.h.b16 %v629
        %v2766 = vunpack.c.l.b16 %v630
        %v2767 = vunpack.c.h.b16 %v630
        %v2768 = vunpack.c.l.b16 %v631
        %v2769 = vunpack.c.h.b16 %v631
        %v2770 = vunpack.c.l.b16 %v632
        %v2771 = vunpack.c.h.b16 %v632
        %v2772 = vunpack.c.l.b16 %v633
        %v2773 = vunpack.c.h.b16 %v633
        %v2774 = vunpack.c.l.b16 %v634
        %v2775 = vunpack.c.h.b16 %v634
        %v2776 = vunpack.c.l.b16 %v635
        %v2777 = vunpack.c.h.b16 %v635
        %v2778 = vunpack.c.l.b16 %v636
        %v2779 = vunpack.c.h.b16 %v636
        %v2780 = vunpack.c.l.b16 %v637
        %v2781 = vunpack.c.h.b16 %v637
        %v2782 = vunpack.c.l.b16 %v638
        %v2783 = vunpack.c.h.b16 %v638
        %v2784 = vunpack.c.l.b16 %v639
        %v2785 = vunpack.c.h.b16 %v639
        %v2786 = vunpack.c.l.b16 %v640
        %v2787 = vunpack.c.h.b16 %v640
        %v2788 = vunpack.c.l.b16 %v641
        %v2789 = vunpack.c.h.b16 %v641
        %v2790 = vunpack.c.l.b16 %v642
        %v2791 = vunpack.c.h.b16 %v642
        %v2792 = vunpack.c.l.b16 %v643
        %v2793 = vunpack.c.h.b16 %v643
        %v2794 = vunpack.c.l.b16 %v644
        %v2795 = vunpack.c.h.b16 %v644
        %v2796 = vunpack.c.l.b16 %v645
        %v2797 = vunpack.c.h.b16 %v645
        %v2798 = vunpack.c.l.b16 %v646
        %v2799 = vunpack.c.h.b16 %v646
        %v2800 = vunpack.c.l.b16 %v647
        %v2801 = vunpack.c.h.b16 %v647
        %v2802 = vunpack.c.l.b16 %v648
        %v2803 = vunpack.c.h.b16 %v648
        %v2804 = vunpack.c.l.b16 %v649
        %v2805 = vunpack.c.h.b16 %v649
        %v2806 = vunpack.c.l.b16 %v650
        %v2807 = vunpack.c.h.b16 %v650
        %v2808 = vunpack.c.l.b16 %v651
        %v2809 = vunpack.c.h.b16 %v651
        %v2810 = vunpack.c.l.b16 %v652
        %v2811 = vunpack.c.h.b16 %v652
        %v2812 = vunpack.c.l.b16 %v653
        %v2813 = vunpack.c.h.b16 %v653
        %v2814 = vunpack.c.l.b16 %v654
        %v2815 = vunpack.c.h.b16 %v654
        %v2816 = vunpack.c.l.b16 %v655
        %v2817 = vunpack.c.h.b16 %v655
        %v2818 = vunpack.c.l.b16 %v656
        %v2819 = vunpack.c.h.b16 %v656
        %v2820 = vunpack.c.l.b16 %v657
        %v2821 = vunpack.c.h.b16 %v657
        %v2822 = vunpack.c.l.b16 %v658
        %v2823 = vunpack.c.h.b16 %v658
        %v2824 = vunpack.c.l.b16 %v659
        %v2825 = vunpack.c.h.b16 %v659
        %v2826 = vunpack.c.l.b16 %v660
        %v2827 = vunpack.c.h.b16 %v660
        %v2828 = vunpack.c.l.b16 %v661
        %v2829 = vunpack.c.h.b16 %v661
        %v2830 = vunpack.c.l.b16 %v662
        %v2831 = vunpack.c.h.b16 %v662
        %v2832 = vunpack.c.l.b16 %v663
        %v2833 = vunpack.c.h.b16 %v663
        %v2834 = vunpack.c.l.b16 %v664
        %v2835 = vunpack.c.h.b16 %v664
        %v2836 = vunpack.c.l.b16 %v665
        %v2837 = vunpack.c.h.b16 %v665
        %v2838 = vunpack.c.l.b16 %v666
        %v2839 = vunpack.c.h.b16 %v666
        %v2840 = vunpack.c.l.b16 %v667
        %v2841 = vunpack.c.h.b16 %v667
        %v2842 = vunpack.c.l.b16 %v668
        %v2843 = vunpack.c.h.b16 %v668
        %v2844 = vunpack.c.l.b16 %v669
        %v2845 = vunpack.c.h.b16 %v669
        %v2846 = vunpack.c.l.b16 %v670
        %v2847 = vunpack.c.h.b16 %v670
        %v2848 = vunpack.c.l.b16 %v671
        %v2849 = vunpack.c.h.b16 %v671
        %v2850 = vunpack.c.l.b16 %v672
        %v2851 = vunpack.c.h.b16 %v672
        %v2852 = vunpack.c.l.b16 %v673
        %v2853 = vunpack.c.h.b16 %v673
        %v2854 = vunpack.c.l.b16 %v674
        %v2855 = vunpack.c.h.b16 %v674
        %v2856 = vunpack.c.l.b16 %v675
        %v2857 = vunpack.c.h.b16 %v675
        %v2858 = vunpack.c.l.b16 %v676
        %v2859 = vunpack.c.h.b16 %v676
        %v2860 = vunpack.c.l.b16 %v677
        %v2861 = vunpack.c.h.b16 %v677
        %v2862 = vunpack.c.l.b16 %v678
        %v2863 = vunpack.c.h.b16 %v678
        %v2864 = vunpack.c.l.b16 %v679
        %v2865 = vunpack.c.h.b16 %v679
        %v2866 = vunpack.c.l.b16 %v680
        %v2867 = vunpack.c.h.b16 %v680
        %v2868 = vunpack.c.l.b16 %v681
        %v2869 = vunpack.c.h.b16 %v681
        %v2870 = vunpack.c.l.b16 %v682
        %v2871 = vunpack.c.h.b16 %v682
        %v2872 = vunpack.c.l.b16 %v683
        %v2873 = vunpack.c.h.b16 %v683
        %v2874 = vunpack.c.l.b16 %v684
        %v2875 = vunpack.c.h.b16 %v684
        %v2876 = vunpack.c.l.b16 %v685
        %v2877 = vunpack.c.h.b16 %v685
        %v2878 = vunpack.c.l.b16 %v686
        %v2879 = vunpack.c.h.b16 %v686
        %v2880 = vunpack.c.l.b16 %v687
        %v2881 = vunpack.c.h.b16 %v687
        %v2882 = vunpack.c.l.b16 %v688
        %v2883 = vunpack.c.h.b16 %v688
        %v2884 = vunpack.c.l.b16 %v689
        %v2885 = vunpack.c.h.b16 %v689
        %v2886 = vunpack.c.l.b16 %v690
        %v2887 = vunpack.c.h.b16 %v690
        %v2888 = vunpack.c.l.b16 %v691
        %v2889 = vunpack.c.h.b16 %v691
        %v2890 = vunpack.c.l.b16 %v692
        %v2891 = vunpack.c.h.b16 %v692
        %v2892 = vunpack.c.l.b16 %v693
        %v2893 = vunpack.c.h.b16 %v693
        %v2894 = vunpack.c.l.b16 %v694
        %v2895 = vunpack.c.h.b16 %v694
        %v2896 = vunpack.c.l.b16 %v695
        %v2897 = vunpack.c.h.b16 %v695
        %v2898 = vunpack.c.l.b16 %v696
        %v2899 = vunpack.c.h.b16 %v696
        %v2900 = vunpack.c.l.b16 %v697
        %v2901 = vunpack.c.h.b16 %v697
        %v2902 = vunpack.c.l.b16 %v698
        %v2903 = vunpack.c.h.b16 %v698
        %v2904 = vunpack.c.l.b16 %v699
        %v2905 = vunpack.c.h.b16 %v699
        %v2906 = vunpack.c.l.b16 %v700
        %v2907 = vunpack.c.h.b16 %v700
        %v2908 = vunpack.c.l.b16 %v701
        %v2909 = vunpack.c.h.b16 %v701
        %v2910 = vunpack.c.l.b16 %v702
        %v2911 = vunpack.c.h.b16 %v702
        %v2912 = vunpack.c.l.b16 %v703
        %v2913 = vunpack.c.h.b16 %v703
        %v2914 = vunpack.c.l.b16 %v704
        %v2915 = vunpack.c.h.b16 %v704
        %v2916 = vunpack.c.l.b16 %v705
        %v2917 = vunpack.c.h.b16 %v705
        %v2918 = vunpack.c.l.b16 %v706
        %v2919 = vunpack.c.h.b16 %v706
        %v2920 = vunpack.c.l.b16 %v707
        %v2921 = vunpack.c.h.b16 %v707
        %v2922 = vunpack.c.l.b16 %v708
        %v2923 = vunpack.c.h.b16 %v708
        %v2924 = vunpack.c.l.b16 %v709
        %v2925 = vunpack.c.h.b16 %v709
        %v2926 = vunpack.c.l.b16 %v710
        %v2927 = vunpack.c.h.b16 %v710
        %v2928 = vunpack.c.l.b16 %v711
        %v2929 = vunpack.c.h.b16 %v711
        %v2930 = vunpack.c.l.b16 %v712
        %v2931 = vunpack.c.h.b16 %v712
        %v2932 = vunpack.c.l.b16 %v713
        %v2933 = vunpack.c.h.b16 %v713
        %v2934 = vunpack.c.l.b16 %v714
        %v2935 = vunpack.c.h.b16 %v714
        %v2936 = vunpack.c.l.b16 %v715
        %v2937 = vunpack.c.h.b16 %v715
        %v2938 = vunpack.c.l.b16 %v716
        %v2939 = vunpack.c.h.b16 %v716
        %v2940 = vunpack.c.l.b16 %v717
        %v2941 = vunpack.c.h.b16 %v717
        %v2942 = vunpack.c.l.b16 %v718
        %v2943 = vunpack.c.h.b16 %v718
        %v2944 = vunpack.c.l.b16 %v719
        %v2945 = vunpack.c.h.b16 %v719
        %v2946 = vunpack.c.l.b16 %v720
        %v2947 = vunpack.c.h.b16 %v720
        %v2948 = vunpack.c.l.b16 %v721
        %v2949 = vunpack.c.h.b16 %v721
        %v2950 = vunpack.c.l.b16 %v722
        %v2951 = vunpack.c.h.b16 %v722
        %v2952 = vunpack.c.l.b16 %v723
        %v2953 = vunpack.c.h.b16 %v723
        %v2954 = vunpack.c.l.b16 %v724
        %v2955 = vunpack.c.h.b16 %v724
        %v2956 = vunpack.c.l.b16 %v725
        %v2957 = vunpack.c.h.b16 %v725
        %v2958 = vunpack.c.l.b16 %v726
        %v2959 = vunpack.c.h.b16 %v726
        %v2960 = vunpack.c.l.b16 %v727
        %v2961 = vunpack.c.h.b16 %v727
        %v2962 = vunpack.c.l.b16 %v728
        %v2963 = vunpack.c.h.b16 %v728
        %v2964 = vunpack.c.l.b16 %v729
        %v2965 = vunpack.c.h.b16 %v729
        %v2966 = vunpack.c.l.b16 %v730
        %v2967 = vunpack.c.h.b16 %v730
        %v2968 = vunpack.c.l.b16 %v731
        %v2969 = vunpack.c.h.b16 %v731
        %v2970 = vunpack.c.l.b16 %v732
        %v2971 = vunpack.c.h.b16 %v732
        %v2972 = vunpack.c.l.b16 %v733
        %v2973 = vunpack.c.h.b16 %v733
        %v2974 = vunpack.c.l.b16 %v734
        %v2975 = vunpack.c.h.b16 %v734
        %v2976 = vunpack.c.l.b16 %v735
        %v2977 = vunpack.c.h.b16 %v735
        %v2978 = vunpack.c.l.b16 %v736
        %v2979 = vunpack.c.h.b16 %v736
        %v2980 = vunpack.c.l.b16 %v737
        %v2981 = vunpack.c.h.b16 %v737
        %v2982 = vunpack.c.l.b16 %v738
        %v2983 = vunpack.c.h.b16 %v738
        %v2984 = vunpack.c.l.b16 %v739
        %v2985 = vunpack.c.h.b16 %v739
        %v2986 = vunpack.c.l.b16 %v740
        %v2987 = vunpack.c.h.b16 %v740
        %v2988 = vunpack.c.l.b16 %v741
        %v2989 = vunpack.c.h.b16 %v741
        %v2990 = vunpack.c.l.b16 %v742
        %v2991 = vunpack.c.h.b16 %v742
        %v2992 = vunpack.c.l.b16 %v743
        %v2993 = vunpack.c.h.b16 %v743
        %v2994 = vunpack.c.l.b16 %v744
        %v2995 = vunpack.c.h.b16 %v744
        %v2996 = vunpack.c.l.b16 %v745
        %v2997 = vunpack.c.h.b16 %v745
        %v2998 = vunpack.c.l.b16 %v746
        %v2999 = vunpack.c.h.b16 %v746
        %v3000 = vunpack.c.l.b16 %v747
        %v3001 = vunpack.c.h.b16 %v747
        %v3002 = vunpack.c.l.b16 %v748
        %v3003 = vunpack.c.h.b16 %v748
        %v3004 = vunpack.c.l.b16 %v749
        %v3005 = vunpack.c.h.b16 %v749
        %v3006 = vunpack.c.l.b16 %v750
        %v3007 = vunpack.c.h.b16 %v750
        %v3008 = vunpack.c.l.b16 %v751
        %v3009 = vunpack.c.h.b16 %v751
        %v3010 = vunpack.c.l.b16 %v752
        %v3011 = vunpack.c.h.b16 %v752
        %v3012 = vunpack.c.l.b16 %v753
        %v3013 = vunpack.c.h.b16 %v753
        %v3014 = vunpack.c.l.b16 %v754
        %v3015 = vunpack.c.h.b16 %v754
        %v3016 = vunpack.c.l.b16 %v755
        %v3017 = vunpack.c.h.b16 %v755
        %v3018 = vunpack.c.l.b16 %v756
        %v3019 = vunpack.c.h.b16 %v756
        %v3020 = vunpack.c.l.b16 %v757
        %v3021 = vunpack.c.h.b16 %v757
        %v3022 = vunpack.c.l.b16 %v758
        %v3023 = vunpack.c.h.b16 %v758
        %v3024 = vunpack.c.l.b16 %v759
        %v3025 = vunpack.c.h.b16 %v759
        %v3026 = vunpack.c.l.b16 %v760
        %v3027 = vunpack.c.h.b16 %v760
        %v3028 = vunpack.c.l.b16 %v761
        %v3029 = vunpack.c.h.b16 %v761
        %v3030 = vunpack.c.l.b16 %v762
        %v3031 = vunpack.c.h.b16 %v762
        %v3032 = vunpack.c.l.b16 %v763
        %v3033 = vunpack.c.h.b16 %v763
        %v3034 = vunpack.c.l.b16 %v764
        %v3035 = vunpack.c.h.b16 %v764
        %v3036 = vunpack.c.l.b16 %v765
        %v3037 = vunpack.c.h.b16 %v765
        %v3038 = vunpack.c.l.b16 %v766
        %v3039 = vunpack.c.h.b16 %v766
        %v3040 = vunpack.c.l.b16 %v767
        %v3041 = vunpack.c.h.b16 %v767
        %v3042 = vunpack.c.l.b16 %v768
        %v3043 = vunpack.c.h.b16 %v768
        %v3044 = vunpack.c.l.b16 %v769
        %v3045 = vunpack.c.h.b16 %v769
        %v3046 = vunpack.c.l.b16 %v770
        %v3047 = vunpack.c.h.b16 %v770
        %v3048 = vunpack.c.l.b16 %v771
        %v3049 = vunpack.c.h.b16 %v771
        %v3050 = vunpack.c.l.b16 %v772
        %v3051 = vunpack.c.h.b16 %v772
        %v3052 = vunpack.c.l.b16 %v773
        %v3053 = vunpack.c.h.b16 %v773
        %v3054 = vunpack.c.l.b16 %v774
        %v3055 = vunpack.c.h.b16 %v774
        %v3056 = vunpack.c.l.b16 %v775
        %v3057 = vunpack.c.h.b16 %v775
        %v3058 = vunpack.c.l.b16 %v776
        %v3059 = vunpack.c.h.b16 %v776
        %v3060 = vunpack.c.l.b16 %v777
        %v3061 = vunpack.c.h.b16 %v777
        %v3062 = vunpack.c.l.b16 %v778
        %v3063 = vunpack.c.h.b16 %v778
        %v3064 = vunpack.c.l.b16 %v779
        %v3065 = vunpack.c.h.b16 %v779
        %v3066 = vunpack.c.l.b16 %v780
        %v3067 = vunpack.c.h.b16 %v780
        %v3068 = vunpack.c.l.b16 %v781
        %v3069 = vunpack.c.h.b16 %v781
        %v3070 = vunpack.c.l.b16 %v782
        %v3071 = vunpack.c.h.b16 %v782
        %v3072 = vunpack.c.l.b16 %v783
        %v3073 = vunpack.c.h.b16 %v783
        %v3074 = vunpack.c.l.b16 %v784
        %v3075 = vunpack.c.h.b16 %v784
        %v3076 = vunpack.c.l.b16 %v785
        %v3077 = vunpack.c.h.b16 %v785
        %v3078 = vunpack.c.l.b16 %v786
        %v3079 = vunpack.c.h.b16 %v786
        %v3080 = vunpack.c.l.b16 %v787
        %v3081 = vunpack.c.h.b16 %v787
        %v3082 = vunpack.c.l.b16 %v788
        %v3083 = vunpack.c.h.b16 %v788
        %v3084 = vunpack.c.l.b16 %v789
        %v3085 = vunpack.c.h.b16 %v789
        %v3086 = vunpack.c.l.b16 %v790
        %v3087 = vunpack.c.h.b16 %v790
        %v3088 = vunpack.c.l.b16 %v791
        %v3089 = vunpack.c.h.b16 %v791
        %v3090 = vunpack.c.l.b16 %v792
        %v3091 = vunpack.c.h.b16 %v792
        %v3092 = vunpack.c.l.b16 %v793
        %v3093 = vunpack.c.h.b16 %v793
        %v3094 = vunpack.c.l.b16 %v794
        %v3095 = vunpack.c.h.b16 %v794
        %v3096 = vunpack.c.l.b16 %v795
        %v3097 = vunpack.c.h.b16 %v795
        %v3098 = vunpack.c.l.b16 %v796
        %v3099 = vunpack.c.h.b16 %v796
        %v3100 = vunpack.c.l.b16 %v797
        %v3101 = vunpack.c.h.b16 %v797
        %v3102 = vunpack.c.l.b16 %v798
        %v3103 = vunpack.c.h.b16 %v798
        %v3104 = vunpack.c.l.b16 %v799
        %v3105 = vunpack.c.h.b16 %v799
        %v3106 = vunpack.c.l.b16 %v800
        %v3107 = vunpack.c.h.b16 %v800
        %v3108 = vunpack.c.l.b16 %v801
        %v3109 = vunpack.c.h.b16 %v801
        %v3110 = vunpack.c.l.b16 %v802
        %v3111 = vunpack.c.h.b16 %v802
        %v3112 = vunpack.c.l.b16 %v803
        %v3113 = vunpack.c.h.b16 %v803
        %v3114 = vunpack.c.l.b16 %v804
        %v3115 = vunpack.c.h.b16 %v804
        %v3116 = vunpack.c.l.b16 %v805
        %v3117 = vunpack.c.h.b16 %v805
        %v3118 = vunpack.c.l.b16 %v806
        %v3119 = vunpack.c.h.b16 %v806
        %v3120 = vunpack.c.l.b16 %v807
        %v3121 = vunpack.c.h.b16 %v807
        %v3122 = vunpack.c.l.b16 %v808
        %v3123 = vunpack.c.h.b16 %v808
        %v3124 = vunpack.c.l.b16 %v809
        %v3125 = vunpack.c.h.b16 %v809
        %v3126 = vunpack.c.l.b16 %v810
        %v3127 = vunpack.c.h.b16 %v810
        %v3128 = vunpack.c.l.b16 %v811
        %v3129 = vunpack.c.h.b16 %v811
        %v3130 = vunpack.c.l.b16 %v812
        %v3131 = vunpack.c.h.b16 %v812
        %v3132 = vunpack.c.l.b16 %v813
        %v3133 = vunpack.c.h.b16 %v813
        %v3134 = vunpack.c.l.b16 %v814
        %v3135 = vunpack.c.h.b16 %v814
        %v3136 = vunpack.c.l.b16 %v815
        %v3137 = vunpack.c.h.b16 %v815
        %v3138 = vunpack.c.l.b16 %v816
        %v3139 = vunpack.c.h.b16 %v816
        %v3140 = vunpack.c.l.b16 %v817
        %v3141 = vunpack.c.h.b16 %v817
        %v3142 = vunpack.c.l.b16 %v818
        %v3143 = vunpack.c.h.b16 %v818
        %v3144 = vunpack.c.l.b16 %v819
        %v3145 = vunpack.c.h.b16 %v819
        %v3146 = vunpack.c.l.b16 %v820
        %v3147 = vunpack.c.h.b16 %v820
        %v3148 = vunpack.c.l.b16 %v821
        %v3149 = vunpack.c.h.b16 %v821
        %v3150 = vunpack.c.l.b16 %v822
        %v3151 = vunpack.c.h.b16 %v822
        %v3152 = vunpack.c.l.b16 %v823
        %v3153 = vunpack.c.h.b16 %v823
        %v3154 = vunpack.c.l.b16 %v824
        %v3155 = vunpack.c.h.b16 %v824
        %v3156 = vunpack.c.l.b16 %v825
        %v3157 = vunpack.c.h.b16 %v825
        %v3158 = vunpack.c.l.b16 %v826
        %v3159 = vunpack.c.h.b16 %v826
        %v3160 = vunpack.c.l.b16 %v827
        %v3161 = vunpack.c.h.b16 %v827
        %v3162 = vunpack.c.l.b16 %v828
        %v3163 = vunpack.c.h.b16 %v828
        %v3164 = vunpack.c.l.b16 %v829
        %v3165 = vunpack.c.h.b16 %v829
        %v3166 = vunpack.c.l.b16 %v830
        %v3167 = vunpack.c.h.b16 %v830
        %v3168 = vunpack.c.l.b16 %v831
        %v3169 = vunpack.c.h.b16 %v831
        %v3170 = vunpack.c.l.b16 %v832
        %v3171 = vunpack.c.h.b16 %v832
        %v3172 = vunpack.c.l.b16 %v833
        %v3173 = vunpack.c.h.b16 %v833
        %v3174 = vunpack.c.l.b16 %v834
        %v3175 = vunpack.c.h.b16 %v834
        %v3176 = vunpack.c.l.b16 %v835
        %v3177 = vunpack.c.h.b16 %v835
        %v3178 = vunpack.c.l.b16 %v836
        %v3179 = vunpack.c.h.b16 %v836
        %v3180 = vunpack.c.l.b16 %v837
        %v3181 = vunpack.c.h.b16 %v837
        %v3182 = vunpack.c.l.b16 %v838
        %v3183 = vunpack.c.h.b16 %v838
        %v3184 = vunpack.c.l.b16 %v839
        %v3185 = vunpack.c.h.b16 %v839
        %v3186 = vunpack.c.l.b16 %v840
        %v3187 = vunpack.c.h.b16 %v840
        %v3188 = vunpack.c.l.b16 %v841
        %v3189 = vunpack.c.h.b16 %v841
        %v3190 = vunpack.c.l.b16 %v842
        %v3191 = vunpack.c.h.b16 %v842
        %v3192 = vunpack.c.l.b16 %v843
        %v3193 = vunpack.c.h.b16 %v843
        %v3194 = vunpack.c.l.b16 %v844
        %v3195 = vunpack.c.h.b16 %v844
        %v3196 = vunpack.c.l.b16 %v845
        %v3197 = vunpack.c.h.b16 %v845
        %v3198 = vunpack.c.l.b16 %v846
        %v3199 = vunpack.c.h.b16 %v846
        %v3200 = vunpack.c.l.b16 %v847
        %v3201 = vunpack.c.h.b16 %v847
        %v3202 = vunpack.c.l.b16 %v848
        %v3203 = vunpack.c.h.b16 %v848
        %v3204 = vunpack.c.l.b16 %v849
        %v3205 = vunpack.c.h.b16 %v849
        %v3206 = vunpack.c.l.b16 %v850
        %v3207 = vunpack.c.h.b16 %v850
        %v3208 = vunpack.c.l.b16 %v851
        %v3209 = vunpack.c.h.b16 %v851
        %v3210 = vunpack.c.l.b16 %v852
        %v3211 = vunpack.c.h.b16 %v852
        %v3212 = vunpack.c.l.b16 %v853
        %v3213 = vunpack.c.h.b16 %v853
        %v3214 = vunpack.c.l.b16 %v854
        %v3215 = vunpack.c.h.b16 %v854
        %v3216 = vunpack.c.l.b16 %v855
        %v3217 = vunpack.c.h.b16 %v855
        %v3218 = vunpack.c.l.b16 %v856
        %v3219 = vunpack.c.h.b16 %v856
        %v3220 = vunpack.c.l.b16 %v857
        %v3221 = vunpack.c.h.b16 %v857
        %v3222 = vunpack.c.l.b16 %v858
        %v3223 = vunpack.c.h.b16 %v858
        %v3224 = vunpack.c.l.b16 %v859
        %v3225 = vunpack.c.h.b16 %v859
        %v3226 = vunpack.c.l.b16 %v860
        %v3227 = vunpack.c.h.b16 %v860
        %v3228 = vunpack.c.l.b16 %v861
        %v3229 = vunpack.c.h.b16 %v861
        %v3230 = vunpack.c.l.b16 %v862
        %v3231 = vunpack.c.h.b16 %v862
        %v3232 = vunpack.c.l.b16 %v863
        %v3233 = vunpack.c.h.b16 %v863
        %v3234 = vunpack.c.l.b16 %v864
        %v3235 = vunpack.c.h.b16 %v864
        %v3236 = vunpack.c.l.b16 %v865
        %v3237 = vunpack.c.h.b16 %v865
        %v3238 = vunpack.c.l.b16 %v866
        %v3239 = vunpack.c.h.b16 %v866
        %v3240 = vunpack.c.l.b16 %v867
        %v3241 = vunpack.c.h.b16 %v867
        %v3242 = vunpack.c.l.b16 %v868
        %v3243 = vunpack.c.h.b16 %v868
        %v3244 = vunpack.c.l.b16 %v869
        %v3245 = vunpack.c.h.b16 %v869
        %v3246 = vunpack.c.l.b16 %v870
        %v3247 = vunpack.c.h.b16 %v870
        %v3248 = vunpack.c.l.b16 %v871
        %v3249 = vunpack.c.h.b16 %v871
        %v3250 = vunpack.c.l.b16 %v872
        %v3251 = vunpack.c.h.b16 %v872
        %v3252 = vunpack.c.l.b16 %v873
        %v3253 = vunpack.c.h.b16 %v873
        %v3254 = vunpack.c.l.b16 %v874
        %v3255 = vunpack.c.h.b16 %v874
        %v3256 = vunpack.c.l.b16 %v875
        %v3257 = vunpack.c.h.b16 %v875
        %v3258 = vunpack.c.l.b16 %v876
        %v3259 = vunpack.c.h.b16 %v876
        %v3260 = vunpack.c.l.b16 %v877
        %v3261 = vunpack.c.h.b16 %v877
        %v3262 = vunpack.c.l.b16 %v878
        %v3263 = vunpack.c.h.b16 %v878
        %v3264 = vunpack.c.l.b16 %v879
        %v3265 = vunpack.c.h.b16 %v879
        %v3266 = vunpack.c.l.b16 %v880
        %v3267 = vunpack.c.h.b16 %v880
        %v3268 = vunpack.c.l.b16 %v881
        %v3269 = vunpack.c.h.b16 %v881
        %v3270 = vunpack.c.l.b16 %v882
        %v3271 = vunpack.c.h.b16 %v882
        %v3272 = vunpack.c.l.b16 %v883
        %v3273 = vunpack.c.h.b16 %v883
        %v3274 = vunpack.c.l.b16 %v884
        %v3275 = vunpack.c.h.b16 %v884
        %v3276 = vunpack.c.l.b16 %v885
        %v3277 = vunpack.c.h.b16 %v885
        %v3278 = vunpack.c.l.b16 %v886
        %v3279 = vunpack.c.h.b16 %v886
        %v3280 = vunpack.c.l.b16 %v887
        %v3281 = vunpack.c.h.b16 %v887
        %v3282 = vunpack.c.l.b16 %v888
        %v3283 = vunpack.c.h.b16 %v888
        %v3284 = vunpack.c.l.b16 %v889
        %v3285 = vunpack.c.h.b16 %v889
        %v3286 = vunpack.c.l.b16 %v890
        %v3287 = vunpack.c.h.b16 %v890
        %v3288 = vunpack.c.l.b16 %v891
        %v3289 = vunpack.c.h.b16 %v891
        %v3290 = vunpack.c.l.b16 %v892
        %v3291 = vunpack.c.h.b16 %v892
        %v3292 = vunpack.c.l.b16 %v893
        %v3293 = vunpack.c.h.b16 %v893
        %v3294 = vunpack.c.l.b16 %v894
        %v3295 = vunpack.c.h.b16 %v894
        %v3296 = vunpack.c.l.b16 %v895
        %v3297 = vunpack.c.h.b16 %v895
        %v3298 = vunpack.c.l.b16 %v896
        %v3299 = vunpack.c.h.b16 %v896
        %v3300 = vunpack.c.l.b16 %v897
        %v3301 = vunpack.c.h.b16 %v897
        %v3302 = vunpack.c.l.b16 %v898
        %v3303 = vunpack.c.h.b16 %v898
        %v3304 = vunpack.c.l.b16 %v899
        %v3305 = vunpack.c.h.b16 %v899
        %v3306 = vunpack.c.l.b16 %v900
        %v3307 = vunpack.c.h.b16 %v900
        %v3308 = vunpack.c.l.b16 %v901
        %v3309 = vunpack.c.h.b16 %v901
        %v3310 = vunpack.c.l.b16 %v902
        %v3311 = vunpack.c.h.b16 %v902
        %v3312 = vunpack.c.l.b16 %v903
        %v3313 = vunpack.c.h.b16 %v903
        %v3314 = vunpack.c.l.b16 %v904
        %v3315 = vunpack.c.h.b16 %v904
        %v3316 = vunpack.c.l.b16 %v905
        %v3317 = vunpack.c.h.b16 %v905
        %v3318 = vunpack.c.l.b16 %v906
        %v3319 = vunpack.c.h.b16 %v906
        %v3320 = vunpack.c.l.b16 %v907
        %v3321 = vunpack.c.h.b16 %v907
        %v3322 = vunpack.c.l.b16 %v908
        %v3323 = vunpack.c.h.b16 %v908
        %v3324 = vunpack.c.l.b16 %v909
        %v3325 = vunpack.c.h.b16 %v909
        %v3326 = vunpack.c.l.b16 %v910
        %v3327 = vunpack.c.h.b16 %v910
        %v3328 = vunpack.c.l.b16 %v911
        %v3329 = vunpack.c.h.b16 %v911
        %v3330 = vunpack.c.l.b16 %v912
        %v3331 = vunpack.c.h.b16 %v912
        %v3332 = vunpack.c.l.b16 %v913
        %v3333 = vunpack.c.h.b16 %v913
        %v3334 = vunpack.c.l.b16 %v914
        %v3335 = vunpack.c.h.b16 %v914
        %v3336 = vunpack.c.l.b16 %v915
        %v3337 = vunpack.c.h.b16 %v915
        %v3338 = vunpack.c.l.b16 %v916
        %v3339 = vunpack.c.h.b16 %v916
        %v3340 = vunpack.c.l.b16 %v917
        %v3341 = vunpack.c.h.b16 %v917
        %v3342 = vunpack.c.l.b16 %v918
        %v3343 = vunpack.c.h.b16 %v918
        %v3344 = vunpack.c.l.b16 %v919
        %v3345 = vunpack.c.h.b16 %v919
        %v3346 = vunpack.c.l.b16 %v920
        %v3347 = vunpack.c.h.b16 %v920
        %v3348 = vunpack.c.l.b16 %v921
        %v3349 = vunpack.c.h.b16 %v921
        %v3350 = vunpack.c.l.b16 %v922
        %v3351 = vunpack.c.h.b16 %v922
        %v3352 = vunpack.c.l.b16 %v923
        %v3353 = vunpack.c.h.b16 %v923
        %v3354 = vunpack.c.l.b16 %v924
        %v3355 = vunpack.c.h.b16 %v924
        %v3356 = vunpack.c.l.b16 %v925
        %v3357 = vunpack.c.h.b16 %v925
        %v3358 = vunpack.c.l.b16 %v926
        %v3359 = vunpack.c.h.b16 %v926
        %v3360 = vunpack.c.l.b16 %v927
        %v3361 = vunpack.c.h.b16 %v927
        %v3362 = vunpack.c.l.b16 %v928
        %v3363 = vunpack.c.h.b16 %v928
        %v3364 = vunpack.c.l.b16 %v929
        %v3365 = vunpack.c.h.b16 %v929
        %v3366 = vunpack.c.l.b16 %v930
        %v3367 = vunpack.c.h.b16 %v930
        %v3368 = vunpack.c.l.b16 %v931
        %v3369 = vunpack.c.h.b16 %v931
        %v3370 = vunpack.c.l.b16 %v932
        %v3371 = vunpack.c.h.b16 %v932
        %v3372 = vunpack.c.l.b16 %v933
        %v3373 = vunpack.c.h.b16 %v933
        %v3374 = vunpack.c.l.b16 %v934
        %v3375 = vunpack.c.h.b16 %v934
        %v3376 = vunpack.c.l.b16 %v935
        %v3377 = vunpack.c.h.b16 %v935
        %v3378 = vunpack.c.l.b16 %v936
        %v3379 = vunpack.c.h.b16 %v936
        %v3380 = vunpack.c.l.b16 %v937
        %v3381 = vunpack.c.h.b16 %v937
        %v3382 = vunpack.c.l.b16 %v938
        %v3383 = vunpack.c.h.b16 %v938
        %v3384 = vunpack.c.l.b16 %v939
        %v3385 = vunpack.c.h.b16 %v939
        %v3386 = vunpack.c.l.b16 %v940
        %v3387 = vunpack.c.h.b16 %v940
        %v3388 = vunpack.c.l.b16 %v941
        %v3389 = vunpack.c.h.b16 %v941
        %v3390 = vunpack.c.l.b16 %v942
        %v3391 = vunpack.c.h.b16 %v942
        %v3392 = vunpack.c.l.b16 %v943
        %v3393 = vunpack.c.h.b16 %v943
        %v3394 = vunpack.c.l.b16 %v944
        %v3395 = vunpack.c.h.b16 %v944
        %v3396 = vunpack.c.l.b16 %v945
        %v3397 = vunpack.c.h.b16 %v945
        %v3398 = vunpack.c.l.b16 %v946
        %v3399 = vunpack.c.h.b16 %v946
        %v3400 = vunpack.c.l.b16 %v947
        %v3401 = vunpack.c.h.b16 %v947
        %v3402 = vunpack.c.l.b16 %v948
        %v3403 = vunpack.c.h.b16 %v948
        %v3404 = vunpack.c.l.b16 %v949
        %v3405 = vunpack.c.h.b16 %v949
        %v3406 = vunpack.c.l.b16 %v950
        %v3407 = vunpack.c.h.b16 %v950
        %v3408 = vunpack.c.l.b16 %v951
        %v3409 = vunpack.c.h.b16 %v951
        %v3410 = vunpack.c.l.b16 %v952
        %v3411 = vunpack.c.h.b16 %v952
        %v3412 = vunpack.c.l.b16 %v953
        %v3413 = vunpack.c.h.b16 %v953
        %v3414 = vunpack.c.l.b16 %v954
        %v3415 = vunpack.c.h.b16 %v954
        %v3416 = vunpack.c.l.b16 %v955
        %v3417 = vunpack.c.h.b16 %v955
        %v3418 = vunpack.c.l.b16 %v956
        %v3419 = vunpack.c.h.b16 %v956
        %v3420 = vunpack.c.l.b16 %v957
        %v3421 = vunpack.c.h.b16 %v957
        %v3422 = vunpack.c.l.b16 %v958
        %v3423 = vunpack.c.h.b16 %v958
        %v3424 = vunpack.c.l.b16 %v959
        %v3425 = vunpack.c.h.b16 %v959
        %v3426 = vunpack.c.l.b16 %v960
        %v3427 = vunpack.c.h.b16 %v960
        %v3428 = vunpack.c.l.b16 %v961
        %v3429 = vunpack.c.h.b16 %v961
        %v3430 = vunpack.c.l.b16 %v962
        %v3431 = vunpack.c.h.b16 %v962
        %v3432 = vunpack.c.l.b16 %v963
        %v3433 = vunpack.c.h.b16 %v963
        %v3434 = vunpack.c.l.b16 %v964
        %v3435 = vunpack.c.h.b16 %v964
        %v3436 = vunpack.c.l.b16 %v965
        %v3437 = vunpack.c.h.b16 %v965
        %v3438 = vunpack.c.l.b16 %v966
        %v3439 = vunpack.c.h.b16 %v966
        %v3440 = vunpack.c.l.b16 %v967
        %v3441 = vunpack.c.h.b16 %v967
        %v3442 = vunpack.c.l.b16 %v968
        %v3443 = vunpack.c.h.b16 %v968
        %v3444 = vunpack.c.l.b16 %v969
        %v3445 = vunpack.c.h.b16 %v969
        %v3446 = vunpack.c.l.b16 %v970
        %v3447 = vunpack.c.h.b16 %v970
        %v3448 = vunpack.c.l.b16 %v971
        %v3449 = vunpack.c.h.b16 %v971
        %v3450 = vunpack.c.l.b16 %v972
        %v3451 = vunpack.c.h.b16 %v972
        %v3452 = vunpack.c.l.b16 %v973
        %v3453 = vunpack.c.h.b16 %v973
        %v3454 = vunpack.c.l.b16 %v974
        %v3455 = vunpack.c.h.b16 %v974
        %v3456 = vunpack.c.l.b16 %v975
        %v3457 = vunpack.c.h.b16 %v975
        %v3458 = vunpack.c.l.b16 %v976
        %v3459 = vunpack.c.h.b16 %v976
        %v3460 = vunpack.c.l.b16 %v977
        %v3461 = vunpack.c.h.b16 %v977
        %v3462 = vunpack.c.l.b16 %v978
        %v3463 = vunpack.c.h.b16 %v978
        %v3464 = vunpack.c.l.b16 %v979
        %v3465 = vunpack.c.h.b16 %v979
        %v3466 = vunpack.c.l.b16 %v980
        %v3467 = vunpack.c.h.b16 %v980
        %v3468 = vunpack.c.l.b16 %v981
        %v3469 = vunpack.c.h.b16 %v981
        %v3470 = vunpack.c.l.b16 %v982
        %v3471 = vunpack.c.h.b16 %v982
        %v3472 = vunpack.c.l.b16 %v983
        %v3473 = vunpack.c.h.b16 %v983
        %v3474 = vunpack.c.l.b16 %v984
        %v3475 = vunpack.c.h.b16 %v984
        %v3476 = vunpack.c.l.b16 %v985
        %v3477 = vunpack.c.h.b16 %v985
        %v3478 = vunpack.c.l.b16 %v986
        %v3479 = vunpack.c.h.b16 %v986
        %v3480 = vunpack.c.l.b16 %v987
        %v3481 = vunpack.c.h.b16 %v987
        %v3482 = vunpack.c.l.b16 %v988
        %v3483 = vunpack.c.h.b16 %v988
        %v3484 = vunpack.c.l.b16 %v989
        %v3485 = vunpack.c.h.b16 %v989
        %v3486 = vunpack.c.l.b16 %v990
        %v3487 = vunpack.c.h.b16 %v990
        %v3488 = vunpack.c.l.b16 %v991
        %v3489 = vunpack.c.h.b16 %v991
        %v3490 = vunpack.c.l.b16 %v992
        %v3491 = vunpack.c.h.b16 %v992
        %v3492 = vunpack.c.l.b16 %v993
        %v3493 = vunpack.c.h.b16 %v993
        %v3494 = vunpack.c.l.b16 %v994
        %v3495 = vunpack.c.h.b16 %v994
        %v3496 = vunpack.c.l.b16 %v995
        %v3497 = vunpack.c.h.b16 %v995
        %v3498 = vunpack.c.l.b16 %v996
        %v3499 = vunpack.c.h.b16 %v996
        %v3500 = vunpack.c.l.b16 %v997
        %v3501 = vunpack.c.h.b16 %v997
        %v3502 = vunpack.c.l.b16 %v998
        %v3503 = vunpack.c.h.b16 %v998
        %v3504 = vunpack.c.l.b16 %v999
        %v3505 = vunpack.c.h.b16 %v999
        %v3506 = vunpack.c.l.b16 %v1000
        %v3507 = vunpack.c.h.b16 %v1000
        %v3508 = vunpack.c.l.b16 %v1001
        %v3509 = vunpack.c.h.b16 %v1001
        %v3510 = vunpack.c.l.b16 %v1002
        %v3511 = vunpack.c.h.b16 %v1002
        %v3512 = vunpack.c.l.b16 %v1003
        %v3513 = vunpack.c.h.b16 %v1003
        %v3514 = vunpack.c.l.b16 %v1004
        %v3515 = vunpack.c.h.b16 %v1004
        %v3516 = vunpack.c.l.b16 %v1005
        %v3517 = vunpack.c.h.b16 %v1005
        %v3518 = vunpack.c.l.b16 %v1006
        %v3519 = vunpack.c.h.b16 %v1006
        %v3520 = vunpack.c.l.b16 %v1007
        %v3521 = vunpack.c.h.b16 %v1007
        %v3522 = vunpack.c.l.b16 %v1008
        %v3523 = vunpack.c.h.b16 %v1008
        %v3524 = vunpack.c.l.b16 %v1009
        %v3525 = vunpack.c.h.b16 %v1009
        %v3526 = vunpack.c.l.b16 %v1010
        %v3527 = vunpack.c.h.b16 %v1010
        %v3528 = vunpack.c.l.b16 %v1011
        %v3529 = vunpack.c.h.b16 %v1011
        %v3530 = vunpack.c.l.b16 %v1012
        %v3531 = vunpack.c.h.b16 %v1012
        %v3532 = vunpack.c.l.b16 %v1013
        %v3533 = vunpack.c.h.b16 %v1013
        %v3534 = vunpack.c.l.b16 %v1014
        %v3535 = vunpack.c.h.b16 %v1014
        %v3536 = vunpack.c.l.b16 %v1015
        %v3537 = vunpack.c.h.b16 %v1015
        %v3538 = vunpack.c.l.b16 %v1016
        %v3539 = vunpack.c.h.b16 %v1016
        %v3540 = vunpack.c.l.b16 %v1017
        %v3541 = vunpack.c.h.b16 %v1017
        %v3542 = vunpack.c.l.b16 %v1018
        %v3543 = vunpack.c.h.b16 %v1018
        %v3544 = vunpack.c.l.b16 %v1019
        %v3545 = vunpack.c.h.b16 %v1019
        %v3546 = vunpack.c.l.b16 %v1020
        %v3547 = vunpack.c.h.b16 %v1020
        %v3548 = vunpack.c.l.b16 %v1021
        %v3549 = vunpack.c.h.b16 %v1021
        %v3550 = vunpack.c.l.b16 %v1022
        %v3551 = vunpack.c.h.b16 %v1022
        %v3552 = vunpack.c.l.b16 %v1023
        %v3553 = vunpack.c.h.b16 %v1023
        %v3554 = vunpack.c.l.b16 %v1024
        %v3555 = vunpack.c.h.b16 %v1024
        %v3556 = vunpack.c.l.b16 %v1025
        %v3557 = vunpack.c.h.b16 %v1025
        %v3558 = vunpack.c.l.b16 %v1026
        %v3559 = vunpack.c.h.b16 %v1026
        %v3560 = vunpack.c.l.b16 %v1027
        %v3561 = vunpack.c.h.b16 %v1027
        %v3562 = vunpack.c.l.b16 %v1028
        %v3563 = vunpack.c.h.b16 %v1028
        %v3564 = vunpack.c.l.b16 %v1029
        %v3565 = vunpack.c.h.b16 %v1029
        %v3566 = vunpack.c.l.b16 %v1030
        %v3567 = vunpack.c.h.b16 %v1030
        %v3568 = vunpack.c.l.b16 %v1031
        %v3569 = vunpack.c.h.b16 %v1031
        %v3570 = vunpack.c.l.b16 %v1032
        %v3571 = vunpack.c.h.b16 %v1032
        %v3572 = vunpack.c.l.b16 %v1033
        %v3573 = vunpack.c.h.b16 %v1033
        %v3574 = vunpack.c.l.b16 %v1034
        %v3575 = vunpack.c.h.b16 %v1034
        %v3576 = vunpack.c.l.b16 %v1035
        %v3577 = vunpack.c.h.b16 %v1035
        %v3578 = vunpack.c.l.b16 %v1036
        %v3579 = vunpack.c.h.b16 %v1036
        %v3580 = vunpack.c.l.b16 %v1037
        %v3581 = vunpack.c.h.b16 %v1037
        %v3582 = vunpack.c.l.b16 %v1038
        %v3583 = vunpack.c.h.b16 %v1038
        %v3584 = vunpack.c.l.b16 %v1039
        %v3585 = vunpack.c.h.b16 %v1039
        %v3586 = vunpack.c.l.b16 %v1040
        %v3587 = vunpack.c.h.b16 %v1040
        %v3588 = vunpack.c.l.b16 %v1041
        %v3589 = vunpack.c.h.b16 %v1041
        %v3590 = vunpack.c.l.b16 %v1042
        %v3591 = vunpack.c.h.b16 %v1042
        %v3592 = vunpack.c.l.b16 %v1043
        %v3593 = vunpack.c.h.b16 %v1043
        %v3594 = vunpack.c.l.b16 %v1044
        %v3595 = vunpack.c.h.b16 %v1044
        %v3596 = vunpack.c.l.b16 %v1045
        %v3597 = vunpack.c.h.b16 %v1045
        %v3598 = vunpack.c.l.b16 %v1046
        %v3599 = vunpack.c.h.b16 %v1046
        %v3600 = vunpack.c.l.b16 %v1047
        %v3601 = vunpack.c.h.b16 %v1047
        %v3602 = vunpack.c.l.b16 %v1048
        %v3603 = vunpack.c.h.b16 %v1048
        %v3604 = vunpack.c.l.b16 %v1049
        %v3605 = vunpack.c.h.b16 %v1049
        %v3606 = vunpack.c.l.b16 %v1050
        %v3607 = vunpack.c.h.b16 %v1050
        %v3608 = vunpack.c.l.b16 %v1051
        %v3609 = vunpack.c.h.b16 %v1051
        %v3610 = vunpack.c.l.b16 %v1052
        %v3611 = vunpack.c.h.b16 %v1052
        %v3612 = vunpack.c.l.b16 %v1053
        %v3613 = vunpack.c.h.b16 %v1053
        %v3614 = vunpack.c.l.b16 %v1054
        %v3615 = vunpack.c.h.b16 %v1054
        %v3616 = vunpack.c.l.b16 %v1055
        %v3617 = vunpack.c.h.b16 %v1055
        %v3618 = vunpack.c.l.b16 %v1056
        %v3619 = vunpack.c.h.b16 %v1056
        %v3620 = vunpack.c.l.b16 %v1057
        %v3621 = vunpack.c.h.b16 %v1057
        %v3622 = vunpack.c.l.b16 %v1058
        %v3623 = vunpack.c.h.b16 %v1058
        %v3624 = vunpack.c.l.b16 %v1059
        %v3625 = vunpack.c.h.b16 %v1059
        %v3626 = vunpack.c.l.b16 %v1060
        %v3627 = vunpack.c.h.b16 %v1060
        %v3628 = vunpack.c.l.b16 %v1061
        %v3629 = vunpack.c.h.b16 %v1061
        %v3630 = vunpack.c.l.b16 %v1062
        %v3631 = vunpack.c.h.b16 %v1062
        %v3632 = vunpack.c.l.b16 %v1063
        %v3633 = vunpack.c.h.b16 %v1063
        %v3634 = vunpack.c.l.b16 %v1064
        %v3635 = vunpack.c.h.b16 %v1064
        %v3636 = vunpack.c.l.b16 %v1065
        %v3637 = vunpack.c.h.b16 %v1065
        %v3638 = vunpack.c.l.b16 %v1066
        %v3639 = vunpack.c.h.b16 %v1066
        %v3640 = vunpack.c.l.b16 %v1067
        %v3641 = vunpack.c.h.b16 %v1067
        %v3642 = vunpack.c.l.b16 %v1068
        %v3643 = vunpack.c.h.b16 %v1068
        %v3644 = vunpack.c.l.b16 %v1069
        %v3645 = vunpack.c.h.b16 %v1069
        %v3646 = vunpack.c.l.b16 %v1070
        %v3647 = vunpack.c.h.b16 %v1070
        %v3648 = vunpack.c.l.b16 %v1071
        %v3649 = vunpack.c.h.b16 %v1071
        %v3650 = vunpack.c.l.b16 %v1072
        %v3651 = vunpack.c.h.b16 %v1072
        %v3652 = vunpack.c.l.b16 %v1073
        %v3653 = vunpack.c.h.b16 %v1073
        %v3654 = vunpack.c.l.b16 %v1074
        %v3655 = vunpack.c.h.b16 %v1074
        %v3656 = vunpack.c.l.b16 %v1075
        %v3657 = vunpack.c.h.b16 %v1075
        %v3658 = vunpack.c.l.b16 %v1076
        %v3659 = vunpack.c.h.b16 %v1076
        %v3660 = vunpack.c.l.b16 %v1077
        %v3661 = vunpack.c.h.b16 %v1077
        %v3662 = vunpack.c.l.b16 %v1078
        %v3663 = vunpack.c.h.b16 %v1078
        %v3664 = vunpack.c.l.b16 %v1079
        %v3665 = vunpack.c.h.b16 %v1079
        %v3666 = vunpack.c.l.b16 %v1080
        %v3667 = vunpack.c.h.b16 %v1080
        %v3668 = vunpack.c.l.b16 %v1081
        %v3669 = vunpack.c.h.b16 %v1081
        %v3670 = vunpack.c.l.b16 %v1082
        %v3671 = vunpack.c.h.b16 %v1082
        %v3672 = vunpack.c.l.b16 %v1083
        %v3673 = vunpack.c.h.b16 %v1083
        %v3674 = vunpack.c.l.b16 %v1084
        %v3675 = vunpack.c.h.b16 %v1084
        %v3676 = vunpack.c.l.b16 %v1085
        %v3677 = vunpack.c.h.b16 %v1085
        %v3678 = vunpack.c.l.b16 %v1086
        %v3679 = vunpack.c.h.b16 %v1086
        %v3680 = vunpack.c.l.b16 %v1087
        %v3681 = vunpack.c.h.b16 %v1087
        %v3682 = vunpack.c.l.b16 %v1088
        %v3683 = vunpack.c.h.b16 %v1088
        %v3684 = vunpack.c.l.b16 %v1089
        %v3685 = vunpack.c.h.b16 %v1089
        %v3686 = vunpack.c.l.b16 %v1090
        %v3687 = vunpack.c.h.b16 %v1090
        %v3688 = vunpack.c.l.b16 %v1091
        %v3689 = vunpack.c.h.b16 %v1091
        %v3690 = vunpack.c.l.b16 %v1092
        %v3691 = vunpack.c.h.b16 %v1092
        %v3692 = vunpack.c.l.b16 %v1093
        %v3693 = vunpack.c.h.b16 %v1093
        %v3694 = vunpack.c.l.b16 %v1094
        %v3695 = vunpack.c.h.b16 %v1094
        %v3696 = vunpack.c.l.b16 %v1095
        %v3697 = vunpack.c.h.b16 %v1095
        %v3698 = vunpack.c.l.b16 %v1096
        %v3699 = vunpack.c.h.b16 %v1096
        %v3700 = vunpack.c.l.b16 %v1097
        %v3701 = vunpack.c.h.b16 %v1097
        %v3702 = vunpack.c.l.b16 %v1098
        %v3703 = vunpack.c.h.b16 %v1098
        %v3704 = vunpack.c.l.b16 %v1099
        %v3705 = vunpack.c.h.b16 %v1099
        %v3706 = vunpack.c.l.b16 %v1100
        %v3707 = vunpack.c.h.b16 %v1100
        %v3708 = vunpack.c.l.b16 %v1101
        %v3709 = vunpack.c.h.b16 %v1101
        %v3710 = vunpack.c.l.b16 %v1102
        %v3711 = vunpack.c.h.b16 %v1102
        %v3712 = vunpack.c.l.b16 %v1103
        %v3713 = vunpack.c.h.b16 %v1103
        %v3714 = vunpack.c.l.b16 %v1104
        %v3715 = vunpack.c.h.b16 %v1104
        %v3716 = vunpack.c.l.b16 %v1105
        %v3717 = vunpack.c.h.b16 %v1105
        %v3718 = vunpack.c.l.b16 %v1106
        %v3719 = vunpack.c.h.b16 %v1106
        %v3720 = vunpack.c.l.b16 %v1107
        %v3721 = vunpack.c.h.b16 %v1107
        %v3722 = vunpack.c.l.b16 %v1108
        %v3723 = vunpack.c.h.b16 %v1108
        %v3724 = vunpack.c.l.b16 %v1109
        %v3725 = vunpack.c.h.b16 %v1109
        %v3726 = vunpack.c.l.b16 %v1110
        %v3727 = vunpack.c.h.b16 %v1110
        %v3728 = vunpack.c.l.b16 %v1111
        %v3729 = vunpack.c.h.b16 %v1111
        %v3730 = vunpack.c.l.b16 %v1112
        %v3731 = vunpack.c.h.b16 %v1112
        %v3732 = vunpack.c.l.b16 %v1113
        %v3733 = vunpack.c.h.b16 %v1113
        %v3734 = vunpack.c.l.b16 %v1114
        %v3735 = vunpack.c.h.b16 %v1114
        %v3736 = vunpack.c.l.b16 %v1115
        %v3737 = vunpack.c.h.b16 %v1115
        %v3738 = vunpack.c.l.b16 %v1116
        %v3739 = vunpack.c.h.b16 %v1116
        %v3740 = vunpack.c.l.b16 %v1117
        %v3741 = vunpack.c.h.b16 %v1117
        %v3742 = vunpack.c.l.b16 %v1118
        %v3743 = vunpack.c.h.b16 %v1118
        %v3744 = vunpack.c.l.b16 %v1119
        %v3745 = vunpack.c.h.b16 %v1119
        %v3746 = vunpack.c.l.b16 %v1120
        %v3747 = vunpack.c.h.b16 %v1120
        %v3748 = vunpack.c.l.b16 %v1121
        %v3749 = vunpack.c.h.b16 %v1121
        %v3750 = vunpack.c.l.b16 %v1122
        %v3751 = vunpack.c.h.b16 %v1122
        %v3752 = vunpack.c.l.b16 %v1123
        %v3753 = vunpack.c.h.b16 %v1123
        %v3754 = vunpack.c.l.b16 %v1124
        %v3755 = vunpack.c.h.b16 %v1124
        %v3756 = vunpack.c.l.b16 %v1125
        %v3757 = vunpack.c.h.b16 %v1125
        %v3758 = vunpack.c.l.b16 %v1126
        %v3759 = vunpack.c.h.b16 %v1126
        %v3760 = vunpack.c.l.b16 %v1127
        %v3761 = vunpack.c.h.b16 %v1127
        %v3762 = vunpack.c.l.b16 %v1128
        %v3763 = vunpack.c.h.b16 %v1128
        %v3764 = vunpack.c.l.b16 %v1129
        %v3765 = vunpack.c.h.b16 %v1129
        %v3766 = vunpack.c.l.b16 %v1130
        %v3767 = vunpack.c.h.b16 %v1130
        %v3768 = vunpack.c.l.b16 %v1131
        %v3769 = vunpack.c.h.b16 %v1131
        %v3770 = vunpack.c.l.b16 %v1132
        %v3771 = vunpack.c.h.b16 %v1132
        %v3772 = vunpack.c.l.b16 %v1133
        %v3773 = vunpack.c.h.b16 %v1133
        %v3774 = vunpack.c.l.b16 %v1134
        %v3775 = vunpack.c.h.b16 %v1134
        %v3776 = vunpack.c.l.b16 %v1135
        %v3777 = vunpack.c.h.b16 %v1135
        %v3778 = vunpack.c.l.b16 %v1136
        %v3779 = vunpack.c.h.b16 %v1136
        %v3780 = vunpack.c.l.b16 %v1137
        %v3781 = vunpack.c.h.b16 %v1137
        %v3782 = vunpack.c.l.b16 %v1138
        %v3783 = vunpack.c.h.b16 %v1138
        %v3784 = vunpack.c.l.b16 %v1139
        %v3785 = vunpack.c.h.b16 %v1139
        %v3786 = vunpack.c.l.b16 %v1140
        %v3787 = vunpack.c.h.b16 %v1140
        %v3788 = vunpack.c.l.b16 %v1141
        %v3789 = vunpack.c.h.b16 %v1141
        %v3790 = vunpack.c.l.b16 %v1142
        %v3791 = vunpack.c.h.b16 %v1142
        %v3792 = vunpack.c.l.b16 %v1143
        %v3793 = vunpack.c.h.b16 %v1143
        %v3794 = vunpack.c.l.b16 %v1144
        %v3795 = vunpack.c.h.b16 %v1144
        %v3796 = vunpack.c.l.b16 %v1145
        %v3797 = vunpack.c.h.b16 %v1145
        %v3798 = vunpack.c.l.b16 %v1146
        %v3799 = vunpack.c.h.b16 %v1146
        %v3800 = vunpack.c.l.b16 %v1147
        %v3801 = vunpack.c.h.b16 %v1147
        %v3802 = vunpack.c.l.b16 %v1148
        %v3803 = vunpack.c.h.b16 %v1148
        %v3804 = vunpack.c.l.b16 %v1149
        %v3805 = vunpack.c.h.b16 %v1149
        %v3806 = vunpack.c.l.b16 %v1150
        %v3807 = vunpack.c.h.b16 %v1150
        %v3808 = vunpack.c.l.b16 %v1151
        %v3809 = vunpack.c.h.b16 %v1151
        %v3810 = vunpack.c.l.b16 %v1152
        %v3811 = vunpack.c.h.b16 %v1152
        %v3812 = vunpack.c.l.b16 %v1153
        %v3813 = vunpack.c.h.b16 %v1153
        %v3814 = vunpack.c.l.b16 %v1154
        %v3815 = vunpack.c.h.b16 %v1154
        %v3816 = vunpack.c.l.b16 %v1155
        %v3817 = vunpack.c.h.b16 %v1155
        %v3818 = vunpack.c.l.b16 %v1156
        %v3819 = vunpack.c.h.b16 %v1156
        %v3820 = vunpack.c.l.b16 %v1157
        %v3821 = vunpack.c.h.b16 %v1157
        %v3822 = vunpack.c.l.b16 %v1158
        %v3823 = vunpack.c.h.b16 %v1158
        %v3824 = vunpack.c.l.b16 %v1159
        %v3825 = vunpack.c.h.b16 %v1159
        %v3826 = vunpack.c.l.b16 %v1160
        %v3827 = vunpack.c.h.b16 %v1160
        %v3828 = vunpack.c.l.b16 %v1161
        %v3829 = vunpack.c.h.b16 %v1161
        %v3830 = vunpack.c.l.b16 %v1162
        %v3831 = vunpack.c.h.b16 %v1162
        %v3832 = vunpack.c.l.b16 %v1163
        %v3833 = vunpack.c.h.b16 %v1163
        %v3834 = vunpack.c.l.b16 %v1164
        %v3835 = vunpack.c.h.b16 %v1164
        %v3836 = vunpack.c.l.b16 %v1165
        %v3837 = vunpack.c.h.b16 %v1165
        %v3838 = vunpack.c.l.b16 %v1166
        %v3839 = vunpack.c.h.b16 %v1166
        %v3840 = vunpack.c.l.b16 %v1167
        %v3841 = vunpack.c.h.b16 %v1167
        %v3842 = vunpack.c.l.b16 %v1168
        %v3843 = vunpack.c.h.b16 %v1168
        %v3844 = vunpack.c.l.b16 %v1169
        %v3845 = vunpack.c.h.b16 %v1169
        %v3846 = vunpack.c.l.b16 %v1170
        %v3847 = vunpack.c.h.b16 %v1170
        %v3848 = vunpack.c.l.b16 %v1171
        %v3849 = vunpack.c.h.b16 %v1171
        %v3850 = vunpack.c.l.b16 %v1172
        %v3851 = vunpack.c.h.b16 %v1172
        %v3852 = vunpack.c.l.b16 %v1173
        %v3853 = vunpack.c.h.b16 %v1173
        %v3854 = vunpack.c.l.b16 %v1174
        %v3855 = vunpack.c.h.b16 %v1174
        %v3856 = vunpack.c.l.b16 %v1175
        %v3857 = vunpack.c.h.b16 %v1175
        %v3858 = vunpack.c.l.b16 %v1176
        %v3859 = vunpack.c.h.b16 %v1176
        %v3860 = vunpack.c.l.b16 %v1177
        %v3861 = vunpack.c.h.b16 %v1177
        %v3862 = vunpack.c.l.b16 %v1178
        %v3863 = vunpack.c.h.b16 %v1178
        %v3864 = vunpack.c.l.b16 %v1179
        %v3865 = vunpack.c.h.b16 %v1179
        %v3866 = vunpack.c.l.b16 %v1180
        %v3867 = vunpack.c.h.b16 %v1180
        %v3868 = vunpack.c.l.b16 %v1181
        %v3869 = vunpack.c.h.b16 %v1181
        %v3870 = vunpack.c.l.b16 %v1182
        %v3871 = vunpack.c.h.b16 %v1182
        %v3872 = vunpack.c.l.b16 %v1183
        %v3873 = vunpack.c.h.b16 %v1183
        %v3874 = vunpack.c.l.b16 %v1184
        %v3875 = vunpack.c.h.b16 %v1184
        %v3876 = vunpack.c.l.b16 %v1185
        %v3877 = vunpack.c.h.b16 %v1185
        %v3878 = vunpack.c.l.b16 %v1186
        %v3879 = vunpack.c.h.b16 %v1186
        %v3880 = vunpack.c.l.b16 %v1187
        %v3881 = vunpack.c.h.b16 %v1187
        %v3882 = vunpack.c.l.b16 %v1188
        %v3883 = vunpack.c.h.b16 %v1188
        %v3884 = vunpack.c.l.b16 %v1189
        %v3885 = vunpack.c.h.b16 %v1189
        %v3886 = vunpack.c.l.b16 %v1190
        %v3887 = vunpack.c.h.b16 %v1190
        %v3888 = vunpack.c.l.b16 %v1191
        %v3889 = vunpack.c.h.b16 %v1191
        %v3890 = vunpack.c.l.b16 %v1192
        %v3891 = vunpack.c.h.b16 %v1192
        %v3892 = vunpack.c.l.b16 %v1193
        %v3893 = vunpack.c.h.b16 %v1193
        %v3894 = vunpack.c.l.b16 %v1194
        %v3895 = vunpack.c.h.b16 %v1194
        %v3896 = vunpack.c.l.b16 %v1195
        %v3897 = vunpack.c.h.b16 %v1195
        %v3898 = vunpack.c.l.b16 %v1196
        %v3899 = vunpack.c.h.b16 %v1196
        %v3900 = vunpack.c.l.b16 %v1197
        %v3901 = vunpack.c.h.b16 %v1197
        %v3902 = vunpack.c.l.b16 %v1198
        %v3903 = vunpack.c.h.b16 %v1198
        %v3904 = vunpack.c.l.b16 %v1199
        %v3905 = vunpack.c.h.b16 %v1199
        %v3906 = vunpack.c.l.b16 %v1200
        %v3907 = vunpack.c.h.b16 %v1200
        %v3908 = vunpack.c.l.b16 %v1201
        %v3909 = vunpack.c.h.b16 %v1201
        %v3910 = vunpack.c.l.b16 %v1202
        %v3911 = vunpack.c.h.b16 %v1202
        %v3912 = vunpack.c.l.b16 %v1203
        %v3913 = vunpack.c.h.b16 %v1203
        %v3914 = vunpack.c.l.b16 %v1204
        %v3915 = vunpack.c.h.b16 %v1204
        %v3916 = vunpack.c.l.b16 %v1205
        %v3917 = vunpack.c.h.b16 %v1205
        %v3918 = vunpack.c.l.b16 %v1206
        %v3919 = vunpack.c.h.b16 %v1206
        %v3920 = vunpack.c.l.b16 %v1207
        %v3921 = vunpack.c.h.b16 %v1207
        %v3922 = vunpack.c.l.b16 %v1208
        %v3923 = vunpack.c.h.b16 %v1208
        %v3924 = vunpack.c.l.b16 %v1209
        %v3925 = vunpack.c.h.b16 %v1209
        %v3926 = vunpack.c.l.b16 %v1210
        %v3927 = vunpack.c.h.b16 %v1210
        %v3928 = vunpack.c.l.b16 %v1211
        %v3929 = vunpack.c.h.b16 %v1211
        %v3930 = vunpack.c.l.b16 %v1212
        %v3931 = vunpack.c.h.b16 %v1212
        %v3932 = vunpack.c.l.b16 %v1213
        %v3933 = vunpack.c.h.b16 %v1213
        %v3934 = vunpack.c.l.b16 %v1214
        %v3935 = vunpack.c.h.b16 %v1214
        %v3936 = vunpack.c.l.b16 %v1215
        %v3937 = vunpack.c.h.b16 %v1215
        %v3938 = vunpack.c.l.b16 %v1216
        %v3939 = vunpack.c.h.b16 %v1216
        %v3940 = vunpack.c.l.b16 %v1217
        %v3941 = vunpack.c.h.b16 %v1217
        %v3942 = vunpack.c.l.b16 %v1218
        %v3943 = vunpack.c.h.b16 %v1218
        %v3944 = vunpack.c.l.b16 %v1219
        %v3945 = vunpack.c.h.b16 %v1219
        %v3946 = vunpack.c.l.b16 %v1220
        %v3947 = vunpack.c.h.b16 %v1220
        %v3948 = vunpack.c.l.b16 %v1221
        %v3949 = vunpack.c.h.b16 %v1221
        %v3950 = vunpack.c.l.b16 %v1222
        %v3951 = vunpack.c.h.b16 %v1222
        %v3952 = vunpack.c.l.b16 %v1223
        %v3953 = vunpack.c.h.b16 %v1223
        %v3954 = vunpack.c.l.b16 %v1224
        %v3955 = vunpack.c.h.b16 %v1224
        %v3956 = vunpack.c.l.b16 %v1225
        %v3957 = vunpack.c.h.b16 %v1225
        %v3958 = vunpack.c.l.b16 %v1226
        %v3959 = vunpack.c.h.b16 %v1226
        %v3960 = vunpack.c.l.b16 %v1227
        %v3961 = vunpack.c.h.b16 %v1227
        %v3962 = vunpack.c.l.b16 %v1228
        %v3963 = vunpack.c.h.b16 %v1228
        %v3964 = vunpack.c.l.b16 %v1229
        %v3965 = vunpack.c.h.b16 %v1229
        %v3966 = vunpack.c.l.b16 %v1230
        %v3967 = vunpack.c.h.b16 %v1230
        %v3968 = vunpack.c.l.b16 %v1231
        %v3969 = vunpack.c.h.b16 %v1231
        %v3970 = vunpack.c.l.b16 %v1232
        %v3971 = vunpack.c.h.b16 %v1232
        %v3972 = vunpack.c.l.b16 %v1233
        %v3973 = vunpack.c.h.b16 %v1233
        %v3974 = vunpack.c.l.b16 %v1234
        %v3975 = vunpack.c.h.b16 %v1234
        %v3976 = vunpack.c.l.b16 %v1235
        %v3977 = vunpack.c.h.b16 %v1235
        %v3978 = vunpack.c.l.b16 %v1236
        %v3979 = vunpack.c.h.b16 %v1236
        %v3980 = vunpack.c.l.b16 %v1237
        %v3981 = vunpack.c.h.b16 %v1237
        %v3982 = vunpack.c.l.b16 %v1238
        %v3983 = vunpack.c.h.b16 %v1238
        %v3984 = vunpack.c.l.b16 %v1239
        %v3985 = vunpack.c.h.b16 %v1239
        %v3986 = vunpack.c.l.b16 %v1240
        %v3987 = vunpack.c.h.b16 %v1240
        %v3988 = vunpack.c.l.b16 %v1241
        %v3989 = vunpack.c.h.b16 %v1241
        %v3990 = vunpack.c.l.b16 %v1242
        %v3991 = vunpack.c.h.b16 %v1242
        %v3992 = vunpack.c.l.b16 %v1243
        %v3993 = vunpack.c.h.b16 %v1243
        %v3994 = vunpack.c.l.b16 %v1244
        %v3995 = vunpack.c.h.b16 %v1244
        %v3996 = vunpack.c.l.b16 %v1245
        %v3997 = vunpack.c.h.b16 %v1245
        %v3998 = vunpack.c.l.b16 %v1246
        %v3999 = vunpack.c.h.b16 %v1246
        %v4000 = vunpack.c.l.b16 %v1247
        %v4001 = vunpack.c.h.b16 %v1247
        %v4002 = vunpack.c.l.b16 %v1248
        %v4003 = vunpack.c.h.b16 %v1248
        %v4004 = vunpack.c.l.b16 %v1249
        %v4005 = vunpack.c.h.b16 %v1249
        %v4006 = vunpack.c.l.b16 %v1250
        %v4007 = vunpack.c.h.b16 %v1250
        %v4008 = vunpack.c.l.b16 %v1251
        %v4009 = vunpack.c.h.b16 %v1251
        %v4010 = vunpack.c.l.b16 %v1252
        %v4011 = vunpack.c.h.b16 %v1252
        %v4012 = vunpack.c.l.b16 %v1253
        %v4013 = vunpack.c.h.b16 %v1253
        %v4014 = vunpack.c.l.b16 %v1254
        %v4015 = vunpack.c.h.b16 %v1254
        %v4016 = vunpack.c.l.b16 %v1255
        %v4017 = vunpack.c.h.b16 %v1255
        %v4018 = vunpack.c.l.b16 %v1256
        %v4019 = vunpack.c.h.b16 %v1256
        %v4020 = vunpack.c.l.b16 %v1257
        %v4021 = vunpack.c.h.b16 %v1257
        %v4022 = vunpack.c.l.b16 %v1258
        %v4023 = vunpack.c.h.b16 %v1258
        %v4024 = vunpack.c.l.b16 %v1259
        %v4025 = vunpack.c.h.b16 %v1259
        %v4026 = vunpack.c.l.b16 %v1260
        %v4027 = vunpack.c.h.b16 %v1260
        %v4028 = vunpack.c.l.b16 %v1261
        %v4029 = vunpack.c.h.b16 %v1261
        %v4030 = vunpack.c.l.b16 %v1262
        %v4031 = vunpack.c.h.b16 %v1262
        %v4032 = vunpack.c.l.b16 %v1263
        %v4033 = vunpack.c.h.b16 %v1263
        %v4034 = vunpack.c.l.b16 %v1264
        %v4035 = vunpack.c.h.b16 %v1264
        %v4036 = vunpack.c.l.b16 %v1265
        %v4037 = vunpack.c.h.b16 %v1265
        %v4038 = vunpack.c.l.b16 %v1266
        %v4039 = vunpack.c.h.b16 %v1266
        %v4040 = vunpack.c.l.b16 %v1267
        %v4041 = vunpack.c.h.b16 %v1267
        %v4042 = vunpack.c.l.b16 %v1268
        %v4043 = vunpack.c.h.b16 %v1268
        %v4044 = vunpack.c.l.b16 %v1269
        %v4045 = vunpack.c.h.b16 %v1269
        %v4046 = vunpack.c.l.b16 %v1270
        %v4047 = vunpack.c.h.b16 %v1270
        %v4048 = vunpack.c.l.b16 %v1271
        %v4049 = vunpack.c.h.b16 %v1271
        %v4050 = vunpack.c.l.b16 %v1272
        %v4051 = vunpack.c.h.b16 %v1272
        %v4052 = vunpack.c.l.b16 %v1273
        %v4053 = vunpack.c.h.b16 %v1273
        %v4054 = vunpack.c.l.b16 %v1274
        %v4055 = vunpack.c.h.b16 %v1274
        %v4056 = vunpack.c.l.b16 %v1275
        %v4057 = vunpack.c.h.b16 %v1275
        %v4058 = vunpack.c.l.b16 %v1276
        %v4059 = vunpack.c.h.b16 %v1276
        %v4060 = vunpack.c.l.b16 %v1277
        %v4061 = vunpack.c.h.b16 %v1277
        %v4062 = vunpack.c.l.b16 %v1278
        %v4063 = vunpack.c.h.b16 %v1278
        %v4064 = vunpack.c.l.b16 %v1279
        %v4065 = vunpack.c.h.b16 %v1279
        %v4066 = vunpack.c.l.b16 %v1280
        %v4067 = vunpack.c.h.b16 %v1280
        %v4068 = vunpack.c.l.b16 %v1281
        %v4069 = vunpack.c.h.b16 %v1281
        %v4070 = vunpack.c.l.b16 %v1282
        %v4071 = vunpack.c.h.b16 %v1282
        %v4072 = vunpack.c.l.b16 %v1283
        %v4073 = vunpack.c.h.b16 %v1283
        %v4074 = vunpack.c.l.b16 %v1284
        %v4075 = vunpack.c.h.b16 %v1284
        %v4076 = vunpack.c.l.b16 %v1285
        %v4077 = vunpack.c.h.b16 %v1285
        %v4078 = vunpack.c.l.b16 %v1286
        %v4079 = vunpack.c.h.b16 %v1286
        %v4080 = vunpack.c.l.b16 %v1287
        %v4081 = vunpack.c.h.b16 %v1287
        %v4082 = vunpack.c.l.b16 %v1288
        %v4083 = vunpack.c.h.b16 %v1288
        %v4084 = vunpack.c.l.b16 %v1289
        %v4085 = vunpack.c.h.b16 %v1289
        %v4086 = vunpack.c.l.b16 %v1290
        %v4087 = vunpack.c.h.b16 %v1290
        %v4088 = vunpack.c.l.b16 %v1291
        %v4089 = vunpack.c.h.b16 %v1291
        %v4090 = vunpack.c.l.b16 %v1292
        %v4091 = vunpack.c.h.b16 %v1292
        %v4092 = vunpack.c.l.b16 %v1293
        %v4093 = vunpack.c.h.b16 %v1293
        %v4094 = vunpack.c.l.b16 %v1294
        %v4095 = vunpack.c.h.b16 %v1294
        %v4096 = vunpack.c.l.b16 %v1295
        %v4097 = vunpack.c.h.b16 %v1295
        %v4098 = vunpack.c.l.b16 %v1296
        %v4099 = vunpack.c.h.b16 %v1296
        %v4100 = vunpack.c.l.b16 %v1297
        %v4101 = vunpack.c.h.b16 %v1297
        %v4102 = vunpack.c.l.b16 %v1298
        %v4103 = vunpack.c.h.b16 %v1298
        %v4104 = vunpack.c.l.b16 %v1299
        %v4105 = vunpack.c.h.b16 %v1299
        %v4106 = vunpack.c.l.b16 %v1300
        %v4107 = vunpack.c.h.b16 %v1300
        %v4108 = vunpack.c.l.b16 %v1301
        %v4109 = vunpack.c.h.b16 %v1301
        %v4110 = vunpack.c.l.b16 %v1302
        %v4111 = vunpack.c.h.b16 %v1302
        %v4112 = vunpack.c.l.b16 %v1303
        %v4113 = vunpack.c.h.b16 %v1303
        %v4114 = vunpack.c.l.b16 %v1304
        %v4115 = vunpack.c.h.b16 %v1304
        %v4116 = vunpack.c.l.b16 %v1305
        %v4117 = vunpack.c.h.b16 %v1305
        %v4118 = vunpack.c.l.b16 %v1306
        %v4119 = vunpack.c.h.b16 %v1306
        %v4120 = vunpack.c.l.b16 %v1307
        %v4121 = vunpack.c.h.b16 %v1307
        %v4122 = vunpack.c.l.b16 %v1308
        %v4123 = vunpack.c.h.b16 %v1308
        %v4124 = vunpack.c.l.b16 %v1309
        %v4125 = vunpack.c.h.b16 %v1309
        %v4126 = vunpack.c.l.b16 %v1310
        %v4127 = vunpack.c.h.b16 %v1310
        %v4128 = vunpack.c.l.b16 %v1311
        %v4129 = vunpack.c.h.b16 %v1311
        %v4130 = vunpack.c.l.b16 %v1312
        %v4131 = vunpack.c.h.b16 %v1312
        %v4132 = vunpack.c.l.b16 %v1313
        %v4133 = vunpack.c.h.b16 %v1313
        %v4134 = vunpack.c.l.b16 %v1314
        %v4135 = vunpack.c.h.b16 %v1314
        %v4136 = vunpack.c.l.b16 %v1315
        %v4137 = vunpack.c.h.b16 %v1315
        %v4138 = vunpack.c.l.b16 %v1316
        %v4139 = vunpack.c.h.b16 %v1316
        %v4140 = vunpack.c.l.b16 %v1317
        %v4141 = vunpack.c.h.b16 %v1317
        %v4142 = vunpack.c.l.b16 %v1318
        %v4143 = vunpack.c.h.b16 %v1318
        %v4144 = vunpack.c.l.b16 %v1319
        %v4145 = vunpack.c.h.b16 %v1319
        %v4146 = vunpack.c.l.b16 %v1320
        %v4147 = vunpack.c.h.b16 %v1320
        %v4148 = vunpack.c.l.b16 %v1321
        %v4149 = vunpack.c.h.b16 %v1321
        %v4150 = vunpack.c.l.b16 %v1322
        %v4151 = vunpack.c.h.b16 %v1322
        %v4152 = vunpack.c.l.b16 %v1323
        %v4153 = vunpack.c.h.b16 %v1323
        %v4154 = vunpack.c.l.b16 %v1324
        %v4155 = vunpack.c.h.b16 %v1324
        %v4156 = vunpack.c.l.b16 %v1325
        %v4157 = vunpack.c.h.b16 %v1325
        %v4158 = vunpack.c.l.b16 %v1326
        %v4159 = vunpack.c.h.b16 %v1326
        %v4160 = vunpack.c.l.b16 %v1327
        %v4161 = vunpack.c.h.b16 %v1327
        %v4162 = vunpack.c.l.b16 %v1328
        %v4163 = vunpack.c.h.b16 %v1328
        %v4164 = vunpack.c.l.b16 %v1329
        %v4165 = vunpack.c.h.b16 %v1329
        %v4166 = vunpack.c.l.b16 %v1330
        %v4167 = vunpack.c.h.b16 %v1330
        %v4168 = vunpack.c.l.b16 %v1331
        %v4169 = vunpack.c.h.b16 %v1331
        %v4170 = vunpack.c.l.b16 %v1332
        %v4171 = vunpack.c.h.b16 %v1332
        %v4172 = vunpack.c.l.b16 %v1333
        %v4173 = vunpack.c.h.b16 %v1333
        %v4174 = vunpack.c.l.b16 %v1334
        %v4175 = vunpack.c.h.b16 %v1334
        %v4176 = vunpack.c.l.b16 %v1335
        %v4177 = vunpack.c.h.b16 %v1335
        %v4178 = vunpack.c.l.b16 %v1336
        %v4179 = vunpack.c.h.b16 %v1336
        %v4180 = vunpack.c.l.b16 %v1337
        %v4181 = vunpack.c.h.b16 %v1337
        %v4182 = vunpack.c.l.b16 %v1338
        %v4183 = vunpack.c.h.b16 %v1338
        %v4184 = vunpack.c.l.b16 %v1339
        %v4185 = vunpack.c.h.b16 %v1339
        %v4186 = vunpack.c.l.b16 %v1340
        %v4187 = vunpack.c.h.b16 %v1340
        %v4188 = vunpack.c.l.b16 %v1341
        %v4189 = vunpack.c.h.b16 %v1341
        %v4190 = vunpack.c.l.b16 %v1342
        %v4191 = vunpack.c.h.b16 %v1342
        %v4192 = vunpack.c.l.b16 %v1343
        %v4193 = vunpack.c.h.b16 %v1343
        %v4194 = vunpack.c.l.b16 %v1344
        %v4195 = vunpack.c.h.b16 %v1344
        %v4196 = vunpack.c.l.b16 %v1345
        %v4197 = vunpack.c.h.b16 %v1345
        %v4198 = vunpack.c.l.b16 %v1346
        %v4199 = vunpack.c.h.b16 %v1346
        %v4200 = vunpack.c.l.b16 %v1347
        %v4201 = vunpack.c.h.b16 %v1347
        %v4202 = vunpack.c.l.b16 %v1348
        %v4203 = vunpack.c.h.b16 %v1348
        %v4204 = vunpack.c.l.b16 %v1349
        %v4205 = vunpack.c.h.b16 %v1349
        %v4206 = vunpack.c.l.b16 %v1350
        %v4207 = vunpack.c.h.b16 %v1350
        %v4208 = vunpack.c.l.b16 %v1351
        %v4209 = vunpack.c.h.b16 %v1351
        %v4210 = vunpack.c.l.b16 %v1352
        %v4211 = vunpack.c.h.b16 %v1352
        %v4212 = vunpack.c.l.b16 %v1353
        %v4213 = vunpack.c.h.b16 %v1353
        %v4214 = vunpack.c.l.b16 %v1354
        %v4215 = vunpack.c.h.b16 %v1354
        %v4216 = vunpack.c.l.b16 %v1355
        %v4217 = vunpack.c.h.b16 %v1355
        %v4218 = vunpack.c.l.b16 %v1356
        %v4219 = vunpack.c.h.b16 %v1356
        %v4220 = vunpack.c.l.b16 %v1357
        %v4221 = vunpack.c.h.b16 %v1357
        %v4222 = vunpack.c.l.b16 %v1358
        %v4223 = vunpack.c.h.b16 %v1358
        %v4224 = vunpack.c.l.b16 %v1359
        %v4225 = vunpack.c.h.b16 %v1359
        %v4226 = vunpack.c.l.b16 %v1360
        %v4227 = vunpack.c.h.b16 %v1360
        %v4228 = vunpack.c.l.b16 %v1361
        %v4229 = vunpack.c.h.b16 %v1361
        %v4230 = vunpack.c.l.b16 %v1362
        %v4231 = vunpack.c.h.b16 %v1362
        %v4232 = vunpack.c.l.b16 %v1363
        %v4233 = vunpack.c.h.b16 %v1363
        %v4234 = vunpack.c.l.b16 %v1364
        %v4235 = vunpack.c.h.b16 %v1364
        %v4236 = vunpack.c.l.b16 %v1365
        %v4237 = vunpack.c.h.b16 %v1365
        %v4238 = vunpack.c.l.b16 %v1366
        %v4239 = vunpack.c.h.b16 %v1366
        %v4240 = vunpack.c.l.b16 %v1367
        %v4241 = vunpack.c.h.b16 %v1367
        %v4242 = vunpack.c.l.b16 %v1368
        %v4243 = vunpack.c.h.b16 %v1368
        %v4244 = vunpack.c.l.b16 %v1369
        %v4245 = vunpack.c.h.b16 %v1369
        %v4246 = vunpack.c.l.b16 %v1370
        %v4247 = vunpack.c.h.b16 %v1370
        %v4248 = vunpack.c.l.b16 %v1371
        %v4249 = vunpack.c.h.b16 %v1371
        %v4250 = vunpack.c.l.b16 %v1372
        %v4251 = vunpack.c.h.b16 %v1372
        %v4252 = vunpack.c.l.b16 %v1373
        %v4253 = vunpack.c.h.b16 %v1373
        %v4254 = vunpack.c.l.b16 %v1374
        %v4255 = vunpack.c.h.b16 %v1374
        %v4256 = vunpack.c.l.b16 %v1375
        %v4257 = vunpack.c.h.b16 %v1375
        %v4258 = vunpack.c.l.b16 %v1376
        %v4259 = vunpack.c.h.b16 %v1376
        %v4260 = vunpack.c.l.b16 %v1377
        %v4261 = vunpack.c.h.b16 %v1377
        %v4262 = vunpack.c.l.b16 %v1378
        %v4263 = vunpack.c.h.b16 %v1378
        %v4264 = vunpack.c.l.b16 %v1379
        %v4265 = vunpack.c.h.b16 %v1379
        %v4266 = vunpack.c.l.b16 %v1380
        %v4267 = vunpack.c.h.b16 %v1380
        %v4268 = vunpack.c.l.b16 %v1381
        %v4269 = vunpack.c.h.b16 %v1381
        %v4270 = vunpack.c.l.b16 %v1382
        %v4271 = vunpack.c.h.b16 %v1382
        %v4272 = vunpack.c.l.b16 %v1383
        %v4273 = vunpack.c.h.b16 %v1383
        %v4274 = vunpack.c.l.b16 %v1384
        %v4275 = vunpack.c.h.b16 %v1384
        %v4276 = vunpack.c.l.b16 %v1385
        %v4277 = vunpack.c.h.b16 %v1385
        %v4278 = vunpack.c.l.b16 %v1386
        %v4279 = vunpack.c.h.b16 %v1386
        %v4280 = vunpack.c.l.b16 %v1387
        %v4281 = vunpack.c.h.b16 %v1387
        %v4282 = vunpack.c.l.b16 %v1388
        %v4283 = vunpack.c.h.b16 %v1388
        %v4284 = vunpack.c.l.b16 %v1389
        %v4285 = vunpack.c.h.b16 %v1389
        %v4286 = vunpack.c.l.b16 %v1390
        %v4287 = vunpack.c.h.b16 %v1390
        %v4288 = vunpack.c.l.b16 %v1391
        %v4289 = vunpack.c.h.b16 %v1391
        %v4290 = vunpack.c.l.b16 %v1392
        %v4291 = vunpack.c.h.b16 %v1392
        %v4292 = vunpack.c.l.b16 %v1393
        %v4293 = vunpack.c.h.b16 %v1393
        %v4294 = vunpack.c.l.b16 %v1394
        %v4295 = vunpack.c.h.b16 %v1394
        %v4296 = vunpack.c.l.b16 %v1395
        %v4297 = vunpack.c.h.b16 %v1395
        %v4298 = vunpack.c.l.b16 %v1396
        %v4299 = vunpack.c.h.b16 %v1396
        %v4300 = vunpack.c.l.b16 %v1397
        %v4301 = vunpack.c.h.b16 %v1397
        %v4302 = vunpack.c.l.b16 %v1398
        %v4303 = vunpack.c.h.b16 %v1398
        %v4304 = vunpack.c.l.b16 %v1399
        %v4305 = vunpack.c.h.b16 %v1399
        %v4306 = vunpack.c.l.b16 %v1400
        %v4307 = vunpack.c.h.b16 %v1400
        %v4308 = vunpack.c.l.b16 %v1401
        %v4309 = vunpack.c.h.b16 %v1401
        %v4310 = vunpack.c.l.b16 %v1402
        %v4311 = vunpack.c.h.b16 %v1402
        %v4312 = vunpack.c.l.b16 %v1403
        %v4313 = vunpack.c.h.b16 %v1403
        %v4314 = vunpack.c.l.b16 %v1404
        %v4315 = vunpack.c.h.b16 %v1404
        %v4316 = vunpack.c.l.b16 %v1405
        %v4317 = vunpack.c.h.b16 %v1405
        %v4318 = vunpack.c.l.b16 %v1406
        %v4319 = vunpack.c.h.b16 %v1406
        %v4320 = vunpack.c.l.b16 %v1407
        %v4321 = vunpack.c.h.b16 %v1407
        %v4322 = vunpack.c.l.b16 %v1408
        %v4323 = vunpack.c.h.b16 %v1408
        %v4324 = vunpack.c.l.b16 %v1409
        %v4325 = vunpack.c.h.b16 %v1409
        %v4326 = vunpack.c.l.b16 %v1410
        %v4327 = vunpack.c.h.b16 %v1410
        %v4328 = vunpack.c.l.b16 %v1411
        %v4329 = vunpack.c.h.b16 %v1411
        %v4330 = vunpack.c.l.b16 %v1412
        %v4331 = vunpack.c.h.b16 %v1412
        %v4332 = vunpack.c.l.b16 %v1413
        %v4333 = vunpack.c.h.b16 %v1413
        %v4334 = vunpack.c.l.b16 %v1414
        %v4335 = vunpack.c.h.b16 %v1414
        %v4336 = vunpack.c.l.b16 %v1415
        %v4337 = vunpack.c.h.b16 %v1415
        %v4338 = vunpack.c.l.b16 %v1416
        %v4339 = vunpack.c.h.b16 %v1416
        %v4340 = vunpack.c.l.b16 %v1417
        %v4341 = vunpack.c.h.b16 %v1417
        %v4342 = vunpack.c.l.b16 %v1418
        %v4343 = vunpack.c.h.b16 %v1418
        %v4344 = vunpack.c.l.b16 %v1419
        %v4345 = vunpack.c.h.b16 %v1419
        %v4346 = vunpack.c.l.b16 %v1420
        %v4347 = vunpack.c.h.b16 %v1420
        %v4348 = vunpack.c.l.b16 %v1421
        %v4349 = vunpack.c.h.b16 %v1421
        %v4350 = vunpack.c.l.b16 %v1422
        %v4351 = vunpack.c.h.b16 %v1422
        %v4352 = vunpack.c.l.b16 %v1423
        %v4353 = vunpack.c.h.b16 %v1423
        %v4354 = vunpack.c.l.b16 %v1424
        %v4355 = vunpack.c.h.b16 %v1424
        %v4356 = vunpack.c.l.b16 %v1425
        %v4357 = vunpack.c.h.b16 %v1425
        %v4358 = vunpack.c.l.b16 %v1426
        %v4359 = vunpack.c.h.b16 %v1426
        %v4360 = vpack.c.b16 %v2448, %v2440
        %v4361 = vpack.c.b16 %v2449, %v2441
        %v4362 = vpack.c.b16 %v2450, %v2442
        %v4363 = vpack.c.b16 %v2451, %v2443
        %v4364 = vpack.c.b16 %v2452, %v2444
        %v4365 = vpack.c.b16 %v2453, %v2445
        %v4366 = vpack.c.b16 %v2454, %v2446
        %v4367 = vpack.c.b16 %v2455, %v2447
        %v4368 = vpack.c.b16 %v2464, %v2456
        %v4369 = vpack.c.b16 %v2465, %v2457
        %v4370 = vpack.c.b16 %v2466, %v2458
        %v4371 = vpack.c.b16 %v2467, %v2459
        %v4372 = vpack.c.b16 %v2468, %v2460
        %v4373 = vpack.c.b16 %v2469, %v2461
        %v4374 = vpack.c.b16 %v2470, %v2462
        %v4375 = vpack.c.b16 %v2471, %v2463
        %v4376 = vpack.c.b16 %v2480, %v2472
        %v4377 = vpack.c.b16 %v2481, %v2473
        %v4378 = vpack.c.b16 %v2482, %v2474
        %v4379 = vpack.c.b16 %v2483, %v2475
        %v4380 = vpack.c.b16 %v2484, %v2476
        %v4381 = vpack.c.b16 %v2485, %v2477
        %v4382 = vpack.c.b16 %v2486, %v2478
        %v4383 = vpack.c.b16 %v2487, %v2479
        %v4384 = vpack.c.b16 %v2496, %v2488
        %v4385 = vpack.c.b16 %v2497, %v2489
        %v4386 = vpack.c.b16 %v2498, %v2490
        %v4387 = vpack.c.b16 %v2499, %v2491
        %v4388 = vpack.c.b16 %v2500, %v2492
        %v4389 = vpack.c.b16 %v2501, %v2493
        %v4390 = vpack.c.b16 %v2502, %v2494
        %v4391 = vpack.c.b16 %v2503, %v2495
        %v4392 = vpack.c.b16 %v2512, %v2504
        %v4393 = vpack.c.b16 %v2513, %v2505
        %v4394 = vpack.c.b16 %v2514, %v2506
        %v4395 = vpack.c.b16 %v2515, %v2507
        %v4396 = vpack.c.b16 %v2516, %v2508
        %v4397 = vpack.c.b16 %v2517, %v2509
        %v4398 = vpack.c.b16 %v2518, %v2510
        %v4399 = vpack.c.b16 %v2519, %v2511
        %v4400 = vpack.c.b16 %v2528, %v2520
        %v4401 = vpack.c.b16 %v2529, %v2521
        %v4402 = vpack.c.b16 %v2530, %v2522
        %v4403 = vpack.c.b16 %v2531, %v2523
        %v4404 = vpack.c.b16 %v2532, %v2524
        %v4405 = vpack.c.b16 %v2533, %v2525
        %v4406 = vpack.c.b16 %v2534, %v2526
        %v4407 = vpack.c.b16 %v2535, %v2527
        %v4408 = vpack.c.b16 %v2544, %v2536
        %v4409 = vpack.c.b16 %v2545, %v2537
        %v4410 = vpack.c.b16 %v2546, %v2538
        %v4411 = vpack.c.b16 %v2547, %v2539
        %v4412 = vpack.c.b16 %v2548, %v2540
        %v4413 = vpack.c.b16 %v2549, %v2541
        %v4414 = vpack.c.b16 %v2550, %v2542
        %v4415 = vpack.c.b16 %v2551, %v2543
        %v4416 = vpack.c.b16 %v2560, %v2552
        %v4417 = vpack.c.b16 %v2561, %v2553
        %v4418 = vpack.c.b16 %v2562, %v2554
        %v4419 = vpack.c.b16 %v2563, %v2555
        %v4420 = vpack.c.b16 %v2564, %v2556
        %v4421 = vpack.c.b16 %v2565, %v2557
        %v4422 = vpack.c.b16 %v2566, %v2558
        %v4423 = vpack.c.b16 %v2567, %v2559
        %v4424 = vpack.c.b16 %v2576, %v2568
        %v4425 = vpack.c.b16 %v2577, %v2569
        %v4426 = vpack.c.b16 %v2578, %v2570
        %v4427 = vpack.c.b16 %v2579, %v2571
        %v4428 = vpack.c.b16 %v2580, %v2572
        %v4429 = vpack.c.b16 %v2581, %v2573
        %v4430 = vpack.c.b16 %v2582, %v2574
        %v4431 = vpack.c.b16 %v2583, %v2575
        %v4432 = vpack.c.b16 %v2592, %v2584
        %v4433 = vpack.c.b16 %v2593, %v2585
        %v4434 = vpack.c.b16 %v2594, %v2586
        %v4435 = vpack.c.b16 %v2595, %v2587
        %v4436 = vpack.c.b16 %v2596, %v2588
        %v4437 = vpack.c.b16 %v2597, %v2589
        %v4438 = vpack.c.b16 %v2598, %v2590
        %v4439 = vpack.c.b16 %v2599, %v2591
        %v4440 = vpack.c.b16 %v2608, %v2600
        %v4441 = vpack.c.b16 %v2609, %v2601
        %v4442 = vpack.c.b16 %v2610, %v2602
        %v4443 = vpack.c.b16 %v2611, %v2603
        %v4444 = vpack.c.b16 %v2612, %v2604
        %v4445 = vpack.c.b16 %v2613, %v2605
        %v4446 = vpack.c.b16 %v2614, %v2606
        %v4447 = vpack.c.b16 %v2615, %v2607
        %v4448 = vpack.c.b16 %v2624, %v2616
        %v4449 = vpack.c.b16 %v2625, %v2617
        %v4450 = vpack.c.b16 %v2626, %v2618
        %v4451 = vpack.c.b16 %v2627, %v2619
        %v4452 = vpack.c.b16 %v2628, %v2620
        %v4453 = vpack.c.b16 %v2629, %v2621
        %v4454 = vpack.c.b16 %v2630, %v2622
        %v4455 = vpack.c.b16 %v2631, %v2623
        %v4456 = vpack.c.b16 %v2640, %v2632
        %v4457 = vpack.c.b16 %v2641, %v2633
        %v4458 = vpack.c.b16 %v2642, %v2634
        %v4459 = vpack.c.b16 %v2643, %v2635
        %v4460 = vpack.c.b16 %v2644, %v2636
        %v4461 = vpack.c.b16 %v2645, %v2637
        %v4462 = vpack.c.b16 %v2646, %v2638
        %v4463 = vpack.c.b16 %v2647, %v2639
        %v4464 = vpack.c.b16 %v2656, %v2648
        %v4465 = vpack.c.b16 %v2657, %v2649
        %v4466 = vpack.c.b16 %v2658, %v2650
        %v4467 = vpack.c.b16 %v2659, %v2651
        %v4468 = vpack.c.b16 %v2660, %v2652
        %v4469 = vpack.c.b16 %v2661, %v2653
        %v4470 = vpack.c.b16 %v2662, %v2654
        %v4471 = vpack.c.b16 %v2663, %v2655
        %v4472 = vpack.c.b16 %v2672, %v2664
        %v4473 = vpack.c.b16 %v2673, %v2665
        %v4474 = vpack.c.b16 %v2674, %v2666
        %v4475 = vpack.c.b16 %v2675, %v2667
        %v4476 = vpack.c.b16 %v2676, %v2668
        %v4477 = vpack.c.b16 %v2677, %v2669
        %v4478 = vpack.c.b16 %v2678, %v2670
        %v4479 = vpack.c.b16 %v2679, %v2671
        %v4480 = vpack.c.b16 %v2688, %v2680
        %v4481 = vpack.c.b16 %v2689, %v2681
        %v4482 = vpack.c.b16 %v2690, %v2682
        %v4483 = vpack.c.b16 %v2691, %v2683
        %v4484 = vpack.c.b16 %v2692, %v2684
        %v4485 = vpack.c.b16 %v2693, %v2685
        %v4486 = vpack.c.b16 %v2694, %v2686
        %v4487 = vpack.c.b16 %v2695, %v2687
        %v4488 = vpack.c.b16 %v2704, %v2696
        %v4489 = vpack.c.b16 %v2705, %v2697
        %v4490 = vpack.c.b16 %v2706, %v2698
        %v4491 = vpack.c.b16 %v2707, %v2699
        %v4492 = vpack.c.b16 %v2708, %v2700
        %v4493 = vpack.c.b16 %v2709, %v2701
        %v4494 = vpack.c.b16 %v2710, %v2702
        %v4495 = vpack.c.b16 %v2711, %v2703
        %v4496 = vpack.c.b16 %v2720, %v2712
        %v4497 = vpack.c.b16 %v2721, %v2713
        %v4498 = vpack.c.b16 %v2722, %v2714
        %v4499 = vpack.c.b16 %v2723, %v2715
        %v4500 = vpack.c.b16 %v2724, %v2716
        %v4501 = vpack.c.b16 %v2725, %v2717
        %v4502 = vpack.c.b16 %v2726, %v2718
        %v4503 = vpack.c.b16 %v2727, %v2719
        %v4504 = vpack.c.b16 %v2736, %v2728
        %v4505 = vpack.c.b16 %v2737, %v2729
        %v4506 = vpack.c.b16 %v2738, %v2730
        %v4507 = vpack.c.b16 %v2739, %v2731
        %v4508 = vpack.c.b16 %v2740, %v2732
        %v4509 = vpack.c.b16 %v2741, %v2733
        %v4510 = vpack.c.b16 %v2742, %v2734
        %v4511 = vpack.c.b16 %v2743, %v2735
        %v4512 = vpack.c.b16 %v2752, %v2744
        %v4513 = vpack.c.b16 %v2753, %v2745
        %v4514 = vpack.c.b16 %v2754, %v2746
        %v4515 = vpack.c.b16 %v2755, %v2747
        %v4516 = vpack.c.b16 %v2756, %v2748
        %v4517 = vpack.c.b16 %v2757, %v2749
        %v4518 = vpack.c.b16 %v2758, %v2750
        %v4519 = vpack.c.b16 %v2759, %v2751
        %v4520 = vpack.c.b16 %v2768, %v2760
        %v4521 = vpack.c.b16 %v2769, %v2761
        %v4522 = vpack.c.b16 %v2770, %v2762
        %v4523 = vpack.c.b16 %v2771, %v2763
        %v4524 = vpack.c.b16 %v2772, %v2764
        %v4525 = vpack.c.b16 %v2773, %v2765
        %v4526 = vpack.c.b16 %v2774, %v2766
        %v4527 = vpack.c.b16 %v2775, %v2767
        %v4528 = vpack.c.b16 %v2784, %v2776
        %v4529 = vpack.c.b16 %v2785, %v2777
        %v4530 = vpack.c.b16 %v2786, %v2778
        %v4531 = vpack.c.b16 %v2787, %v2779
        %v4532 = vpack.c.b16 %v2788, %v2780
        %v4533 = vpack.c.b16 %v2789, %v2781
        %v4534 = vpack.c.b16 %v2790, %v2782
        %v4535 = vpack.c.b16 %v2791, %v2783
        %v4536 = vpack.c.b16 %v2800, %v2792
        %v4537 = vpack.c.b16 %v2801, %v2793
        %v4538 = vpack.c.b16 %v2802, %v2794
        %v4539 = vpack.c.b16 %v2803, %v2795
        %v4540 = vpack.c.b16 %v2804, %v2796
        %v4541 = vpack.c.b16 %v2805, %v2797
        %v4542 = vpack.c.b16 %v2806, %v2798
        %v4543 = vpack.c.b16 %v2807, %v2799
        %v4544 = vpack.c.b16 %v2816, %v2808
        %v4545 = vpack.c.b16 %v2817, %v2809
        %v4546 = vpack.c.b16 %v2818, %v2810
        %v4547 = vpack.c.b16 %v2819, %v2811
        %v4548 = vpack.c.b16 %v2820, %v2812
        %v4549 = vpack.c.b16 %v2821, %v2813
        %v4550 = vpack.c.b16 %v2822, %v2814
        %v4551 = vpack.c.b16 %v2823, %v2815
        %v4552 = vpack.c.b16 %v2832, %v2824
        %v4553 = vpack.c.b16 %v2833, %v2825
        %v4554 = vpack.c.b16 %v2834, %v2826
        %v4555 = vpack.c.b16 %v2835, %v2827
        %v4556 = vpack.c.b16 %v2836, %v2828
        %v4557 = vpack.c.b16 %v2837, %v2829
        %v4558 = vpack.c.b16 %v2838, %v2830
        %v4559 = vpack.c.b16 %v2839, %v2831
        %v4560 = vpack.c.b16 %v2848, %v2840
        %v4561 = vpack.c.b16 %v2849, %v2841
        %v4562 = vpack.c.b16 %v2850, %v2842
        %v4563 = vpack.c.b16 %v2851, %v2843
        %v4564 = vpack.c.b16 %v2852, %v2844
        %v4565 = vpack.c.b16 %v2853, %v2845
        %v4566 = vpack.c.b16 %v2854, %v2846
        %v4567 = vpack.c.b16 %v2855, %v2847
        %v4568 = vpack.c.b16 %v2864, %v2856
        %v4569 = vpack.c.b16 %v2865, %v2857
        %v4570 = vpack.c.b16 %v2866, %v2858
        %v4571 = vpack.c.b16 %v2867, %v2859
        %v4572 = vpack.c.b16 %v2868, %v2860
        %v4573 = vpack.c.b16 %v2869, %v2861
        %v4574 = vpack.c.b16 %v2870, %v2862
        %v4575 = vpack.c.b16 %v2871, %v2863
        %v4576 = vpack.c.b16 %v2880, %v2872
        %v4577 = vpack.c.b16 %v2881, %v2873
        %v4578 = vpack.c.b16 %v2882, %v2874
        %v4579 = vpack.c.b16 %v2883, %v2875
        %v4580 = vpack.c.b16 %v2884, %v2876
        %v4581 = vpack.c.b16 %v2885, %v2877
        %v4582 = vpack.c.b16 %v2886, %v2878
        %v4583 = vpack.c.b16 %v2887, %v2879
        %v4584 = vpack.c.b16 %v2896, %v2888
        %v4585 = vpack.c.b16 %v2897, %v2889
        %v4586 = vpack.c.b16 %v2898, %v2890
        %v4587 = vpack.c.b16 %v2899, %v2891
        %v4588 = vpack.c.b16 %v2900, %v2892
        %v4589 = vpack.c.b16 %v2901, %v2893
        %v4590 = vpack.c.b16 %v2902, %v2894
        %v4591 = vpack.c.b16 %v2903, %v2895
        %v4592 = vpack.c.b16 %v2912, %v2904
        %v4593 = vpack.c.b16 %v2913, %v2905
        %v4594 = vpack.c.b16 %v2914, %v2906
        %v4595 = vpack.c.b16 %v2915, %v2907
        %v4596 = vpack.c.b16 %v2916, %v2908
        %v4597 = vpack.c.b16 %v2917, %v2909
        %v4598 = vpack.c.b16 %v2918, %v2910
        %v4599 = vpack.c.b16 %v2919, %v2911
        %v4600 = vpack.c.b16 %v2928, %v2920
        %v4601 = vpack.c.b16 %v2929, %v2921
        %v4602 = vpack.c.b16 %v2930, %v2922
        %v4603 = vpack.c.b16 %v2931, %v2923
        %v4604 = vpack.c.b16 %v2932, %v2924
        %v4605 = vpack.c.b16 %v2933, %v2925
        %v4606 = vpack.c.b16 %v2934, %v2926
        %v4607 = vpack.c.b16 %v2935, %v2927
        %v4608 = vpack.c.b16 %v2944, %v2936
        %v4609 = vpack.c.b16 %v2945, %v2937
        %v4610 = vpack.c.b16 %v2946, %v2938
        %v4611 = vpack.c.b16 %v2947, %v2939
        %v4612 = vpack.c.b16 %v2948, %v2940
        %v4613 = vpack.c.b16 %v2949, %v2941
        %v4614 = vpack.c.b16 %v2950, %v2942
        %v4615 = vpack.c.b16 %v2951, %v2943
        %v4616 = vpack.c.b16 %v2960, %v2952
        %v4617 = vpack.c.b16 %v2961, %v2953
        %v4618 = vpack.c.b16 %v2962, %v2954
        %v4619 = vpack.c.b16 %v2963, %v2955
        %v4620 = vpack.c.b16 %v2964, %v2956
        %v4621 = vpack.c.b16 %v2965, %v2957
        %v4622 = vpack.c.b16 %v2966, %v2958
        %v4623 = vpack.c.b16 %v2967, %v2959
        %v4624 = vpack.c.b16 %v2976, %v2968
        %v4625 = vpack.c.b16 %v2977, %v2969
        %v4626 = vpack.c.b16 %v2978, %v2970
        %v4627 = vpack.c.b16 %v2979, %v2971
        %v4628 = vpack.c.b16 %v2980, %v2972
        %v4629 = vpack.c.b16 %v2981, %v2973
        %v4630 = vpack.c.b16 %v2982, %v2974
        %v4631 = vpack.c.b16 %v2983, %v2975
        %v4632 = vpack.c.b16 %v2992, %v2984
        %v4633 = vpack.c.b16 %v2993, %v2985
        %v4634 = vpack.c.b16 %v2994, %v2986
        %v4635 = vpack.c.b16 %v2995, %v2987
        %v4636 = vpack.c.b16 %v2996, %v2988
        %v4637 = vpack.c.b16 %v2997, %v2989
        %v4638 = vpack.c.b16 %v2998, %v2990
        %v4639 = vpack.c.b16 %v2999, %v2991
        %v4640 = vpack.c.b16 %v3008, %v3000
        %v4641 = vpack.c.b16 %v3009, %v3001
        %v4642 = vpack.c.b16 %v3010, %v3002
        %v4643 = vpack.c.b16 %v3011, %v3003
        %v4644 = vpack.c.b16 %v3012, %v3004
        %v4645 = vpack.c.b16 %v3013, %v3005
        %v4646 = vpack.c.b16 %v3014, %v3006
        %v4647 = vpack.c.b16 %v3015, %v3007
        %v4648 = vpack.c.b16 %v3024, %v3016
        %v4649 = vpack.c.b16 %v3025, %v3017
        %v4650 = vpack.c.b16 %v3026, %v3018
        %v4651 = vpack.c.b16 %v3027, %v3019
        %v4652 = vpack.c.b16 %v3028, %v3020
        %v4653 = vpack.c.b16 %v3029, %v3021
        %v4654 = vpack.c.b16 %v3030, %v3022
        %v4655 = vpack.c.b16 %v3031, %v3023
        %v4656 = vpack.c.b16 %v3040, %v3032
        %v4657 = vpack.c.b16 %v3041, %v3033
        %v4658 = vpack.c.b16 %v3042, %v3034
        %v4659 = vpack.c.b16 %v3043, %v3035
        %v4660 = vpack.c.b16 %v3044, %v3036
        %v4661 = vpack.c.b16 %v3045, %v3037
        %v4662 = vpack.c.b16 %v3046, %v3038
        %v4663 = vpack.c.b16 %v3047, %v3039
        %v4664 = vpack.c.b16 %v3056, %v3048
        %v4665 = vpack.c.b16 %v3057, %v3049
        %v4666 = vpack.c.b16 %v3058, %v3050
        %v4667 = vpack.c.b16 %v3059, %v3051
        %v4668 = vpack.c.b16 %v3060, %v3052
        %v4669 = vpack.c.b16 %v3061, %v3053
        %v4670 = vpack.c.b16 %v3062, %v3054
        %v4671 = vpack.c.b16 %v3063, %v3055
        %v4672 = vpack.c.b16 %v3072, %v3064
        %v4673 = vpack.c.b16 %v3073, %v3065
        %v4674 = vpack.c.b16 %v3074, %v3066
        %v4675 = vpack.c.b16 %v3075, %v3067
        %v4676 = vpack.c.b16 %v3076, %v3068
        %v4677 = vpack.c.b16 %v3077, %v3069
        %v4678 = vpack.c.b16 %v3078, %v3070
        %v4679 = vpack.c.b16 %v3079, %v3071
        %v4680 = vpack.c.b16 %v3088, %v3080
        %v4681 = vpack.c.b16 %v3089, %v3081
        %v4682 = vpack.c.b16 %v3090, %v3082
        %v4683 = vpack.c.b16 %v3091, %v3083
        %v4684 = vpack.c.b16 %v3092, %v3084
        %v4685 = vpack.c.b16 %v3093, %v3085
        %v4686 = vpack.c.b16 %v3094, %v3086
        %v4687 = vpack.c.b16 %v3095, %v3087
        %v4688 = vpack.c.b16 %v3104, %v3096
        %v4689 = vpack.c.b16 %v3105, %v3097
        %v4690 = vpack.c.b16 %v3106, %v3098
        %v4691 = vpack.c.b16 %v3107, %v3099
        %v4692 = vpack.c.b16 %v3108, %v3100
        %v4693 = vpack.c.b16 %v3109, %v3101
        %v4694 = vpack.c.b16 %v3110, %v3102
        %v4695 = vpack.c.b16 %v3111, %v3103
        %v4696 = vpack.c.b16 %v3120, %v3112
        %v4697 = vpack.c.b16 %v3121, %v3113
        %v4698 = vpack.c.b16 %v3122, %v3114
        %v4699 = vpack.c.b16 %v3123, %v3115
        %v4700 = vpack.c.b16 %v3124, %v3116
        %v4701 = vpack.c.b16 %v3125, %v3117
        %v4702 = vpack.c.b16 %v3126, %v3118
        %v4703 = vpack.c.b16 %v3127, %v3119
        %v4704 = vpack.c.b16 %v3136, %v3128
        %v4705 = vpack.c.b16 %v3137, %v3129
        %v4706 = vpack.c.b16 %v3138, %v3130
        %v4707 = vpack.c.b16 %v3139, %v3131
        %v4708 = vpack.c.b16 %v3140, %v3132
        %v4709 = vpack.c.b16 %v3141, %v3133
        %v4710 = vpack.c.b16 %v3142, %v3134
        %v4711 = vpack.c.b16 %v3143, %v3135
        %v4712 = vpack.c.b16 %v3152, %v3144
        %v4713 = vpack.c.b16 %v3153, %v3145
        %v4714 = vpack.c.b16 %v3154, %v3146
        %v4715 = vpack.c.b16 %v3155, %v3147
        %v4716 = vpack.c.b16 %v3156, %v3148
        %v4717 = vpack.c.b16 %v3157, %v3149
        %v4718 = vpack.c.b16 %v3158, %v3150
        %v4719 = vpack.c.b16 %v3159, %v3151
        %v4720 = vpack.c.b16 %v3168, %v3160
        %v4721 = vpack.c.b16 %v3169, %v3161
        %v4722 = vpack.c.b16 %v3170, %v3162
        %v4723 = vpack.c.b16 %v3171, %v3163
        %v4724 = vpack.c.b16 %v3172, %v3164
        %v4725 = vpack.c.b16 %v3173, %v3165
        %v4726 = vpack.c.b16 %v3174, %v3166
        %v4727 = vpack.c.b16 %v3175, %v3167
        %v4728 = vpack.c.b16 %v3184, %v3176
        %v4729 = vpack.c.b16 %v3185, %v3177
        %v4730 = vpack.c.b16 %v3186, %v3178
        %v4731 = vpack.c.b16 %v3187, %v3179
        %v4732 = vpack.c.b16 %v3188, %v3180
        %v4733 = vpack.c.b16 %v3189, %v3181
        %v4734 = vpack.c.b16 %v3190, %v3182
        %v4735 = vpack.c.b16 %v3191, %v3183
        %v4736 = vpack.c.b16 %v3200, %v3192
        %v4737 = vpack.c.b16 %v3201, %v3193
        %v4738 = vpack.c.b16 %v3202, %v3194
        %v4739 = vpack.c.b16 %v3203, %v3195
        %v4740 = vpack.c.b16 %v3204, %v3196
        %v4741 = vpack.c.b16 %v3205, %v3197
        %v4742 = vpack.c.b16 %v3206, %v3198
        %v4743 = vpack.c.b16 %v3207, %v3199
        %v4744 = vpack.c.b16 %v3216, %v3208
        %v4745 = vpack.c.b16 %v3217, %v3209
        %v4746 = vpack.c.b16 %v3218, %v3210
        %v4747 = vpack.c.b16 %v3219, %v3211
        %v4748 = vpack.c.b16 %v3220, %v3212
        %v4749 = vpack.c.b16 %v3221, %v3213
        %v4750 = vpack.c.b16 %v3222, %v3214
        %v4751 = vpack.c.b16 %v3223, %v3215
        %v4752 = vpack.c.b16 %v3232, %v3224
        %v4753 = vpack.c.b16 %v3233, %v3225
        %v4754 = vpack.c.b16 %v3234, %v3226
        %v4755 = vpack.c.b16 %v3235, %v3227
        %v4756 = vpack.c.b16 %v3236, %v3228
        %v4757 = vpack.c.b16 %v3237, %v3229
        %v4758 = vpack.c.b16 %v3238, %v3230
        %v4759 = vpack.c.b16 %v3239, %v3231
        %v4760 = vpack.c.b16 %v3248, %v3240
        %v4761 = vpack.c.b16 %v3249, %v3241
        %v4762 = vpack.c.b16 %v3250, %v3242
        %v4763 = vpack.c.b16 %v3251, %v3243
        %v4764 = vpack.c.b16 %v3252, %v3244
        %v4765 = vpack.c.b16 %v3253, %v3245
        %v4766 = vpack.c.b16 %v3254, %v3246
        %v4767 = vpack.c.b16 %v3255, %v3247
        %v4768 = vpack.c.b16 %v3264, %v3256
        %v4769 = vpack.c.b16 %v3265, %v3257
        %v4770 = vpack.c.b16 %v3266, %v3258
        %v4771 = vpack.c.b16 %v3267, %v3259
        %v4772 = vpack.c.b16 %v3268, %v3260
        %v4773 = vpack.c.b16 %v3269, %v3261
        %v4774 = vpack.c.b16 %v3270, %v3262
        %v4775 = vpack.c.b16 %v3271, %v3263
        %v4776 = vpack.c.b16 %v3280, %v3272
        %v4777 = vpack.c.b16 %v3281, %v3273
        %v4778 = vpack.c.b16 %v3282, %v3274
        %v4779 = vpack.c.b16 %v3283, %v3275
        %v4780 = vpack.c.b16 %v3284, %v3276
        %v4781 = vpack.c.b16 %v3285, %v3277
        %v4782 = vpack.c.b16 %v3286, %v3278
        %v4783 = vpack.c.b16 %v3287, %v3279
        %v4784 = vpack.c.b16 %v3296, %v3288
        %v4785 = vpack.c.b16 %v3297, %v3289
        %v4786 = vpack.c.b16 %v3298, %v3290
        %v4787 = vpack.c.b16 %v3299, %v3291
        %v4788 = vpack.c.b16 %v3300, %v3292
        %v4789 = vpack.c.b16 %v3301, %v3293
        %v4790 = vpack.c.b16 %v3302, %v3294
        %v4791 = vpack.c.b16 %v3303, %v3295
        %v4792 = vpack.c.b16 %v3312, %v3304
        %v4793 = vpack.c.b16 %v3313, %v3305
        %v4794 = vpack.c.b16 %v3314, %v3306
        %v4795 = vpack.c.b16 %v3315, %v3307
        %v4796 = vpack.c.b16 %v3316, %v3308
        %v4797 = vpack.c.b16 %v3317, %v3309
        %v4798 = vpack.c.b16 %v3318, %v3310
        %v4799 = vpack.c.b16 %v3319, %v3311
        %v4800 = vpack.c.b16 %v3328, %v3320
        %v4801 = vpack.c.b16 %v3329, %v3321
        %v4802 = vpack.c.b16 %v3330, %v3322
        %v4803 = vpack.c.b16 %v3331, %v3323
        %v4804 = vpack.c.b16 %v3332, %v3324
        %v4805 = vpack.c.b16 %v3333, %v3325
        %v4806 = vpack.c.b16 %v3334, %v3326
        %v4807 = vpack.c.b16 %v3335, %v3327
        %v4808 = vpack.c.b16 %v3344, %v3336
        %v4809 = vpack.c.b16 %v3345, %v3337
        %v4810 = vpack.c.b16 %v3346, %v3338
        %v4811 = vpack.c.b16 %v3347, %v3339
        %v4812 = vpack.c.b16 %v3348, %v3340
        %v4813 = vpack.c.b16 %v3349, %v3341
        %v4814 = vpack.c.b16 %v3350, %v3342
        %v4815 = vpack.c.b16 %v3351, %v3343
        %v4816 = vpack.c.b16 %v3360, %v3352
        %v4817 = vpack.c.b16 %v3361, %v3353
        %v4818 = vpack.c.b16 %v3362, %v3354
        %v4819 = vpack.c.b16 %v3363, %v3355
        %v4820 = vpack.c.b16 %v3364, %v3356
        %v4821 = vpack.c.b16 %v3365, %v3357
        %v4822 = vpack.c.b16 %v3366, %v3358
        %v4823 = vpack.c.b16 %v3367, %v3359
        %v4824 = vpack.c.b16 %v3376, %v3368
        %v4825 = vpack.c.b16 %v3377, %v3369
        %v4826 = vpack.c.b16 %v3378, %v3370
        %v4827 = vpack.c.b16 %v3379, %v3371
        %v4828 = vpack.c.b16 %v3380, %v3372
        %v4829 = vpack.c.b16 %v3381, %v3373
        %v4830 = vpack.c.b16 %v3382, %v3374
        %v4831 = vpack.c.b16 %v3383, %v3375
        %v4832 = vpack.c.b16 %v3392, %v3384
        %v4833 = vpack.c.b16 %v3393, %v3385
        %v4834 = vpack.c.b16 %v3394, %v3386
        %v4835 = vpack.c.b16 %v3395, %v3387
        %v4836 = vpack.c.b16 %v3396, %v3388
        %v4837 = vpack.c.b16 %v3397, %v3389
        %v4838 = vpack.c.b16 %v3398, %v3390
        %v4839 = vpack.c.b16 %v3399, %v3391
        %v4840 = vpack.c.b16 %v3408, %v3400
        %v4841 = vpack.c.b16 %v3409, %v3401
        %v4842 = vpack.c.b16 %v3410, %v3402
        %v4843 = vpack.c.b16 %v3411, %v3403
        %v4844 = vpack.c.b16 %v3412, %v3404
        %v4845 = vpack.c.b16 %v3413, %v3405
        %v4846 = vpack.c.b16 %v3414, %v3406
        %v4847 = vpack.c.b16 %v3415, %v3407
        %v4848 = vpack.c.b16 %v3424, %v3416
        %v4849 = vpack.c.b16 %v3425, %v3417
        %v4850 = vpack.c.b16 %v3426, %v3418
        %v4851 = vpack.c.b16 %v3427, %v3419
        %v4852 = vpack.c.b16 %v3428, %v3420
        %v4853 = vpack.c.b16 %v3429, %v3421
        %v4854 = vpack.c.b16 %v3430, %v3422
        %v4855 = vpack.c.b16 %v3431, %v3423
        %v4856 = vpack.c.b16 %v3440, %v3432
        %v4857 = vpack.c.b16 %v3441, %v3433
        %v4858 = vpack.c.b16 %v3442, %v3434
        %v4859 = vpack.c.b16 %v3443, %v3435
        %v4860 = vpack.c.b16 %v3444, %v3436
        %v4861 = vpack.c.b16 %v3445, %v3437
        %v4862 = vpack.c.b16 %v3446, %v3438
        %v4863 = vpack.c.b16 %v3447, %v3439
        %v4864 = vpack.c.b16 %v3456, %v3448
        %v4865 = vpack.c.b16 %v3457, %v3449
        %v4866 = vpack.c.b16 %v3458, %v3450
        %v4867 = vpack.c.b16 %v3459, %v3451
        %v4868 = vpack.c.b16 %v3460, %v3452
        %v4869 = vpack.c.b16 %v3461, %v3453
        %v4870 = vpack.c.b16 %v3462, %v3454
        %v4871 = vpack.c.b16 %v3463, %v3455
        %v4872 = vpack.c.b16 %v3472, %v3464
        %v4873 = vpack.c.b16 %v3473, %v3465
        %v4874 = vpack.c.b16 %v3474, %v3466
        %v4875 = vpack.c.b16 %v3475, %v3467
        %v4876 = vpack.c.b16 %v3476, %v3468
        %v4877 = vpack.c.b16 %v3477, %v3469
        %v4878 = vpack.c.b16 %v3478, %v3470
        %v4879 = vpack.c.b16 %v3479, %v3471
        %v4880 = vpack.c.b16 %v3488, %v3480
        %v4881 = vpack.c.b16 %v3489, %v3481
        %v4882 = vpack.c.b16 %v3490, %v3482
        %v4883 = vpack.c.b16 %v3491, %v3483
        %v4884 = vpack.c.b16 %v3492, %v3484
        %v4885 = vpack.c.b16 %v3493, %v3485
        %v4886 = vpack.c.b16 %v3494, %v3486
        %v4887 = vpack.c.b16 %v3495, %v3487
        %v4888 = vpack.c.b16 %v3504, %v3496
        %v4889 = vpack.c.b16 %v3505, %v3497
        %v4890 = vpack.c.b16 %v3506, %v3498
        %v4891 = vpack.c.b16 %v3507, %v3499
        %v4892 = vpack.c.b16 %v3508, %v3500
        %v4893 = vpack.c.b16 %v3509, %v3501
        %v4894 = vpack.c.b16 %v3510, %v3502
        %v4895 = vpack.c.b16 %v3511, %v3503
        %v4896 = vpack.c.b16 %v3520, %v3512
        %v4897 = vpack.c.b16 %v3521, %v3513
        %v4898 = vpack.c.b16 %v3522, %v3514
        %v4899 = vpack.c.b16 %v3523, %v3515
        %v4900 = vpack.c.b16 %v3524, %v3516
        %v4901 = vpack.c.b16 %v3525, %v3517
        %v4902 = vpack.c.b16 %v3526, %v3518
        %v4903 = vpack.c.b16 %v3527, %v3519
        %v4904 = vpack.c.b16 %v3536, %v3528
        %v4905 = vpack.c.b16 %v3537, %v3529
        %v4906 = vpack.c.b16 %v3538, %v3530
        %v4907 = vpack.c.b16 %v3539, %v3531
        %v4908 = vpack.c.b16 %v3540, %v3532
        %v4909 = vpack.c.b16 %v3541, %v3533
        %v4910 = vpack.c.b16 %v3542, %v3534
        %v4911 = vpack.c.b16 %v3543, %v3535
        %v4912 = vpack.c.b16 %v3552, %v3544
        %v4913 = vpack.c.b16 %v3553, %v3545
        %v4914 = vpack.c.b16 %v3554, %v3546
        %v4915 = vpack.c.b16 %v3555, %v3547
        %v4916 = vpack.c.b16 %v3556, %v3548
        %v4917 = vpack.c.b16 %v3557, %v3549
        %v4918 = vpack.c.b16 %v3558, %v3550
        %v4919 = vpack.c.b16 %v3559, %v3551
        %v4920 = vpack.c.b16 %v3568, %v3560
        %v4921 = vpack.c.b16 %v3569, %v3561
        %v4922 = vpack.c.b16 %v3570, %v3562
        %v4923 = vpack.c.b16 %v3571, %v3563
        %v4924 = vpack.c.b16 %v3572, %v3564
        %v4925 = vpack.c.b16 %v3573, %v3565
        %v4926 = vpack.c.b16 %v3574, %v3566
        %v4927 = vpack.c.b16 %v3575, %v3567
        %v4928 = vpack.c.b16 %v3584, %v3576
        %v4929 = vpack.c.b16 %v3585, %v3577
        %v4930 = vpack.c.b16 %v3586, %v3578
        %v4931 = vpack.c.b16 %v3587, %v3579
        %v4932 = vpack.c.b16 %v3588, %v3580
        %v4933 = vpack.c.b16 %v3589, %v3581
        %v4934 = vpack.c.b16 %v3590, %v3582
        %v4935 = vpack.c.b16 %v3591, %v3583
        %v4936 = vpack.c.b16 %v3600, %v3592
        %v4937 = vpack.c.b16 %v3601, %v3593
        %v4938 = vpack.c.b16 %v3602, %v3594
        %v4939 = vpack.c.b16 %v3603, %v3595
        %v4940 = vpack.c.b16 %v3604, %v3596
        %v4941 = vpack.c.b16 %v3605, %v3597
        %v4942 = vpack.c.b16 %v3606, %v3598
        %v4943 = vpack.c.b16 %v3607, %v3599
        %v4944 = vpack.c.b16 %v3616, %v3608
        %v4945 = vpack.c.b16 %v3617, %v3609
        %v4946 = vpack.c.b16 %v3618, %v3610
        %v4947 = vpack.c.b16 %v3619, %v3611
        %v4948 = vpack.c.b16 %v3620, %v3612
        %v4949 = vpack.c.b16 %v3621, %v3613
        %v4950 = vpack.c.b16 %v3622, %v3614
        %v4951 = vpack.c.b16 %v3623, %v3615
        %v4952 = vpack.c.b16 %v3632, %v3624
        %v4953 = vpack.c.b16 %v3633, %v3625
        %v4954 = vpack.c.b16 %v3634, %v3626
        %v4955 = vpack.c.b16 %v3635, %v3627
        %v4956 = vpack.c.b16 %v3636, %v3628
        %v4957 = vpack.c.b16 %v3637, %v3629
        %v4958 = vpack.c.b16 %v3638, %v3630
        %v4959 = vpack.c.b16 %v3639, %v3631
        %v4960 = vpack.c.b16 %v3648, %v3640
        %v4961 = vpack.c.b16 %v3649, %v3641
        %v4962 = vpack.c.b16 %v3650, %v3642
        %v4963 = vpack.c.b16 %v3651, %v3643
        %v4964 = vpack.c.b16 %v3652, %v3644
        %v4965 = vpack.c.b16 %v3653, %v3645
        %v4966 = vpack.c.b16 %v3654, %v3646
        %v4967 = vpack.c.b16 %v3655, %v3647
        %v4968 = vpack.c.b16 %v3664, %v3656
        %v4969 = vpack.c.b16 %v3665, %v3657
        %v4970 = vpack.c.b16 %v3666, %v3658
        %v4971 = vpack.c.b16 %v3667, %v3659
        %v4972 = vpack.c.b16 %v3668, %v3660
        %v4973 = vpack.c.b16 %v3669, %v3661
        %v4974 = vpack.c.b16 %v3670, %v3662
        %v4975 = vpack.c.b16 %v3671, %v3663
        %v4976 = vpack.c.b16 %v3680, %v3672
        %v4977 = vpack.c.b16 %v3681, %v3673
        %v4978 = vpack.c.b16 %v3682, %v3674
        %v4979 = vpack.c.b16 %v3683, %v3675
        %v4980 = vpack.c.b16 %v3684, %v3676
        %v4981 = vpack.c.b16 %v3685, %v3677
        %v4982 = vpack.c.b16 %v3686, %v3678
        %v4983 = vpack.c.b16 %v3687, %v3679
        %v4984 = vpack.c.b16 %v3696, %v3688
        %v4985 = vpack.c.b16 %v3697, %v3689
        %v4986 = vpack.c.b16 %v3698, %v3690
        %v4987 = vpack.c.b16 %v3699, %v3691
        %v4988 = vpack.c.b16 %v3700, %v3692
        %v4989 = vpack.c.b16 %v3701, %v3693
        %v4990 = vpack.c.b16 %v3702, %v3694
        %v4991 = vpack.c.b16 %v3703, %v3695
        %v4992 = vpack.c.b16 %v3712, %v3704
        %v4993 = vpack.c.b16 %v3713, %v3705
        %v4994 = vpack.c.b16 %v3714, %v3706
        %v4995 = vpack.c.b16 %v3715, %v3707
        %v4996 = vpack.c.b16 %v3716, %v3708
        %v4997 = vpack.c.b16 %v3717, %v3709
        %v4998 = vpack.c.b16 %v3718, %v3710
        %v4999 = vpack.c.b16 %v3719, %v3711
        %v5000 = vpack.c.b16 %v3728, %v3720
        %v5001 = vpack.c.b16 %v3729, %v3721
        %v5002 = vpack.c.b16 %v3730, %v3722
        %v5003 = vpack.c.b16 %v3731, %v3723
        %v5004 = vpack.c.b16 %v3732, %v3724
        %v5005 = vpack.c.b16 %v3733, %v3725
        %v5006 = vpack.c.b16 %v3734, %v3726
        %v5007 = vpack.c.b16 %v3735, %v3727
        %v5008 = vpack.c.b16 %v3744, %v3736
        %v5009 = vpack.c.b16 %v3745, %v3737
        %v5010 = vpack.c.b16 %v3746, %v3738
        %v5011 = vpack.c.b16 %v3747, %v3739
        %v5012 = vpack.c.b16 %v3748, %v3740
        %v5013 = vpack.c.b16 %v3749, %v3741
        %v5014 = vpack.c.b16 %v3750, %v3742
        %v5015 = vpack.c.b16 %v3751, %v3743
        %v5016 = vpack.c.b16 %v3760, %v3752
        %v5017 = vpack.c.b16 %v3761, %v3753
        %v5018 = vpack.c.b16 %v3762, %v3754
        %v5019 = vpack.c.b16 %v3763, %v3755
        %v5020 = vpack.c.b16 %v3764, %v3756
        %v5021 = vpack.c.b16 %v3765, %v3757
        %v5022 = vpack.c.b16 %v3766, %v3758
        %v5023 = vpack.c.b16 %v3767, %v3759
        %v5024 = vpack.c.b16 %v3776, %v3768
        %v5025 = vpack.c.b16 %v3777, %v3769
        %v5026 = vpack.c.b16 %v3778, %v3770
        %v5027 = vpack.c.b16 %v3779, %v3771
        %v5028 = vpack.c.b16 %v3780, %v3772
        %v5029 = vpack.c.b16 %v3781, %v3773
        %v5030 = vpack.c.b16 %v3782, %v3774
        %v5031 = vpack.c.b16 %v3783, %v3775
        %v5032 = vpack.c.b16 %v3792, %v3784
        %v5033 = vpack.c.b16 %v3793, %v3785
        %v5034 = vpack.c.b16 %v3794, %v3786
        %v5035 = vpack.c.b16 %v3795, %v3787
        %v5036 = vpack.c.b16 %v3796, %v3788
        %v5037 = vpack.c.b16 %v3797, %v3789
        %v5038 = vpack.c.b16 %v3798, %v3790
        %v5039 = vpack.c.b16 %v3799, %v3791
        %v5040 = vpack.c.b16 %v3808, %v3800
        %v5041 = vpack.c.b16 %v3809, %v3801
        %v5042 = vpack.c.b16 %v3810, %v3802
        %v5043 = vpack.c.b16 %v3811, %v3803
        %v5044 = vpack.c.b16 %v3812, %v3804
        %v5045 = vpack.c.b16 %v3813, %v3805
        %v5046 = vpack.c.b16 %v3814, %v3806
        %v5047 = vpack.c.b16 %v3815, %v3807
        %v5048 = vpack.c.b16 %v3824, %v3816
        %v5049 = vpack.c.b16 %v3825, %v3817
        %v5050 = vpack.c.b16 %v3826, %v3818
        %v5051 = vpack.c.b16 %v3827, %v3819
        %v5052 = vpack.c.b16 %v3828, %v3820
        %v5053 = vpack.c.b16 %v3829, %v3821
        %v5054 = vpack.c.b16 %v3830, %v3822
        %v5055 = vpack.c.b16 %v3831, %v3823
        %v5056 = vpack.c.b16 %v3840, %v3832
        %v5057 = vpack.c.b16 %v3841, %v3833
        %v5058 = vpack.c.b16 %v3842, %v3834
        %v5059 = vpack.c.b16 %v3843, %v3835
        %v5060 = vpack.c.b16 %v3844, %v3836
        %v5061 = vpack.c.b16 %v3845, %v3837
        %v5062 = vpack.c.b16 %v3846, %v3838
        %v5063 = vpack.c.b16 %v3847, %v3839
        %v5064 = vpack.c.b16 %v3856, %v3848
        %v5065 = vpack.c.b16 %v3857, %v3849
        %v5066 = vpack.c.b16 %v3858, %v3850
        %v5067 = vpack.c.b16 %v3859, %v3851
        %v5068 = vpack.c.b16 %v3860, %v3852
        %v5069 = vpack.c.b16 %v3861, %v3853
        %v5070 = vpack.c.b16 %v3862, %v3854
        %v5071 = vpack.c.b16 %v3863, %v3855
        %v5072 = vpack.c.b16 %v3872, %v3864
        %v5073 = vpack.c.b16 %v3873, %v3865
        %v5074 = vpack.c.b16 %v3874, %v3866
        %v5075 = vpack.c.b16 %v3875, %v3867
        %v5076 = vpack.c.b16 %v3876, %v3868
        %v5077 = vpack.c.b16 %v3877, %v3869
        %v5078 = vpack.c.b16 %v3878, %v3870
        %v5079 = vpack.c.b16 %v3879, %v3871
        %v5080 = vpack.c.b16 %v3888, %v3880
        %v5081 = vpack.c.b16 %v3889, %v3881
        %v5082 = vpack.c.b16 %v3890, %v3882
        %v5083 = vpack.c.b16 %v3891, %v3883
        %v5084 = vpack.c.b16 %v3892, %v3884
        %v5085 = vpack.c.b16 %v3893, %v3885
        %v5086 = vpack.c.b16 %v3894, %v3886
        %v5087 = vpack.c.b16 %v3895, %v3887
        %v5088 = vpack.c.b16 %v3904, %v3896
        %v5089 = vpack.c.b16 %v3905, %v3897
        %v5090 = vpack.c.b16 %v3906, %v3898
        %v5091 = vpack.c.b16 %v3907, %v3899
        %v5092 = vpack.c.b16 %v3908, %v3900
        %v5093 = vpack.c.b16 %v3909, %v3901
        %v5094 = vpack.c.b16 %v3910, %v3902
        %v5095 = vpack.c.b16 %v3911, %v3903
        %v5096 = vpack.c.b16 %v3920, %v3912
        %v5097 = vpack.c.b16 %v3921, %v3913
        %v5098 = vpack.c.b16 %v3922, %v3914
        %v5099 = vpack.c.b16 %v3923, %v3915
        %v5100 = vpack.c.b16 %v3924, %v3916
        %v5101 = vpack.c.b16 %v3925, %v3917
        %v5102 = vpack.c.b16 %v3926, %v3918
        %v5103 = vpack.c.b16 %v3927, %v3919
        %v5104 = vpack.c.b16 %v3936, %v3928
        %v5105 = vpack.c.b16 %v3937, %v3929
        %v5106 = vpack.c.b16 %v3938, %v3930
        %v5107 = vpack.c.b16 %v3939, %v3931
        %v5108 = vpack.c.b16 %v3940, %v3932
        %v5109 = vpack.c.b16 %v3941, %v3933
        %v5110 = vpack.c.b16 %v3942, %v3934
        %v5111 = vpack.c.b16 %v3943, %v3935
        %v5112 = vpack.c.b16 %v3952, %v3944
        %v5113 = vpack.c.b16 %v3953, %v3945
        %v5114 = vpack.c.b16 %v3954, %v3946
        %v5115 = vpack.c.b16 %v3955, %v3947
        %v5116 = vpack.c.b16 %v3956, %v3948
        %v5117 = vpack.c.b16 %v3957, %v3949
        %v5118 = vpack.c.b16 %v3958, %v3950
        %v5119 = vpack.c.b16 %v3959, %v3951
        %v5120 = vpack.c.b16 %v3968, %v3960
        %v5121 = vpack.c.b16 %v3969, %v3961
        %v5122 = vpack.c.b16 %v3970, %v3962
        %v5123 = vpack.c.b16 %v3971, %v3963
        %v5124 = vpack.c.b16 %v3972, %v3964
        %v5125 = vpack.c.b16 %v3973, %v3965
        %v5126 = vpack.c.b16 %v3974, %v3966
        %v5127 = vpack.c.b16 %v3975, %v3967
        %v5128 = vpack.c.b16 %v3984, %v3976
        %v5129 = vpack.c.b16 %v3985, %v3977
        %v5130 = vpack.c.b16 %v3986, %v3978
        %v5131 = vpack.c.b16 %v3987, %v3979
        %v5132 = vpack.c.b16 %v3988, %v3980
        %v5133 = vpack.c.b16 %v3989, %v3981
        %v5134 = vpack.c.b16 %v3990, %v3982
        %v5135 = vpack.c.b16 %v3991, %v3983
        %v5136 = vpack.c.b16 %v4000, %v3992
        %v5137 = vpack.c.b16 %v4001, %v3993
        %v5138 = vpack.c.b16 %v4002, %v3994
        %v5139 = vpack.c.b16 %v4003, %v3995
        %v5140 = vpack.c.b16 %v4004, %v3996
        %v5141 = vpack.c.b16 %v4005, %v3997
        %v5142 = vpack.c.b16 %v4006, %v3998
        %v5143 = vpack.c.b16 %v4007, %v3999
        %v5144 = vpack.c.b16 %v4016, %v4008
        %v5145 = vpack.c.b16 %v4017, %v4009
        %v5146 = vpack.c.b16 %v4018, %v4010
        %v5147 = vpack.c.b16 %v4019, %v4011
        %v5148 = vpack.c.b16 %v4020, %v4012
        %v5149 = vpack.c.b16 %v4021, %v4013
        %v5150 = vpack.c.b16 %v4022, %v4014
        %v5151 = vpack.c.b16 %v4023, %v4015
        %v5152 = vpack.c.b16 %v4032, %v4024
        %v5153 = vpack.c.b16 %v4033, %v4025
        %v5154 = vpack.c.b16 %v4034, %v4026
        %v5155 = vpack.c.b16 %v4035, %v4027
        %v5156 = vpack.c.b16 %v4036, %v4028
        %v5157 = vpack.c.b16 %v4037, %v4029
        %v5158 = vpack.c.b16 %v4038, %v4030
        %v5159 = vpack.c.b16 %v4039, %v4031
        %v5160 = vpack.c.b16 %v4048, %v4040
        %v5161 = vpack.c.b16 %v4049, %v4041
        %v5162 = vpack.c.b16 %v4050, %v4042
        %v5163 = vpack.c.b16 %v4051, %v4043
        %v5164 = vpack.c.b16 %v4052, %v4044
        %v5165 = vpack.c.b16 %v4053, %v4045
        %v5166 = vpack.c.b16 %v4054, %v4046
        %v5167 = vpack.c.b16 %v4055, %v4047
        %v5168 = vpack.c.b16 %v4064, %v4056
        %v5169 = vpack.c.b16 %v4065, %v4057
        %v5170 = vpack.c.b16 %v4066, %v4058
        %v5171 = vpack.c.b16 %v4067, %v4059
        %v5172 = vpack.c.b16 %v4068, %v4060
        %v5173 = vpack.c.b16 %v4069, %v4061
        %v5174 = vpack.c.b16 %v4070, %v4062
        %v5175 = vpack.c.b16 %v4071, %v4063
        %v5176 = vpack.c.b16 %v4080, %v4072
        %v5177 = vpack.c.b16 %v4081, %v4073
        %v5178 = vpack.c.b16 %v4082, %v4074
        %v5179 = vpack.c.b16 %v4083, %v4075
        %v5180 = vpack.c.b16 %v4084, %v4076
        %v5181 = vpack.c.b16 %v4085, %v4077
        %v5182 = vpack.c.b16 %v4086, %v4078
        %v5183 = vpack.c.b16 %v4087, %v4079
        %v5184 = vpack.c.b16 %v4096, %v4088
        %v5185 = vpack.c.b16 %v4097, %v4089
        %v5186 = vpack.c.b16 %v4098, %v4090
        %v5187 = vpack.c.b16 %v4099, %v4091
        %v5188 = vpack.c.b16 %v4100, %v4092
        %v5189 = vpack.c.b16 %v4101, %v4093
        %v5190 = vpack.c.b16 %v4102, %v4094
        %v5191 = vpack.c.b16 %v4103, %v4095
        %v5192 = vpack.c.b16 %v4112, %v4104
        %v5193 = vpack.c.b16 %v4113, %v4105
        %v5194 = vpack.c.b16 %v4114, %v4106
        %v5195 = vpack.c.b16 %v4115, %v4107
        %v5196 = vpack.c.b16 %v4116, %v4108
        %v5197 = vpack.c.b16 %v4117, %v4109
        %v5198 = vpack.c.b16 %v4118, %v4110
        %v5199 = vpack.c.b16 %v4119, %v4111
        %v5200 = vpack.c.b16 %v4128, %v4120
        %v5201 = vpack.c.b16 %v4129, %v4121
        %v5202 = vpack.c.b16 %v4130, %v4122
        %v5203 = vpack.c.b16 %v4131, %v4123
        %v5204 = vpack.c.b16 %v4132, %v4124
        %v5205 = vpack.c.b16 %v4133, %v4125
        %v5206 = vpack.c.b16 %v4134, %v4126
        %v5207 = vpack.c.b16 %v4135, %v4127
        %v5208 = vpack.c.b16 %v4144, %v4136
        %v5209 = vpack.c.b16 %v4145, %v4137
        %v5210 = vpack.c.b16 %v4146, %v4138
        %v5211 = vpack.c.b16 %v4147, %v4139
        %v5212 = vpack.c.b16 %v4148, %v4140
        %v5213 = vpack.c.b16 %v4149, %v4141
        %v5214 = vpack.c.b16 %v4150, %v4142
        %v5215 = vpack.c.b16 %v4151, %v4143
        %v5216 = vpack.c.b16 %v4160, %v4152
        %v5217 = vpack.c.b16 %v4161, %v4153
        %v5218 = vpack.c.b16 %v4162, %v4154
        %v5219 = vpack.c.b16 %v4163, %v4155
        %v5220 = vpack.c.b16 %v4164, %v4156
        %v5221 = vpack.c.b16 %v4165, %v4157
        %v5222 = vpack.c.b16 %v4166, %v4158
        %v5223 = vpack.c.b16 %v4167, %v4159
        %v5224 = vpack.c.b16 %v4176, %v4168
        %v5225 = vpack.c.b16 %v4177, %v4169
        %v5226 = vpack.c.b16 %v4178, %v4170
        %v5227 = vpack.c.b16 %v4179, %v4171
        %v5228 = vpack.c.b16 %v4180, %v4172
        %v5229 = vpack.c.b16 %v4181, %v4173
        %v5230 = vpack.c.b16 %v4182, %v4174
        %v5231 = vpack.c.b16 %v4183, %v4175
        %v5232 = vpack.c.b16 %v4192, %v4184
        %v5233 = vpack.c.b16 %v4193, %v4185
        %v5234 = vpack.c.b16 %v4194, %v4186
        %v5235 = vpack.c.b16 %v4195, %v4187
        %v5236 = vpack.c.b16 %v4196, %v4188
        %v5237 = vpack.c.b16 %v4197, %v4189
        %v5238 = vpack.c.b16 %v4198, %v4190
        %v5239 = vpack.c.b16 %v4199, %v4191
        %v5240 = vpack.c.b16 %v4208, %v4200
        %v5241 = vpack.c.b16 %v4209, %v4201
        %v5242 = vpack.c.b16 %v4210, %v4202
        %v5243 = vpack.c.b16 %v4211, %v4203
        %v5244 = vpack.c.b16 %v4212, %v4204
        %v5245 = vpack.c.b16 %v4213, %v4205
        %v5246 = vpack.c.b16 %v4214, %v4206
        %v5247 = vpack.c.b16 %v4215, %v4207
        %v5248 = vpack.c.b16 %v4224, %v4216
        %v5249 = vpack.c.b16 %v4225, %v4217
        %v5250 = vpack.c.b16 %v4226, %v4218
        %v5251 = vpack.c.b16 %v4227, %v4219
        %v5252 = vpack.c.b16 %v4228, %v4220
        %v5253 = vpack.c.b16 %v4229, %v4221
        %v5254 = vpack.c.b16 %v4230, %v4222
        %v5255 = vpack.c.b16 %v4231, %v4223
        %v5256 = vpack.c.b16 %v4240, %v4232
        %v5257 = vpack.c.b16 %v4241, %v4233
        %v5258 = vpack.c.b16 %v4242, %v4234
        %v5259 = vpack.c.b16 %v4243, %v4235
        %v5260 = vpack.c.b16 %v4244, %v4236
        %v5261 = vpack.c.b16 %v4245, %v4237
        %v5262 = vpack.c.b16 %v4246, %v4238
        %v5263 = vpack.c.b16 %v4247, %v4239
        %v5264 = vpack.c.b16 %v4256, %v4248
        %v5265 = vpack.c.b16 %v4257, %v4249
        %v5266 = vpack.c.b16 %v4258, %v4250
        %v5267 = vpack.c.b16 %v4259, %v4251
        %v5268 = vpack.c.b16 %v4260, %v4252
        %v5269 = vpack.c.b16 %v4261, %v4253
        %v5270 = vpack.c.b16 %v4262, %v4254
        %v5271 = vpack.c.b16 %v4263, %v4255
        %v5272 = vpack.c.b16 %v4272, %v4264
        %v5273 = vpack.c.b16 %v4273, %v4265
        %v5274 = vpack.c.b16 %v4274, %v4266
        %v5275 = vpack.c.b16 %v4275, %v4267
        %v5276 = vpack.c.b16 %v4276, %v4268
        %v5277 = vpack.c.b16 %v4277, %v4269
        %v5278 = vpack.c.b16 %v4278, %v4270
        %v5279 = vpack.c.b16 %v4279, %v4271
        %v5280 = vpack.c.b16 %v4288, %v4280
        %v5281 = vpack.c.b16 %v4289, %v4281
        %v5282 = vpack.c.b16 %v4290, %v4282
        %v5283 = vpack.c.b16 %v4291, %v4283
        %v5284 = vpack.c.b16 %v4292, %v4284
        %v5285 = vpack.c.b16 %v4293, %v4285
        %v5286 = vpack.c.b16 %v4294, %v4286
        %v5287 = vpack.c.b16 %v4295, %v4287
        %v5288 = vpack.c.b16 %v4304, %v4296
        %v5289 = vpack.c.b16 %v4305, %v4297
        %v5290 = vpack.c.b16 %v4306, %v4298
        %v5291 = vpack.c.b16 %v4307, %v4299
        %v5292 = vpack.c.b16 %v4308, %v4300
        %v5293 = vpack.c.b16 %v4309, %v4301
        %v5294 = vpack.c.b16 %v4310, %v4302
        %v5295 = vpack.c.b16 %v4311, %v4303
        %v5296 = vpack.c.b16 %v4320, %v4312
        %v5297 = vpack.c.b16 %v4321, %v4313
        %v5298 = vpack.c.b16 %v4322, %v4314
        %v5299 = vpack.c.b16 %v4323, %v4315
        %v5300 = vpack.c.b16 %v4324, %v4316
        %v5301 = vpack.c.b16 %v4325, %v4317
        %v5302 = vpack.c.b16 %v4326, %v4318
        %v5303 = vpack.c.b16 %v4327, %v4319
        %v5304 = vpack.c.b16 %v4336, %v4328
        %v5305 = vpack.c.b16 %v4337, %v4329
        %v5306 = vpack.c.b16 %v4338, %v4330
        %v5307 = vpack.c.b16 %v4339, %v4331
        %v5308 = vpack.c.b16 %v4340, %v4332
        %v5309 = vpack.c.b16 %v4341, %v4333
        %v5310 = vpack.c.b16 %v4342, %v4334
        %v5311 = vpack.c.b16 %v4343, %v4335
        %v5312 = vpack.c.b16 %v4352, %v4344
        %v5313 = vpack.c.b16 %v4353, %v4345
        %v5314 = vpack.c.b16 %v4354, %v4346
        %v5315 = vpack.c.b16 %v4355, %v4347
        %v5316 = vpack.c.b16 %v4356, %v4348
        %v5317 = vpack.c.b16 %v4357, %v4349
        %v5318 = vpack.c.b16 %v4358, %v4350
        %v5319 = vpack.c.b16 %v4359, %v4351
        %6280 = vmatpush.bf16.msra.mxu0 %v4416
        %6281 = vmatpush.bf16.msra.mxu0 %v4408
        %6282 = vmatpush.bf16.msra.mxu0 %v4400
        %6283 = vmatpush.bf16.msra.mxu0 %v4392
        %6284 = vmatpush.bf16.msra.mxu0 %v4384
        %6285 = vmatpush.bf16.msra.mxu0 %v4376
        %6286 = vmatpush.bf16.msra.mxu0 %v4368
        %6287 = vmatpush.bf16.msra.mxu0 %v4360
        %6288 = vmatmul.bf16.gmra.mxu0 %v1450
        %v6289 = vpop.f32.mrf.mxu0
        %v6290 = vadd.f32 0.0, %v6289
        %v6291 = vpop.f32.mrf.mxu0
        %6292 = vdwg.mxu0
        %6293 = vmatpush.bf16.msra.mxu0 %v4480
        %6294 = vmatpush.bf16.msra.mxu0 %v4472
        %6295 = vmatpush.bf16.msra.mxu0 %v4464
        %6296 = vmatpush.bf16.msra.mxu0 %v4456
        %6297 = vmatpush.bf16.msra.mxu0 %v4448
        %6298 = vmatpush.bf16.msra.mxu0 %v4440
        %6299 = vmatpush.bf16.msra.mxu0 %v4432
        %6300 = vmatpush.bf16.msra.mxu0 %v4424
        %6301 = vmatmul.bf16.gmra.mxu0 %v1451
        %v6302 = vpop.f32.mrf.mxu0
        %v6303 = vadd.f32 %v6290, %v6302
        %v6304 = vpop.f32.mrf.mxu0
        %6305 = vdwg.mxu0
        %6306 = vmatpush.bf16.msra.mxu0 %v4544
        %6307 = vmatpush.bf16.msra.mxu0 %v4536
        %6308 = vmatpush.bf16.msra.mxu0 %v4528
        %6309 = vmatpush.bf16.msra.mxu0 %v4520
        %6310 = vmatpush.bf16.msra.mxu0 %v4512
        %6311 = vmatpush.bf16.msra.mxu0 %v4504
        %6312 = vmatpush.bf16.msra.mxu0 %v4496
        %6313 = vmatpush.bf16.msra.mxu0 %v4488
        %6314 = vmatmul.bf16.gmra.mxu0 %v1452
        %v6315 = vpop.f32.mrf.mxu0
        %v6316 = vadd.f32 %v6303, %v6315
        %v6317 = vpop.f32.mrf.mxu0
        %6318 = vdwg.mxu0
        %6319 = vmatpush.bf16.msra.mxu0 %v4608
        %6320 = vmatpush.bf16.msra.mxu0 %v4600
        %6321 = vmatpush.bf16.msra.mxu0 %v4592
        %6322 = vmatpush.bf16.msra.mxu0 %v4584
        %6323 = vmatpush.bf16.msra.mxu0 %v4576
        %6324 = vmatpush.bf16.msra.mxu0 %v4568
        %6325 = vmatpush.bf16.msra.mxu0 %v4560
        %6326 = vmatpush.bf16.msra.mxu0 %v4552
        %6327 = vmatmul.bf16.gmra.mxu0 %v1453
        %v6328 = vpop.f32.mrf.mxu0
        %v6329 = vadd.f32 %v6316, %v6328
        %v6330 = vpop.f32.mrf.mxu0
        %6331 = vdwg.mxu0
        %6332 = vmatpush.bf16.msra.mxu0 %v4672
        %6333 = vmatpush.bf16.msra.mxu0 %v4664
        %6334 = vmatpush.bf16.msra.mxu0 %v4656
        %6335 = vmatpush.bf16.msra.mxu0 %v4648
        %6336 = vmatpush.bf16.msra.mxu0 %v4640
        %6337 = vmatpush.bf16.msra.mxu0 %v4632
        %6338 = vmatpush.bf16.msra.mxu0 %v4624
        %6339 = vmatpush.bf16.msra.mxu0 %v4616
        %6340 = vmatmul.bf16.gmra.mxu0 %v1454
        %v6341 = vpop.f32.mrf.mxu0
        %v6342 = vadd.f32 %v6329, %v6341
        %v6343 = vpop.f32.mrf.mxu0
        %6344 = vdwg.mxu0
        %6345 = vmatpush.bf16.msra.mxu0 %v4736
        %6346 = vmatpush.bf16.msra.mxu0 %v4728
        %6347 = vmatpush.bf16.msra.mxu0 %v4720
        %6348 = vmatpush.bf16.msra.mxu0 %v4712
        %6349 = vmatpush.bf16.msra.mxu0 %v4704
        %6350 = vmatpush.bf16.msra.mxu0 %v4696
        %6351 = vmatpush.bf16.msra.mxu0 %v4688
        %6352 = vmatpush.bf16.msra.mxu0 %v4680
        %6353 = vmatmul.bf16.gmra.mxu0 %v1455
        %v6354 = vpop.f32.mrf.mxu0
        %v6355 = vadd.f32 %v6342, %v6354
        %v6356 = vpop.f32.mrf.mxu0
        %6357 = vdwg.mxu0
        %6358 = vmatpush.bf16.msra.mxu0 %v4800
        %6359 = vmatpush.bf16.msra.mxu0 %v4792
        %6360 = vmatpush.bf16.msra.mxu0 %v4784
        %6361 = vmatpush.bf16.msra.mxu0 %v4776
        %6362 = vmatpush.bf16.msra.mxu0 %v4768
        %6363 = vmatpush.bf16.msra.mxu0 %v4760
        %6364 = vmatpush.bf16.msra.mxu0 %v4752
        %6365 = vmatpush.bf16.msra.mxu0 %v4744
        %6366 = vmatmul.bf16.gmra.mxu0 %v1456
        %v6367 = vpop.f32.mrf.mxu0
        %v6368 = vadd.f32 %v6355, %v6367
        %v6369 = vpop.f32.mrf.mxu0
        %6370 = vdwg.mxu0
        %6371 = vmatpush.bf16.msra.mxu0 %v4864
        %6372 = vmatpush.bf16.msra.mxu0 %v4856
        %6373 = vmatpush.bf16.msra.mxu0 %v4848
        %6374 = vmatpush.bf16.msra.mxu0 %v4840
        %6375 = vmatpush.bf16.msra.mxu0 %v4832
        %6376 = vmatpush.bf16.msra.mxu0 %v4824
        %6377 = vmatpush.bf16.msra.mxu0 %v4816
        %6378 = vmatpush.bf16.msra.mxu0 %v4808
        %6379 = vmatmul.bf16.gmra.mxu0 %v1457
        %v6380 = vpop.f32.mrf.mxu0
        %v6381 = vadd.f32 %v6368, %v6380
        %v6382 = vpop.f32.mrf.mxu0
        %6383 = vdwg.mxu0
        %6384 = vmatpush.bf16.msra.mxu0 %v4928
        %6385 = vmatpush.bf16.msra.mxu0 %v4920
        %6386 = vmatpush.bf16.msra.mxu0 %v4912
        %6387 = vmatpush.bf16.msra.mxu0 %v4904
        %6388 = vmatpush.bf16.msra.mxu0 %v4896
        %6389 = vmatpush.bf16.msra.mxu0 %v4888
        %6390 = vmatpush.bf16.msra.mxu0 %v4880
        %6391 = vmatpush.bf16.msra.mxu0 %v4872
        %6392 = vmatmul.bf16.gmra.mxu0 %v1458
        %v6393 = vpop.f32.mrf.mxu0
        %v6394 = vadd.f32 %v6381, %v6393
        %v6395 = vpop.f32.mrf.mxu0
        %6396 = vdwg.mxu0
        %6397 = vmatpush.bf16.msra.mxu0 %v4992
        %6398 = vmatpush.bf16.msra.mxu0 %v4984
        %6399 = vmatpush.bf16.msra.mxu0 %v4976
        %6400 = vmatpush.bf16.msra.mxu0 %v4968
        %6401 = vmatpush.bf16.msra.mxu0 %v4960
        %6402 = vmatpush.bf16.msra.mxu0 %v4952
        %6403 = vmatpush.bf16.msra.mxu0 %v4944
        %6404 = vmatpush.bf16.msra.mxu0 %v4936
        %6405 = vmatmul.bf16.gmra.mxu0 %v1459
        %v6406 = vpop.f32.mrf.mxu0
        %v6407 = vadd.f32 %v6394, %v6406
        %v6408 = vpop.f32.mrf.mxu0
        %6409 = vdwg.mxu0
        %6410 = vmatpush.bf16.msra.mxu0 %v5056
        %6411 = vmatpush.bf16.msra.mxu0 %v5048
        %6412 = vmatpush.bf16.msra.mxu0 %v5040
        %6413 = vmatpush.bf16.msra.mxu0 %v5032
        %6414 = vmatpush.bf16.msra.mxu0 %v5024
        %6415 = vmatpush.bf16.msra.mxu0 %v5016
        %6416 = vmatpush.bf16.msra.mxu0 %v5008
        %6417 = vmatpush.bf16.msra.mxu0 %v5000
        %6418 = vmatmul.bf16.gmra.mxu0 %v1460
        %v6419 = vpop.f32.mrf.mxu0
        %v6420 = vadd.f32 %v6407, %v6419
        %v6421 = vpop.f32.mrf.mxu0
        %6422 = vdwg.mxu0
        %6423 = vmatpush.bf16.msra.mxu0 %v5120
        %6424 = vmatpush.bf16.msra.mxu0 %v5112
        %6425 = vmatpush.bf16.msra.mxu0 %v5104
        %6426 = vmatpush.bf16.msra.mxu0 %v5096
        %6427 = vmatpush.bf16.msra.mxu0 %v5088
        %6428 = vmatpush.bf16.msra.mxu0 %v5080
        %6429 = vmatpush.bf16.msra.mxu0 %v5072
        %6430 = vmatpush.bf16.msra.mxu0 %v5064
        %6431 = vmatmul.bf16.gmra.mxu0 %v1461
        %v6432 = vpop.f32.mrf.mxu0
        %v6433 = vadd.f32 %v6420, %v6432
        %v6434 = vpop.f32.mrf.mxu0
        %6435 = vdwg.mxu0
        %6436 = vmatpush.bf16.msra.mxu0 %v5184
        %6437 = vmatpush.bf16.msra.mxu0 %v5176
        %6438 = vmatpush.bf16.msra.mxu0 %v5168
        %6439 = vmatpush.bf16.msra.mxu0 %v5160
        %6440 = vmatpush.bf16.msra.mxu0 %v5152
        %6441 = vmatpush.bf16.msra.mxu0 %v5144
        %6442 = vmatpush.bf16.msra.mxu0 %v5136
        %6443 = vmatpush.bf16.msra.mxu0 %v5128
        %6444 = vmatmul.bf16.gmra.mxu0 %v1462
        %v6445 = vpop.f32.mrf.mxu0
        %v6446 = vadd.f32 %v6433, %v6445
        %v6447 = vpop.f32.mrf.mxu0
        %6448 = vdwg.mxu0
        %6449 = vmatpush.bf16.msra.mxu0 %v5248
        %6450 = vmatpush.bf16.msra.mxu0 %v5240
        %6451 = vmatpush.bf16.msra.mxu0 %v5232
        %6452 = vmatpush.bf16.msra.mxu0 %v5224
        %6453 = vmatpush.bf16.msra.mxu0 %v5216
        %6454 = vmatpush.bf16.msra.mxu0 %v5208
        %6455 = vmatpush.bf16.msra.mxu0 %v5200
        %6456 = vmatpush.bf16.msra.mxu0 %v5192
        %6457 = vmatmul.bf16.gmra.mxu0 %v1463
        %v6458 = vpop.f32.mrf.mxu0
        %v6459 = vadd.f32 %v6446, %v6458
        %v6460 = vpop.f32.mrf.mxu0
        %6461 = vdwg.mxu0
        %6462 = vmatpush.bf16.msra.mxu0 %v5312
        %6463 = vmatpush.bf16.msra.mxu0 %v5304
        %6464 = vmatpush.bf16.msra.mxu0 %v5296
        %6465 = vmatpush.bf16.msra.mxu0 %v5288
        %6466 = vmatpush.bf16.msra.mxu0 %v5280
        %6467 = vmatpush.bf16.msra.mxu0 %v5272
        %6468 = vmatpush.bf16.msra.mxu0 %v5264
        %6469 = vmatpush.bf16.msra.mxu0 %v5256
        %6470 = vmatmul.bf16.gmra.mxu0 %v1464
        %v6471 = vpop.f32.mrf.mxu0
        %v6472 = vadd.f32 %v6459, %v6471
        %v6473 = vpop.f32.mrf.mxu0
        %6474 = vdwg.mxu0
        %6475 = vmatpush.bf16.msra.mxu0 %v4417
        %6476 = vmatpush.bf16.msra.mxu0 %v4409
        %6477 = vmatpush.bf16.msra.mxu0 %v4401
        %6478 = vmatpush.bf16.msra.mxu0 %v4393
        %6479 = vmatpush.bf16.msra.mxu0 %v4385
        %6480 = vmatpush.bf16.msra.mxu0 %v4377
        %6481 = vmatpush.bf16.msra.mxu0 %v4369
        %6482 = vmatpush.bf16.msra.mxu0 %v4361
        %6483 = vmatmul.bf16.gmra.mxu0 %v1450
        %v6484 = vpop.f32.mrf.mxu0
        %v6485 = vadd.f32 0.0, %v6484
        %v6486 = vpop.f32.mrf.mxu0
        %6487 = vdwg.mxu0
        %6488 = vmatpush.bf16.msra.mxu0 %v4481
        %6489 = vmatpush.bf16.msra.mxu0 %v4473
        %6490 = vmatpush.bf16.msra.mxu0 %v4465
        %6491 = vmatpush.bf16.msra.mxu0 %v4457
        %6492 = vmatpush.bf16.msra.mxu0 %v4449
        %6493 = vmatpush.bf16.msra.mxu0 %v4441
        %6494 = vmatpush.bf16.msra.mxu0 %v4433
        %6495 = vmatpush.bf16.msra.mxu0 %v4425
        %6496 = vmatmul.bf16.gmra.mxu0 %v1451
        %v6497 = vpop.f32.mrf.mxu0
        %v6498 = vadd.f32 %v6485, %v6497
        %v6499 = vpop.f32.mrf.mxu0
        %6500 = vdwg.mxu0
        %6501 = vmatpush.bf16.msra.mxu0 %v4545
        %6502 = vmatpush.bf16.msra.mxu0 %v4537
        %6503 = vmatpush.bf16.msra.mxu0 %v4529
        %6504 = vmatpush.bf16.msra.mxu0 %v4521
        %6505 = vmatpush.bf16.msra.mxu0 %v4513
        %6506 = vmatpush.bf16.msra.mxu0 %v4505
        %6507 = vmatpush.bf16.msra.mxu0 %v4497
        %6508 = vmatpush.bf16.msra.mxu0 %v4489
        %6509 = vmatmul.bf16.gmra.mxu0 %v1452
        %v6510 = vpop.f32.mrf.mxu0
        %v6511 = vadd.f32 %v6498, %v6510
        %v6512 = vpop.f32.mrf.mxu0
        %6513 = vdwg.mxu0
        %6514 = vmatpush.bf16.msra.mxu0 %v4609
        %6515 = vmatpush.bf16.msra.mxu0 %v4601
        %6516 = vmatpush.bf16.msra.mxu0 %v4593
        %6517 = vmatpush.bf16.msra.mxu0 %v4585
        %6518 = vmatpush.bf16.msra.mxu0 %v4577
        %6519 = vmatpush.bf16.msra.mxu0 %v4569
        %6520 = vmatpush.bf16.msra.mxu0 %v4561
        %6521 = vmatpush.bf16.msra.mxu0 %v4553
        %6522 = vmatmul.bf16.gmra.mxu0 %v1453
        %v6523 = vpop.f32.mrf.mxu0
        %v6524 = vadd.f32 %v6511, %v6523
        %v6525 = vpop.f32.mrf.mxu0
        %6526 = vdwg.mxu0
        %6527 = vmatpush.bf16.msra.mxu0 %v4673
        %6528 = vmatpush.bf16.msra.mxu0 %v4665
        %6529 = vmatpush.bf16.msra.mxu0 %v4657
        %6530 = vmatpush.bf16.msra.mxu0 %v4649
        %6531 = vmatpush.bf16.msra.mxu0 %v4641
        %6532 = vmatpush.bf16.msra.mxu0 %v4633
        %6533 = vmatpush.bf16.msra.mxu0 %v4625
        %6534 = vmatpush.bf16.msra.mxu0 %v4617
        %6535 = vmatmul.bf16.gmra.mxu0 %v1454
        %v6536 = vpop.f32.mrf.mxu0
        %v6537 = vadd.f32 %v6524, %v6536
        %v6538 = vpop.f32.mrf.mxu0
        %6539 = vdwg.mxu0
        %6540 = vmatpush.bf16.msra.mxu0 %v4737
        %6541 = vmatpush.bf16.msra.mxu0 %v4729
        %6542 = vmatpush.bf16.msra.mxu0 %v4721
        %6543 = vmatpush.bf16.msra.mxu0 %v4713
        %6544 = vmatpush.bf16.msra.mxu0 %v4705
        %6545 = vmatpush.bf16.msra.mxu0 %v4697
        %6546 = vmatpush.bf16.msra.mxu0 %v4689
        %6547 = vmatpush.bf16.msra.mxu0 %v4681
        %6548 = vmatmul.bf16.gmra.mxu0 %v1455
        %v6549 = vpop.f32.mrf.mxu0
        %v6550 = vadd.f32 %v6537, %v6549
        %v6551 = vpop.f32.mrf.mxu0
        %6552 = vdwg.mxu0
        %6553 = vmatpush.bf16.msra.mxu0 %v4801
        %6554 = vmatpush.bf16.msra.mxu0 %v4793
        %6555 = vmatpush.bf16.msra.mxu0 %v4785
        %6556 = vmatpush.bf16.msra.mxu0 %v4777
        %6557 = vmatpush.bf16.msra.mxu0 %v4769
        %6558 = vmatpush.bf16.msra.mxu0 %v4761
        %6559 = vmatpush.bf16.msra.mxu0 %v4753
        %6560 = vmatpush.bf16.msra.mxu0 %v4745
        %6561 = vmatmul.bf16.gmra.mxu0 %v1456
        %v6562 = vpop.f32.mrf.mxu0
        %v6563 = vadd.f32 %v6550, %v6562
        %v6564 = vpop.f32.mrf.mxu0
        %6565 = vdwg.mxu0
        %6566 = vmatpush.bf16.msra.mxu0 %v4865
        %6567 = vmatpush.bf16.msra.mxu0 %v4857
        %6568 = vmatpush.bf16.msra.mxu0 %v4849
        %6569 = vmatpush.bf16.msra.mxu0 %v4841
        %6570 = vmatpush.bf16.msra.mxu0 %v4833
        %6571 = vmatpush.bf16.msra.mxu0 %v4825
        %6572 = vmatpush.bf16.msra.mxu0 %v4817
        %6573 = vmatpush.bf16.msra.mxu0 %v4809
        %6574 = vmatmul.bf16.gmra.mxu0 %v1457
        %v6575 = vpop.f32.mrf.mxu0
        %v6576 = vadd.f32 %v6563, %v6575
        %v6577 = vpop.f32.mrf.mxu0
        %6578 = vdwg.mxu0
        %6579 = vmatpush.bf16.msra.mxu0 %v4929
        %6580 = vmatpush.bf16.msra.mxu0 %v4921
        %6581 = vmatpush.bf16.msra.mxu0 %v4913
        %6582 = vmatpush.bf16.msra.mxu0 %v4905
        %6583 = vmatpush.bf16.msra.mxu0 %v4897
        %6584 = vmatpush.bf16.msra.mxu0 %v4889
        %6585 = vmatpush.bf16.msra.mxu0 %v4881
        %6586 = vmatpush.bf16.msra.mxu0 %v4873
        %6587 = vmatmul.bf16.gmra.mxu0 %v1458
        %v6588 = vpop.f32.mrf.mxu0
        %v6589 = vadd.f32 %v6576, %v6588
        %v6590 = vpop.f32.mrf.mxu0
        %6591 = vdwg.mxu0
        %6592 = vmatpush.bf16.msra.mxu0 %v4993
        %6593 = vmatpush.bf16.msra.mxu0 %v4985
        %6594 = vmatpush.bf16.msra.mxu0 %v4977
        %6595 = vmatpush.bf16.msra.mxu0 %v4969
        %6596 = vmatpush.bf16.msra.mxu0 %v4961
        %6597 = vmatpush.bf16.msra.mxu0 %v4953
        %6598 = vmatpush.bf16.msra.mxu0 %v4945
        %6599 = vmatpush.bf16.msra.mxu0 %v4937
        %6600 = vmatmul.bf16.gmra.mxu0 %v1459
        %v6601 = vpop.f32.mrf.mxu0
        %v6602 = vadd.f32 %v6589, %v6601
        %v6603 = vpop.f32.mrf.mxu0
        %6604 = vdwg.mxu0
        %6605 = vmatpush.bf16.msra.mxu0 %v5057
        %6606 = vmatpush.bf16.msra.mxu0 %v5049
        %6607 = vmatpush.bf16.msra.mxu0 %v5041
        %6608 = vmatpush.bf16.msra.mxu0 %v5033
        %6609 = vmatpush.bf16.msra.mxu0 %v5025
        %6610 = vmatpush.bf16.msra.mxu0 %v5017
        %6611 = vmatpush.bf16.msra.mxu0 %v5009
        %6612 = vmatpush.bf16.msra.mxu0 %v5001
        %6613 = vmatmul.bf16.gmra.mxu0 %v1460
        %v6614 = vpop.f32.mrf.mxu0
        %v6615 = vadd.f32 %v6602, %v6614
        %v6616 = vpop.f32.mrf.mxu0
        %6617 = vdwg.mxu0
        %6618 = vmatpush.bf16.msra.mxu0 %v5121
        %6619 = vmatpush.bf16.msra.mxu0 %v5113
        %6620 = vmatpush.bf16.msra.mxu0 %v5105
        %6621 = vmatpush.bf16.msra.mxu0 %v5097
        %6622 = vmatpush.bf16.msra.mxu0 %v5089
        %6623 = vmatpush.bf16.msra.mxu0 %v5081
        %6624 = vmatpush.bf16.msra.mxu0 %v5073
        %6625 = vmatpush.bf16.msra.mxu0 %v5065
        %6626 = vmatmul.bf16.gmra.mxu0 %v1461
        %v6627 = vpop.f32.mrf.mxu0
        %v6628 = vadd.f32 %v6615, %v6627
        %v6629 = vpop.f32.mrf.mxu0
        %6630 = vdwg.mxu0
        %6631 = vmatpush.bf16.msra.mxu0 %v5185
        %6632 = vmatpush.bf16.msra.mxu0 %v5177
        %6633 = vmatpush.bf16.msra.mxu0 %v5169
        %6634 = vmatpush.bf16.msra.mxu0 %v5161
        %6635 = vmatpush.bf16.msra.mxu0 %v5153
        %6636 = vmatpush.bf16.msra.mxu0 %v5145
        %6637 = vmatpush.bf16.msra.mxu0 %v5137
        %6638 = vmatpush.bf16.msra.mxu0 %v5129
        %6639 = vmatmul.bf16.gmra.mxu0 %v1462
        %v6640 = vpop.f32.mrf.mxu0
        %v6641 = vadd.f32 %v6628, %v6640
        %v6642 = vpop.f32.mrf.mxu0
        %6643 = vdwg.mxu0
        %6644 = vmatpush.bf16.msra.mxu0 %v5249
        %6645 = vmatpush.bf16.msra.mxu0 %v5241
        %6646 = vmatpush.bf16.msra.mxu0 %v5233
        %6647 = vmatpush.bf16.msra.mxu0 %v5225
        %6648 = vmatpush.bf16.msra.mxu0 %v5217
        %6649 = vmatpush.bf16.msra.mxu0 %v5209
        %6650 = vmatpush.bf16.msra.mxu0 %v5201
        %6651 = vmatpush.bf16.msra.mxu0 %v5193
        %6652 = vmatmul.bf16.gmra.mxu0 %v1463
        %v6653 = vpop.f32.mrf.mxu0
        %v6654 = vadd.f32 %v6641, %v6653
        %v6655 = vpop.f32.mrf.mxu0
        %6656 = vdwg.mxu0
        %6657 = vmatpush.bf16.msra.mxu0 %v5313
        %6658 = vmatpush.bf16.msra.mxu0 %v5305
        %6659 = vmatpush.bf16.msra.mxu0 %v5297
        %6660 = vmatpush.bf16.msra.mxu0 %v5289
        %6661 = vmatpush.bf16.msra.mxu0 %v5281
        %6662 = vmatpush.bf16.msra.mxu0 %v5273
        %6663 = vmatpush.bf16.msra.mxu0 %v5265
        %6664 = vmatpush.bf16.msra.mxu0 %v5257
        %6665 = vmatmul.bf16.gmra.mxu0 %v1464
        %v6666 = vpop.f32.mrf.mxu0
        %v6667 = vadd.f32 %v6654, %v6666
        %v6668 = vpop.f32.mrf.mxu0
        %6669 = vdwg.mxu0
        %6670 = vmatpush.bf16.msra.mxu0 %v4418
        %6671 = vmatpush.bf16.msra.mxu0 %v4410
        %6672 = vmatpush.bf16.msra.mxu0 %v4402
        %6673 = vmatpush.bf16.msra.mxu0 %v4394
        %6674 = vmatpush.bf16.msra.mxu0 %v4386
        %6675 = vmatpush.bf16.msra.mxu0 %v4378
        %6676 = vmatpush.bf16.msra.mxu0 %v4370
        %6677 = vmatpush.bf16.msra.mxu0 %v4362
        %6678 = vmatmul.bf16.gmra.mxu0 %v1450
        %v6679 = vpop.f32.mrf.mxu0
        %v6680 = vadd.f32 0.0, %v6679
        %v6681 = vpop.f32.mrf.mxu0
        %6682 = vdwg.mxu0
        %6683 = vmatpush.bf16.msra.mxu0 %v4482
        %6684 = vmatpush.bf16.msra.mxu0 %v4474
        %6685 = vmatpush.bf16.msra.mxu0 %v4466
        %6686 = vmatpush.bf16.msra.mxu0 %v4458
        %6687 = vmatpush.bf16.msra.mxu0 %v4450
        %6688 = vmatpush.bf16.msra.mxu0 %v4442
        %6689 = vmatpush.bf16.msra.mxu0 %v4434
        %6690 = vmatpush.bf16.msra.mxu0 %v4426
        %6691 = vmatmul.bf16.gmra.mxu0 %v1451
        %v6692 = vpop.f32.mrf.mxu0
        %v6693 = vadd.f32 %v6680, %v6692
        %v6694 = vpop.f32.mrf.mxu0
        %6695 = vdwg.mxu0
        %6696 = vmatpush.bf16.msra.mxu0 %v4546
        %6697 = vmatpush.bf16.msra.mxu0 %v4538
        %6698 = vmatpush.bf16.msra.mxu0 %v4530
        %6699 = vmatpush.bf16.msra.mxu0 %v4522
        %6700 = vmatpush.bf16.msra.mxu0 %v4514
        %6701 = vmatpush.bf16.msra.mxu0 %v4506
        %6702 = vmatpush.bf16.msra.mxu0 %v4498
        %6703 = vmatpush.bf16.msra.mxu0 %v4490
        %6704 = vmatmul.bf16.gmra.mxu0 %v1452
        %v6705 = vpop.f32.mrf.mxu0
        %v6706 = vadd.f32 %v6693, %v6705
        %v6707 = vpop.f32.mrf.mxu0
        %6708 = vdwg.mxu0
        %6709 = vmatpush.bf16.msra.mxu0 %v4610
        %6710 = vmatpush.bf16.msra.mxu0 %v4602
        %6711 = vmatpush.bf16.msra.mxu0 %v4594
        %6712 = vmatpush.bf16.msra.mxu0 %v4586
        %6713 = vmatpush.bf16.msra.mxu0 %v4578
        %6714 = vmatpush.bf16.msra.mxu0 %v4570
        %6715 = vmatpush.bf16.msra.mxu0 %v4562
        %6716 = vmatpush.bf16.msra.mxu0 %v4554
        %6717 = vmatmul.bf16.gmra.mxu0 %v1453
        %v6718 = vpop.f32.mrf.mxu0
        %v6719 = vadd.f32 %v6706, %v6718
        %v6720 = vpop.f32.mrf.mxu0
        %6721 = vdwg.mxu0
        %6722 = vmatpush.bf16.msra.mxu0 %v4674
        %6723 = vmatpush.bf16.msra.mxu0 %v4666
        %6724 = vmatpush.bf16.msra.mxu0 %v4658
        %6725 = vmatpush.bf16.msra.mxu0 %v4650
        %6726 = vmatpush.bf16.msra.mxu0 %v4642
        %6727 = vmatpush.bf16.msra.mxu0 %v4634
        %6728 = vmatpush.bf16.msra.mxu0 %v4626
        %6729 = vmatpush.bf16.msra.mxu0 %v4618
        %6730 = vmatmul.bf16.gmra.mxu0 %v1454
        %v6731 = vpop.f32.mrf.mxu0
        %v6732 = vadd.f32 %v6719, %v6731
        %v6733 = vpop.f32.mrf.mxu0
        %6734 = vdwg.mxu0
        %6735 = vmatpush.bf16.msra.mxu0 %v4738
        %6736 = vmatpush.bf16.msra.mxu0 %v4730
        %6737 = vmatpush.bf16.msra.mxu0 %v4722
        %6738 = vmatpush.bf16.msra.mxu0 %v4714
        %6739 = vmatpush.bf16.msra.mxu0 %v4706
        %6740 = vmatpush.bf16.msra.mxu0 %v4698
        %6741 = vmatpush.bf16.msra.mxu0 %v4690
        %6742 = vmatpush.bf16.msra.mxu0 %v4682
        %6743 = vmatmul.bf16.gmra.mxu0 %v1455
        %v6744 = vpop.f32.mrf.mxu0
        %v6745 = vadd.f32 %v6732, %v6744
        %v6746 = vpop.f32.mrf.mxu0
        %6747 = vdwg.mxu0
        %6748 = vmatpush.bf16.msra.mxu0 %v4802
        %6749 = vmatpush.bf16.msra.mxu0 %v4794
        %6750 = vmatpush.bf16.msra.mxu0 %v4786
        %6751 = vmatpush.bf16.msra.mxu0 %v4778
        %6752 = vmatpush.bf16.msra.mxu0 %v4770
        %6753 = vmatpush.bf16.msra.mxu0 %v4762
        %6754 = vmatpush.bf16.msra.mxu0 %v4754
        %6755 = vmatpush.bf16.msra.mxu0 %v4746
        %6756 = vmatmul.bf16.gmra.mxu0 %v1456
        %v6757 = vpop.f32.mrf.mxu0
        %v6758 = vadd.f32 %v6745, %v6757
        %v6759 = vpop.f32.mrf.mxu0
        %6760 = vdwg.mxu0
        %6761 = vmatpush.bf16.msra.mxu0 %v4866
        %6762 = vmatpush.bf16.msra.mxu0 %v4858
        %6763 = vmatpush.bf16.msra.mxu0 %v4850
        %6764 = vmatpush.bf16.msra.mxu0 %v4842
        %6765 = vmatpush.bf16.msra.mxu0 %v4834
        %6766 = vmatpush.bf16.msra.mxu0 %v4826
        %6767 = vmatpush.bf16.msra.mxu0 %v4818
        %6768 = vmatpush.bf16.msra.mxu0 %v4810
        %6769 = vmatmul.bf16.gmra.mxu0 %v1457
        %v6770 = vpop.f32.mrf.mxu0
        %v6771 = vadd.f32 %v6758, %v6770
        %v6772 = vpop.f32.mrf.mxu0
        %6773 = vdwg.mxu0
        %6774 = vmatpush.bf16.msra.mxu0 %v4930
        %6775 = vmatpush.bf16.msra.mxu0 %v4922
        %6776 = vmatpush.bf16.msra.mxu0 %v4914
        %6777 = vmatpush.bf16.msra.mxu0 %v4906
        %6778 = vmatpush.bf16.msra.mxu0 %v4898
        %6779 = vmatpush.bf16.msra.mxu0 %v4890
        %6780 = vmatpush.bf16.msra.mxu0 %v4882
        %6781 = vmatpush.bf16.msra.mxu0 %v4874
        %6782 = vmatmul.bf16.gmra.mxu0 %v1458
        %v6783 = vpop.f32.mrf.mxu0
        %v6784 = vadd.f32 %v6771, %v6783
        %v6785 = vpop.f32.mrf.mxu0
        %6786 = vdwg.mxu0
        %6787 = vmatpush.bf16.msra.mxu0 %v4994
        %6788 = vmatpush.bf16.msra.mxu0 %v4986
        %6789 = vmatpush.bf16.msra.mxu0 %v4978
        %6790 = vmatpush.bf16.msra.mxu0 %v4970
        %6791 = vmatpush.bf16.msra.mxu0 %v4962
        %6792 = vmatpush.bf16.msra.mxu0 %v4954
        %6793 = vmatpush.bf16.msra.mxu0 %v4946
        %6794 = vmatpush.bf16.msra.mxu0 %v4938
        %6795 = vmatmul.bf16.gmra.mxu0 %v1459
        %v6796 = vpop.f32.mrf.mxu0
        %v6797 = vadd.f32 %v6784, %v6796
        %v6798 = vpop.f32.mrf.mxu0
        %6799 = vdwg.mxu0
        %6800 = vmatpush.bf16.msra.mxu0 %v5058
        %6801 = vmatpush.bf16.msra.mxu0 %v5050
        %6802 = vmatpush.bf16.msra.mxu0 %v5042
        %6803 = vmatpush.bf16.msra.mxu0 %v5034
        %6804 = vmatpush.bf16.msra.mxu0 %v5026
        %6805 = vmatpush.bf16.msra.mxu0 %v5018
        %6806 = vmatpush.bf16.msra.mxu0 %v5010
        %6807 = vmatpush.bf16.msra.mxu0 %v5002
        %6808 = vmatmul.bf16.gmra.mxu0 %v1460
        %v6809 = vpop.f32.mrf.mxu0
        %v6810 = vadd.f32 %v6797, %v6809
        %v6811 = vpop.f32.mrf.mxu0
        %6812 = vdwg.mxu0
        %6813 = vmatpush.bf16.msra.mxu0 %v5122
        %6814 = vmatpush.bf16.msra.mxu0 %v5114
        %6815 = vmatpush.bf16.msra.mxu0 %v5106
        %6816 = vmatpush.bf16.msra.mxu0 %v5098
        %6817 = vmatpush.bf16.msra.mxu0 %v5090
        %6818 = vmatpush.bf16.msra.mxu0 %v5082
        %6819 = vmatpush.bf16.msra.mxu0 %v5074
        %6820 = vmatpush.bf16.msra.mxu0 %v5066
        %6821 = vmatmul.bf16.gmra.mxu0 %v1461
        %v6822 = vpop.f32.mrf.mxu0
        %v6823 = vadd.f32 %v6810, %v6822
        %v6824 = vpop.f32.mrf.mxu0
        %6825 = vdwg.mxu0
        %6826 = vmatpush.bf16.msra.mxu0 %v5186
        %6827 = vmatpush.bf16.msra.mxu0 %v5178
        %6828 = vmatpush.bf16.msra.mxu0 %v5170
        %6829 = vmatpush.bf16.msra.mxu0 %v5162
        %6830 = vmatpush.bf16.msra.mxu0 %v5154
        %6831 = vmatpush.bf16.msra.mxu0 %v5146
        %6832 = vmatpush.bf16.msra.mxu0 %v5138
        %6833 = vmatpush.bf16.msra.mxu0 %v5130
        %6834 = vmatmul.bf16.gmra.mxu0 %v1462
        %v6835 = vpop.f32.mrf.mxu0
        %v6836 = vadd.f32 %v6823, %v6835
        %v6837 = vpop.f32.mrf.mxu0
        %6838 = vdwg.mxu0
        %6839 = vmatpush.bf16.msra.mxu0 %v5250
        %6840 = vmatpush.bf16.msra.mxu0 %v5242
        %6841 = vmatpush.bf16.msra.mxu0 %v5234
        %6842 = vmatpush.bf16.msra.mxu0 %v5226
        %6843 = vmatpush.bf16.msra.mxu0 %v5218
        %6844 = vmatpush.bf16.msra.mxu0 %v5210
        %6845 = vmatpush.bf16.msra.mxu0 %v5202
        %6846 = vmatpush.bf16.msra.mxu0 %v5194
        %6847 = vmatmul.bf16.gmra.mxu0 %v1463
        %v6848 = vpop.f32.mrf.mxu0
        %v6849 = vadd.f32 %v6836, %v6848
        %v6850 = vpop.f32.mrf.mxu0
        %6851 = vdwg.mxu0
        %6852 = vmatpush.bf16.msra.mxu0 %v5314
        %6853 = vmatpush.bf16.msra.mxu0 %v5306
        %6854 = vmatpush.bf16.msra.mxu0 %v5298
        %6855 = vmatpush.bf16.msra.mxu0 %v5290
        %6856 = vmatpush.bf16.msra.mxu0 %v5282
        %6857 = vmatpush.bf16.msra.mxu0 %v5274
        %6858 = vmatpush.bf16.msra.mxu0 %v5266
        %6859 = vmatpush.bf16.msra.mxu0 %v5258
        %6860 = vmatmul.bf16.gmra.mxu0 %v1464
        %v6861 = vpop.f32.mrf.mxu0
        %v6862 = vadd.f32 %v6849, %v6861
        %v6863 = vpop.f32.mrf.mxu0
        %6864 = vdwg.mxu0
        %6865 = vmatpush.bf16.msra.mxu0 %v4419
        %6866 = vmatpush.bf16.msra.mxu0 %v4411
        %6867 = vmatpush.bf16.msra.mxu0 %v4403
        %6868 = vmatpush.bf16.msra.mxu0 %v4395
        %6869 = vmatpush.bf16.msra.mxu0 %v4387
        %6870 = vmatpush.bf16.msra.mxu0 %v4379
        %6871 = vmatpush.bf16.msra.mxu0 %v4371
        %6872 = vmatpush.bf16.msra.mxu0 %v4363
        %6873 = vmatmul.bf16.gmra.mxu0 %v1450
        %v6874 = vpop.f32.mrf.mxu0
        %v6875 = vadd.f32 0.0, %v6874
        %v6876 = vpop.f32.mrf.mxu0
        %6877 = vdwg.mxu0
        %6878 = vmatpush.bf16.msra.mxu0 %v4483
        %6879 = vmatpush.bf16.msra.mxu0 %v4475
        %6880 = vmatpush.bf16.msra.mxu0 %v4467
        %6881 = vmatpush.bf16.msra.mxu0 %v4459
        %6882 = vmatpush.bf16.msra.mxu0 %v4451
        %6883 = vmatpush.bf16.msra.mxu0 %v4443
        %6884 = vmatpush.bf16.msra.mxu0 %v4435
        %6885 = vmatpush.bf16.msra.mxu0 %v4427
        %6886 = vmatmul.bf16.gmra.mxu0 %v1451
        %v6887 = vpop.f32.mrf.mxu0
        %v6888 = vadd.f32 %v6875, %v6887
        %v6889 = vpop.f32.mrf.mxu0
        %6890 = vdwg.mxu0
        %6891 = vmatpush.bf16.msra.mxu0 %v4547
        %6892 = vmatpush.bf16.msra.mxu0 %v4539
        %6893 = vmatpush.bf16.msra.mxu0 %v4531
        %6894 = vmatpush.bf16.msra.mxu0 %v4523
        %6895 = vmatpush.bf16.msra.mxu0 %v4515
        %6896 = vmatpush.bf16.msra.mxu0 %v4507
        %6897 = vmatpush.bf16.msra.mxu0 %v4499
        %6898 = vmatpush.bf16.msra.mxu0 %v4491
        %6899 = vmatmul.bf16.gmra.mxu0 %v1452
        %v6900 = vpop.f32.mrf.mxu0
        %v6901 = vadd.f32 %v6888, %v6900
        %v6902 = vpop.f32.mrf.mxu0
        %6903 = vdwg.mxu0
        %6904 = vmatpush.bf16.msra.mxu0 %v4611
        %6905 = vmatpush.bf16.msra.mxu0 %v4603
        %6906 = vmatpush.bf16.msra.mxu0 %v4595
        %6907 = vmatpush.bf16.msra.mxu0 %v4587
        %6908 = vmatpush.bf16.msra.mxu0 %v4579
        %6909 = vmatpush.bf16.msra.mxu0 %v4571
        %6910 = vmatpush.bf16.msra.mxu0 %v4563
        %6911 = vmatpush.bf16.msra.mxu0 %v4555
        %6912 = vmatmul.bf16.gmra.mxu0 %v1453
        %v6913 = vpop.f32.mrf.mxu0
        %v6914 = vadd.f32 %v6901, %v6913
        %v6915 = vpop.f32.mrf.mxu0
        %6916 = vdwg.mxu0
        %6917 = vmatpush.bf16.msra.mxu0 %v4675
        %6918 = vmatpush.bf16.msra.mxu0 %v4667
        %6919 = vmatpush.bf16.msra.mxu0 %v4659
        %6920 = vmatpush.bf16.msra.mxu0 %v4651
        %6921 = vmatpush.bf16.msra.mxu0 %v4643
        %6922 = vmatpush.bf16.msra.mxu0 %v4635
        %6923 = vmatpush.bf16.msra.mxu0 %v4627
        %6924 = vmatpush.bf16.msra.mxu0 %v4619
        %6925 = vmatmul.bf16.gmra.mxu0 %v1454
        %v6926 = vpop.f32.mrf.mxu0
        %v6927 = vadd.f32 %v6914, %v6926
        %v6928 = vpop.f32.mrf.mxu0
        %6929 = vdwg.mxu0
        %6930 = vmatpush.bf16.msra.mxu0 %v4739
        %6931 = vmatpush.bf16.msra.mxu0 %v4731
        %6932 = vmatpush.bf16.msra.mxu0 %v4723
        %6933 = vmatpush.bf16.msra.mxu0 %v4715
        %6934 = vmatpush.bf16.msra.mxu0 %v4707
        %6935 = vmatpush.bf16.msra.mxu0 %v4699
        %6936 = vmatpush.bf16.msra.mxu0 %v4691
        %6937 = vmatpush.bf16.msra.mxu0 %v4683
        %6938 = vmatmul.bf16.gmra.mxu0 %v1455
        %v6939 = vpop.f32.mrf.mxu0
        %v6940 = vadd.f32 %v6927, %v6939
        %v6941 = vpop.f32.mrf.mxu0
        %6942 = vdwg.mxu0
        %6943 = vmatpush.bf16.msra.mxu0 %v4803
        %6944 = vmatpush.bf16.msra.mxu0 %v4795
        %6945 = vmatpush.bf16.msra.mxu0 %v4787
        %6946 = vmatpush.bf16.msra.mxu0 %v4779
        %6947 = vmatpush.bf16.msra.mxu0 %v4771
        %6948 = vmatpush.bf16.msra.mxu0 %v4763
        %6949 = vmatpush.bf16.msra.mxu0 %v4755
        %6950 = vmatpush.bf16.msra.mxu0 %v4747
        %6951 = vmatmul.bf16.gmra.mxu0 %v1456
        %v6952 = vpop.f32.mrf.mxu0
        %v6953 = vadd.f32 %v6940, %v6952
        %v6954 = vpop.f32.mrf.mxu0
        %6955 = vdwg.mxu0
        %6956 = vmatpush.bf16.msra.mxu0 %v4867
        %6957 = vmatpush.bf16.msra.mxu0 %v4859
        %6958 = vmatpush.bf16.msra.mxu0 %v4851
        %6959 = vmatpush.bf16.msra.mxu0 %v4843
        %6960 = vmatpush.bf16.msra.mxu0 %v4835
        %6961 = vmatpush.bf16.msra.mxu0 %v4827
        %6962 = vmatpush.bf16.msra.mxu0 %v4819
        %6963 = vmatpush.bf16.msra.mxu0 %v4811
        %6964 = vmatmul.bf16.gmra.mxu0 %v1457
        %v6965 = vpop.f32.mrf.mxu0
        %v6966 = vadd.f32 %v6953, %v6965
        %v6967 = vpop.f32.mrf.mxu0
        %6968 = vdwg.mxu0
        %6969 = vmatpush.bf16.msra.mxu0 %v4931
        %6970 = vmatpush.bf16.msra.mxu0 %v4923
        %6971 = vmatpush.bf16.msra.mxu0 %v4915
        %6972 = vmatpush.bf16.msra.mxu0 %v4907
        %6973 = vmatpush.bf16.msra.mxu0 %v4899
        %6974 = vmatpush.bf16.msra.mxu0 %v4891
        %6975 = vmatpush.bf16.msra.mxu0 %v4883
        %6976 = vmatpush.bf16.msra.mxu0 %v4875
        %6977 = vmatmul.bf16.gmra.mxu0 %v1458
        %v6978 = vpop.f32.mrf.mxu0
        %v6979 = vadd.f32 %v6966, %v6978
        %v6980 = vpop.f32.mrf.mxu0
        %6981 = vdwg.mxu0
        %6982 = vmatpush.bf16.msra.mxu0 %v4995
        %6983 = vmatpush.bf16.msra.mxu0 %v4987
        %6984 = vmatpush.bf16.msra.mxu0 %v4979
        %6985 = vmatpush.bf16.msra.mxu0 %v4971
        %6986 = vmatpush.bf16.msra.mxu0 %v4963
        %6987 = vmatpush.bf16.msra.mxu0 %v4955
        %6988 = vmatpush.bf16.msra.mxu0 %v4947
        %6989 = vmatpush.bf16.msra.mxu0 %v4939
        %6990 = vmatmul.bf16.gmra.mxu0 %v1459
        %v6991 = vpop.f32.mrf.mxu0
        %v6992 = vadd.f32 %v6979, %v6991
        %v6993 = vpop.f32.mrf.mxu0
        %6994 = vdwg.mxu0
        %6995 = vmatpush.bf16.msra.mxu0 %v5059
        %6996 = vmatpush.bf16.msra.mxu0 %v5051
        %6997 = vmatpush.bf16.msra.mxu0 %v5043
        %6998 = vmatpush.bf16.msra.mxu0 %v5035
        %6999 = vmatpush.bf16.msra.mxu0 %v5027
        %7000 = vmatpush.bf16.msra.mxu0 %v5019
        %7001 = vmatpush.bf16.msra.mxu0 %v5011
        %7002 = vmatpush.bf16.msra.mxu0 %v5003
        %7003 = vmatmul.bf16.gmra.mxu0 %v1460
        %v7004 = vpop.f32.mrf.mxu0
        %v7005 = vadd.f32 %v6992, %v7004
        %v7006 = vpop.f32.mrf.mxu0
        %7007 = vdwg.mxu0
        %7008 = vmatpush.bf16.msra.mxu0 %v5123
        %7009 = vmatpush.bf16.msra.mxu0 %v5115
        %7010 = vmatpush.bf16.msra.mxu0 %v5107
        %7011 = vmatpush.bf16.msra.mxu0 %v5099
        %7012 = vmatpush.bf16.msra.mxu0 %v5091
        %7013 = vmatpush.bf16.msra.mxu0 %v5083
        %7014 = vmatpush.bf16.msra.mxu0 %v5075
        %7015 = vmatpush.bf16.msra.mxu0 %v5067
        %7016 = vmatmul.bf16.gmra.mxu0 %v1461
        %v7017 = vpop.f32.mrf.mxu0
        %v7018 = vadd.f32 %v7005, %v7017
        %v7019 = vpop.f32.mrf.mxu0
        %7020 = vdwg.mxu0
        %7021 = vmatpush.bf16.msra.mxu0 %v5187
        %7022 = vmatpush.bf16.msra.mxu0 %v5179
        %7023 = vmatpush.bf16.msra.mxu0 %v5171
        %7024 = vmatpush.bf16.msra.mxu0 %v5163
        %7025 = vmatpush.bf16.msra.mxu0 %v5155
        %7026 = vmatpush.bf16.msra.mxu0 %v5147
        %7027 = vmatpush.bf16.msra.mxu0 %v5139
        %7028 = vmatpush.bf16.msra.mxu0 %v5131
        %7029 = vmatmul.bf16.gmra.mxu0 %v1462
        %v7030 = vpop.f32.mrf.mxu0
        %v7031 = vadd.f32 %v7018, %v7030
        %v7032 = vpop.f32.mrf.mxu0
        %7033 = vdwg.mxu0
        %7034 = vmatpush.bf16.msra.mxu0 %v5251
        %7035 = vmatpush.bf16.msra.mxu0 %v5243
        %7036 = vmatpush.bf16.msra.mxu0 %v5235
        %7037 = vmatpush.bf16.msra.mxu0 %v5227
        %7038 = vmatpush.bf16.msra.mxu0 %v5219
        %7039 = vmatpush.bf16.msra.mxu0 %v5211
        %7040 = vmatpush.bf16.msra.mxu0 %v5203
        %7041 = vmatpush.bf16.msra.mxu0 %v5195
        %7042 = vmatmul.bf16.gmra.mxu0 %v1463
        %v7043 = vpop.f32.mrf.mxu0
        %v7044 = vadd.f32 %v7031, %v7043
        %v7045 = vpop.f32.mrf.mxu0
        %7046 = vdwg.mxu0
        %7047 = vmatpush.bf16.msra.mxu0 %v5315
        %7048 = vmatpush.bf16.msra.mxu0 %v5307
        %7049 = vmatpush.bf16.msra.mxu0 %v5299
        %7050 = vmatpush.bf16.msra.mxu0 %v5291
        %7051 = vmatpush.bf16.msra.mxu0 %v5283
        %7052 = vmatpush.bf16.msra.mxu0 %v5275
        %7053 = vmatpush.bf16.msra.mxu0 %v5267
        %7054 = vmatpush.bf16.msra.mxu0 %v5259
        %7055 = vmatmul.bf16.gmra.mxu0 %v1464
        %v7056 = vpop.f32.mrf.mxu0
        %v7057 = vadd.f32 %v7044, %v7056
        %v7058 = vpop.f32.mrf.mxu0
        %7059 = vdwg.mxu0
        %7060 = vmatpush.bf16.msra.mxu0 %v4420
        %7061 = vmatpush.bf16.msra.mxu0 %v4412
        %7062 = vmatpush.bf16.msra.mxu0 %v4404
        %7063 = vmatpush.bf16.msra.mxu0 %v4396
        %7064 = vmatpush.bf16.msra.mxu0 %v4388
        %7065 = vmatpush.bf16.msra.mxu0 %v4380
        %7066 = vmatpush.bf16.msra.mxu0 %v4372
        %7067 = vmatpush.bf16.msra.mxu0 %v4364
        %7068 = vmatmul.bf16.gmra.mxu0 %v1450
        %v7069 = vpop.f32.mrf.mxu0
        %v7070 = vadd.f32 0.0, %v7069
        %v7071 = vpop.f32.mrf.mxu0
        %7072 = vdwg.mxu0
        %7073 = vmatpush.bf16.msra.mxu0 %v4484
        %7074 = vmatpush.bf16.msra.mxu0 %v4476
        %7075 = vmatpush.bf16.msra.mxu0 %v4468
        %7076 = vmatpush.bf16.msra.mxu0 %v4460
        %7077 = vmatpush.bf16.msra.mxu0 %v4452
        %7078 = vmatpush.bf16.msra.mxu0 %v4444
        %7079 = vmatpush.bf16.msra.mxu0 %v4436
        %7080 = vmatpush.bf16.msra.mxu0 %v4428
        %7081 = vmatmul.bf16.gmra.mxu0 %v1451
        %v7082 = vpop.f32.mrf.mxu0
        %v7083 = vadd.f32 %v7070, %v7082
        %v7084 = vpop.f32.mrf.mxu0
        %7085 = vdwg.mxu0
        %7086 = vmatpush.bf16.msra.mxu0 %v4548
        %7087 = vmatpush.bf16.msra.mxu0 %v4540
        %7088 = vmatpush.bf16.msra.mxu0 %v4532
        %7089 = vmatpush.bf16.msra.mxu0 %v4524
        %7090 = vmatpush.bf16.msra.mxu0 %v4516
        %7091 = vmatpush.bf16.msra.mxu0 %v4508
        %7092 = vmatpush.bf16.msra.mxu0 %v4500
        %7093 = vmatpush.bf16.msra.mxu0 %v4492
        %7094 = vmatmul.bf16.gmra.mxu0 %v1452
        %v7095 = vpop.f32.mrf.mxu0
        %v7096 = vadd.f32 %v7083, %v7095
        %v7097 = vpop.f32.mrf.mxu0
        %7098 = vdwg.mxu0
        %7099 = vmatpush.bf16.msra.mxu0 %v4612
        %7100 = vmatpush.bf16.msra.mxu0 %v4604
        %7101 = vmatpush.bf16.msra.mxu0 %v4596
        %7102 = vmatpush.bf16.msra.mxu0 %v4588
        %7103 = vmatpush.bf16.msra.mxu0 %v4580
        %7104 = vmatpush.bf16.msra.mxu0 %v4572
        %7105 = vmatpush.bf16.msra.mxu0 %v4564
        %7106 = vmatpush.bf16.msra.mxu0 %v4556
        %7107 = vmatmul.bf16.gmra.mxu0 %v1453
        %v7108 = vpop.f32.mrf.mxu0
        %v7109 = vadd.f32 %v7096, %v7108
        %v7110 = vpop.f32.mrf.mxu0
        %7111 = vdwg.mxu0
        %7112 = vmatpush.bf16.msra.mxu0 %v4676
        %7113 = vmatpush.bf16.msra.mxu0 %v4668
        %7114 = vmatpush.bf16.msra.mxu0 %v4660
        %7115 = vmatpush.bf16.msra.mxu0 %v4652
        %7116 = vmatpush.bf16.msra.mxu0 %v4644
        %7117 = vmatpush.bf16.msra.mxu0 %v4636
        %7118 = vmatpush.bf16.msra.mxu0 %v4628
        %7119 = vmatpush.bf16.msra.mxu0 %v4620
        %7120 = vmatmul.bf16.gmra.mxu0 %v1454
        %v7121 = vpop.f32.mrf.mxu0
        %v7122 = vadd.f32 %v7109, %v7121
        %v7123 = vpop.f32.mrf.mxu0
        %7124 = vdwg.mxu0
        %7125 = vmatpush.bf16.msra.mxu0 %v4740
        %7126 = vmatpush.bf16.msra.mxu0 %v4732
        %7127 = vmatpush.bf16.msra.mxu0 %v4724
        %7128 = vmatpush.bf16.msra.mxu0 %v4716
        %7129 = vmatpush.bf16.msra.mxu0 %v4708
        %7130 = vmatpush.bf16.msra.mxu0 %v4700
        %7131 = vmatpush.bf16.msra.mxu0 %v4692
        %7132 = vmatpush.bf16.msra.mxu0 %v4684
        %7133 = vmatmul.bf16.gmra.mxu0 %v1455
        %v7134 = vpop.f32.mrf.mxu0
        %v7135 = vadd.f32 %v7122, %v7134
        %v7136 = vpop.f32.mrf.mxu0
        %7137 = vdwg.mxu0
        %7138 = vmatpush.bf16.msra.mxu0 %v4804
        %7139 = vmatpush.bf16.msra.mxu0 %v4796
        %7140 = vmatpush.bf16.msra.mxu0 %v4788
        %7141 = vmatpush.bf16.msra.mxu0 %v4780
        %7142 = vmatpush.bf16.msra.mxu0 %v4772
        %7143 = vmatpush.bf16.msra.mxu0 %v4764
        %7144 = vmatpush.bf16.msra.mxu0 %v4756
        %7145 = vmatpush.bf16.msra.mxu0 %v4748
        %7146 = vmatmul.bf16.gmra.mxu0 %v1456
        %v7147 = vpop.f32.mrf.mxu0
        %v7148 = vadd.f32 %v7135, %v7147
        %v7149 = vpop.f32.mrf.mxu0
        %7150 = vdwg.mxu0
        %7151 = vmatpush.bf16.msra.mxu0 %v4868
        %7152 = vmatpush.bf16.msra.mxu0 %v4860
        %7153 = vmatpush.bf16.msra.mxu0 %v4852
        %7154 = vmatpush.bf16.msra.mxu0 %v4844
        %7155 = vmatpush.bf16.msra.mxu0 %v4836
        %7156 = vmatpush.bf16.msra.mxu0 %v4828
        %7157 = vmatpush.bf16.msra.mxu0 %v4820
        %7158 = vmatpush.bf16.msra.mxu0 %v4812
        %7159 = vmatmul.bf16.gmra.mxu0 %v1457
        %v7160 = vpop.f32.mrf.mxu0
        %v7161 = vadd.f32 %v7148, %v7160
        %v7162 = vpop.f32.mrf.mxu0
        %7163 = vdwg.mxu0
        %7164 = vmatpush.bf16.msra.mxu0 %v4932
        %7165 = vmatpush.bf16.msra.mxu0 %v4924
        %7166 = vmatpush.bf16.msra.mxu0 %v4916
        %7167 = vmatpush.bf16.msra.mxu0 %v4908
        %7168 = vmatpush.bf16.msra.mxu0 %v4900
        %7169 = vmatpush.bf16.msra.mxu0 %v4892
        %7170 = vmatpush.bf16.msra.mxu0 %v4884
        %7171 = vmatpush.bf16.msra.mxu0 %v4876
        %7172 = vmatmul.bf16.gmra.mxu0 %v1458
        %v7173 = vpop.f32.mrf.mxu0
        %v7174 = vadd.f32 %v7161, %v7173
        %v7175 = vpop.f32.mrf.mxu0
        %7176 = vdwg.mxu0
        %7177 = vmatpush.bf16.msra.mxu0 %v4996
        %7178 = vmatpush.bf16.msra.mxu0 %v4988
        %7179 = vmatpush.bf16.msra.mxu0 %v4980
        %7180 = vmatpush.bf16.msra.mxu0 %v4972
        %7181 = vmatpush.bf16.msra.mxu0 %v4964
        %7182 = vmatpush.bf16.msra.mxu0 %v4956
        %7183 = vmatpush.bf16.msra.mxu0 %v4948
        %7184 = vmatpush.bf16.msra.mxu0 %v4940
        %7185 = vmatmul.bf16.gmra.mxu0 %v1459
        %v7186 = vpop.f32.mrf.mxu0
        %v7187 = vadd.f32 %v7174, %v7186
        %v7188 = vpop.f32.mrf.mxu0
        %7189 = vdwg.mxu0
        %7190 = vmatpush.bf16.msra.mxu0 %v5060
        %7191 = vmatpush.bf16.msra.mxu0 %v5052
        %7192 = vmatpush.bf16.msra.mxu0 %v5044
        %7193 = vmatpush.bf16.msra.mxu0 %v5036
        %7194 = vmatpush.bf16.msra.mxu0 %v5028
        %7195 = vmatpush.bf16.msra.mxu0 %v5020
        %7196 = vmatpush.bf16.msra.mxu0 %v5012
        %7197 = vmatpush.bf16.msra.mxu0 %v5004
        %7198 = vmatmul.bf16.gmra.mxu0 %v1460
        %v7199 = vpop.f32.mrf.mxu0
        %v7200 = vadd.f32 %v7187, %v7199
        %v7201 = vpop.f32.mrf.mxu0
        %7202 = vdwg.mxu0
        %7203 = vmatpush.bf16.msra.mxu0 %v5124
        %7204 = vmatpush.bf16.msra.mxu0 %v5116
        %7205 = vmatpush.bf16.msra.mxu0 %v5108
        %7206 = vmatpush.bf16.msra.mxu0 %v5100
        %7207 = vmatpush.bf16.msra.mxu0 %v5092
        %7208 = vmatpush.bf16.msra.mxu0 %v5084
        %7209 = vmatpush.bf16.msra.mxu0 %v5076
        %7210 = vmatpush.bf16.msra.mxu0 %v5068
        %7211 = vmatmul.bf16.gmra.mxu0 %v1461
        %v7212 = vpop.f32.mrf.mxu0
        %v7213 = vadd.f32 %v7200, %v7212
        %v7214 = vpop.f32.mrf.mxu0
        %7215 = vdwg.mxu0
        %7216 = vmatpush.bf16.msra.mxu0 %v5188
        %7217 = vmatpush.bf16.msra.mxu0 %v5180
        %7218 = vmatpush.bf16.msra.mxu0 %v5172
        %7219 = vmatpush.bf16.msra.mxu0 %v5164
        %7220 = vmatpush.bf16.msra.mxu0 %v5156
        %7221 = vmatpush.bf16.msra.mxu0 %v5148
        %7222 = vmatpush.bf16.msra.mxu0 %v5140
        %7223 = vmatpush.bf16.msra.mxu0 %v5132
        %7224 = vmatmul.bf16.gmra.mxu0 %v1462
        %v7225 = vpop.f32.mrf.mxu0
        %v7226 = vadd.f32 %v7213, %v7225
        %v7227 = vpop.f32.mrf.mxu0
        %7228 = vdwg.mxu0
        %7229 = vmatpush.bf16.msra.mxu0 %v5252
        %7230 = vmatpush.bf16.msra.mxu0 %v5244
        %7231 = vmatpush.bf16.msra.mxu0 %v5236
        %7232 = vmatpush.bf16.msra.mxu0 %v5228
        %7233 = vmatpush.bf16.msra.mxu0 %v5220
        %7234 = vmatpush.bf16.msra.mxu0 %v5212
        %7235 = vmatpush.bf16.msra.mxu0 %v5204
        %7236 = vmatpush.bf16.msra.mxu0 %v5196
        %7237 = vmatmul.bf16.gmra.mxu0 %v1463
        %v7238 = vpop.f32.mrf.mxu0
        %v7239 = vadd.f32 %v7226, %v7238
        %v7240 = vpop.f32.mrf.mxu0
        %7241 = vdwg.mxu0
        %7242 = vmatpush.bf16.msra.mxu0 %v5316
        %7243 = vmatpush.bf16.msra.mxu0 %v5308
        %7244 = vmatpush.bf16.msra.mxu0 %v5300
        %7245 = vmatpush.bf16.msra.mxu0 %v5292
        %7246 = vmatpush.bf16.msra.mxu0 %v5284
        %7247 = vmatpush.bf16.msra.mxu0 %v5276
        %7248 = vmatpush.bf16.msra.mxu0 %v5268
        %7249 = vmatpush.bf16.msra.mxu0 %v5260
        %7250 = vmatmul.bf16.gmra.mxu0 %v1464
        %v7251 = vpop.f32.mrf.mxu0
        %v7252 = vadd.f32 %v7239, %v7251
        %v7253 = vpop.f32.mrf.mxu0
        %7254 = vdwg.mxu0
        %7255 = vmatpush.bf16.msra.mxu0 %v4421
        %7256 = vmatpush.bf16.msra.mxu0 %v4413
        %7257 = vmatpush.bf16.msra.mxu0 %v4405
        %7258 = vmatpush.bf16.msra.mxu0 %v4397
        %7259 = vmatpush.bf16.msra.mxu0 %v4389
        %7260 = vmatpush.bf16.msra.mxu0 %v4381
        %7261 = vmatpush.bf16.msra.mxu0 %v4373
        %7262 = vmatpush.bf16.msra.mxu0 %v4365
        %7263 = vmatmul.bf16.gmra.mxu0 %v1450
        %v7264 = vpop.f32.mrf.mxu0
        %v7265 = vadd.f32 0.0, %v7264
        %v7266 = vpop.f32.mrf.mxu0
        %7267 = vdwg.mxu0
        %7268 = vmatpush.bf16.msra.mxu0 %v4485
        %7269 = vmatpush.bf16.msra.mxu0 %v4477
        %7270 = vmatpush.bf16.msra.mxu0 %v4469
        %7271 = vmatpush.bf16.msra.mxu0 %v4461
        %7272 = vmatpush.bf16.msra.mxu0 %v4453
        %7273 = vmatpush.bf16.msra.mxu0 %v4445
        %7274 = vmatpush.bf16.msra.mxu0 %v4437
        %7275 = vmatpush.bf16.msra.mxu0 %v4429
        %7276 = vmatmul.bf16.gmra.mxu0 %v1451
        %v7277 = vpop.f32.mrf.mxu0
        %v7278 = vadd.f32 %v7265, %v7277
        %v7279 = vpop.f32.mrf.mxu0
        %7280 = vdwg.mxu0
        %7281 = vmatpush.bf16.msra.mxu0 %v4549
        %7282 = vmatpush.bf16.msra.mxu0 %v4541
        %7283 = vmatpush.bf16.msra.mxu0 %v4533
        %7284 = vmatpush.bf16.msra.mxu0 %v4525
        %7285 = vmatpush.bf16.msra.mxu0 %v4517
        %7286 = vmatpush.bf16.msra.mxu0 %v4509
        %7287 = vmatpush.bf16.msra.mxu0 %v4501
        %7288 = vmatpush.bf16.msra.mxu0 %v4493
        %7289 = vmatmul.bf16.gmra.mxu0 %v1452
        %v7290 = vpop.f32.mrf.mxu0
        %v7291 = vadd.f32 %v7278, %v7290
        %v7292 = vpop.f32.mrf.mxu0
        %7293 = vdwg.mxu0
        %7294 = vmatpush.bf16.msra.mxu0 %v4613
        %7295 = vmatpush.bf16.msra.mxu0 %v4605
        %7296 = vmatpush.bf16.msra.mxu0 %v4597
        %7297 = vmatpush.bf16.msra.mxu0 %v4589
        %7298 = vmatpush.bf16.msra.mxu0 %v4581
        %7299 = vmatpush.bf16.msra.mxu0 %v4573
        %7300 = vmatpush.bf16.msra.mxu0 %v4565
        %7301 = vmatpush.bf16.msra.mxu0 %v4557
        %7302 = vmatmul.bf16.gmra.mxu0 %v1453
        %v7303 = vpop.f32.mrf.mxu0
        %v7304 = vadd.f32 %v7291, %v7303
        %v7305 = vpop.f32.mrf.mxu0
        %7306 = vdwg.mxu0
        %7307 = vmatpush.bf16.msra.mxu0 %v4677
        %7308 = vmatpush.bf16.msra.mxu0 %v4669
        %7309 = vmatpush.bf16.msra.mxu0 %v4661
        %7310 = vmatpush.bf16.msra.mxu0 %v4653
        %7311 = vmatpush.bf16.msra.mxu0 %v4645
        %7312 = vmatpush.bf16.msra.mxu0 %v4637
        %7313 = vmatpush.bf16.msra.mxu0 %v4629
        %7314 = vmatpush.bf16.msra.mxu0 %v4621
        %7315 = vmatmul.bf16.gmra.mxu0 %v1454
        %v7316 = vpop.f32.mrf.mxu0
        %v7317 = vadd.f32 %v7304, %v7316
        %v7318 = vpop.f32.mrf.mxu0
        %7319 = vdwg.mxu0
        %7320 = vmatpush.bf16.msra.mxu0 %v4741
        %7321 = vmatpush.bf16.msra.mxu0 %v4733
        %7322 = vmatpush.bf16.msra.mxu0 %v4725
        %7323 = vmatpush.bf16.msra.mxu0 %v4717
        %7324 = vmatpush.bf16.msra.mxu0 %v4709
        %7325 = vmatpush.bf16.msra.mxu0 %v4701
        %7326 = vmatpush.bf16.msra.mxu0 %v4693
        %7327 = vmatpush.bf16.msra.mxu0 %v4685
        %7328 = vmatmul.bf16.gmra.mxu0 %v1455
        %v7329 = vpop.f32.mrf.mxu0
        %v7330 = vadd.f32 %v7317, %v7329
        %v7331 = vpop.f32.mrf.mxu0
        %7332 = vdwg.mxu0
        %7333 = vmatpush.bf16.msra.mxu0 %v4805
        %7334 = vmatpush.bf16.msra.mxu0 %v4797
        %7335 = vmatpush.bf16.msra.mxu0 %v4789
        %7336 = vmatpush.bf16.msra.mxu0 %v4781
        %7337 = vmatpush.bf16.msra.mxu0 %v4773
        %7338 = vmatpush.bf16.msra.mxu0 %v4765
        %7339 = vmatpush.bf16.msra.mxu0 %v4757
        %7340 = vmatpush.bf16.msra.mxu0 %v4749
        %7341 = vmatmul.bf16.gmra.mxu0 %v1456
        %v7342 = vpop.f32.mrf.mxu0
        %v7343 = vadd.f32 %v7330, %v7342
        %v7344 = vpop.f32.mrf.mxu0
        %7345 = vdwg.mxu0
        %7346 = vmatpush.bf16.msra.mxu0 %v4869
        %7347 = vmatpush.bf16.msra.mxu0 %v4861
        %7348 = vmatpush.bf16.msra.mxu0 %v4853
        %7349 = vmatpush.bf16.msra.mxu0 %v4845
        %7350 = vmatpush.bf16.msra.mxu0 %v4837
        %7351 = vmatpush.bf16.msra.mxu0 %v4829
        %7352 = vmatpush.bf16.msra.mxu0 %v4821
        %7353 = vmatpush.bf16.msra.mxu0 %v4813
        %7354 = vmatmul.bf16.gmra.mxu0 %v1457
        %v7355 = vpop.f32.mrf.mxu0
        %v7356 = vadd.f32 %v7343, %v7355
        %v7357 = vpop.f32.mrf.mxu0
        %7358 = vdwg.mxu0
        %7359 = vmatpush.bf16.msra.mxu0 %v4933
        %7360 = vmatpush.bf16.msra.mxu0 %v4925
        %7361 = vmatpush.bf16.msra.mxu0 %v4917
        %7362 = vmatpush.bf16.msra.mxu0 %v4909
        %7363 = vmatpush.bf16.msra.mxu0 %v4901
        %7364 = vmatpush.bf16.msra.mxu0 %v4893
        %7365 = vmatpush.bf16.msra.mxu0 %v4885
        %7366 = vmatpush.bf16.msra.mxu0 %v4877
        %7367 = vmatmul.bf16.gmra.mxu0 %v1458
        %v7368 = vpop.f32.mrf.mxu0
        %v7369 = vadd.f32 %v7356, %v7368
        %v7370 = vpop.f32.mrf.mxu0
        %7371 = vdwg.mxu0
        %7372 = vmatpush.bf16.msra.mxu0 %v4997
        %7373 = vmatpush.bf16.msra.mxu0 %v4989
        %7374 = vmatpush.bf16.msra.mxu0 %v4981
        %7375 = vmatpush.bf16.msra.mxu0 %v4973
        %7376 = vmatpush.bf16.msra.mxu0 %v4965
        %7377 = vmatpush.bf16.msra.mxu0 %v4957
        %7378 = vmatpush.bf16.msra.mxu0 %v4949
        %7379 = vmatpush.bf16.msra.mxu0 %v4941
        %7380 = vmatmul.bf16.gmra.mxu0 %v1459
        %v7381 = vpop.f32.mrf.mxu0
        %v7382 = vadd.f32 %v7369, %v7381
        %v7383 = vpop.f32.mrf.mxu0
        %7384 = vdwg.mxu0
        %7385 = vmatpush.bf16.msra.mxu0 %v5061
        %7386 = vmatpush.bf16.msra.mxu0 %v5053
        %7387 = vmatpush.bf16.msra.mxu0 %v5045
        %7388 = vmatpush.bf16.msra.mxu0 %v5037
        %7389 = vmatpush.bf16.msra.mxu0 %v5029
        %7390 = vmatpush.bf16.msra.mxu0 %v5021
        %7391 = vmatpush.bf16.msra.mxu0 %v5013
        %7392 = vmatpush.bf16.msra.mxu0 %v5005
        %7393 = vmatmul.bf16.gmra.mxu0 %v1460
        %v7394 = vpop.f32.mrf.mxu0
        %v7395 = vadd.f32 %v7382, %v7394
        %v7396 = vpop.f32.mrf.mxu0
        %7397 = vdwg.mxu0
        %7398 = vmatpush.bf16.msra.mxu0 %v5125
        %7399 = vmatpush.bf16.msra.mxu0 %v5117
        %7400 = vmatpush.bf16.msra.mxu0 %v5109
        %7401 = vmatpush.bf16.msra.mxu0 %v5101
        %7402 = vmatpush.bf16.msra.mxu0 %v5093
        %7403 = vmatpush.bf16.msra.mxu0 %v5085
        %7404 = vmatpush.bf16.msra.mxu0 %v5077
        %7405 = vmatpush.bf16.msra.mxu0 %v5069
        %7406 = vmatmul.bf16.gmra.mxu0 %v1461
        %v7407 = vpop.f32.mrf.mxu0
        %v7408 = vadd.f32 %v7395, %v7407
        %v7409 = vpop.f32.mrf.mxu0
        %7410 = vdwg.mxu0
        %7411 = vmatpush.bf16.msra.mxu0 %v5189
        %7412 = vmatpush.bf16.msra.mxu0 %v5181
        %7413 = vmatpush.bf16.msra.mxu0 %v5173
        %7414 = vmatpush.bf16.msra.mxu0 %v5165
        %7415 = vmatpush.bf16.msra.mxu0 %v5157
        %7416 = vmatpush.bf16.msra.mxu0 %v5149
        %7417 = vmatpush.bf16.msra.mxu0 %v5141
        %7418 = vmatpush.bf16.msra.mxu0 %v5133
        %7419 = vmatmul.bf16.gmra.mxu0 %v1462
        %v7420 = vpop.f32.mrf.mxu0
        %v7421 = vadd.f32 %v7408, %v7420
        %v7422 = vpop.f32.mrf.mxu0
        %7423 = vdwg.mxu0
        %7424 = vmatpush.bf16.msra.mxu0 %v5253
        %7425 = vmatpush.bf16.msra.mxu0 %v5245
        %7426 = vmatpush.bf16.msra.mxu0 %v5237
        %7427 = vmatpush.bf16.msra.mxu0 %v5229
        %7428 = vmatpush.bf16.msra.mxu0 %v5221
        %7429 = vmatpush.bf16.msra.mxu0 %v5213
        %7430 = vmatpush.bf16.msra.mxu0 %v5205
        %7431 = vmatpush.bf16.msra.mxu0 %v5197
        %7432 = vmatmul.bf16.gmra.mxu0 %v1463
        %v7433 = vpop.f32.mrf.mxu0
        %v7434 = vadd.f32 %v7421, %v7433
        %v7435 = vpop.f32.mrf.mxu0
        %7436 = vdwg.mxu0
        %7437 = vmatpush.bf16.msra.mxu0 %v5317
        %7438 = vmatpush.bf16.msra.mxu0 %v5309
        %7439 = vmatpush.bf16.msra.mxu0 %v5301
        %7440 = vmatpush.bf16.msra.mxu0 %v5293
        %7441 = vmatpush.bf16.msra.mxu0 %v5285
        %7442 = vmatpush.bf16.msra.mxu0 %v5277
        %7443 = vmatpush.bf16.msra.mxu0 %v5269
        %7444 = vmatpush.bf16.msra.mxu0 %v5261
        %7445 = vmatmul.bf16.gmra.mxu0 %v1464
        %v7446 = vpop.f32.mrf.mxu0
        %v7447 = vadd.f32 %v7434, %v7446
        %v7448 = vpop.f32.mrf.mxu0
        %7449 = vdwg.mxu0
        %7450 = vmatpush.bf16.msra.mxu0 %v4422
        %7451 = vmatpush.bf16.msra.mxu0 %v4414
        %7452 = vmatpush.bf16.msra.mxu0 %v4406
        %7453 = vmatpush.bf16.msra.mxu0 %v4398
        %7454 = vmatpush.bf16.msra.mxu0 %v4390
        %7455 = vmatpush.bf16.msra.mxu0 %v4382
        %7456 = vmatpush.bf16.msra.mxu0 %v4374
        %7457 = vmatpush.bf16.msra.mxu0 %v4366
        %7458 = vmatmul.bf16.gmra.mxu0 %v1450
        %v7459 = vpop.f32.mrf.mxu0
        %v7460 = vadd.f32 0.0, %v7459
        %v7461 = vpop.f32.mrf.mxu0
        %7462 = vdwg.mxu0
        %7463 = vmatpush.bf16.msra.mxu0 %v4486
        %7464 = vmatpush.bf16.msra.mxu0 %v4478
        %7465 = vmatpush.bf16.msra.mxu0 %v4470
        %7466 = vmatpush.bf16.msra.mxu0 %v4462
        %7467 = vmatpush.bf16.msra.mxu0 %v4454
        %7468 = vmatpush.bf16.msra.mxu0 %v4446
        %7469 = vmatpush.bf16.msra.mxu0 %v4438
        %7470 = vmatpush.bf16.msra.mxu0 %v4430
        %7471 = vmatmul.bf16.gmra.mxu0 %v1451
        %v7472 = vpop.f32.mrf.mxu0
        %v7473 = vadd.f32 %v7460, %v7472
        %v7474 = vpop.f32.mrf.mxu0
        %7475 = vdwg.mxu0
        %7476 = vmatpush.bf16.msra.mxu0 %v4550
        %7477 = vmatpush.bf16.msra.mxu0 %v4542
        %7478 = vmatpush.bf16.msra.mxu0 %v4534
        %7479 = vmatpush.bf16.msra.mxu0 %v4526
        %7480 = vmatpush.bf16.msra.mxu0 %v4518
        %7481 = vmatpush.bf16.msra.mxu0 %v4510
        %7482 = vmatpush.bf16.msra.mxu0 %v4502
        %7483 = vmatpush.bf16.msra.mxu0 %v4494
        %7484 = vmatmul.bf16.gmra.mxu0 %v1452
        %v7485 = vpop.f32.mrf.mxu0
        %v7486 = vadd.f32 %v7473, %v7485
        %v7487 = vpop.f32.mrf.mxu0
        %7488 = vdwg.mxu0
        %7489 = vmatpush.bf16.msra.mxu0 %v4614
        %7490 = vmatpush.bf16.msra.mxu0 %v4606
        %7491 = vmatpush.bf16.msra.mxu0 %v4598
        %7492 = vmatpush.bf16.msra.mxu0 %v4590
        %7493 = vmatpush.bf16.msra.mxu0 %v4582
        %7494 = vmatpush.bf16.msra.mxu0 %v4574
        %7495 = vmatpush.bf16.msra.mxu0 %v4566
        %7496 = vmatpush.bf16.msra.mxu0 %v4558
        %7497 = vmatmul.bf16.gmra.mxu0 %v1453
        %v7498 = vpop.f32.mrf.mxu0
        %v7499 = vadd.f32 %v7486, %v7498
        %v7500 = vpop.f32.mrf.mxu0
        %7501 = vdwg.mxu0
        %7502 = vmatpush.bf16.msra.mxu0 %v4678
        %7503 = vmatpush.bf16.msra.mxu0 %v4670
        %7504 = vmatpush.bf16.msra.mxu0 %v4662
        %7505 = vmatpush.bf16.msra.mxu0 %v4654
        %7506 = vmatpush.bf16.msra.mxu0 %v4646
        %7507 = vmatpush.bf16.msra.mxu0 %v4638
        %7508 = vmatpush.bf16.msra.mxu0 %v4630
        %7509 = vmatpush.bf16.msra.mxu0 %v4622
        %7510 = vmatmul.bf16.gmra.mxu0 %v1454
        %v7511 = vpop.f32.mrf.mxu0
        %v7512 = vadd.f32 %v7499, %v7511
        %v7513 = vpop.f32.mrf.mxu0
        %7514 = vdwg.mxu0
        %7515 = vmatpush.bf16.msra.mxu0 %v4742
        %7516 = vmatpush.bf16.msra.mxu0 %v4734
        %7517 = vmatpush.bf16.msra.mxu0 %v4726
        %7518 = vmatpush.bf16.msra.mxu0 %v4718
        %7519 = vmatpush.bf16.msra.mxu0 %v4710
        %7520 = vmatpush.bf16.msra.mxu0 %v4702
        %7521 = vmatpush.bf16.msra.mxu0 %v4694
        %7522 = vmatpush.bf16.msra.mxu0 %v4686
        %7523 = vmatmul.bf16.gmra.mxu0 %v1455
        %v7524 = vpop.f32.mrf.mxu0
        %v7525 = vadd.f32 %v7512, %v7524
        %v7526 = vpop.f32.mrf.mxu0
        %7527 = vdwg.mxu0
        %7528 = vmatpush.bf16.msra.mxu0 %v4806
        %7529 = vmatpush.bf16.msra.mxu0 %v4798
        %7530 = vmatpush.bf16.msra.mxu0 %v4790
        %7531 = vmatpush.bf16.msra.mxu0 %v4782
        %7532 = vmatpush.bf16.msra.mxu0 %v4774
        %7533 = vmatpush.bf16.msra.mxu0 %v4766
        %7534 = vmatpush.bf16.msra.mxu0 %v4758
        %7535 = vmatpush.bf16.msra.mxu0 %v4750
        %7536 = vmatmul.bf16.gmra.mxu0 %v1456
        %v7537 = vpop.f32.mrf.mxu0
        %v7538 = vadd.f32 %v7525, %v7537
        %v7539 = vpop.f32.mrf.mxu0
        %7540 = vdwg.mxu0
        %7541 = vmatpush.bf16.msra.mxu0 %v4870
        %7542 = vmatpush.bf16.msra.mxu0 %v4862
        %7543 = vmatpush.bf16.msra.mxu0 %v4854
        %7544 = vmatpush.bf16.msra.mxu0 %v4846
        %7545 = vmatpush.bf16.msra.mxu0 %v4838
        %7546 = vmatpush.bf16.msra.mxu0 %v4830
        %7547 = vmatpush.bf16.msra.mxu0 %v4822
        %7548 = vmatpush.bf16.msra.mxu0 %v4814
        %7549 = vmatmul.bf16.gmra.mxu0 %v1457
        %v7550 = vpop.f32.mrf.mxu0
        %v7551 = vadd.f32 %v7538, %v7550
        %v7552 = vpop.f32.mrf.mxu0
        %7553 = vdwg.mxu0
        %7554 = vmatpush.bf16.msra.mxu0 %v4934
        %7555 = vmatpush.bf16.msra.mxu0 %v4926
        %7556 = vmatpush.bf16.msra.mxu0 %v4918
        %7557 = vmatpush.bf16.msra.mxu0 %v4910
        %7558 = vmatpush.bf16.msra.mxu0 %v4902
        %7559 = vmatpush.bf16.msra.mxu0 %v4894
        %7560 = vmatpush.bf16.msra.mxu0 %v4886
        %7561 = vmatpush.bf16.msra.mxu0 %v4878
        %7562 = vmatmul.bf16.gmra.mxu0 %v1458
        %v7563 = vpop.f32.mrf.mxu0
        %v7564 = vadd.f32 %v7551, %v7563
        %v7565 = vpop.f32.mrf.mxu0
        %7566 = vdwg.mxu0
        %7567 = vmatpush.bf16.msra.mxu0 %v4998
        %7568 = vmatpush.bf16.msra.mxu0 %v4990
        %7569 = vmatpush.bf16.msra.mxu0 %v4982
        %7570 = vmatpush.bf16.msra.mxu0 %v4974
        %7571 = vmatpush.bf16.msra.mxu0 %v4966
        %7572 = vmatpush.bf16.msra.mxu0 %v4958
        %7573 = vmatpush.bf16.msra.mxu0 %v4950
        %7574 = vmatpush.bf16.msra.mxu0 %v4942
        %7575 = vmatmul.bf16.gmra.mxu0 %v1459
        %v7576 = vpop.f32.mrf.mxu0
        %v7577 = vadd.f32 %v7564, %v7576
        %v7578 = vpop.f32.mrf.mxu0
        %7579 = vdwg.mxu0
        %7580 = vmatpush.bf16.msra.mxu0 %v5062
        %7581 = vmatpush.bf16.msra.mxu0 %v5054
        %7582 = vmatpush.bf16.msra.mxu0 %v5046
        %7583 = vmatpush.bf16.msra.mxu0 %v5038
        %7584 = vmatpush.bf16.msra.mxu0 %v5030
        %7585 = vmatpush.bf16.msra.mxu0 %v5022
        %7586 = vmatpush.bf16.msra.mxu0 %v5014
        %7587 = vmatpush.bf16.msra.mxu0 %v5006
        %7588 = vmatmul.bf16.gmra.mxu0 %v1460
        %v7589 = vpop.f32.mrf.mxu0
        %v7590 = vadd.f32 %v7577, %v7589
        %v7591 = vpop.f32.mrf.mxu0
        %7592 = vdwg.mxu0
        %7593 = vmatpush.bf16.msra.mxu0 %v5126
        %7594 = vmatpush.bf16.msra.mxu0 %v5118
        %7595 = vmatpush.bf16.msra.mxu0 %v5110
        %7596 = vmatpush.bf16.msra.mxu0 %v5102
        %7597 = vmatpush.bf16.msra.mxu0 %v5094
        %7598 = vmatpush.bf16.msra.mxu0 %v5086
        %7599 = vmatpush.bf16.msra.mxu0 %v5078
        %7600 = vmatpush.bf16.msra.mxu0 %v5070
        %7601 = vmatmul.bf16.gmra.mxu0 %v1461
        %v7602 = vpop.f32.mrf.mxu0
        %v7603 = vadd.f32 %v7590, %v7602
        %v7604 = vpop.f32.mrf.mxu0
        %7605 = vdwg.mxu0
        %7606 = vmatpush.bf16.msra.mxu0 %v5190
        %7607 = vmatpush.bf16.msra.mxu0 %v5182
        %7608 = vmatpush.bf16.msra.mxu0 %v5174
        %7609 = vmatpush.bf16.msra.mxu0 %v5166
        %7610 = vmatpush.bf16.msra.mxu0 %v5158
        %7611 = vmatpush.bf16.msra.mxu0 %v5150
        %7612 = vmatpush.bf16.msra.mxu0 %v5142
        %7613 = vmatpush.bf16.msra.mxu0 %v5134
        %7614 = vmatmul.bf16.gmra.mxu0 %v1462
        %v7615 = vpop.f32.mrf.mxu0
        %v7616 = vadd.f32 %v7603, %v7615
        %v7617 = vpop.f32.mrf.mxu0
        %7618 = vdwg.mxu0
        %7619 = vmatpush.bf16.msra.mxu0 %v5254
        %7620 = vmatpush.bf16.msra.mxu0 %v5246
        %7621 = vmatpush.bf16.msra.mxu0 %v5238
        %7622 = vmatpush.bf16.msra.mxu0 %v5230
        %7623 = vmatpush.bf16.msra.mxu0 %v5222
        %7624 = vmatpush.bf16.msra.mxu0 %v5214
        %7625 = vmatpush.bf16.msra.mxu0 %v5206
        %7626 = vmatpush.bf16.msra.mxu0 %v5198
        %7627 = vmatmul.bf16.gmra.mxu0 %v1463
        %v7628 = vpop.f32.mrf.mxu0
        %v7629 = vadd.f32 %v7616, %v7628
        %v7630 = vpop.f32.mrf.mxu0
        %7631 = vdwg.mxu0
        %7632 = vmatpush.bf16.msra.mxu0 %v5318
        %7633 = vmatpush.bf16.msra.mxu0 %v5310
        %7634 = vmatpush.bf16.msra.mxu0 %v5302
        %7635 = vmatpush.bf16.msra.mxu0 %v5294
        %7636 = vmatpush.bf16.msra.mxu0 %v5286
        %7637 = vmatpush.bf16.msra.mxu0 %v5278
        %7638 = vmatpush.bf16.msra.mxu0 %v5270
        %7639 = vmatpush.bf16.msra.mxu0 %v5262
        %7640 = vmatmul.bf16.gmra.mxu0 %v1464
        %v7641 = vpop.f32.mrf.mxu0
        %v7642 = vadd.f32 %v7629, %v7641
        %v7643 = vpop.f32.mrf.mxu0
        %7644 = vdwg.mxu0
        %7645 = vmatpush.bf16.msra.mxu0 %v4423
        %7646 = vmatpush.bf16.msra.mxu0 %v4415
        %7647 = vmatpush.bf16.msra.mxu0 %v4407
        %7648 = vmatpush.bf16.msra.mxu0 %v4399
        %7649 = vmatpush.bf16.msra.mxu0 %v4391
        %7650 = vmatpush.bf16.msra.mxu0 %v4383
        %7651 = vmatpush.bf16.msra.mxu0 %v4375
        %7652 = vmatpush.bf16.msra.mxu0 %v4367
        %7653 = vmatmul.bf16.gmra.mxu0 %v1450
        %v7654 = vpop.f32.mrf.mxu0
        %v7655 = vadd.f32 0.0, %v7654
        %v7656 = vpop.f32.mrf.mxu0
        %7657 = vdwg.mxu0
        %7658 = vmatpush.bf16.msra.mxu0 %v4487
        %7659 = vmatpush.bf16.msra.mxu0 %v4479
        %7660 = vmatpush.bf16.msra.mxu0 %v4471
        %7661 = vmatpush.bf16.msra.mxu0 %v4463
        %7662 = vmatpush.bf16.msra.mxu0 %v4455
        %7663 = vmatpush.bf16.msra.mxu0 %v4447
        %7664 = vmatpush.bf16.msra.mxu0 %v4439
        %7665 = vmatpush.bf16.msra.mxu0 %v4431
        %7666 = vmatmul.bf16.gmra.mxu0 %v1451
        %v7667 = vpop.f32.mrf.mxu0
        %v7668 = vadd.f32 %v7655, %v7667
        %v7669 = vpop.f32.mrf.mxu0
        %7670 = vdwg.mxu0
        %7671 = vmatpush.bf16.msra.mxu0 %v4551
        %7672 = vmatpush.bf16.msra.mxu0 %v4543
        %7673 = vmatpush.bf16.msra.mxu0 %v4535
        %7674 = vmatpush.bf16.msra.mxu0 %v4527
        %7675 = vmatpush.bf16.msra.mxu0 %v4519
        %7676 = vmatpush.bf16.msra.mxu0 %v4511
        %7677 = vmatpush.bf16.msra.mxu0 %v4503
        %7678 = vmatpush.bf16.msra.mxu0 %v4495
        %7679 = vmatmul.bf16.gmra.mxu0 %v1452
        %v7680 = vpop.f32.mrf.mxu0
        %v7681 = vadd.f32 %v7668, %v7680
        %v7682 = vpop.f32.mrf.mxu0
        %7683 = vdwg.mxu0
        %7684 = vmatpush.bf16.msra.mxu0 %v4615
        %7685 = vmatpush.bf16.msra.mxu0 %v4607
        %7686 = vmatpush.bf16.msra.mxu0 %v4599
        %7687 = vmatpush.bf16.msra.mxu0 %v4591
        %7688 = vmatpush.bf16.msra.mxu0 %v4583
        %7689 = vmatpush.bf16.msra.mxu0 %v4575
        %7690 = vmatpush.bf16.msra.mxu0 %v4567
        %7691 = vmatpush.bf16.msra.mxu0 %v4559
        %7692 = vmatmul.bf16.gmra.mxu0 %v1453
        %v7693 = vpop.f32.mrf.mxu0
        %v7694 = vadd.f32 %v7681, %v7693
        %v7695 = vpop.f32.mrf.mxu0
        %7696 = vdwg.mxu0
        %7697 = vmatpush.bf16.msra.mxu0 %v4679
        %7698 = vmatpush.bf16.msra.mxu0 %v4671
        %7699 = vmatpush.bf16.msra.mxu0 %v4663
        %7700 = vmatpush.bf16.msra.mxu0 %v4655
        %7701 = vmatpush.bf16.msra.mxu0 %v4647
        %7702 = vmatpush.bf16.msra.mxu0 %v4639
        %7703 = vmatpush.bf16.msra.mxu0 %v4631
        %7704 = vmatpush.bf16.msra.mxu0 %v4623
        %7705 = vmatmul.bf16.gmra.mxu0 %v1454
        %v7706 = vpop.f32.mrf.mxu0
        %v7707 = vadd.f32 %v7694, %v7706
        %v7708 = vpop.f32.mrf.mxu0
        %7709 = vdwg.mxu0
        %7710 = vmatpush.bf16.msra.mxu0 %v4743
        %7711 = vmatpush.bf16.msra.mxu0 %v4735
        %7712 = vmatpush.bf16.msra.mxu0 %v4727
        %7713 = vmatpush.bf16.msra.mxu0 %v4719
        %7714 = vmatpush.bf16.msra.mxu0 %v4711
        %7715 = vmatpush.bf16.msra.mxu0 %v4703
        %7716 = vmatpush.bf16.msra.mxu0 %v4695
        %7717 = vmatpush.bf16.msra.mxu0 %v4687
        %7718 = vmatmul.bf16.gmra.mxu0 %v1455
        %v7719 = vpop.f32.mrf.mxu0
        %v7720 = vadd.f32 %v7707, %v7719
        %v7721 = vpop.f32.mrf.mxu0
        %7722 = vdwg.mxu0
        %7723 = vmatpush.bf16.msra.mxu0 %v4807
        %7724 = vmatpush.bf16.msra.mxu0 %v4799
        %7725 = vmatpush.bf16.msra.mxu0 %v4791
        %7726 = vmatpush.bf16.msra.mxu0 %v4783
        %7727 = vmatpush.bf16.msra.mxu0 %v4775
        %7728 = vmatpush.bf16.msra.mxu0 %v4767
        %7729 = vmatpush.bf16.msra.mxu0 %v4759
        %7730 = vmatpush.bf16.msra.mxu0 %v4751
        %7731 = vmatmul.bf16.gmra.mxu0 %v1456
        %v7732 = vpop.f32.mrf.mxu0
        %v7733 = vadd.f32 %v7720, %v7732
        %v7734 = vpop.f32.mrf.mxu0
        %7735 = vdwg.mxu0
        %7736 = vmatpush.bf16.msra.mxu0 %v4871
        %7737 = vmatpush.bf16.msra.mxu0 %v4863
        %7738 = vmatpush.bf16.msra.mxu0 %v4855
        %7739 = vmatpush.bf16.msra.mxu0 %v4847
        %7740 = vmatpush.bf16.msra.mxu0 %v4839
        %7741 = vmatpush.bf16.msra.mxu0 %v4831
        %7742 = vmatpush.bf16.msra.mxu0 %v4823
        %7743 = vmatpush.bf16.msra.mxu0 %v4815
        %7744 = vmatmul.bf16.gmra.mxu0 %v1457
        %v7745 = vpop.f32.mrf.mxu0
        %v7746 = vadd.f32 %v7733, %v7745
        %v7747 = vpop.f32.mrf.mxu0
        %7748 = vdwg.mxu0
        %7749 = vmatpush.bf16.msra.mxu0 %v4935
        %7750 = vmatpush.bf16.msra.mxu0 %v4927
        %7751 = vmatpush.bf16.msra.mxu0 %v4919
        %7752 = vmatpush.bf16.msra.mxu0 %v4911
        %7753 = vmatpush.bf16.msra.mxu0 %v4903
        %7754 = vmatpush.bf16.msra.mxu0 %v4895
        %7755 = vmatpush.bf16.msra.mxu0 %v4887
        %7756 = vmatpush.bf16.msra.mxu0 %v4879
        %7757 = vmatmul.bf16.gmra.mxu0 %v1458
        %v7758 = vpop.f32.mrf.mxu0
        %v7759 = vadd.f32 %v7746, %v7758
        %v7760 = vpop.f32.mrf.mxu0
        %7761 = vdwg.mxu0
        %7762 = vmatpush.bf16.msra.mxu0 %v4999
        %7763 = vmatpush.bf16.msra.mxu0 %v4991
        %7764 = vmatpush.bf16.msra.mxu0 %v4983
        %7765 = vmatpush.bf16.msra.mxu0 %v4975
        %7766 = vmatpush.bf16.msra.mxu0 %v4967
        %7767 = vmatpush.bf16.msra.mxu0 %v4959
        %7768 = vmatpush.bf16.msra.mxu0 %v4951
        %7769 = vmatpush.bf16.msra.mxu0 %v4943
        %7770 = vmatmul.bf16.gmra.mxu0 %v1459
        %v7771 = vpop.f32.mrf.mxu0
        %v7772 = vadd.f32 %v7759, %v7771
        %v7773 = vpop.f32.mrf.mxu0
        %7774 = vdwg.mxu0
        %7775 = vmatpush.bf16.msra.mxu0 %v5063
        %7776 = vmatpush.bf16.msra.mxu0 %v5055
        %7777 = vmatpush.bf16.msra.mxu0 %v5047
        %7778 = vmatpush.bf16.msra.mxu0 %v5039
        %7779 = vmatpush.bf16.msra.mxu0 %v5031
        %7780 = vmatpush.bf16.msra.mxu0 %v5023
        %7781 = vmatpush.bf16.msra.mxu0 %v5015
        %7782 = vmatpush.bf16.msra.mxu0 %v5007
        %7783 = vmatmul.bf16.gmra.mxu0 %v1460
        %v7784 = vpop.f32.mrf.mxu0
        %v7785 = vadd.f32 %v7772, %v7784
        %v7786 = vpop.f32.mrf.mxu0
        %7787 = vdwg.mxu0
        %7788 = vmatpush.bf16.msra.mxu0 %v5127
        %7789 = vmatpush.bf16.msra.mxu0 %v5119
        %7790 = vmatpush.bf16.msra.mxu0 %v5111
        %7791 = vmatpush.bf16.msra.mxu0 %v5103
        %7792 = vmatpush.bf16.msra.mxu0 %v5095
        %7793 = vmatpush.bf16.msra.mxu0 %v5087
        %7794 = vmatpush.bf16.msra.mxu0 %v5079
        %7795 = vmatpush.bf16.msra.mxu0 %v5071
        %7796 = vmatmul.bf16.gmra.mxu0 %v1461
        %v7797 = vpop.f32.mrf.mxu0
        %v7798 = vadd.f32 %v7785, %v7797
        %v7799 = vpop.f32.mrf.mxu0
        %7800 = vdwg.mxu0
        %7801 = vmatpush.bf16.msra.mxu0 %v5191
        %7802 = vmatpush.bf16.msra.mxu0 %v5183
        %7803 = vmatpush.bf16.msra.mxu0 %v5175
        %7804 = vmatpush.bf16.msra.mxu0 %v5167
        %7805 = vmatpush.bf16.msra.mxu0 %v5159
        %7806 = vmatpush.bf16.msra.mxu0 %v5151
        %7807 = vmatpush.bf16.msra.mxu0 %v5143
        %7808 = vmatpush.bf16.msra.mxu0 %v5135
        %7809 = vmatmul.bf16.gmra.mxu0 %v1462
        %v7810 = vpop.f32.mrf.mxu0
        %v7811 = vadd.f32 %v7798, %v7810
        %v7812 = vpop.f32.mrf.mxu0
        %7813 = vdwg.mxu0
        %7814 = vmatpush.bf16.msra.mxu0 %v5255
        %7815 = vmatpush.bf16.msra.mxu0 %v5247
        %7816 = vmatpush.bf16.msra.mxu0 %v5239
        %7817 = vmatpush.bf16.msra.mxu0 %v5231
        %7818 = vmatpush.bf16.msra.mxu0 %v5223
        %7819 = vmatpush.bf16.msra.mxu0 %v5215
        %7820 = vmatpush.bf16.msra.mxu0 %v5207
        %7821 = vmatpush.bf16.msra.mxu0 %v5199
        %7822 = vmatmul.bf16.gmra.mxu0 %v1463
        %v7823 = vpop.f32.mrf.mxu0
        %v7824 = vadd.f32 %v7811, %v7823
        %v7825 = vpop.f32.mrf.mxu0
        %7826 = vdwg.mxu0
        %7827 = vmatpush.bf16.msra.mxu0 %v5319
        %7828 = vmatpush.bf16.msra.mxu0 %v5311
        %7829 = vmatpush.bf16.msra.mxu0 %v5303
        %7830 = vmatpush.bf16.msra.mxu0 %v5295
        %7831 = vmatpush.bf16.msra.mxu0 %v5287
        %7832 = vmatpush.bf16.msra.mxu0 %v5279
        %7833 = vmatpush.bf16.msra.mxu0 %v5271
        %7834 = vmatpush.bf16.msra.mxu0 %v5263
        %7835 = vmatmul.bf16.gmra.mxu0 %v1464
        %v7836 = vpop.f32.mrf.mxu0
        %v7837 = vadd.f32 %v7824, %v7836
        %v7838 = vpop.f32.mrf.mxu0
        %7839 = vdwg.mxu0
        %v7840 = vadd.f32 %v451, %v6472
        %v7841 = vadd.f32 %v452, %v6667
        %v7842 = vadd.f32 %v453, %v6862
        %v7843 = vadd.f32 %v454, %v7057
        %v7844 = vadd.f32 %v455, %v7252
        %v7845 = vadd.f32 %v456, %v7447
        %v7846 = vadd.f32 %v457, %v7642
        %v7847 = vadd.f32 %v458, %v7837
        %7848 = vst [vmem:[#allocation2] sm:$0xff] %v7840
        %7849 = vst [vmem:[#allocation2 + $0x8] sm:$0xff] %v7841
        %7850 = vst [vmem:[#allocation2 + $0x10] sm:$0xff] %v7842
        %7851 = vst [vmem:[#allocation2 + $0x18] sm:$0xff] %v7843
        %7852 = vst [vmem:[#allocation2 + $0x20] sm:$0xff] %v7844
        %7853 = vst [vmem:[#allocation2 + $0x28] sm:$0xff] %v7845
        %7854 = vst [vmem:[#allocation2 + $0x30] sm:$0xff] %v7846
        %7855 = vst [vmem:[#allocation2 + $0x38] sm:$0xff] %v7847
        %p7856 = scmp.eq.s32.totalorder %s26, 3
        // Predicated region
        $region85: #{dnn_forward.1} parent=55 // pred_check
          %p7857 = pneg %p7856
        $region86: #{dnn_forward.1} parent=55 // pred_check_branch
          %7859 = sbr.rel (%p7857) target = $region88
        $region87: #{dnn_forward.1} parent=55 // pred_region
          %v7860 = vld [vmem:[#allocation2] sm:$0xff]
          %v7861 = vld [vmem:[#allocation2 + $0x8] sm:$0xff]
          %v7862 = vld [vmem:[#allocation2 + $0x10] sm:$0xff]
          %v7863 = vld [vmem:[#allocation2 + $0x18] sm:$0xff]
          %v7864 = vld [vmem:[#allocation2 + $0x20] sm:$0xff]
          %v7865 = vld [vmem:[#allocation2 + $0x28] sm:$0xff]
          %v7866 = vld [vmem:[#allocation2 + $0x30] sm:$0xff]
          %v7867 = vld [vmem:[#allocation2 + $0x38] sm:$0xff]
          %v7868 = vld [vmem:[#allocation5] sm:$0xff]
          %v7870 = vperm.slane %v7868, 0
          %v7871 = vperm.slane %v7868, 1
          %v7872 = vperm.slane %v7868, 2
          %v7873 = vperm.slane %v7868, 3
          %v7874 = vperm.slane %v7868, 4
          %v7875 = vperm.slane %v7868, 5
          %v7876 = vperm.slane %v7868, 6
          %v7877 = vperm.slane %v7868, 7
          %v7886 = vadd.f32 %v7860, %v7870
          %v7887 = vadd.f32 %v7861, %v7871
          %v7888 = vadd.f32 %v7862, %v7872
          %v7889 = vadd.f32 %v7863, %v7873
          %v7890 = vadd.f32 %v7864, %v7874
          %v7891 = vadd.f32 %v7865, %v7875
          %v7892 = vadd.f32 %v7866, %v7876
          %v7893 = vadd.f32 %v7867, %v7877
          %v7894 = vmax.f32 %v7886, 0.0
          %v7895 = vmax.f32 %v7887, 0.0
          %v7896 = vmax.f32 %v7888, 0.0
          %v7897 = vmax.f32 %v7889, 0.0
          %v7898 = vmax.f32 %v7890, 0.0
          %v7899 = vmax.f32 %v7891, 0.0
          %v7900 = vmax.f32 %v7892, 0.0
          %v7901 = vmax.f32 %v7893, 0.0
          %v7902 = vld [vmem:[#allocation7] sm:$0xff]
          %v7903 = vld [vmem:[#allocation7 + $0x8] sm:$0xff]
          %v7904 = vld [vmem:[#allocation7 + $0x10] sm:$0xff]
          %v7905 = vld [vmem:[#allocation7 + $0x18] sm:$0xff]
          %v7906 = vld [vmem:[#allocation7 + $0x20] sm:$0xff]
          %v7907 = vld [vmem:[#allocation7 + $0x28] sm:$0xff]
          %v7908 = vld [vmem:[#allocation7 + $0x30] sm:$0xff]
          %v7909 = vld [vmem:[#allocation7 + $0x38] sm:$0xff]
          %v7910 = vld [vmem:[#allocation7 + $0x40] sm:$0xff]
          %v7911 = vld [vmem:[#allocation7 + $0x48] sm:$0xff]
          %v7912 = vld [vmem:[#allocation7 + $0x50] sm:$0xff]
          %v7913 = vld [vmem:[#allocation7 + $0x58] sm:$0xff]
          %v7914 = vld [vmem:[#allocation7 + $0x60] sm:$0xff]
          %v7915 = vld [vmem:[#allocation7 + $0x68] sm:$0xff]
          %v7916 = vld [vmem:[#allocation7 + $0x70] sm:$0xff]
          %v7917 = vld [vmem:[#allocation7 + $0x78] sm:$0xff]
          %v7918 = vld [vmem:[#allocation7 + $0x80] sm:$0xff]
          %v7919 = vld [vmem:[#allocation7 + $0x88] sm:$0xff]
          %v7920 = vld [vmem:[#allocation7 + $0x90] sm:$0xff]
          %v7921 = vld [vmem:[#allocation7 + $0x98] sm:$0xff]
          %v7922 = vld [vmem:[#allocation7 + $0xa0] sm:$0xff]
          %v7923 = vld [vmem:[#allocation7 + $0xa8] sm:$0xff]
          %v7924 = vld [vmem:[#allocation7 + $0xb0] sm:$0xff]
          %v7925 = vld [vmem:[#allocation7 + $0xb8] sm:$0xff]
          %v7926 = vld [vmem:[#allocation7 + $0xc0] sm:$0xff]
          %v7927 = vld [vmem:[#allocation7 + $0xc8] sm:$0xff]
          %v7928 = vld [vmem:[#allocation7 + $0xd0] sm:$0xff]
          %v7929 = vld [vmem:[#allocation7 + $0xd8] sm:$0xff]
          %v7930 = vld [vmem:[#allocation7 + $0xe0] sm:$0xff]
          %v7931 = vld [vmem:[#allocation7 + $0xe8] sm:$0xff]
          %v7932 = vld [vmem:[#allocation7 + $0xf0] sm:$0xff]
          %v7933 = vld [vmem:[#allocation7 + $0xf8] sm:$0xff]
          %v7934 = vld [vmem:[#allocation7 + $0x100] sm:$0xff]
          %v7935 = vld [vmem:[#allocation7 + $0x108] sm:$0xff]
          %v7936 = vld [vmem:[#allocation7 + $0x110] sm:$0xff]
          %v7937 = vld [vmem:[#allocation7 + $0x118] sm:$0xff]
          %v7938 = vld [vmem:[#allocation7 + $0x120] sm:$0xff]
          %v7939 = vld [vmem:[#allocation7 + $0x128] sm:$0xff]
          %v7940 = vld [vmem:[#allocation7 + $0x130] sm:$0xff]
          %v7941 = vld [vmem:[#allocation7 + $0x138] sm:$0xff]
          %v7942 = vld [vmem:[#allocation7 + $0x140] sm:$0xff]
          %v7943 = vld [vmem:[#allocation7 + $0x148] sm:$0xff]
          %v7944 = vld [vmem:[#allocation7 + $0x150] sm:$0xff]
          %v7945 = vld [vmem:[#allocation7 + $0x158] sm:$0xff]
          %v7946 = vld [vmem:[#allocation7 + $0x160] sm:$0xff]
          %v7947 = vld [vmem:[#allocation7 + $0x168] sm:$0xff]
          %v7948 = vld [vmem:[#allocation7 + $0x170] sm:$0xff]
          %v7949 = vld [vmem:[#allocation7 + $0x178] sm:$0xff]
          %v7950 = vld [vmem:[#allocation7 + $0x180] sm:$0xff]
          %v7951 = vld [vmem:[#allocation7 + $0x188] sm:$0xff]
          %v7952 = vld [vmem:[#allocation7 + $0x190] sm:$0xff]
          %v7953 = vld [vmem:[#allocation7 + $0x198] sm:$0xff]
          %v7954 = vld [vmem:[#allocation7 + $0x1a0] sm:$0xff]
          %v7955 = vld [vmem:[#allocation7 + $0x1a8] sm:$0xff]
          %v7956 = vld [vmem:[#allocation7 + $0x1b0] sm:$0xff]
          %v7957 = vld [vmem:[#allocation7 + $0x1b8] sm:$0xff]
          %v7958 = vld [vmem:[#allocation7 + $0x1c0] sm:$0xff]
          %v7959 = vld [vmem:[#allocation7 + $0x1c8] sm:$0xff]
          %v7960 = vld [vmem:[#allocation7 + $0x1d0] sm:$0xff]
          %v7961 = vld [vmem:[#allocation7 + $0x1d8] sm:$0xff]
          %v7962 = vld [vmem:[#allocation7 + $0x1e0] sm:$0xff]
          %v7963 = vld [vmem:[#allocation7 + $0x1e8] sm:$0xff]
          %v7964 = vld [vmem:[#allocation7 + $0x1f0] sm:$0xff]
          %v7965 = vld [vmem:[#allocation7 + $0x1f8] sm:$0xff]
          %v7966 = vld [vmem:[#allocation7 + $0x200] sm:$0xff]
          %v7967 = vld [vmem:[#allocation7 + $0x208] sm:$0xff]
          %v7968 = vld [vmem:[#allocation7 + $0x210] sm:$0xff]
          %v7969 = vld [vmem:[#allocation7 + $0x218] sm:$0xff]
          %v7970 = vld [vmem:[#allocation7 + $0x220] sm:$0xff]
          %v7971 = vld [vmem:[#allocation7 + $0x228] sm:$0xff]
          %v7972 = vld [vmem:[#allocation7 + $0x230] sm:$0xff]
          %v7973 = vld [vmem:[#allocation7 + $0x238] sm:$0xff]
          %v7974 = vld [vmem:[#allocation7 + $0x240] sm:$0xff]
          %v7975 = vld [vmem:[#allocation7 + $0x248] sm:$0xff]
          %v7976 = vld [vmem:[#allocation7 + $0x250] sm:$0xff]
          %v7977 = vld [vmem:[#allocation7 + $0x258] sm:$0xff]
          %v7978 = vld [vmem:[#allocation7 + $0x260] sm:$0xff]
          %v7979 = vld [vmem:[#allocation7 + $0x268] sm:$0xff]
          %v7980 = vld [vmem:[#allocation7 + $0x270] sm:$0xff]
          %v7981 = vld [vmem:[#allocation7 + $0x278] sm:$0xff]
          %v7982 = vld [vmem:[#allocation7 + $0x280] sm:$0xff]
          %v7983 = vld [vmem:[#allocation7 + $0x288] sm:$0xff]
          %v7984 = vld [vmem:[#allocation7 + $0x290] sm:$0xff]
          %v7985 = vld [vmem:[#allocation7 + $0x298] sm:$0xff]
          %v7986 = vld [vmem:[#allocation7 + $0x2a0] sm:$0xff]
          %v7987 = vld [vmem:[#allocation7 + $0x2a8] sm:$0xff]
          %v7988 = vld [vmem:[#allocation7 + $0x2b0] sm:$0xff]
          %v7989 = vld [vmem:[#allocation7 + $0x2b8] sm:$0xff]
          %v7990 = vld [vmem:[#allocation7 + $0x2c0] sm:$0xff]
          %v7991 = vld [vmem:[#allocation7 + $0x2c8] sm:$0xff]
          %v7992 = vld [vmem:[#allocation7 + $0x2d0] sm:$0xff]
          %v7993 = vld [vmem:[#allocation7 + $0x2d8] sm:$0xff]
          %v7994 = vld [vmem:[#allocation7 + $0x2e0] sm:$0xff]
          %v7995 = vld [vmem:[#allocation7 + $0x2e8] sm:$0xff]
          %v7996 = vld [vmem:[#allocation7 + $0x2f0] sm:$0xff]
          %v7997 = vld [vmem:[#allocation7 + $0x2f8] sm:$0xff]
          %v7998 = vld [vmem:[#allocation7 + $0x300] sm:$0xff]
          %v7999 = vld [vmem:[#allocation7 + $0x308] sm:$0xff]
          %v8000 = vld [vmem:[#allocation7 + $0x310] sm:$0xff]
          %v8001 = vld [vmem:[#allocation7 + $0x318] sm:$0xff]
          %v8002 = vld [vmem:[#allocation7 + $0x320] sm:$0xff]
          %v8003 = vld [vmem:[#allocation7 + $0x328] sm:$0xff]
          %v8004 = vld [vmem:[#allocation7 + $0x330] sm:$0xff]
          %v8005 = vld [vmem:[#allocation7 + $0x338] sm:$0xff]
          %v8006 = vld [vmem:[#allocation7 + $0x340] sm:$0xff]
          %v8007 = vld [vmem:[#allocation7 + $0x348] sm:$0xff]
          %v8008 = vld [vmem:[#allocation7 + $0x350] sm:$0xff]
          %v8009 = vld [vmem:[#allocation7 + $0x358] sm:$0xff]
          %v8010 = vld [vmem:[#allocation7 + $0x360] sm:$0xff]
          %v8011 = vld [vmem:[#allocation7 + $0x368] sm:$0xff]
          %v8012 = vld [vmem:[#allocation7 + $0x370] sm:$0xff]
          %v8013 = vld [vmem:[#allocation7 + $0x378] sm:$0xff]
          %v8014 = vld [vmem:[#allocation7 + $0x380] sm:$0xff]
          %v8015 = vld [vmem:[#allocation7 + $0x388] sm:$0xff]
          %v8016 = vld [vmem:[#allocation7 + $0x390] sm:$0xff]
          %v8017 = vld [vmem:[#allocation7 + $0x398] sm:$0xff]
          %v8018 = vld [vmem:[#allocation7 + $0x3a0] sm:$0xff]
          %v8019 = vld [vmem:[#allocation7 + $0x3a8] sm:$0xff]
          %v8020 = vld [vmem:[#allocation7 + $0x3b0] sm:$0xff]
          %v8021 = vld [vmem:[#allocation7 + $0x3b8] sm:$0xff]
          %v8022 = vld [vmem:[#allocation7 + $0x3c0] sm:$0xff]
          %v8023 = vld [vmem:[#allocation7 + $0x3c8] sm:$0xff]
          %v8024 = vld [vmem:[#allocation7 + $0x3d0] sm:$0xff]
          %v8025 = vld [vmem:[#allocation7 + $0x3d8] sm:$0xff]
          %v8026 = vld [vmem:[#allocation7 + $0x3e0] sm:$0xff]
          %v8027 = vld [vmem:[#allocation7 + $0x3e8] sm:$0xff]
          %v8028 = vld [vmem:[#allocation7 + $0x3f0] sm:$0xff]
          %v8029 = vld [vmem:[#allocation7 + $0x3f8] sm:$0xff]
          %v8030 = vld [vmem:[#allocation7 + $0x400] sm:$0xff]
          %v8031 = vld [vmem:[#allocation7 + $0x408] sm:$0xff]
          %v8032 = vld [vmem:[#allocation7 + $0x410] sm:$0xff]
          %v8033 = vld [vmem:[#allocation7 + $0x418] sm:$0xff]
          %v8034 = vld [vmem:[#allocation7 + $0x420] sm:$0xff]
          %v8035 = vld [vmem:[#allocation7 + $0x428] sm:$0xff]
          %v8036 = vld [vmem:[#allocation7 + $0x430] sm:$0xff]
          %v8037 = vld [vmem:[#allocation7 + $0x438] sm:$0xff]
          %v8038 = vld [vmem:[#allocation7 + $0x440] sm:$0xff]
          %v8039 = vld [vmem:[#allocation7 + $0x448] sm:$0xff]
          %v8040 = vld [vmem:[#allocation7 + $0x450] sm:$0xff]
          %v8041 = vld [vmem:[#allocation7 + $0x458] sm:$0xff]
          %v8042 = vld [vmem:[#allocation7 + $0x460] sm:$0xff]
          %v8043 = vld [vmem:[#allocation7 + $0x468] sm:$0xff]
          %v8044 = vld [vmem:[#allocation7 + $0x470] sm:$0xff]
          %v8045 = vld [vmem:[#allocation7 + $0x478] sm:$0xff]
          %v8046 = vld [vmem:[#allocation7 + $0x480] sm:$0xff]
          %v8047 = vld [vmem:[#allocation7 + $0x488] sm:$0xff]
          %v8048 = vld [vmem:[#allocation7 + $0x490] sm:$0xff]
          %v8049 = vld [vmem:[#allocation7 + $0x498] sm:$0xff]
          %v8050 = vld [vmem:[#allocation7 + $0x4a0] sm:$0xff]
          %v8051 = vld [vmem:[#allocation7 + $0x4a8] sm:$0xff]
          %v8052 = vld [vmem:[#allocation7 + $0x4b0] sm:$0xff]
          %v8053 = vld [vmem:[#allocation7 + $0x4b8] sm:$0xff]
          %v8054 = vld [vmem:[#allocation7 + $0x4c0] sm:$0xff]
          %v8055 = vld [vmem:[#allocation7 + $0x4c8] sm:$0xff]
          %v8056 = vld [vmem:[#allocation7 + $0x4d0] sm:$0xff]
          %v8057 = vld [vmem:[#allocation7 + $0x4d8] sm:$0xff]
          %v8058 = vld [vmem:[#allocation7 + $0x4e0] sm:$0xff]
          %v8059 = vld [vmem:[#allocation7 + $0x4e8] sm:$0xff]
          %v8060 = vld [vmem:[#allocation7 + $0x4f0] sm:$0xff]
          %v8061 = vld [vmem:[#allocation7 + $0x4f8] sm:$0xff]
          %v8062 = vld [vmem:[#allocation7 + $0x500] sm:$0xff]
          %v8063 = vld [vmem:[#allocation7 + $0x508] sm:$0xff]
          %v8064 = vld [vmem:[#allocation7 + $0x510] sm:$0xff]
          %v8065 = vld [vmem:[#allocation7 + $0x518] sm:$0xff]
          %v8066 = vld [vmem:[#allocation7 + $0x520] sm:$0xff]
          %v8067 = vld [vmem:[#allocation7 + $0x528] sm:$0xff]
          %v8068 = vld [vmem:[#allocation7 + $0x530] sm:$0xff]
          %v8069 = vld [vmem:[#allocation7 + $0x538] sm:$0xff]
          %v8070 = vld [vmem:[#allocation7 + $0x540] sm:$0xff]
          %v8071 = vld [vmem:[#allocation7 + $0x548] sm:$0xff]
          %v8072 = vld [vmem:[#allocation7 + $0x550] sm:$0xff]
          %v8073 = vld [vmem:[#allocation7 + $0x558] sm:$0xff]
          %v8074 = vld [vmem:[#allocation7 + $0x560] sm:$0xff]
          %v8075 = vld [vmem:[#allocation7 + $0x568] sm:$0xff]
          %v8076 = vld [vmem:[#allocation7 + $0x570] sm:$0xff]
          %v8077 = vld [vmem:[#allocation7 + $0x578] sm:$0xff]
          %v8078 = vld [vmem:[#allocation7 + $0x580] sm:$0xff]
          %v8079 = vld [vmem:[#allocation7 + $0x588] sm:$0xff]
          %v8080 = vld [vmem:[#allocation7 + $0x590] sm:$0xff]
          %v8081 = vld [vmem:[#allocation7 + $0x598] sm:$0xff]
          %v8082 = vld [vmem:[#allocation7 + $0x5a0] sm:$0xff]
          %v8083 = vld [vmem:[#allocation7 + $0x5a8] sm:$0xff]
          %v8084 = vld [vmem:[#allocation7 + $0x5b0] sm:$0xff]
          %v8085 = vld [vmem:[#allocation7 + $0x5b8] sm:$0xff]
          %v8086 = vld [vmem:[#allocation7 + $0x5c0] sm:$0xff]
          %v8087 = vld [vmem:[#allocation7 + $0x5c8] sm:$0xff]
          %v8088 = vld [vmem:[#allocation7 + $0x5d0] sm:$0xff]
          %v8089 = vld [vmem:[#allocation7 + $0x5d8] sm:$0xff]
          %v8090 = vld [vmem:[#allocation7 + $0x5e0] sm:$0xff]
          %v8091 = vld [vmem:[#allocation7 + $0x5e8] sm:$0xff]
          %v8092 = vld [vmem:[#allocation7 + $0x5f0] sm:$0xff]
          %v8093 = vld [vmem:[#allocation7 + $0x5f8] sm:$0xff]
          %v8094 = vld [vmem:[#allocation7 + $0x600] sm:$0xff]
          %v8095 = vld [vmem:[#allocation7 + $0x608] sm:$0xff]
          %v8096 = vld [vmem:[#allocation7 + $0x610] sm:$0xff]
          %v8097 = vld [vmem:[#allocation7 + $0x618] sm:$0xff]
          %v8098 = vld [vmem:[#allocation7 + $0x620] sm:$0xff]
          %v8099 = vld [vmem:[#allocation7 + $0x628] sm:$0xff]
          %v8100 = vld [vmem:[#allocation7 + $0x630] sm:$0xff]
          %v8101 = vld [vmem:[#allocation7 + $0x638] sm:$0xff]
          %v8102 = vld [vmem:[#allocation7 + $0x640] sm:$0xff]
          %v8103 = vld [vmem:[#allocation7 + $0x648] sm:$0xff]
          %v8104 = vld [vmem:[#allocation7 + $0x650] sm:$0xff]
          %v8105 = vld [vmem:[#allocation7 + $0x658] sm:$0xff]
          %v8106 = vld [vmem:[#allocation7 + $0x660] sm:$0xff]
          %v8107 = vld [vmem:[#allocation7 + $0x668] sm:$0xff]
          %v8108 = vld [vmem:[#allocation7 + $0x670] sm:$0xff]
          %v8109 = vld [vmem:[#allocation7 + $0x678] sm:$0xff]
          %v8110 = vld [vmem:[#allocation7 + $0x680] sm:$0xff]
          %v8111 = vld [vmem:[#allocation7 + $0x688] sm:$0xff]
          %v8112 = vld [vmem:[#allocation7 + $0x690] sm:$0xff]
          %v8113 = vld [vmem:[#allocation7 + $0x698] sm:$0xff]
          %v8114 = vld [vmem:[#allocation7 + $0x6a0] sm:$0xff]
          %v8115 = vld [vmem:[#allocation7 + $0x6a8] sm:$0xff]
          %v8116 = vld [vmem:[#allocation7 + $0x6b0] sm:$0xff]
          %v8117 = vld [vmem:[#allocation7 + $0x6b8] sm:$0xff]
          %v8118 = vld [vmem:[#allocation7 + $0x6c0] sm:$0xff]
          %v8119 = vld [vmem:[#allocation7 + $0x6c8] sm:$0xff]
          %v8120 = vld [vmem:[#allocation7 + $0x6d0] sm:$0xff]
          %v8121 = vld [vmem:[#allocation7 + $0x6d8] sm:$0xff]
          %v8122 = vld [vmem:[#allocation7 + $0x6e0] sm:$0xff]
          %v8123 = vld [vmem:[#allocation7 + $0x6e8] sm:$0xff]
          %v8124 = vld [vmem:[#allocation7 + $0x6f0] sm:$0xff]
          %v8125 = vld [vmem:[#allocation7 + $0x6f8] sm:$0xff]
          %v8126 = vld [vmem:[#allocation7 + $0x700] sm:$0xff]
          %v8127 = vld [vmem:[#allocation7 + $0x708] sm:$0xff]
          %v8128 = vld [vmem:[#allocation7 + $0x710] sm:$0xff]
          %v8129 = vld [vmem:[#allocation7 + $0x718] sm:$0xff]
          %v8130 = vld [vmem:[#allocation7 + $0x720] sm:$0xff]
          %v8131 = vld [vmem:[#allocation7 + $0x728] sm:$0xff]
          %v8132 = vld [vmem:[#allocation7 + $0x730] sm:$0xff]
          %v8133 = vld [vmem:[#allocation7 + $0x738] sm:$0xff]
          %v8134 = vld [vmem:[#allocation7 + $0x740] sm:$0xff]
          %v8135 = vld [vmem:[#allocation7 + $0x748] sm:$0xff]
          %v8136 = vld [vmem:[#allocation7 + $0x750] sm:$0xff]
          %v8137 = vld [vmem:[#allocation7 + $0x758] sm:$0xff]
          %v8138 = vld [vmem:[#allocation7 + $0x760] sm:$0xff]
          %v8139 = vld [vmem:[#allocation7 + $0x768] sm:$0xff]
          %v8140 = vld [vmem:[#allocation7 + $0x770] sm:$0xff]
          %v8141 = vld [vmem:[#allocation7 + $0x778] sm:$0xff]
          %v8142 = vld [vmem:[#allocation7 + $0x780] sm:$0xff]
          %v8143 = vld [vmem:[#allocation7 + $0x788] sm:$0xff]
          %v8144 = vld [vmem:[#allocation7 + $0x790] sm:$0xff]
          %v8145 = vld [vmem:[#allocation7 + $0x798] sm:$0xff]
          %v8146 = vld [vmem:[#allocation7 + $0x7a0] sm:$0xff]
          %v8147 = vld [vmem:[#allocation7 + $0x7a8] sm:$0xff]
          %v8148 = vld [vmem:[#allocation7 + $0x7b0] sm:$0xff]
          %v8149 = vld [vmem:[#allocation7 + $0x7b8] sm:$0xff]
          %v8150 = vld [vmem:[#allocation7 + $0x7c0] sm:$0xff]
          %v8151 = vld [vmem:[#allocation7 + $0x7c8] sm:$0xff]
          %v8152 = vld [vmem:[#allocation7 + $0x7d0] sm:$0xff]
          %v8153 = vld [vmem:[#allocation7 + $0x7d8] sm:$0xff]
          %v8154 = vld [vmem:[#allocation7 + $0x7e0] sm:$0xff]
          %v8155 = vld [vmem:[#allocation7 + $0x7e8] sm:$0xff]
          %v8156 = vld [vmem:[#allocation7 + $0x7f0] sm:$0xff]
          %v8157 = vld [vmem:[#allocation7 + $0x7f8] sm:$0xff]
          %v8158 = vld [vmem:[#allocation8] sm:$0x3]
          %v8160 = vperm.slane %v8158, 0
          %v8161 = vperm.slane %v8158, 1
          %8164 = vmatpush.msra.mxu0 %v7932
          %8165 = vmatpush.msra.mxu0 %v7930
          %8166 = vmatpush.msra.mxu0 %v7928
          %8167 = vmatpush.msra.mxu0 %v7926
          %8168 = vmatpush.msra.mxu0 %v7924
          %8169 = vmatpush.msra.mxu0 %v7922
          %8170 = vmatpush.msra.mxu0 %v7920
          %8171 = vmatpush.msra.mxu0 %v7918
          %8172 = vmatpush.msra.mxu0 %v7916
          %8173 = vmatpush.msra.mxu0 %v7914
          %8174 = vmatpush.msra.mxu0 %v7912
          %8175 = vmatpush.msra.mxu0 %v7910
          %8176 = vmatpush.msra.mxu0 %v7908
          %8177 = vmatpush.msra.mxu0 %v7906
          %8178 = vmatpush.msra.mxu0 %v7904
          %8179 = vmatpush.msra.mxu0 %v7902
          %8180 = vmatmul.f32.gmra.mxu0 %v7894
          %v8181 = vpop.f32.mrf.mxu0
          %v8182 = vadd.f32 %v8160, %v8181
          %8183 = vdwg.mxu0
          %8184 = vmatpush.msra.mxu0 %v7964
          %8185 = vmatpush.msra.mxu0 %v7962
          %8186 = vmatpush.msra.mxu0 %v7960
          %8187 = vmatpush.msra.mxu0 %v7958
          %8188 = vmatpush.msra.mxu0 %v7956
          %8189 = vmatpush.msra.mxu0 %v7954
          %8190 = vmatpush.msra.mxu0 %v7952
          %8191 = vmatpush.msra.mxu0 %v7950
          %8192 = vmatpush.msra.mxu0 %v7948
          %8193 = vmatpush.msra.mxu0 %v7946
          %8194 = vmatpush.msra.mxu0 %v7944
          %8195 = vmatpush.msra.mxu0 %v7942
          %8196 = vmatpush.msra.mxu0 %v7940
          %8197 = vmatpush.msra.mxu0 %v7938
          %8198 = vmatpush.msra.mxu0 %v7936
          %8199 = vmatpush.msra.mxu0 %v7934
          %8200 = vmatmul.f32.gmra.mxu0 %v7895
          %v8201 = vpop.f32.mrf.mxu0
          %v8202 = vadd.f32 %v8182, %v8201
          %8203 = vdwg.mxu0
          %8204 = vmatpush.msra.mxu0 %v7996
          %8205 = vmatpush.msra.mxu0 %v7994
          %8206 = vmatpush.msra.mxu0 %v7992
          %8207 = vmatpush.msra.mxu0 %v7990
          %8208 = vmatpush.msra.mxu0 %v7988
          %8209 = vmatpush.msra.mxu0 %v7986
          %8210 = vmatpush.msra.mxu0 %v7984
          %8211 = vmatpush.msra.mxu0 %v7982
          %8212 = vmatpush.msra.mxu0 %v7980
          %8213 = vmatpush.msra.mxu0 %v7978
          %8214 = vmatpush.msra.mxu0 %v7976
          %8215 = vmatpush.msra.mxu0 %v7974
          %8216 = vmatpush.msra.mxu0 %v7972
          %8217 = vmatpush.msra.mxu0 %v7970
          %8218 = vmatpush.msra.mxu0 %v7968
          %8219 = vmatpush.msra.mxu0 %v7966
          %8220 = vmatmul.f32.gmra.mxu0 %v7896
          %v8221 = vpop.f32.mrf.mxu0
          %v8222 = vadd.f32 %v8202, %v8221
          %8223 = vdwg.mxu0
          %8224 = vmatpush.msra.mxu0 %v8028
          %8225 = vmatpush.msra.mxu0 %v8026
          %8226 = vmatpush.msra.mxu0 %v8024
          %8227 = vmatpush.msra.mxu0 %v8022
          %8228 = vmatpush.msra.mxu0 %v8020
          %8229 = vmatpush.msra.mxu0 %v8018
          %8230 = vmatpush.msra.mxu0 %v8016
          %8231 = vmatpush.msra.mxu0 %v8014
          %8232 = vmatpush.msra.mxu0 %v8012
          %8233 = vmatpush.msra.mxu0 %v8010
          %8234 = vmatpush.msra.mxu0 %v8008
          %8235 = vmatpush.msra.mxu0 %v8006
          %8236 = vmatpush.msra.mxu0 %v8004
          %8237 = vmatpush.msra.mxu0 %v8002
          %8238 = vmatpush.msra.mxu0 %v8000
          %8239 = vmatpush.msra.mxu0 %v7998
          %8240 = vmatmul.f32.gmra.mxu0 %v7897
          %v8241 = vpop.f32.mrf.mxu0
          %v8242 = vadd.f32 %v8222, %v8241
          %8243 = vdwg.mxu0
          %8244 = vmatpush.msra.mxu0 %v8060
          %8245 = vmatpush.msra.mxu0 %v8058
          %8246 = vmatpush.msra.mxu0 %v8056
          %8247 = vmatpush.msra.mxu0 %v8054
          %8248 = vmatpush.msra.mxu0 %v8052
          %8249 = vmatpush.msra.mxu0 %v8050
          %8250 = vmatpush.msra.mxu0 %v8048
          %8251 = vmatpush.msra.mxu0 %v8046
          %8252 = vmatpush.msra.mxu0 %v8044
          %8253 = vmatpush.msra.mxu0 %v8042
          %8254 = vmatpush.msra.mxu0 %v8040
          %8255 = vmatpush.msra.mxu0 %v8038
          %8256 = vmatpush.msra.mxu0 %v8036
          %8257 = vmatpush.msra.mxu0 %v8034
          %8258 = vmatpush.msra.mxu0 %v8032
          %8259 = vmatpush.msra.mxu0 %v8030
          %8260 = vmatmul.f32.gmra.mxu0 %v7898
          %v8261 = vpop.f32.mrf.mxu0
          %v8262 = vadd.f32 %v8242, %v8261
          %8263 = vdwg.mxu0
          %8264 = vmatpush.msra.mxu0 %v8092
          %8265 = vmatpush.msra.mxu0 %v8090
          %8266 = vmatpush.msra.mxu0 %v8088
          %8267 = vmatpush.msra.mxu0 %v8086
          %8268 = vmatpush.msra.mxu0 %v8084
          %8269 = vmatpush.msra.mxu0 %v8082
          %8270 = vmatpush.msra.mxu0 %v8080
          %8271 = vmatpush.msra.mxu0 %v8078
          %8272 = vmatpush.msra.mxu0 %v8076
          %8273 = vmatpush.msra.mxu0 %v8074
          %8274 = vmatpush.msra.mxu0 %v8072
          %8275 = vmatpush.msra.mxu0 %v8070
          %8276 = vmatpush.msra.mxu0 %v8068
          %8277 = vmatpush.msra.mxu0 %v8066
          %8278 = vmatpush.msra.mxu0 %v8064
          %8279 = vmatpush.msra.mxu0 %v8062
          %8280 = vmatmul.f32.gmra.mxu0 %v7899
          %v8281 = vpop.f32.mrf.mxu0
          %v8282 = vadd.f32 %v8262, %v8281
          %8283 = vdwg.mxu0
          %8284 = vmatpush.msra.mxu0 %v8124
          %8285 = vmatpush.msra.mxu0 %v8122
          %8286 = vmatpush.msra.mxu0 %v8120
          %8287 = vmatpush.msra.mxu0 %v8118
          %8288 = vmatpush.msra.mxu0 %v8116
          %8289 = vmatpush.msra.mxu0 %v8114
          %8290 = vmatpush.msra.mxu0 %v8112
          %8291 = vmatpush.msra.mxu0 %v8110
          %8292 = vmatpush.msra.mxu0 %v8108
          %8293 = vmatpush.msra.mxu0 %v8106
          %8294 = vmatpush.msra.mxu0 %v8104
          %8295 = vmatpush.msra.mxu0 %v8102
          %8296 = vmatpush.msra.mxu0 %v8100
          %8297 = vmatpush.msra.mxu0 %v8098
          %8298 = vmatpush.msra.mxu0 %v8096
          %8299 = vmatpush.msra.mxu0 %v8094
          %8300 = vmatmul.f32.gmra.mxu0 %v7900
          %v8301 = vpop.f32.mrf.mxu0
          %v8302 = vadd.f32 %v8282, %v8301
          %8303 = vdwg.mxu0
          %8304 = vmatpush.msra.mxu0 %v8156
          %8305 = vmatpush.msra.mxu0 %v8154
          %8306 = vmatpush.msra.mxu0 %v8152
          %8307 = vmatpush.msra.mxu0 %v8150
          %8308 = vmatpush.msra.mxu0 %v8148
          %8309 = vmatpush.msra.mxu0 %v8146
          %8310 = vmatpush.msra.mxu0 %v8144
          %8311 = vmatpush.msra.mxu0 %v8142
          %8312 = vmatpush.msra.mxu0 %v8140
          %8313 = vmatpush.msra.mxu0 %v8138
          %8314 = vmatpush.msra.mxu0 %v8136
          %8315 = vmatpush.msra.mxu0 %v8134
          %8316 = vmatpush.msra.mxu0 %v8132
          %8317 = vmatpush.msra.mxu0 %v8130
          %8318 = vmatpush.msra.mxu0 %v8128
          %8319 = vmatpush.msra.mxu0 %v8126
          %8320 = vmatmul.f32.gmra.mxu0 %v7901
          %v8321 = vpop.f32.mrf.mxu0
          %v8322 = vadd.f32 %v8302, %v8321
          %8323 = vdwg.mxu0
          %8324 = vmatpush.msra.mxu0 %v7933
          %8325 = vmatpush.msra.mxu0 %v7931
          %8326 = vmatpush.msra.mxu0 %v7929
          %8327 = vmatpush.msra.mxu0 %v7927
          %8328 = vmatpush.msra.mxu0 %v7925
          %8329 = vmatpush.msra.mxu0 %v7923
          %8330 = vmatpush.msra.mxu0 %v7921
          %8331 = vmatpush.msra.mxu0 %v7919
          %8332 = vmatpush.msra.mxu0 %v7917
          %8333 = vmatpush.msra.mxu0 %v7915
          %8334 = vmatpush.msra.mxu0 %v7913
          %8335 = vmatpush.msra.mxu0 %v7911
          %8336 = vmatpush.msra.mxu0 %v7909
          %8337 = vmatpush.msra.mxu0 %v7907
          %8338 = vmatpush.msra.mxu0 %v7905
          %8339 = vmatpush.msra.mxu0 %v7903
          %8340 = vmatmul.f32.gmra.mxu0 %v7894
          %v8341 = vpop.f32.mrf.mxu0
          %v8342 = vadd.f32 %v8161, %v8341
          %8343 = vdwg.mxu0
          %8344 = vmatpush.msra.mxu0 %v7965
          %8345 = vmatpush.msra.mxu0 %v7963
          %8346 = vmatpush.msra.mxu0 %v7961
          %8347 = vmatpush.msra.mxu0 %v7959
          %8348 = vmatpush.msra.mxu0 %v7957
          %8349 = vmatpush.msra.mxu0 %v7955
          %8350 = vmatpush.msra.mxu0 %v7953
          %8351 = vmatpush.msra.mxu0 %v7951
          %8352 = vmatpush.msra.mxu0 %v7949
          %8353 = vmatpush.msra.mxu0 %v7947
          %8354 = vmatpush.msra.mxu0 %v7945
          %8355 = vmatpush.msra.mxu0 %v7943
          %8356 = vmatpush.msra.mxu0 %v7941
          %8357 = vmatpush.msra.mxu0 %v7939
          %8358 = vmatpush.msra.mxu0 %v7937
          %8359 = vmatpush.msra.mxu0 %v7935
          %8360 = vmatmul.f32.gmra.mxu0 %v7895
          %v8361 = vpop.f32.mrf.mxu0
          %v8362 = vadd.f32 %v8342, %v8361
          %8363 = vdwg.mxu0
          %8364 = vmatpush.msra.mxu0 %v7997
          %8365 = vmatpush.msra.mxu0 %v7995
          %8366 = vmatpush.msra.mxu0 %v7993
          %8367 = vmatpush.msra.mxu0 %v7991
          %8368 = vmatpush.msra.mxu0 %v7989
          %8369 = vmatpush.msra.mxu0 %v7987
          %8370 = vmatpush.msra.mxu0 %v7985
          %8371 = vmatpush.msra.mxu0 %v7983
          %8372 = vmatpush.msra.mxu0 %v7981
          %8373 = vmatpush.msra.mxu0 %v7979
          %8374 = vmatpush.msra.mxu0 %v7977
          %8375 = vmatpush.msra.mxu0 %v7975
          %8376 = vmatpush.msra.mxu0 %v7973
          %8377 = vmatpush.msra.mxu0 %v7971
          %8378 = vmatpush.msra.mxu0 %v7969
          %8379 = vmatpush.msra.mxu0 %v7967
          %8380 = vmatmul.f32.gmra.mxu0 %v7896
          %v8381 = vpop.f32.mrf.mxu0
          %v8382 = vadd.f32 %v8362, %v8381
          %8383 = vdwg.mxu0
          %8384 = vmatpush.msra.mxu0 %v8029
          %8385 = vmatpush.msra.mxu0 %v8027
          %8386 = vmatpush.msra.mxu0 %v8025
          %8387 = vmatpush.msra.mxu0 %v8023
          %8388 = vmatpush.msra.mxu0 %v8021
          %8389 = vmatpush.msra.mxu0 %v8019
          %8390 = vmatpush.msra.mxu0 %v8017
          %8391 = vmatpush.msra.mxu0 %v8015
          %8392 = vmatpush.msra.mxu0 %v8013
          %8393 = vmatpush.msra.mxu0 %v8011
          %8394 = vmatpush.msra.mxu0 %v8009
          %8395 = vmatpush.msra.mxu0 %v8007
          %8396 = vmatpush.msra.mxu0 %v8005
          %8397 = vmatpush.msra.mxu0 %v8003
          %8398 = vmatpush.msra.mxu0 %v8001
          %8399 = vmatpush.msra.mxu0 %v7999
          %8400 = vmatmul.f32.gmra.mxu0 %v7897
          %v8401 = vpop.f32.mrf.mxu0
          %v8402 = vadd.f32 %v8382, %v8401
          %8403 = vdwg.mxu0
          %8404 = vmatpush.msra.mxu0 %v8061
          %8405 = vmatpush.msra.mxu0 %v8059
          %8406 = vmatpush.msra.mxu0 %v8057
          %8407 = vmatpush.msra.mxu0 %v8055
          %8408 = vmatpush.msra.mxu0 %v8053
          %8409 = vmatpush.msra.mxu0 %v8051
          %8410 = vmatpush.msra.mxu0 %v8049
          %8411 = vmatpush.msra.mxu0 %v8047
          %8412 = vmatpush.msra.mxu0 %v8045
          %8413 = vmatpush.msra.mxu0 %v8043
          %8414 = vmatpush.msra.mxu0 %v8041
          %8415 = vmatpush.msra.mxu0 %v8039
          %8416 = vmatpush.msra.mxu0 %v8037
          %8417 = vmatpush.msra.mxu0 %v8035
          %8418 = vmatpush.msra.mxu0 %v8033
          %8419 = vmatpush.msra.mxu0 %v8031
          %8420 = vmatmul.f32.gmra.mxu0 %v7898
          %v8421 = vpop.f32.mrf.mxu0
          %v8422 = vadd.f32 %v8402, %v8421
          %8423 = vdwg.mxu0
          %8424 = vmatpush.msra.mxu0 %v8093
          %8425 = vmatpush.msra.mxu0 %v8091
          %8426 = vmatpush.msra.mxu0 %v8089
          %8427 = vmatpush.msra.mxu0 %v8087
          %8428 = vmatpush.msra.mxu0 %v8085
          %8429 = vmatpush.msra.mxu0 %v8083
          %8430 = vmatpush.msra.mxu0 %v8081
          %8431 = vmatpush.msra.mxu0 %v8079
          %8432 = vmatpush.msra.mxu0 %v8077
          %8433 = vmatpush.msra.mxu0 %v8075
          %8434 = vmatpush.msra.mxu0 %v8073
          %8435 = vmatpush.msra.mxu0 %v8071
          %8436 = vmatpush.msra.mxu0 %v8069
          %8437 = vmatpush.msra.mxu0 %v8067
          %8438 = vmatpush.msra.mxu0 %v8065
          %8439 = vmatpush.msra.mxu0 %v8063
          %8440 = vmatmul.f32.gmra.mxu0 %v7899
          %v8441 = vpop.f32.mrf.mxu0
          %v8442 = vadd.f32 %v8422, %v8441
          %8443 = vdwg.mxu0
          %8444 = vmatpush.msra.mxu0 %v8125
          %8445 = vmatpush.msra.mxu0 %v8123
          %8446 = vmatpush.msra.mxu0 %v8121
          %8447 = vmatpush.msra.mxu0 %v8119
          %8448 = vmatpush.msra.mxu0 %v8117
          %8449 = vmatpush.msra.mxu0 %v8115
          %8450 = vmatpush.msra.mxu0 %v8113
          %8451 = vmatpush.msra.mxu0 %v8111
          %8452 = vmatpush.msra.mxu0 %v8109
          %8453 = vmatpush.msra.mxu0 %v8107
          %8454 = vmatpush.msra.mxu0 %v8105
          %8455 = vmatpush.msra.mxu0 %v8103
          %8456 = vmatpush.msra.mxu0 %v8101
          %8457 = vmatpush.msra.mxu0 %v8099
          %8458 = vmatpush.msra.mxu0 %v8097
          %8459 = vmatpush.msra.mxu0 %v8095
          %8460 = vmatmul.f32.gmra.mxu0 %v7900
          %v8461 = vpop.f32.mrf.mxu0
          %v8462 = vadd.f32 %v8442, %v8461
          %8463 = vdwg.mxu0
          %8464 = vmatpush.msra.mxu0 %v8157
          %8465 = vmatpush.msra.mxu0 %v8155
          %8466 = vmatpush.msra.mxu0 %v8153
          %8467 = vmatpush.msra.mxu0 %v8151
          %8468 = vmatpush.msra.mxu0 %v8149
          %8469 = vmatpush.msra.mxu0 %v8147
          %8470 = vmatpush.msra.mxu0 %v8145
          %8471 = vmatpush.msra.mxu0 %v8143
          %8472 = vmatpush.msra.mxu0 %v8141
          %8473 = vmatpush.msra.mxu0 %v8139
          %8474 = vmatpush.msra.mxu0 %v8137
          %8475 = vmatpush.msra.mxu0 %v8135
          %8476 = vmatpush.msra.mxu0 %v8133
          %8477 = vmatpush.msra.mxu0 %v8131
          %8478 = vmatpush.msra.mxu0 %v8129
          %8479 = vmatpush.msra.mxu0 %v8127
          %8480 = vmatmul.f32.gmra.mxu0 %v7901
          %v8481 = vpop.f32.mrf.mxu0
          %v8482 = vadd.f32 %v8462, %v8481
          %8483 = vdwg.mxu0
          %v8484 = vmax.f32 %v8322, 0.0
          %v8485 = vmax.f32 %v8482, 0.0
          %v8486 = vld [vmem:[%s5] sm:$0xff]
          %v8487 = vld [vmem:[%s5 + $0x8] sm:$0xff]
          %v8488 = vld [vmem:[%s5 + $0x10] sm:$0xff]
          %v8489 = vld [vmem:[%s5 + $0x18] sm:$0xff]
          %v8490 = vld [vmem:[%s5 + $0x20] sm:$0xff]
          %v8491 = vld [vmem:[%s5 + $0x28] sm:$0xff]
          %v8492 = vld [vmem:[%s5 + $0x30] sm:$0xff]
          %v8493 = vld [vmem:[%s5 + $0x38] sm:$0xff]
          %v8494 = vld [vmem:[%s5 + $0x40] sm:$0xff]
          %v8495 = vld [vmem:[%s5 + $0x48] sm:$0xff]
          %v8496 = vld [vmem:[%s5 + $0x50] sm:$0xff]
          %v8497 = vld [vmem:[%s5 + $0x58] sm:$0xff]
          %v8498 = vld [vmem:[%s5 + $0x60] sm:$0xff]
          %v8499 = vld [vmem:[%s5 + $0x68] sm:$0xff]
          %v8500 = vld [vmem:[%s5 + $0x70] sm:$0xff]
          %v8501 = vld [vmem:[%s5 + $0x78] sm:$0xff]
          %v8502 = vld [vmem:[%s5 + $0x80] sm:$0xff]
          %v8503 = vld [vmem:[%s5 + $0x88] sm:$0xff]
          %v8504 = vld [vmem:[%s5 + $0x90] sm:$0xff]
          %v8505 = vld [vmem:[%s5 + $0x98] sm:$0xff]
          %v8506 = vld [vmem:[%s5 + $0xa0] sm:$0xff]
          %v8507 = vld [vmem:[%s5 + $0xa8] sm:$0xff]
          %v8508 = vld [vmem:[%s5 + $0xb0] sm:$0xff]
          %v8509 = vld [vmem:[%s5 + $0xb8] sm:$0xff]
          %v8510 = vld [vmem:[%s5 + $0xc0] sm:$0xff]
          %v8511 = vld [vmem:[%s5 + $0xc8] sm:$0xff]
          %v8512 = vld [vmem:[%s5 + $0xd0] sm:$0xff]
          %v8513 = vld [vmem:[%s5 + $0xd8] sm:$0xff]
          %v8514 = vld [vmem:[%s5 + $0xe0] sm:$0xff]
          %v8515 = vld [vmem:[%s5 + $0xe8] sm:$0xff]
          %v8516 = vld [vmem:[%s5 + $0xf0] sm:$0xff]
          %v8517 = vld [vmem:[%s5 + $0xf8] sm:$0xff]
          %v8518 = vld [vmem:[#allocation10] sm:$0x1]
          %v8520 = vperm.slane %v8518, 0
          %8522 = vmatpush.msra.mxu0 %v8501
          %8523 = vmatpush.msra.mxu0 %v8500
          %8524 = vmatpush.msra.mxu0 %v8499
          %8525 = vmatpush.msra.mxu0 %v8498
          %8526 = vmatpush.msra.mxu0 %v8497
          %8527 = vmatpush.msra.mxu0 %v8496
          %8528 = vmatpush.msra.mxu0 %v8495
          %8529 = vmatpush.msra.mxu0 %v8494
          %8530 = vmatpush.msra.mxu0 %v8493
          %8531 = vmatpush.msra.mxu0 %v8492
          %8532 = vmatpush.msra.mxu0 %v8491
          %8533 = vmatpush.msra.mxu0 %v8490
          %8534 = vmatpush.msra.mxu0 %v8489
          %8535 = vmatpush.msra.mxu0 %v8488
          %8536 = vmatpush.msra.mxu0 %v8487
          %8537 = vmatpush.msra.mxu0 %v8486
          %8538 = vmatmul.f32.gmra.mxu0 %v8484
          %v8539 = vpop.f32.mrf.mxu0
          %v8540 = vadd.f32 %v8520, %v8539
          %8541 = vdwg.mxu0
          %8542 = vmatpush.msra.mxu0 %v8517
          %8543 = vmatpush.msra.mxu0 %v8516
          %8544 = vmatpush.msra.mxu0 %v8515
          %8545 = vmatpush.msra.mxu0 %v8514
          %8546 = vmatpush.msra.mxu0 %v8513
          %8547 = vmatpush.msra.mxu0 %v8512
          %8548 = vmatpush.msra.mxu0 %v8511
          %8549 = vmatpush.msra.mxu0 %v8510
          %8550 = vmatpush.msra.mxu0 %v8509
          %8551 = vmatpush.msra.mxu0 %v8508
          %8552 = vmatpush.msra.mxu0 %v8507
          %8553 = vmatpush.msra.mxu0 %v8506
          %8554 = vmatpush.msra.mxu0 %v8505
          %8555 = vmatpush.msra.mxu0 %v8504
          %8556 = vmatpush.msra.mxu0 %v8503
          %8557 = vmatpush.msra.mxu0 %v8502
          %8558 = vmatmul.f32.gmra.mxu0 %v8485
          %v8559 = vpop.f32.mrf.mxu0
          %v8560 = vadd.f32 %v8540, %v8559
          %8561 = vdwg.mxu0
          %v8562 = vmax.f32 %v8560, 0.0
          %v8563 = vld [vmem:[%s7] sm:$0xff]
          %v8564 = vld [vmem:[%s7 + $0x8] sm:$0xff]
          %v8565 = vld [vmem:[%s7 + $0x10] sm:$0xff]
          %v8566 = vld [vmem:[%s7 + $0x18] sm:$0xff]
          %v8567 = vld [vmem:[#allocation11] sm:$0x1]
          %v8569 = vperm.slane %v8567, 0
          %vm8571 = vcmask 261120
          %v8573 = vsel %vm8571, %v8562, 0
          %8575 = vmatpush.msra.mxu0 0.0
          %8576 = vmatpush.msra.mxu0 0.0
          %8577 = vmatpush.msra.mxu0 0.0
          %8578 = vmatpush.msra.mxu0 0.0
          %8579 = vmatpush.msra.mxu0 0.0
          %8580 = vmatpush.msra.mxu0 0.0
          %8581 = vmatpush.msra.mxu0 0.0
          %8582 = vmatpush.msra.mxu0 0.0
          %8583 = vmatpush.msra.mxu0 0.0
          %8584 = vmatpush.msra.mxu0 0.0
          %8585 = vmatpush.msra.mxu0 0.0
          %8586 = vmatpush.msra.mxu0 0.0
          %8587 = vmatpush.msra.mxu0 %v8566
          %8588 = vmatpush.msra.mxu0 %v8565
          %8589 = vmatpush.msra.mxu0 %v8564
          %8590 = vmatpush.msra.mxu0 %v8563
          %8591 = vmatmul.f32.gmra.mxu0 %v8573
          %v8592 = vpop.f32.mrf.mxu0
          %v8593 = vadd.f32 %v8569, %v8592
          %8594 = vdwg.mxu0
          %vm8595 = vcmask 15360
          %v8596 = vsel %vm8595, %v8593, -inf
          %8597 = vmax.xlane.f32.xlu0 %v8596
          %v8598 = vpop.xlane.xlu0 %8597
          %v8599 = vsub.f32 %v8593, %v8598
          %v8600 = vmul.f32 %v8599, 1.442695
          %v8601 = vpow.pop %v8600
          %v8602 = vsel %vm8595, %v8601, 0.0
          %8603 = vadd.xlane.f32.xlu0 %v8602
          %v8604 = vpop.xlane.xlu0 %8603
          %v8605 = vrcp.pop %v8604
          %v8606 = vmul.f32 %v8604, %v8605
          %v8607 = vsub.f32 1.0, %v8606
          %v8608 = vmul.f32 %v8605, %v8607
          %v8609 = vadd.f32 %v8605, %v8608
          %vm8610 = vweird.f32 %v8604
          %vm8611 = vweird.f32 %v8605
          %vm8612 = vmor %vm8610, %vm8611
          %v8613 = vsel %vm8612, %v8605, %v8609
          %v8614 = vand.u32 2147483647, %v8604
          %vm8615 = vcmp.eq.f32.partialorder %v8614, 8.507059e+37
          %v8616 = vand.u32 %v8604, 2147483648
          %v8617 = vor.u32 1.1754944e-38, %v8616
          %v8618 = vsel %vm8615, %v8617, %v8613
          %v8619 = vmul.f32 %v8601, %v8618
          %8620 = vst.msk [vmem:[%s9] sm:$0xff] %vm8595, %v8619
        $region88: #{dnn_forward.1} parent=55 // pred_fallthru
          _
        // Predicated region
        $region89: #{dnn_forward.1} parent=55 // pred_check
          %p8621 = pneg %p238
        $region90: #{dnn_forward.1} parent=55 // pred_check_branch
          %8623 = sbr.rel (%p8621) target = $region92
        $region91: #{dnn_forward.1} parent=55 // pred_region
          _
        $region92: #{dnn_forward.1} parent=55 // pred_fallthru
          _
        // Predicated region
        $region93: #{dnn_forward.1} parent=55 // pred_check
          %p8624 = pneg %p238
        $region94: #{dnn_forward.1} parent=55 // pred_check_branch
          %8626 = sbr.rel (%p8624) target = $region96
        $region95: #{dnn_forward.1} parent=55 // pred_region
          _
        $region96: #{dnn_forward.1} parent=55 // pred_fallthru
          _
      $region56: #{dnn_forward.1} parent=5 // pred_fallthru
        _
      %p8627 = scmp.le.s32.totalorder 2, %s21
      // Predicated region
      $region97: #{dnn_forward.1} parent=5 // pred_check
        %p8628 = pneg %p8627
      $region98: #{dnn_forward.1} parent=5 // pred_check_branch
        %8630 = sbr.rel (%p8628) target = $region100
      $region99: #{dnn_forward.1} parent=5 // pred_region
        %s8631 = ssub.s32 %s21, 2
      $region100: #{dnn_forward.1} parent=5 // pred_fallthru
        _
    $region6: #{dnn_forward.1} parent=1 // loop_footer
      %s25 = sadd.s32 1, %s21
    $region7: #{dnn_forward.1} parent=1 // loop_footer_branch
      %20 = sbr.rel target = $region3
    $region8: #{dnn_forward.1} parent=1 // loop_exit
      _
    %8632 = vsyncpa [#allocation4], 1
    %s8633 = scalar_lea.sflag [#allocation4], 1
    %8634 = vsyncpa %s8633, 1
    %8635 = vsyncpa [#allocation6], 1
    %8636 = vsyncpa [#allocation9], 1
    %8637 = vsyncpa [#allocation12], 1

</llo_original>
